<compile_context>
chip_gen: v7x
topology: tpu7x:2x2x1
jax: 0.10.0
libtpu: 0.0.40
codegen_flags: <defaults>
</compile_context>

<pallas_src>
import functools

import jax
import jax.numpy as jnp
from jax.experimental import pallas as pl
from jax.experimental.pallas import tpu as pltpu

K1, C1 = 24, 32
K2, C2 = 16, 64
K3, C3 = 8, 96
C3P = 128          # conv3 out-channels padded to a full lane tile
NPH = 8            # phase-fold factor (= f32 sublane tile height)


def _round_up(x, m):
    return (x + m - 1) // m * m


def _har_kernel(xs_ref, w1_ref, b1_ref, w2_ref, b2_ref, w3_ref, b3_ref, out_ref,
                h1s_ref, u3_ref, *, c_in, L1p, L1s, L2p, L3p, L3):
    """One batch tile of Bt samples (inference forward).

    xs_ref : (Bt, Lsp, NPH*c_in) bf16   8-phase pre-shifted input
    w1_ref : (K1//NPH, NPH*c_in, C1) bf16     b1_ref: (1, C1)  f32
    w2_ref : (K2//NPH, NPH*C1, C2)   bf16     b2_ref: (1, C2)  f32
    w3_ref : (NPH*C2, C3P)           bf16     b3_ref: (1, C3P) f32
    out_ref: (Bt, C3P) f32
    h1s_ref: (Bt, L1s, NPH*C1) bf16 scratch   (conv2 phase-folded im2col)
    u3_ref : (Bt, L3p, NPH*C2) bf16 scratch   (conv3 im2col; K3 == NPH)
    """
    Bt = out_ref.shape[0]

    # ---- Conv1d(c_in -> 32, k=24) + ReLU ---------------------------------
    # Accumulated matmuls over 8-aligned sublane slices of the pre-shifted
    # input (each slice is a free view; K = 8*c_in per matmul).
    h1 = jnp.zeros((Bt * L1p, C1), jnp.float32)
    for q in range(K1 // NPH):
        lhs = xs_ref[:, NPH * q:NPH * q + L1p, :].reshape(Bt * L1p, NPH * c_in)
        h1 = h1 + jnp.dot(lhs, w1_ref[q], preferred_element_type=jnp.float32)
    h1 = jnp.maximum(h1 + b1_ref[...], 0.0)
    h1 = h1.reshape(Bt, L1p, C1).astype(jnp.bfloat16)
    # Dropout(0.1) is identity at inference time.

    # ---- phase-fold into VMEM scratch: h1s[b,t,r*C1+c] = h1[b,t+r,c] ------
    for r in range(NPH):
        h1s_ref[:, :, r * C1:(r + 1) * C1] = h1[:, r:r + L1s, :]

    # ---- Conv1d(32 -> 64, k=16) + ReLU : 2 accumulated K=256 matmuls ------
    h2 = jnp.zeros((Bt * L2p, C2), jnp.float32)
    for q in range(K2 // NPH):
        lhs = h1s_ref[:, NPH * q:NPH * q + L2p, :].reshape(Bt * L2p, NPH * C1)
        h2 = h2 + jnp.dot(lhs, w2_ref[q], preferred_element_type=jnp.float32)
    h2 = jnp.maximum(h2 + b2_ref[...], 0.0)
    h2 = h2.reshape(Bt, L2p, C2).astype(jnp.bfloat16)

    # ---- phase-fold h2: u3 is the full conv3 im2col (K3 == NPH == 8) ------
    for r in range(NPH):
        u3_ref[:, :, r * C2:(r + 1) * C2] = h2[:, r:r + L3p, :]

    # ---- Conv1d(64 -> 96(pad 128), k=8) + ReLU : one K=512, N=128 matmul --
    h3 = jnp.dot(u3_ref[...].reshape(Bt * L3p, NPH * C2), w3_ref[...],
                 preferred_element_type=jnp.float32)
    h3 = jnp.maximum(h3 + b3_ref[...], 0.0).reshape(Bt, L3p, C3P)

    # ---- AdaptiveMaxPool1d(1): full-tile max, padded rows masked to 0 -----
    t_idx = jax.lax.broadcasted_iota(jnp.int32, (L3p, C3P), 0)
    h3 = jnp.where(t_idx < L3, h3, 0.0)        # post-ReLU values are >= 0
    out_ref[...] = jnp.max(h3, axis=1)          # (Bt, 128), lane dense


def single_modal_layers_forward(x_ncw, params, *, batch_tile=None):
    """x_ncw: (B, c_in, L) float32 in PyTorch NCW layout.  Returns (B, 96) f32."""
    w1, b1, w2, b2, w3, b3 = params
    B, c_in, L = x_ncw.shape
    assert w1.shape == (C1, c_in, K1)
    assert w2.shape == (C2, C1, K2) and w3.shape == (C3, C2, K3)
    assert K1 % NPH == 0 and K2 % NPH == 0 and K3 == NPH

    L1 = L - K1 + 1
    L2 = L1 - K2 + 1
    L3 = L2 - K3 + 1
    assert L3 >= 1, "sequence too short for the three valid convolutions"

    # Padded time extents, chosen inside out (multiples of 8) so every in-kernel
    # slice stays in bounds and valid output rows only ever read real data.
    L3p = _round_up(L3, NPH)          # conv3 rows computed (extra rows masked)
    L2p = L3p + NPH                   # conv2 rows computed (>= L3p + K3 - 1)
    L1s = L2p + NPH                   # conv2 phase-fold rows
    L1p = L1s + NPH                   # conv1 rows computed (>= L1s + NPH - 1)
    Lsp = L1p + 2 * NPH               # pre-shifted input rows (>= L1p + 16)

    # Batch tiling: large tiles amortize the ~0.35us/step pipeline overhead,
    # but keep >= 2 grid steps when possible (v7x megacore) and cap the default
    # so the bf16 scratches stay well inside VMEM on every generation.
    if batch_tile is None:
        n_steps = max(2, -(-B // 128)) if B > NPH else 1
        batch_tile = -(-B // n_steps)
    Bt = max(NPH, _round_up(batch_tile, NPH))
    B_pad = _round_up(B, Bt)

    # ---- 8-phase pre-shifted input xs[b,t,r*c_in+c] = x[b,t+r,c] (bf16) ----
    x_blc = jnp.transpose(x_ncw, (0, 2, 1)).astype(jnp.float32)        # (B, L, c)
    x_blc = jnp.pad(x_blc, ((0, 0), (0, Lsp + NPH - 1 - L), (0, 0)))
    xs = jnp.concatenate([x_blc[:, r:r + Lsp, :] for r in range(NPH)], axis=-1)
    xs = jnp.pad(xs, ((0, B_pad - B), (0, 0), (0, 0))).astype(jnp.bfloat16)

    # ---- weights: PyTorch (C_out, C_in, K) -> per-phase-group matmul form --
    w1q = jnp.transpose(w1, (2, 1, 0)).reshape(K1 // NPH, NPH * c_in, C1)
    w2q = jnp.transpose(w2, (2, 1, 0)).reshape(K2 // NPH, NPH * C1, C2)
    w3k = jnp.transpose(w3, (2, 1, 0)).reshape(NPH * C2, C3)
    w3k = jnp.pad(w3k, ((0, 0), (0, C3P - C3)))
    w1q = w1q.astype(jnp.bfloat16)
    w2q = w2q.astype(jnp.bfloat16)
    w3k = w3k.astype(jnp.bfloat16)
    b1r = b1.reshape(1, C1).astype(jnp.float32)
    b2r = b2.reshape(1, C2).astype(jnp.float32)
    b3r = jnp.pad(b3.reshape(1, C3).astype(jnp.float32), ((0, 0), (0, C3P - C3)))

    kernel = functools.partial(_har_kernel, c_in=c_in,
                               L1p=L1p, L1s=L1s, L2p=L2p, L3p=L3p, L3=L3)

    # Rough VMEM budget: own scratches + double-buffered in/out blocks and
    # weights + f32 temporaries, with 50% headroom; used to raise the scoped
    # VMEM limit explicitly (floor 32 MiB, v5e defaults to 16 MiB).
    scratch_bytes = Bt * (L1s * NPH * C1 + L3p * NPH * C2) * 2
    block_bytes = 2 * (Bt * Lsp * NPH * c_in * 2 + Bt * C3P * 4
                       + (w1q.size + w2q.size + w3k.size) * 2
                       + (b1r.size + b2r.size + b3r.size) * 4)
    temp_bytes = Bt * (2 * L1p * C1 + 2 * L2p * C2 + 2 * L3p * C3P) * 4
    vmem_limit = int(min(max(1.5 * (scratch_bytes + block_bytes + temp_bytes),
                             32 * 1024 * 1024), 96 * 1024 * 1024))

    out = pl.pallas_call(
        kernel,
        out_shape=jax.ShapeDtypeStruct((B_pad, C3P), jnp.float32),
        grid_spec=pltpu.PrefetchScalarGridSpec(
            num_scalar_prefetch=0,
            grid=(B_pad // Bt,),
            in_specs=[
                pl.BlockSpec((Bt, Lsp, NPH * c_in), lambda b: (b, 0, 0)),
                pl.BlockSpec((K1 // NPH, NPH * c_in, C1), lambda b: (0, 0, 0)),
                pl.BlockSpec((1, C1), lambda b: (0, 0)),
                pl.BlockSpec((K2 // NPH, NPH * C1, C2), lambda b: (0, 0, 0)),
                pl.BlockSpec((1, C2), lambda b: (0, 0)),
                pl.BlockSpec((NPH * C2, C3P), lambda b: (0, 0)),
                pl.BlockSpec((1, C3P), lambda b: (0, 0)),
            ],
            out_specs=pl.BlockSpec((Bt, C3P), lambda b: (b, 0)),
            scratch_shapes=[
                pltpu.VMEM((Bt, L1s, NPH * C1), jnp.bfloat16),
                pltpu.VMEM((Bt, L3p, NPH * C2), jnp.bfloat16),
            ]),
        compiler_params=pltpu.CompilerParams(
            dimension_semantics=("parallel",),
            vmem_limit_bytes=vmem_limit),
    )(xs, w1q, b1r, w2q, b2r, w3k, b3r)

    return out[:B, :C3]


def _init_params(key, c_in=3):
    """Deterministic PyTorch-Conv1d-style init (uniform +-1/sqrt(fan_in*K))."""
    ks = jax.random.split(key, 6)

    def conv_init(kw, kb, c_out, cin, ksz):
        bound = 1.0 / jnp.sqrt(cin * ksz)
        w = jax.random.uniform(kw, (c_out, cin, ksz), jnp.float32, -bound, bound)
        b = jax.random.uniform(kb, (c_out,), jnp.float32, -bound, bound)
        return w, b

    w1, b1 = conv_init(ks[0], ks[1], C1, c_in, K1)
    w2, b2 = conv_init(ks[2], ks[3], C2, C1, K2)
    w3, b3 = conv_init(ks[4], ks[5], C3, C2, K3)
    return (w1, b1, w2, b2, w3, b3)


def _reference_forward(x_ncw, params):
    """Pure-JAX reference (valid conv + bias + ReLU + global max)."""
    w1, b1, w2, b2, w3, b3 = params

    def conv_relu(h, w, b):  # h: (B, L, Cin); w: (Cout, Cin, K)
        K = w.shape[2]
        Lout = h.shape[1] - K + 1
        wk = jnp.transpose(w, (2, 1, 0))                   # (K, Cin, Cout)
        acc = jnp.zeros((h.shape[0], Lout, w.shape[0]), jnp.float32) + b
        for k in range(K):
            acc = acc + jnp.einsum("blc,cd->bld", h[:, k:k + Lout, :], wk[k])
        return jnp.maximum(acc, 0.0)

    h = jnp.transpose(x_ncw, (0, 2, 1)).astype(jnp.float32)
    h = conv_relu(h, w1, b1)
    h = conv_relu(h, w2, b2)
    h = conv_relu(h, w3, b3)
    return jnp.max(h, axis=1)                              # (B, 96)


if __name__ == "__main__":
    key = jax.random.PRNGKey(0)
    k_params, k_x1, k_x2 = jax.random.split(key, 3)
    params = _init_params(k_params, c_in=3)

    # L >= 46 required by the three valid convolutions.
    B, L = 4, 64
    x = jax.random.normal(k_x1, (B, 3, L), dtype=jnp.float32)
    out = jax.block_until_ready(single_modal_layers_forward(x, params))
    ref = jax.block_until_ready(_reference_forward(x, params))
    assert out.shape == (B, C3)
    assert jnp.allclose(out, ref, atol=3e-2, rtol=3e-2), (
        "mismatch vs JAX reference")

    # Exercise the multi-step grid + batch/time padding path
    # (B not a multiple of the batch tile).
    B2 = 10
    x2 = jax.random.normal(k_x2, (B2, 3, L), dtype=jnp.float32)
    out2 = jax.block_until_ready(
        single_modal_layers_forward(x2, params, batch_tile=8))
    ref2 = jax.block_until_ready(_reference_forward(x2, params))
    assert out2.shape == (B2, C3)
    assert jnp.allclose(out2, ref2, atol=3e-2, rtol=3e-2), "mismatch (tiled batch)"

    print("KERNEL_OK")
</pallas_src>

<mosaic_0001>
module attributes {stable_mosaic.version = 11 : i64} {
  func.func @_har_kernel(%arg0: i32, %arg1: memref<8x64x24xbf16, #tpu.memory_space<vmem>>, %arg2: memref<3x24x32xbf16, #tpu.memory_space<vmem>>, %arg3: memref<1x32xf32, #tpu.memory_space<vmem>>, %arg4: memref<2x256x64xbf16, #tpu.memory_space<vmem>>, %arg5: memref<1x64xf32, #tpu.memory_space<vmem>>, %arg6: memref<512x128xbf16, #tpu.memory_space<vmem>>, %arg7: memref<1x128xf32, #tpu.memory_space<vmem>>, %arg8: memref<8x128xf32, #tpu.memory_space<vmem>>, %arg9: memref<8x40x256xbf16, #tpu.memory_space<vmem>>, %arg10: memref<8x24x512xbf16, #tpu.memory_space<vmem>>) attributes {dimension_semantics = [#tpu.dimension_semantics<parallel>], iteration_bounds = array<i64: 1>, scalar_prefetch = 0 : i64, scratch_operands = 2 : i64, tpu.core_type = #tpu.core_type<tc>, window_params = [{transform_indices = @transform_0, window_bounds = array<i64: 8, 64, 24>}, {pipeline_mode = #tpu.pipeline_mode<synchronous>, transform_indices = @transform_1, window_bounds = array<i64: 3, 24, 32>}, {pipeline_mode = #tpu.pipeline_mode<synchronous>, transform_indices = @transform_2, window_bounds = array<i64: 1, 32>}, {pipeline_mode = #tpu.pipeline_mode<synchronous>, transform_indices = @transform_3, window_bounds = array<i64: 2, 256, 64>}, {pipeline_mode = #tpu.pipeline_mode<synchronous>, transform_indices = @transform_4, window_bounds = array<i64: 1, 64>}, {pipeline_mode = #tpu.pipeline_mode<synchronous>, transform_indices = @transform_5, window_bounds = array<i64: 512, 128>}, {pipeline_mode = #tpu.pipeline_mode<synchronous>, transform_indices = @transform_6, window_bounds = array<i64: 1, 128>}, {transform_indices = @transform_7, window_bounds = array<i64: 8, 128>}]} {
    %cst = arith.constant 0.000000e+00 : f32
    %0 = vector.broadcast %cst : f32 to vector<384x32xf32>
    %c0 = arith.constant 0 : index
    %c0_0 = arith.constant 0 : index
    %c0_1 = arith.constant 0 : index
    %1 = vector.load %arg1[%c0, %c0_0, %c0_1] : memref<8x64x24xbf16, #tpu.memory_space<vmem>>, vector<8x48x24xbf16>
    %2 = vector.shape_cast %1 : vector<8x48x24xbf16> to vector<384x24xbf16>
    %c0_2 = arith.constant 0 : index
    %c0_3 = arith.constant 0 : index
    %c0_4 = arith.constant 0 : index
    %3 = vector.load %arg2[%c0_2, %c0_3, %c0_4] : memref<3x24x32xbf16, #tpu.memory_space<vmem>>, vector<1x24x32xbf16>
    %4 = vector.shape_cast %3 : vector<1x24x32xbf16> to vector<24x32xbf16>
    %cst_5 = arith.constant dense<0.000000e+00> : vector<384x32xf32>
    %5 = tpu.matmul %2, %4, %cst_5 {dimension_numbers = #tpu.dot_dimension_numbers<[1], [0], [0], [1], [0, 0, 1, 1], [], []>} : vector<384x24xbf16>, vector<24x32xbf16>, vector<384x32xf32> -> vector<384x32xf32>
    %6 = arith.addf %0, %5 : vector<384x32xf32>
    %c0_6 = arith.constant 0 : index
    %c8 = arith.constant 8 : index
    %c0_7 = arith.constant 0 : index
    %7 = vector.load %arg1[%c0_6, %c8, %c0_7] : memref<8x64x24xbf16, #tpu.memory_space<vmem>>, vector<8x48x24xbf16>
    %8 = vector.shape_cast %7 : vector<8x48x24xbf16> to vector<384x24xbf16>
    %c1 = arith.constant 1 : index
    %c0_8 = arith.constant 0 : index
    %c0_9 = arith.constant 0 : index
    %9 = vector.load %arg2[%c1, %c0_8, %c0_9] : memref<3x24x32xbf16, #tpu.memory_space<vmem>>, vector<1x24x32xbf16>
    %10 = vector.shape_cast %9 : vector<1x24x32xbf16> to vector<24x32xbf16>
    %cst_10 = arith.constant dense<0.000000e+00> : vector<384x32xf32>
    %11 = tpu.matmul %8, %10, %cst_10 {dimension_numbers = #tpu.dot_dimension_numbers<[1], [0], [0], [1], [0, 0, 1, 1], [], []>} : vector<384x24xbf16>, vector<24x32xbf16>, vector<384x32xf32> -> vector<384x32xf32>
    %12 = arith.addf %6, %11 : vector<384x32xf32>
    %c0_11 = arith.constant 0 : index
    %c16 = arith.constant 16 : index
    %c0_12 = arith.constant 0 : index
    %13 = vector.load %arg1[%c0_11, %c16, %c0_12] : memref<8x64x24xbf16, #tpu.memory_space<vmem>>, vector<8x48x24xbf16>
    %14 = vector.shape_cast %13 : vector<8x48x24xbf16> to vector<384x24xbf16>
    %c2 = arith.constant 2 : index
    %c0_13 = arith.constant 0 : index
    %c0_14 = arith.constant 0 : index
    %15 = vector.load %arg2[%c2, %c0_13, %c0_14] : memref<3x24x32xbf16, #tpu.memory_space<vmem>>, vector<1x24x32xbf16>
    %16 = vector.shape_cast %15 : vector<1x24x32xbf16> to vector<24x32xbf16>
    %cst_15 = arith.constant dense<0.000000e+00> : vector<384x32xf32>
    %17 = tpu.matmul %14, %16, %cst_15 {dimension_numbers = #tpu.dot_dimension_numbers<[1], [0], [0], [1], [0, 0, 1, 1], [], []>} : vector<384x24xbf16>, vector<24x32xbf16>, vector<384x32xf32> -> vector<384x32xf32>
    %18 = arith.addf %12, %17 : vector<384x32xf32>
    %c0_16 = arith.constant 0 : index
    %c0_17 = arith.constant 0 : index
    %19 = vector.load %arg3[%c0_16, %c0_17] : memref<1x32xf32, #tpu.memory_space<vmem>>, vector<1x32xf32>
    %20 = vector.broadcast %19 : vector<1x32xf32> to vector<384x32xf32>
    %21 = arith.addf %18, %20 : vector<384x32xf32>
    %cst_18 = arith.constant 0.000000e+00 : f32
    %22 = vector.broadcast %cst_18 : f32 to vector<384x32xf32>
    %23 = arith.maximumf %21, %22 : vector<384x32xf32>
    %24 = vector.shape_cast %23 : vector<384x32xf32> to vector<8x48x32xf32>
    %25 = arith.truncf %24 : vector<8x48x32xf32> to vector<8x48x32xbf16>
    %26 = vector.extract_strided_slice %25 {offsets = [0, 0, 0], sizes = [8, 40, 32], strides = [1, 1, 1]} : vector<8x48x32xbf16> to vector<8x40x32xbf16>
    %c0_19 = arith.constant 0 : index
    %c0_20 = arith.constant 0 : index
    %c0_21 = arith.constant 0 : index
    %27 = vector.load %arg9[%c0_19, %c0_20, %c0_21] : memref<8x40x256xbf16, #tpu.memory_space<vmem>>, vector<8x40x32xbf16>
    tpu.vector_store %arg9[%c0_19, %c0_20, %c0_21], %26 {strides = array<i32>} : memref<8x40x256xbf16, #tpu.memory_space<vmem>>, vector<8x40x32xbf16>,
    %28 = vector.extract_strided_slice %25 {offsets = [0, 1, 0], sizes = [8, 40, 32], strides = [1, 1, 1]} : vector<8x48x32xbf16> to vector<8x40x32xbf16>
    %c0_22 = arith.constant 0 : index
    %c0_23 = arith.constant 0 : index
    %c32 = arith.constant 32 : index
    %29 = vector.load %arg9[%c0_22, %c0_23, %c32] : memref<8x40x256xbf16, #tpu.memory_space<vmem>>, vector<8x40x32xbf16>
    tpu.vector_store %arg9[%c0_22, %c0_23, %c32], %28 {strides = array<i32>} : memref<8x40x256xbf16, #tpu.memory_space<vmem>>, vector<8x40x32xbf16>,
    %30 = vector.extract_strided_slice %25 {offsets = [0, 2, 0], sizes = [8, 40, 32], strides = [1, 1, 1]} : vector<8x48x32xbf16> to vector<8x40x32xbf16>
    %c0_24 = arith.constant 0 : index
    %c0_25 = arith.constant 0 : index
    %c64 = arith.constant 64 : index
    %31 = vector.load %arg9[%c0_24, %c0_25, %c64] : memref<8x40x256xbf16, #tpu.memory_space<vmem>>, vector<8x40x32xbf16>
    tpu.vector_store %arg9[%c0_24, %c0_25, %c64], %30 {strides = array<i32>} : memref<8x40x256xbf16, #tpu.memory_space<vmem>>, vector<8x40x32xbf16>,
    %32 = vector.extract_strided_slice %25 {offsets = [0, 3, 0], sizes = [8, 40, 32], strides = [1, 1, 1]} : vector<8x48x32xbf16> to vector<8x40x32xbf16>
    %c0_26 = arith.constant 0 : index
    %c0_27 = arith.constant 0 : index
    %c96 = arith.constant 96 : index
    %33 = vector.load %arg9[%c0_26, %c0_27, %c96] : memref<8x40x256xbf16, #tpu.memory_space<vmem>>, vector<8x40x32xbf16>
    tpu.vector_store %arg9[%c0_26, %c0_27, %c96], %32 {strides = array<i32>} : memref<8x40x256xbf16, #tpu.memory_space<vmem>>, vector<8x40x32xbf16>,
    %34 = vector.extract_strided_slice %25 {offsets = [0, 4, 0], sizes = [8, 40, 32], strides = [1, 1, 1]} : vector<8x48x32xbf16> to vector<8x40x32xbf16>
    %c0_28 = arith.constant 0 : index
    %c0_29 = arith.constant 0 : index
    %c128 = arith.constant 128 : index
    %35 = vector.load %arg9[%c0_28, %c0_29, %c128] : memref<8x40x256xbf16, #tpu.memory_space<vmem>>, vector<8x40x32xbf16>
    tpu.vector_store %arg9[%c0_28, %c0_29, %c128], %34 {strides = array<i32>} : memref<8x40x256xbf16, #tpu.memory_space<vmem>>, vector<8x40x32xbf16>,
    %36 = vector.extract_strided_slice %25 {offsets = [0, 5, 0], sizes = [8, 40, 32], strides = [1, 1, 1]} : vector<8x48x32xbf16> to vector<8x40x32xbf16>
    %c0_30 = arith.constant 0 : index
    %c0_31 = arith.constant 0 : index
    %c160 = arith.constant 160 : index
    %37 = vector.load %arg9[%c0_30, %c0_31, %c160] : memref<8x40x256xbf16, #tpu.memory_space<vmem>>, vector<8x40x32xbf16>
    tpu.vector_store %arg9[%c0_30, %c0_31, %c160], %36 {strides = array<i32>} : memref<8x40x256xbf16, #tpu.memory_space<vmem>>, vector<8x40x32xbf16>,
    %38 = vector.extract_strided_slice %25 {offsets = [0, 6, 0], sizes = [8, 40, 32], strides = [1, 1, 1]} : vector<8x48x32xbf16> to vector<8x40x32xbf16>
    %c0_32 = arith.constant 0 : index
    %c0_33 = arith.constant 0 : index
    %c192 = arith.constant 192 : index
    %39 = vector.load %arg9[%c0_32, %c0_33, %c192] : memref<8x40x256xbf16, #tpu.memory_space<vmem>>, vector<8x40x32xbf16>
    tpu.vector_store %arg9[%c0_32, %c0_33, %c192], %38 {strides = array<i32>} : memref<8x40x256xbf16, #tpu.memory_space<vmem>>, vector<8x40x32xbf16>,
    %40 = vector.extract_strided_slice %25 {offsets = [0, 7, 0], sizes = [8, 40, 32], strides = [1, 1, 1]} : vector<8x48x32xbf16> to vector<8x40x32xbf16>
    %c0_34 = arith.constant 0 : index
    %c0_35 = arith.constant 0 : index
    %c224 = arith.constant 224 : index
    %41 = vector.load %arg9[%c0_34, %c0_35, %c224] : memref<8x40x256xbf16, #tpu.memory_space<vmem>>, vector<8x40x32xbf16>
    tpu.vector_store %arg9[%c0_34, %c0_35, %c224], %40 {strides = array<i32>} : memref<8x40x256xbf16, #tpu.memory_space<vmem>>, vector<8x40x32xbf16>,
    %cst_36 = arith.constant 0.000000e+00 : f32
    %42 = vector.broadcast %cst_36 : f32 to vector<256x64xf32>
    %c0_37 = arith.constant 0 : index
    %c0_38 = arith.constant 0 : index
    %c0_39 = arith.constant 0 : index
    %43 = vector.load %arg9[%c0_37, %c0_38, %c0_39] : memref<8x40x256xbf16, #tpu.memory_space<vmem>>, vector<8x32x256xbf16>
    %44 = vector.shape_cast %43 : vector<8x32x256xbf16> to vector<256x256xbf16>
    %c0_40 = arith.constant 0 : index
    %c0_41 = arith.constant 0 : index
    %c0_42 = arith.constant 0 : index
    %45 = vector.load %arg4[%c0_40, %c0_41, %c0_42] : memref<2x256x64xbf16, #tpu.memory_space<vmem>>, vector<1x256x64xbf16>
    %46 = vector.shape_cast %45 : vector<1x256x64xbf16> to vector<256x64xbf16>
    %cst_43 = arith.constant dense<0.000000e+00> : vector<256x64xf32>
    %47 = tpu.matmul %44, %46, %cst_43 {dimension_numbers = #tpu.dot_dimension_numbers<[1], [0], [0], [1], [0, 0, 1, 1], [], []>} : vector<256x256xbf16>, vector<256x64xbf16>, vector<256x64xf32> -> vector<256x64xf32>
    %48 = arith.addf %42, %47 : vector<256x64xf32>
    %c0_44 = arith.constant 0 : index
    %c8_45 = arith.constant 8 : index
    %c0_46 = arith.constant 0 : index
    %49 = vector.load %arg9[%c0_44, %c8_45, %c0_46] : memref<8x40x256xbf16, #tpu.memory_space<vmem>>, vector<8x32x256xbf16>
    %50 = vector.shape_cast %49 : vector<8x32x256xbf16> to vector<256x256xbf16>
    %c1_47 = arith.constant 1 : index
    %c0_48 = arith.constant 0 : index
    %c0_49 = arith.constant 0 : index
    %51 = vector.load %arg4[%c1_47, %c0_48, %c0_49] : memref<2x256x64xbf16, #tpu.memory_space<vmem>>, vector<1x256x64xbf16>
    %52 = vector.shape_cast %51 : vector<1x256x64xbf16> to vector<256x64xbf16>
    %cst_50 = arith.constant dense<0.000000e+00> : vector<256x64xf32>
    %53 = tpu.matmul %50, %52, %cst_50 {dimension_numbers = #tpu.dot_dimension_numbers<[1], [0], [0], [1], [0, 0, 1, 1], [], []>} : vector<256x256xbf16>, vector<256x64xbf16>, vector<256x64xf32> -> vector<256x64xf32>
    %54 = arith.addf %48, %53 : vector<256x64xf32>
    %c0_51 = arith.constant 0 : index
    %c0_52 = arith.constant 0 : index
    %55 = vector.load %arg5[%c0_51, %c0_52] : memref<1x64xf32, #tpu.memory_space<vmem>>, vector<1x64xf32>
    %56 = vector.broadcast %55 : vector<1x64xf32> to vector<256x64xf32>
    %57 = arith.addf %54, %56 : vector<256x64xf32>
    %cst_53 = arith.constant 0.000000e+00 : f32
    %58 = vector.broadcast %cst_53 : f32 to vector<256x64xf32>
    %59 = arith.maximumf %57, %58 : vector<256x64xf32>
    %60 = vector.shape_cast %59 : vector<256x64xf32> to vector<8x32x64xf32>
    %61 = arith.truncf %60 : vector<8x32x64xf32> to vector<8x32x64xbf16>
    %62 = vector.extract_strided_slice %61 {offsets = [0, 0, 0], sizes = [8, 24, 64], strides = [1, 1, 1]} : vector<8x32x64xbf16> to vector<8x24x64xbf16>
    %c0_54 = arith.constant 0 : index
    %c0_55 = arith.constant 0 : index
    %c0_56 = arith.constant 0 : index
    %63 = vector.load %arg10[%c0_54, %c0_55, %c0_56] : memref<8x24x512xbf16, #tpu.memory_space<vmem>>, vector<8x24x64xbf16>
    tpu.vector_store %arg10[%c0_54, %c0_55, %c0_56], %62 {strides = array<i32>} : memref<8x24x512xbf16, #tpu.memory_space<vmem>>, vector<8x24x64xbf16>,
    %64 = vector.extract_strided_slice %61 {offsets = [0, 1, 0], sizes = [8, 24, 64], strides = [1, 1, 1]} : vector<8x32x64xbf16> to vector<8x24x64xbf16>
    %c0_57 = arith.constant 0 : index
    %c0_58 = arith.constant 0 : index
    %c64_59 = arith.constant 64 : index
    %65 = vector.load %arg10[%c0_57, %c0_58, %c64_59] : memref<8x24x512xbf16, #tpu.memory_space<vmem>>, vector<8x24x64xbf16>
    tpu.vector_store %arg10[%c0_57, %c0_58, %c64_59], %64 {strides = array<i32>} : memref<8x24x512xbf16, #tpu.memory_space<vmem>>, vector<8x24x64xbf16>,
    %66 = vector.extract_strided_slice %61 {offsets = [0, 2, 0], sizes = [8, 24, 64], strides = [1, 1, 1]} : vector<8x32x64xbf16> to vector<8x24x64xbf16>
    %c0_60 = arith.constant 0 : index
    %c0_61 = arith.constant 0 : index
    %c128_62 = arith.constant 128 : index
    %67 = vector.load %arg10[%c0_60, %c0_61, %c128_62] : memref<8x24x512xbf16, #tpu.memory_space<vmem>>, vector<8x24x64xbf16>
    tpu.vector_store %arg10[%c0_60, %c0_61, %c128_62], %66 {strides = array<i32>} : memref<8x24x512xbf16, #tpu.memory_space<vmem>>, vector<8x24x64xbf16>,
    %68 = vector.extract_strided_slice %61 {offsets = [0, 3, 0], sizes = [8, 24, 64], strides = [1, 1, 1]} : vector<8x32x64xbf16> to vector<8x24x64xbf16>
    %c0_63 = arith.constant 0 : index
    %c0_64 = arith.constant 0 : index
    %c192_65 = arith.constant 192 : index
    %69 = vector.load %arg10[%c0_63, %c0_64, %c192_65] : memref<8x24x512xbf16, #tpu.memory_space<vmem>>, vector<8x24x64xbf16>
    tpu.vector_store %arg10[%c0_63, %c0_64, %c192_65], %68 {strides = array<i32>} : memref<8x24x512xbf16, #tpu.memory_space<vmem>>, vector<8x24x64xbf16>,
    %70 = vector.extract_strided_slice %61 {offsets = [0, 4, 0], sizes = [8, 24, 64], strides = [1, 1, 1]} : vector<8x32x64xbf16> to vector<8x24x64xbf16>
    %c0_66 = arith.constant 0 : index
    %c0_67 = arith.constant 0 : index
    %c256 = arith.constant 256 : index
    %71 = vector.load %arg10[%c0_66, %c0_67, %c256] : memref<8x24x512xbf16, #tpu.memory_space<vmem>>, vector<8x24x64xbf16>
    tpu.vector_store %arg10[%c0_66, %c0_67, %c256], %70 {strides = array<i32>} : memref<8x24x512xbf16, #tpu.memory_space<vmem>>, vector<8x24x64xbf16>,
    %72 = vector.extract_strided_slice %61 {offsets = [0, 5, 0], sizes = [8, 24, 64], strides = [1, 1, 1]} : vector<8x32x64xbf16> to vector<8x24x64xbf16>
    %c0_68 = arith.constant 0 : index
    %c0_69 = arith.constant 0 : index
    %c320 = arith.constant 320 : index
    %73 = vector.load %arg10[%c0_68, %c0_69, %c320] : memref<8x24x512xbf16, #tpu.memory_space<vmem>>, vector<8x24x64xbf16>
    tpu.vector_store %arg10[%c0_68, %c0_69, %c320], %72 {strides = array<i32>} : memref<8x24x512xbf16, #tpu.memory_space<vmem>>, vector<8x24x64xbf16>,
    %74 = vector.extract_strided_slice %61 {offsets = [0, 6, 0], sizes = [8, 24, 64], strides = [1, 1, 1]} : vector<8x32x64xbf16> to vector<8x24x64xbf16>
    %c0_70 = arith.constant 0 : index
    %c0_71 = arith.constant 0 : index
    %c384 = arith.constant 384 : index
    %75 = vector.load %arg10[%c0_70, %c0_71, %c384] : memref<8x24x512xbf16, #tpu.memory_space<vmem>>, vector<8x24x64xbf16>
    tpu.vector_store %arg10[%c0_70, %c0_71, %c384], %74 {strides = array<i32>} : memref<8x24x512xbf16, #tpu.memory_space<vmem>>, vector<8x24x64xbf16>,
    %76 = vector.extract_strided_slice %61 {offsets = [0, 7, 0], sizes = [8, 24, 64], strides = [1, 1, 1]} : vector<8x32x64xbf16> to vector<8x24x64xbf16>
    %c0_72 = arith.constant 0 : index
    %c0_73 = arith.constant 0 : index
    %c448 = arith.constant 448 : index
    %77 = vector.load %arg10[%c0_72, %c0_73, %c448] : memref<8x24x512xbf16, #tpu.memory_space<vmem>>, vector<8x24x64xbf16>
    tpu.vector_store %arg10[%c0_72, %c0_73, %c448], %76 {strides = array<i32>} : memref<8x24x512xbf16, #tpu.memory_space<vmem>>, vector<8x24x64xbf16>,
    %c0_74 = arith.constant 0 : index
    %c0_75 = arith.constant 0 : index
    %c0_76 = arith.constant 0 : index
    %78 = vector.load %arg10[%c0_74, %c0_75, %c0_76] : memref<8x24x512xbf16, #tpu.memory_space<vmem>>, vector<8x24x512xbf16>
    %79 = vector.shape_cast %78 : vector<8x24x512xbf16> to vector<192x512xbf16>
    %c0_77 = arith.constant 0 : index
    %c0_78 = arith.constant 0 : index
    %80 = vector.load %arg6[%c0_77, %c0_78] : memref<512x128xbf16, #tpu.memory_space<vmem>>, vector<512x128xbf16>
    %cst_79 = arith.constant dense<0.000000e+00> : vector<192x128xf32>
    %81 = tpu.matmul %79, %80, %cst_79 {dimension_numbers = #tpu.dot_dimension_numbers<[1], [0], [0], [1], [0, 0, 1, 1], [], []>} : vector<192x512xbf16>, vector<512x128xbf16>, vector<192x128xf32> -> vector<192x128xf32>
    %c0_80 = arith.constant 0 : index
    %c0_81 = arith.constant 0 : index
    %82 = vector.load %arg7[%c0_80, %c0_81] : memref<1x128xf32, #tpu.memory_space<vmem>>, vector<1x128xf32>
    %83 = vector.broadcast %82 : vector<1x128xf32> to vector<192x128xf32>
    %84 = arith.addf %81, %83 : vector<192x128xf32>
    %cst_82 = arith.constant 0.000000e+00 : f32
    %85 = vector.broadcast %cst_82 : f32 to vector<192x128xf32>
    %86 = arith.maximumf %84, %85 : vector<192x128xf32>
    %87 = vector.shape_cast %86 : vector<192x128xf32> to vector<8x24x128xf32>
    %88 = tpu.iota {dimensions = array<i32: 0>} : vector<24x128xi32>
    %c19_i32 = arith.constant 19 : i32
    %89 = vector.broadcast %c19_i32 : i32 to vector<24x128xi32>
    %90 = arith.cmpi slt, %88, %89 : vector<24x128xi32>
    %cst_83 = arith.constant 0.000000e+00 : f32
    %91 = vector.shape_cast %90 : vector<24x128xi1> to vector<1x24x128xi1>
    %92 = vector.broadcast %91 : vector<1x24x128xi1> to vector<8x24x128xi1>
    %93 = vector.broadcast %cst_83 : f32 to vector<8x24x128xf32>
    %94 = arith.select %92, %87, %93 : vector<8x24x128xi1>, vector<8x24x128xf32>
    %cst_84 = arith.constant dense<0xFF800000> : vector<8x128xf32>
    %95 = vector.multi_reduction <maximumf>, %94, %cst_84 [1] : vector<8x24x128xf32> to vector<8x128xf32>
    %c0_85 = arith.constant 0 : index
    %c0_86 = arith.constant 0 : index
    %96 = vector.load %arg8[%c0_85, %c0_86] : memref<8x128xf32, #tpu.memory_space<vmem>>, vector<8x128xf32>
    tpu.vector_store %arg8[%c0_85, %c0_86], %95 {strides = array<i32>} : memref<8x128xf32, #tpu.memory_space<vmem>>, vector<8x128xf32>,
    return
  }
  func.func @transform_0(%arg0: i32) -> (i32, i32, i32) {
    %c0_i32 = arith.constant 0 : i32
    %c0_i32_0 = arith.constant 0 : i32
    %c0_i32_1 = arith.constant 0 : i32
    return %arg0, %c0_i32, %c0_i32_0 : i32, i32, i32
  }
  func.func @transform_1(%arg0: i32) -> (i32, i32, i32) {
    %c0_i32 = arith.constant 0 : i32
    %c0_i32_0 = arith.constant 0 : i32
    %c0_i32_1 = arith.constant 0 : i32
    %c0_i32_2 = arith.constant 0 : i32
    return %c0_i32, %c0_i32_0, %c0_i32_1 : i32, i32, i32
  }
  func.func @transform_2(%arg0: i32) -> (i32, i32) {
    %c0_i32 = arith.constant 0 : i32
    %c0_i32_0 = arith.constant 0 : i32
    %c0_i32_1 = arith.constant 0 : i32
    return %c0_i32, %c0_i32_0 : i32, i32
  }
  func.func @transform_3(%arg0: i32) -> (i32, i32, i32) {
    %c0_i32 = arith.constant 0 : i32
    %c0_i32_0 = arith.constant 0 : i32
    %c0_i32_1 = arith.constant 0 : i32
    %c0_i32_2 = arith.constant 0 : i32
    return %c0_i32, %c0_i32_0, %c0_i32_1 : i32, i32, i32
  }
  func.func @transform_4(%arg0: i32) -> (i32, i32) {
    %c0_i32 = arith.constant 0 : i32
    %c0_i32_0 = arith.constant 0 : i32
    %c0_i32_1 = arith.constant 0 : i32
    return %c0_i32, %c0_i32_0 : i32, i32
  }
  func.func @transform_5(%arg0: i32) -> (i32, i32) {
    %c0_i32 = arith.constant 0 : i32
    %c0_i32_0 = arith.constant 0 : i32
    %c0_i32_1 = arith.constant 0 : i32
    return %c0_i32, %c0_i32_0 : i32, i32
  }
  func.func @transform_6(%arg0: i32) -> (i32, i32) {
    %c0_i32 = arith.constant 0 : i32
    %c0_i32_0 = arith.constant 0 : i32
    %c0_i32_1 = arith.constant 0 : i32
    return %c0_i32, %c0_i32_0 : i32, i32
  }
  func.func @transform_7(%arg0: i32) -> (i32, i32) {
    %c0_i32 = arith.constant 0 : i32
    %c0_i32_0 = arith.constant 0 : i32
    return %arg0, %c0_i32 : i32, i32
  }
}

</mosaic_0001>

<llo_original>
// kernel: tpu_custom_call.1
$region0: #{tpu_custom_call.1}
  #allocation0 [shape = 'u32[]', space=smem, size = 0x4, offset = 0x4, fixed_abs, tag = 'smem constant byte address 0x4 - core index']
  #allocation1 [shape = 'u32[144,128]{1,0:T(1,128)}', space=vmem, size = 0x12000, scoped, tag = 'internal scratch']
  #allocation2 [shape = 'bf16[8,40,256]{2,1,0:T(8,128)(2,1)}', space=vmem, size = 0x28000, scoped, tag = 'scratch operand']
  #allocation3 [shape = 'bf16[8,24,512]{2,1,0:T(8,128)(2,1)}', space=vmem, size = 0x30000, scoped, tag = 'scratch operand']
  %s0 = inlined_call_operand.vmem [shape: bf16[8,64,24], index: 0, kind: input, shape index: {}]
  %s1 = inlined_call_operand.vmem [shape: bf16[3,24,32], index: 1, kind: input, shape index: {}]
  %s2 = inlined_call_operand.vmem [shape: f32[1,32], index: 2, kind: input, shape index: {}]
  %s3 = inlined_call_operand.vmem [shape: bf16[2,256,64], index: 3, kind: input, shape index: {}]
  %s4 = inlined_call_operand.vmem [shape: f32[1,64], index: 4, kind: input, shape index: {}]
  %s5 = inlined_call_operand.vmem [shape: bf16[512,128], index: 5, kind: input, shape index: {}]
  %s6 = inlined_call_operand.vmem [shape: f32[1,128], index: 6, kind: input, shape index: {}]
  %s7 = inlined_call_operand.hbm [shape: f32[8,128], index: 7, kind: output, shape index: {}]
  %s8 = sld [smem:[#allocation0]]
  $region38: #{tpu_custom_call.1} parent=0
    _
  %s10 = ssub.s32 1, %s8
  %s11 = scalar_select 0, %s10, %s8
  $region1: #{tpu_custom_call.1} parent=0
    #allocation4 [shape = 'u8[4096]{0}', space=vmem, size = 0x1000, scoped, tag = 'output window, operand 0, single buffered']
    #allocation5 [shape = 's32[1]{0}', space=sflag, size = 0x4, scoped, tag = 'scoped memory for tpu_custom_call.1']
    %12 = vsyncpa [#allocation5], 0
    // Predicated region
    $region2: #{tpu_custom_call.1} parent=1 // pred_check
      _
    $region3: #{tpu_custom_call.1} parent=1 // pred_check_branch
      %14 = sbr.rel (0) target = $region5
    $region4: #{tpu_custom_call.1} parent=1 // pred_region
      _
    $region5: #{tpu_custom_call.1} parent=1 // pred_fallthru
      _
    // Predicated region
    $region6: #{tpu_custom_call.1} parent=1 // pred_check
      _
    $region7: #{tpu_custom_call.1} parent=1 // pred_check_branch
      %16 = sbr.rel (0) target = $region9
    $region8: #{tpu_custom_call.1} parent=1 // pred_region
      _
    $region9: #{tpu_custom_call.1} parent=1 // pred_fallthru
      _
    // Predicated region
    $region10: #{tpu_custom_call.1} parent=1 // pred_check
      _
    $region11: #{tpu_custom_call.1} parent=1 // pred_check_branch
      %18 = sbr.rel (0) target = $region13
    $region12: #{tpu_custom_call.1} parent=1 // pred_region
      _
    $region13: #{tpu_custom_call.1} parent=1 // pred_fallthru
      _
    // Predicated region
    $region14: #{tpu_custom_call.1} parent=1 // pred_check
      _
    $region15: #{tpu_custom_call.1} parent=1 // pred_check_branch
      %20 = sbr.rel (0) target = $region17
    $region16: #{tpu_custom_call.1} parent=1 // pred_region
      _
    $region17: #{tpu_custom_call.1} parent=1 // pred_fallthru
      _
    // Predicated region
    $region18: #{tpu_custom_call.1} parent=1 // pred_check
      _
    $region19: #{tpu_custom_call.1} parent=1 // pred_check_branch
      %22 = sbr.rel (0) target = $region21
    $region20: #{tpu_custom_call.1} parent=1 // pred_region
      _
    $region21: #{tpu_custom_call.1} parent=1 // pred_fallthru
      _
    // Predicated region
    $region22: #{tpu_custom_call.1} parent=1 // pred_check
      _
    $region23: #{tpu_custom_call.1} parent=1 // pred_check_branch
      %24 = sbr.rel (0) target = $region25
    $region24: #{tpu_custom_call.1} parent=1 // pred_region
      _
    $region25: #{tpu_custom_call.1} parent=1 // pred_fallthru
      _
    // Predicated region
    $region26: #{tpu_custom_call.1} parent=1 // pred_check
      _
    $region27: #{tpu_custom_call.1} parent=1 // pred_check_branch
      %26 = sbr.rel (0) target = $region29
    $region28: #{tpu_custom_call.1} parent=1 // pred_region
      _
    $region29: #{tpu_custom_call.1} parent=1 // pred_fallthru
      _
    %v28 = vld [vmem:[%s0] sm:$0xf]
    %v29 = vld [vmem:[%s0 + $0x4] sm:$0xf]
    %v30 = vld [vmem:[%s0 + $0x8] sm:$0xf]
    %v31 = vld [vmem:[%s0 + $0xc] sm:$0xf]
    %v32 = vld [vmem:[%s0 + $0x10] sm:$0xf]
    %v33 = vld [vmem:[%s0 + $0x14] sm:$0xf]
    %v34 = vld [vmem:[%s0 + $0x20] sm:$0xf]
    %v35 = vld [vmem:[%s0 + $0x24] sm:$0xf]
    %v36 = vld [vmem:[%s0 + $0x28] sm:$0xf]
    %v37 = vld [vmem:[%s0 + $0x2c] sm:$0xf]
    %v38 = vld [vmem:[%s0 + $0x30] sm:$0xf]
    %v39 = vld [vmem:[%s0 + $0x34] sm:$0xf]
    %v40 = vld [vmem:[%s0 + $0x40] sm:$0xf]
    %v41 = vld [vmem:[%s0 + $0x44] sm:$0xf]
    %v42 = vld [vmem:[%s0 + $0x48] sm:$0xf]
    %v43 = vld [vmem:[%s0 + $0x4c] sm:$0xf]
    %v44 = vld [vmem:[%s0 + $0x50] sm:$0xf]
    %v45 = vld [vmem:[%s0 + $0x54] sm:$0xf]
    %v46 = vld [vmem:[%s0 + $0x60] sm:$0xf]
    %v47 = vld [vmem:[%s0 + $0x64] sm:$0xf]
    %v48 = vld [vmem:[%s0 + $0x68] sm:$0xf]
    %v49 = vld [vmem:[%s0 + $0x6c] sm:$0xf]
    %v50 = vld [vmem:[%s0 + $0x70] sm:$0xf]
    %v51 = vld [vmem:[%s0 + $0x74] sm:$0xf]
    %v52 = vld [vmem:[%s0 + $0x80] sm:$0xf]
    %v53 = vld [vmem:[%s0 + $0x84] sm:$0xf]
    %v54 = vld [vmem:[%s0 + $0x88] sm:$0xf]
    %v55 = vld [vmem:[%s0 + $0x8c] sm:$0xf]
    %v56 = vld [vmem:[%s0 + $0x90] sm:$0xf]
    %v57 = vld [vmem:[%s0 + $0x94] sm:$0xf]
    %v58 = vld [vmem:[%s0 + $0xa0] sm:$0xf]
    %v59 = vld [vmem:[%s0 + $0xa4] sm:$0xf]
    %v60 = vld [vmem:[%s0 + $0xa8] sm:$0xf]
    %v61 = vld [vmem:[%s0 + $0xac] sm:$0xf]
    %v62 = vld [vmem:[%s0 + $0xb0] sm:$0xf]
    %v63 = vld [vmem:[%s0 + $0xb4] sm:$0xf]
    %v64 = vld [vmem:[%s0 + $0xc0] sm:$0xf]
    %v65 = vld [vmem:[%s0 + $0xc4] sm:$0xf]
    %v66 = vld [vmem:[%s0 + $0xc8] sm:$0xf]
    %v67 = vld [vmem:[%s0 + $0xcc] sm:$0xf]
    %v68 = vld [vmem:[%s0 + $0xd0] sm:$0xf]
    %v69 = vld [vmem:[%s0 + $0xd4] sm:$0xf]
    %v70 = vld [vmem:[%s0 + $0xe0] sm:$0xf]
    %v71 = vld [vmem:[%s0 + $0xe4] sm:$0xf]
    %v72 = vld [vmem:[%s0 + $0xe8] sm:$0xf]
    %v73 = vld [vmem:[%s0 + $0xec] sm:$0xf]
    %v74 = vld [vmem:[%s0 + $0xf0] sm:$0xf]
    %v75 = vld [vmem:[%s0 + $0xf4] sm:$0xf]
    %v76 = vld [vmem:[%s1] sm:$0xf]
    %v77 = vld [vmem:[%s1 + $0x4] sm:$0xf]
    %v78 = vld [vmem:[%s1 + $0x8] sm:$0xf]
    %v79 = vld [vmem:[%s0 + $0x18] sm:$0xf]
    %v80 = vld [vmem:[%s0 + $0x38] sm:$0xf]
    %v81 = vld [vmem:[%s0 + $0x58] sm:$0xf]
    %v82 = vld [vmem:[%s0 + $0x78] sm:$0xf]
    %v83 = vld [vmem:[%s0 + $0x98] sm:$0xf]
    %v84 = vld [vmem:[%s0 + $0xb8] sm:$0xf]
    %v85 = vld [vmem:[%s0 + $0xd8] sm:$0xf]
    %v86 = vld [vmem:[%s0 + $0xf8] sm:$0xf]
    %s87 = scalar_lea.vmem %s1, 12
    %v88 = vld [vmem:[%s87] sm:$0xf]
    %v89 = vld [vmem:[%s87 + $0x4] sm:$0xf]
    %v90 = vld [vmem:[%s87 + $0x8] sm:$0xf]
    %v139 = vunpack.c.l.b16 %v29
    %v140 = vunpack.c.l.b16 %v30
    %v141 = vunpack.c.l.b16 %v31
    %v142 = vunpack.c.l.b16 %v32
    %v143 = vunpack.c.l.b16 %v33
    %v144 = vunpack.c.l.b16 %v79
    %v145 = vunpack.c.l.b16 %v35
    %v146 = vunpack.c.l.b16 %v36
    %v147 = vunpack.c.l.b16 %v37
    %v148 = vunpack.c.l.b16 %v38
    %v149 = vunpack.c.l.b16 %v39
    %v150 = vunpack.c.l.b16 %v80
    %v151 = vunpack.c.l.b16 %v41
    %v152 = vunpack.c.l.b16 %v42
    %v153 = vunpack.c.l.b16 %v43
    %v154 = vunpack.c.l.b16 %v44
    %v155 = vunpack.c.l.b16 %v45
    %v156 = vunpack.c.l.b16 %v81
    %v157 = vunpack.c.l.b16 %v47
    %v158 = vunpack.c.l.b16 %v48
    %v159 = vunpack.c.l.b16 %v49
    %v160 = vunpack.c.l.b16 %v50
    %v161 = vunpack.c.l.b16 %v51
    %v162 = vunpack.c.l.b16 %v82
    %v163 = vunpack.c.l.b16 %v53
    %v164 = vunpack.c.l.b16 %v54
    %v165 = vunpack.c.l.b16 %v55
    %v166 = vunpack.c.l.b16 %v56
    %v167 = vunpack.c.l.b16 %v57
    %v168 = vunpack.c.l.b16 %v83
    %v169 = vunpack.c.l.b16 %v59
    %v170 = vunpack.c.l.b16 %v60
    %v171 = vunpack.c.l.b16 %v61
    %v172 = vunpack.c.l.b16 %v62
    %v173 = vunpack.c.l.b16 %v63
    %v174 = vunpack.c.l.b16 %v84
    %v175 = vunpack.c.l.b16 %v65
    %v176 = vunpack.c.l.b16 %v66
    %v177 = vunpack.c.l.b16 %v67
    %v178 = vunpack.c.l.b16 %v68
    %v179 = vunpack.c.l.b16 %v69
    %v180 = vunpack.c.l.b16 %v85
    %v181 = vunpack.c.l.b16 %v71
    %v182 = vunpack.c.l.b16 %v72
    %v183 = vunpack.c.l.b16 %v73
    %v184 = vunpack.c.l.b16 %v74
    %v185 = vunpack.c.l.b16 %v75
    %v186 = vunpack.c.l.b16 %v86
    %v187 = vpack.c.b16 %v140, %v139
    %v188 = vpack.c.b16 %v142, %v141
    %v189 = vpack.c.b16 %v144, %v143
    %v190 = vpack.c.b16 %v146, %v145
    %v191 = vpack.c.b16 %v148, %v147
    %v192 = vpack.c.b16 %v150, %v149
    %v193 = vpack.c.b16 %v152, %v151
    %v194 = vpack.c.b16 %v154, %v153
    %v195 = vpack.c.b16 %v156, %v155
    %v196 = vpack.c.b16 %v158, %v157
    %v197 = vpack.c.b16 %v160, %v159
    %v198 = vpack.c.b16 %v162, %v161
    %v199 = vpack.c.b16 %v164, %v163
    %v200 = vpack.c.b16 %v166, %v165
    %v201 = vpack.c.b16 %v168, %v167
    %v202 = vpack.c.b16 %v170, %v169
    %v203 = vpack.c.b16 %v172, %v171
    %v204 = vpack.c.b16 %v174, %v173
    %v205 = vpack.c.b16 %v176, %v175
    %v206 = vpack.c.b16 %v178, %v177
    %v207 = vpack.c.b16 %v180, %v179
    %v208 = vpack.c.b16 %v182, %v181
    %v209 = vpack.c.b16 %v184, %v183
    %v210 = vpack.c.b16 %v186, %v185
    %v214 = vunpack.c.l.b16 %v88
    %v215 = vunpack.c.l.b16 %v89
    %v216 = vunpack.c.l.b16 %v90
    %v217 = vpack.c.b16 %v215, %v214
    %v218 = vpack.c.b16 %v216, %v216
    %vm220 = vcmask 195584
    %v222 = vsel %vm220, %v187, 0
    %v225 = vsel %vm220, %v188, 0
    %v228 = vsel %vm220, %v189, 0
    %v231 = vsel %vm220, %v190, 0
    %v234 = vsel %vm220, %v191, 0
    %v237 = vsel %vm220, %v192, 0
    %v240 = vsel %vm220, %v193, 0
    %v243 = vsel %vm220, %v194, 0
    %v246 = vsel %vm220, %v195, 0
    %v249 = vsel %vm220, %v196, 0
    %v252 = vsel %vm220, %v197, 0
    %v255 = vsel %vm220, %v198, 0
    %v258 = vsel %vm220, %v199, 0
    %v261 = vsel %vm220, %v200, 0
    %v264 = vsel %vm220, %v201, 0
    %v267 = vsel %vm220, %v202, 0
    %v270 = vsel %vm220, %v203, 0
    %v273 = vsel %vm220, %v204, 0
    %v276 = vsel %vm220, %v205, 0
    %v279 = vsel %vm220, %v206, 0
    %v282 = vsel %vm220, %v207, 0
    %v285 = vsel %vm220, %v208, 0
    %v288 = vsel %vm220, %v209, 0
    %v291 = vsel %vm220, %v210, 0
    %vm293 = vcmask 1043456
    %v295 = vsel %vm293, %v218, 0
    %297 = vmatprep.subr.bf16.mxu0 0
    %298 = vmatpush1.bf16.msra.mxu0 %v217
    %299 = vmatprep.subr.bf16.mxu0 0
    %300 = vmatpush1.bf16.msra.mxu0 %v295
    %301 = vmatprep.subr.bf16.mxu0 0
    %302 = vmatpush1.bf16.msra.mxu0 0
    %303 = vmatprep.subr.bf16.mxu0 0
    %304 = vmatpush1.bf16.msra.mxu0 0
    %305 = vmatprep.subr.bf16.mxu0 0
    %306 = vmatpush1.bf16.msra.mxu0 0
    %307 = vmatprep.subr.bf16.mxu0 0
    %308 = vmatpush1.bf16.msra.mxu0 0
    %309 = vmatprep.subr.bf16.mxu0 0
    %310 = vmatpush1.bf16.msra.mxu0 0
    %311 = vmatprep.subr.bf16.mxu0 0
    %312 = vmatpush1.bf16.msra.mxu0 0
    %313 = vmatprep.subr.bf16.mxu0 0
    %314 = vmatpush1.bf16.msra.mxu0 0
    %315 = vmatprep.subr.bf16.mxu0 0
    %316 = vmatpush1.bf16.msra.mxu0 0
    %317 = vmatprep.subr.bf16.mxu0 0
    %318 = vmatpush1.bf16.msra.mxu0 0
    %319 = vmatprep.subr.bf16.mxu0 0
    %320 = vmatpush1.bf16.msra.mxu0 0
    %321 = vmatprep.subr.bf16.mxu0 0
    %322 = vmatpush1.bf16.msra.mxu0 0
    %323 = vmatprep.subr.bf16.mxu0 0
    %324 = vmatpush1.bf16.msra.mxu0 0
    %325 = vmatprep.subr.bf16.mxu0 0
    %326 = vmatpush1.bf16.msra.mxu0 0
    %327 = vmatprep.subr.bf16.mxu0 0
    %328 = vmatpush1.bf16.msra.mxu0 0
    %329 = vmatprep.mubr.bf16.mxu0 0
    %330 = vmatmul.mubr.bf16.gmra.mrb[0].mxu0 %v222
    %v331 = vpop.f32.mrb[0].mxu0
    %v332 = vadd.f32 0.0, %v331
    %v333 = vpop.f32.mrb[0].mxu0
    %v334 = vpop.f32.mrb[0].mxu0
    %v335 = vadd.f32 0.0, %v334
    %v336 = vpop.f32.mrb[0].mxu0
    %337 = vmatprep.mubr.bf16.mxu0 0
    %338 = vmatmul.mubr.bf16.gmra.mrb[0].mxu0 %v225
    %v339 = vpop.f32.mrb[0].mxu0
    %v340 = vadd.f32 0.0, %v339
    %v341 = vpop.f32.mrb[0].mxu0
    %v342 = vpop.f32.mrb[0].mxu0
    %v343 = vadd.f32 0.0, %v342
    %v344 = vpop.f32.mrb[0].mxu0
    %345 = vmatprep.mubr.bf16.mxu0 0
    %346 = vmatmul.mubr.bf16.gmra.mrb[0].mxu0 %v228
    %v347 = vpop.f32.mrb[0].mxu0
    %v348 = vadd.f32 0.0, %v347
    %v349 = vpop.f32.mrb[0].mxu0
    %v350 = vpop.f32.mrb[0].mxu0
    %v351 = vadd.f32 0.0, %v350
    %v352 = vpop.f32.mrb[0].mxu0
    %353 = vmatprep.mubr.bf16.mxu0 0
    %354 = vmatmul.mubr.bf16.gmra.mrb[0].mxu0 %v231
    %v355 = vpop.f32.mrb[0].mxu0
    %v356 = vadd.f32 0.0, %v355
    %v357 = vpop.f32.mrb[0].mxu0
    %v358 = vpop.f32.mrb[0].mxu0
    %v359 = vadd.f32 0.0, %v358
    %v360 = vpop.f32.mrb[0].mxu0
    %361 = vmatprep.mubr.bf16.mxu0 0
    %362 = vmatmul.mubr.bf16.gmra.mrb[0].mxu0 %v234
    %v363 = vpop.f32.mrb[0].mxu0
    %v364 = vadd.f32 0.0, %v363
    %v365 = vpop.f32.mrb[0].mxu0
    %v366 = vpop.f32.mrb[0].mxu0
    %v367 = vadd.f32 0.0, %v366
    %v368 = vpop.f32.mrb[0].mxu0
    %369 = vmatprep.mubr.bf16.mxu0 0
    %370 = vmatmul.mubr.bf16.gmra.mrb[0].mxu0 %v237
    %v371 = vpop.f32.mrb[0].mxu0
    %v372 = vadd.f32 0.0, %v371
    %v373 = vpop.f32.mrb[0].mxu0
    %v374 = vpop.f32.mrb[0].mxu0
    %v375 = vadd.f32 0.0, %v374
    %v376 = vpop.f32.mrb[0].mxu0
    %377 = vmatprep.mubr.bf16.mxu0 0
    %378 = vmatmul.mubr.bf16.gmra.mrb[0].mxu0 %v240
    %v379 = vpop.f32.mrb[0].mxu0
    %v380 = vadd.f32 0.0, %v379
    %v381 = vpop.f32.mrb[0].mxu0
    %v382 = vpop.f32.mrb[0].mxu0
    %v383 = vadd.f32 0.0, %v382
    %v384 = vpop.f32.mrb[0].mxu0
    %385 = vmatprep.mubr.bf16.mxu0 0
    %386 = vmatmul.mubr.bf16.gmra.mrb[0].mxu0 %v243
    %v387 = vpop.f32.mrb[0].mxu0
    %v388 = vadd.f32 0.0, %v387
    %v389 = vpop.f32.mrb[0].mxu0
    %v390 = vpop.f32.mrb[0].mxu0
    %v391 = vadd.f32 0.0, %v390
    %v392 = vpop.f32.mrb[0].mxu0
    %393 = vmatprep.mubr.bf16.mxu0 0
    %394 = vmatmul.mubr.bf16.gmra.mrb[0].mxu0 %v246
    %v395 = vpop.f32.mrb[0].mxu0
    %v396 = vadd.f32 0.0, %v395
    %v397 = vpop.f32.mrb[0].mxu0
    %v398 = vpop.f32.mrb[0].mxu0
    %v399 = vadd.f32 0.0, %v398
    %v400 = vpop.f32.mrb[0].mxu0
    %401 = vmatprep.mubr.bf16.mxu0 0
    %402 = vmatmul.mubr.bf16.gmra.mrb[0].mxu0 %v249
    %v403 = vpop.f32.mrb[0].mxu0
    %v404 = vadd.f32 0.0, %v403
    %v405 = vpop.f32.mrb[0].mxu0
    %v406 = vpop.f32.mrb[0].mxu0
    %v407 = vadd.f32 0.0, %v406
    %v408 = vpop.f32.mrb[0].mxu0
    %409 = vmatprep.mubr.bf16.mxu0 0
    %410 = vmatmul.mubr.bf16.gmra.mrb[0].mxu0 %v252
    %v411 = vpop.f32.mrb[0].mxu0
    %v412 = vadd.f32 0.0, %v411
    %v413 = vpop.f32.mrb[0].mxu0
    %v414 = vpop.f32.mrb[0].mxu0
    %v415 = vadd.f32 0.0, %v414
    %v416 = vpop.f32.mrb[0].mxu0
    %417 = vmatprep.mubr.bf16.mxu0 0
    %418 = vmatmul.mubr.bf16.gmra.mrb[0].mxu0 %v255
    %v419 = vpop.f32.mrb[0].mxu0
    %v420 = vadd.f32 0.0, %v419
    %v421 = vpop.f32.mrb[0].mxu0
    %v422 = vpop.f32.mrb[0].mxu0
    %v423 = vadd.f32 0.0, %v422
    %v424 = vpop.f32.mrb[0].mxu0
    %425 = vmatprep.mubr.bf16.mxu0 0
    %426 = vmatmul.mubr.bf16.gmra.mrb[0].mxu0 %v258
    %v427 = vpop.f32.mrb[0].mxu0
    %v428 = vadd.f32 0.0, %v427
    %v429 = vpop.f32.mrb[0].mxu0
    %v430 = vpop.f32.mrb[0].mxu0
    %v431 = vadd.f32 0.0, %v430
    %v432 = vpop.f32.mrb[0].mxu0
    %433 = vmatprep.mubr.bf16.mxu0 0
    %434 = vmatmul.mubr.bf16.gmra.mrb[0].mxu0 %v261
    %v435 = vpop.f32.mrb[0].mxu0
    %v436 = vadd.f32 0.0, %v435
    %v437 = vpop.f32.mrb[0].mxu0
    %v438 = vpop.f32.mrb[0].mxu0
    %v439 = vadd.f32 0.0, %v438
    %v440 = vpop.f32.mrb[0].mxu0
    %441 = vmatprep.mubr.bf16.mxu0 0
    %442 = vmatmul.mubr.bf16.gmra.mrb[0].mxu0 %v264
    %v443 = vpop.f32.mrb[0].mxu0
    %v444 = vadd.f32 0.0, %v443
    %v445 = vpop.f32.mrb[0].mxu0
    %v446 = vpop.f32.mrb[0].mxu0
    %v447 = vadd.f32 0.0, %v446
    %v448 = vpop.f32.mrb[0].mxu0
    %449 = vmatprep.mubr.bf16.mxu0 0
    %450 = vmatmul.mubr.bf16.gmra.mrb[0].mxu0 %v267
    %v451 = vpop.f32.mrb[0].mxu0
    %v452 = vadd.f32 0.0, %v451
    %v453 = vpop.f32.mrb[0].mxu0
    %v454 = vpop.f32.mrb[0].mxu0
    %v455 = vadd.f32 0.0, %v454
    %v456 = vpop.f32.mrb[0].mxu0
    %457 = vmatprep.mubr.bf16.mxu0 0
    %458 = vmatmul.mubr.bf16.gmra.mrb[0].mxu0 %v270
    %v459 = vpop.f32.mrb[0].mxu0
    %v460 = vadd.f32 0.0, %v459
    %v461 = vpop.f32.mrb[0].mxu0
    %v462 = vpop.f32.mrb[0].mxu0
    %v463 = vadd.f32 0.0, %v462
    %v464 = vpop.f32.mrb[0].mxu0
    %465 = vmatprep.mubr.bf16.mxu0 0
    %466 = vmatmul.mubr.bf16.gmra.mrb[0].mxu0 %v273
    %v467 = vpop.f32.mrb[0].mxu0
    %v468 = vadd.f32 0.0, %v467
    %v469 = vpop.f32.mrb[0].mxu0
    %v470 = vpop.f32.mrb[0].mxu0
    %v471 = vadd.f32 0.0, %v470
    %v472 = vpop.f32.mrb[0].mxu0
    %473 = vmatprep.mubr.bf16.mxu0 0
    %474 = vmatmul.mubr.bf16.gmra.mrb[0].mxu0 %v276
    %v475 = vpop.f32.mrb[0].mxu0
    %v476 = vadd.f32 0.0, %v475
    %v477 = vpop.f32.mrb[0].mxu0
    %v478 = vpop.f32.mrb[0].mxu0
    %v479 = vadd.f32 0.0, %v478
    %v480 = vpop.f32.mrb[0].mxu0
    %481 = vmatprep.mubr.bf16.mxu0 0
    %482 = vmatmul.mubr.bf16.gmra.mrb[0].mxu0 %v279
    %v483 = vpop.f32.mrb[0].mxu0
    %v484 = vadd.f32 0.0, %v483
    %v485 = vpop.f32.mrb[0].mxu0
    %v486 = vpop.f32.mrb[0].mxu0
    %v487 = vadd.f32 0.0, %v486
    %v488 = vpop.f32.mrb[0].mxu0
    %489 = vmatprep.mubr.bf16.mxu0 0
    %490 = vmatmul.mubr.bf16.gmra.mrb[0].mxu0 %v282
    %v491 = vpop.f32.mrb[0].mxu0
    %v492 = vadd.f32 0.0, %v491
    %v493 = vpop.f32.mrb[0].mxu0
    %v494 = vpop.f32.mrb[0].mxu0
    %v495 = vadd.f32 0.0, %v494
    %v496 = vpop.f32.mrb[0].mxu0
    %497 = vmatprep.mubr.bf16.mxu0 0
    %498 = vmatmul.mubr.bf16.gmra.mrb[0].mxu0 %v285
    %v499 = vpop.f32.mrb[0].mxu0
    %v500 = vadd.f32 0.0, %v499
    %v501 = vpop.f32.mrb[0].mxu0
    %v502 = vpop.f32.mrb[0].mxu0
    %v503 = vadd.f32 0.0, %v502
    %v504 = vpop.f32.mrb[0].mxu0
    %505 = vmatprep.mubr.bf16.mxu0 0
    %506 = vmatmul.mubr.bf16.gmra.mrb[0].mxu0 %v288
    %v507 = vpop.f32.mrb[0].mxu0
    %v508 = vadd.f32 0.0, %v507
    %v509 = vpop.f32.mrb[0].mxu0
    %v510 = vpop.f32.mrb[0].mxu0
    %v511 = vadd.f32 0.0, %v510
    %v512 = vpop.f32.mrb[0].mxu0
    %513 = vmatprep.mubr.bf16.mxu0 0
    %514 = vmatmul.mubr.bf16.gmra.mrb[0].mxu0 %v291
    %v515 = vpop.f32.mrb[0].mxu0
    %v516 = vadd.f32 0.0, %v515
    %v517 = vpop.f32.mrb[0].mxu0
    %v518 = vpop.f32.mrb[0].mxu0
    %v519 = vadd.f32 0.0, %v518
    %v520 = vpop.f32.mrb[0].mxu0
    %521 = vdwg.mxu0
    %v530 = vunpack.c.l.b16 %v28
    %v531 = vunpack.c.l.b16 %v34
    %v532 = vunpack.c.l.b16 %v40
    %v533 = vunpack.c.l.b16 %v46
    %v534 = vunpack.c.l.b16 %v52
    %v535 = vunpack.c.l.b16 %v58
    %v536 = vunpack.c.l.b16 %v64
    %v537 = vunpack.c.l.b16 %v70
    %v538 = vpack.c.b16 %v139, %v530
    %v539 = vpack.c.b16 %v141, %v140
    %v540 = vpack.c.b16 %v143, %v142
    %v541 = vpack.c.b16 %v145, %v531
    %v542 = vpack.c.b16 %v147, %v146
    %v543 = vpack.c.b16 %v149, %v148
    %v544 = vpack.c.b16 %v151, %v532
    %v545 = vpack.c.b16 %v153, %v152
    %v546 = vpack.c.b16 %v155, %v154
    %v547 = vpack.c.b16 %v157, %v533
    %v548 = vpack.c.b16 %v159, %v158
    %v549 = vpack.c.b16 %v161, %v160
    %v550 = vpack.c.b16 %v163, %v534
    %v551 = vpack.c.b16 %v165, %v164
    %v552 = vpack.c.b16 %v167, %v166
    %v553 = vpack.c.b16 %v169, %v535
    %v554 = vpack.c.b16 %v171, %v170
    %v555 = vpack.c.b16 %v173, %v172
    %v556 = vpack.c.b16 %v175, %v536
    %v557 = vpack.c.b16 %v177, %v176
    %v558 = vpack.c.b16 %v179, %v178
    %v559 = vpack.c.b16 %v181, %v537
    %v560 = vpack.c.b16 %v183, %v182
    %v561 = vpack.c.b16 %v185, %v184
    %v565 = vunpack.c.l.b16 %v76
    %v566 = vunpack.c.l.b16 %v77
    %v567 = vunpack.c.l.b16 %v78
    %v568 = vpack.c.b16 %v566, %v565
    %v569 = vpack.c.b16 %v567, %v567
    %v572 = vsel %vm220, %v538, 0
    %v575 = vsel %vm220, %v539, 0
    %v578 = vsel %vm220, %v540, 0
    %v581 = vsel %vm220, %v541, 0
    %v584 = vsel %vm220, %v542, 0
    %v587 = vsel %vm220, %v543, 0
    %v590 = vsel %vm220, %v544, 0
    %v593 = vsel %vm220, %v545, 0
    %v596 = vsel %vm220, %v546, 0
    %v599 = vsel %vm220, %v547, 0
    %v602 = vsel %vm220, %v548, 0
    %v605 = vsel %vm220, %v549, 0
    %v608 = vsel %vm220, %v550, 0
    %v611 = vsel %vm220, %v551, 0
    %v614 = vsel %vm220, %v552, 0
    %v617 = vsel %vm220, %v553, 0
    %v620 = vsel %vm220, %v554, 0
    %v623 = vsel %vm220, %v555, 0
    %v626 = vsel %vm220, %v556, 0
    %v629 = vsel %vm220, %v557, 0
    %v632 = vsel %vm220, %v558, 0
    %v635 = vsel %vm220, %v559, 0
    %v638 = vsel %vm220, %v560, 0
    %v641 = vsel %vm220, %v561, 0
    %v644 = vsel %vm293, %v569, 0
    %646 = vmatprep.subr.bf16.mxu0 0
    %647 = vmatpush1.bf16.msra.mxu0 %v568
    %648 = vmatprep.subr.bf16.mxu0 0
    %649 = vmatpush1.bf16.msra.mxu0 %v644
    %650 = vmatprep.subr.bf16.mxu0 0
    %651 = vmatpush1.bf16.msra.mxu0 0
    %652 = vmatprep.subr.bf16.mxu0 0
    %653 = vmatpush1.bf16.msra.mxu0 0
    %654 = vmatprep.subr.bf16.mxu0 0
    %655 = vmatpush1.bf16.msra.mxu0 0
    %656 = vmatprep.subr.bf16.mxu0 0
    %657 = vmatpush1.bf16.msra.mxu0 0
    %658 = vmatprep.subr.bf16.mxu0 0
    %659 = vmatpush1.bf16.msra.mxu0 0
    %660 = vmatprep.subr.bf16.mxu0 0
    %661 = vmatpush1.bf16.msra.mxu0 0
    %662 = vmatprep.subr.bf16.mxu0 0
    %663 = vmatpush1.bf16.msra.mxu0 0
    %664 = vmatprep.subr.bf16.mxu0 0
    %665 = vmatpush1.bf16.msra.mxu0 0
    %666 = vmatprep.subr.bf16.mxu0 0
    %667 = vmatpush1.bf16.msra.mxu0 0
    %668 = vmatprep.subr.bf16.mxu0 0
    %669 = vmatpush1.bf16.msra.mxu0 0
    %670 = vmatprep.subr.bf16.mxu0 0
    %671 = vmatpush1.bf16.msra.mxu0 0
    %672 = vmatprep.subr.bf16.mxu0 0
    %673 = vmatpush1.bf16.msra.mxu0 0
    %674 = vmatprep.subr.bf16.mxu0 0
    %675 = vmatpush1.bf16.msra.mxu0 0
    %676 = vmatprep.subr.bf16.mxu0 0
    %677 = vmatpush1.bf16.msra.mxu0 0
    %678 = vmatprep.mubr.bf16.mxu0 0
    %679 = vmatmul.mubr.bf16.gmra.mrb[0].mxu0 %v572
    %v680 = vpop.f32.mrb[0].mxu0
    %v681 = vadd.f32 %v332, %v680
    %v682 = vpop.f32.mrb[0].mxu0
    %v683 = vpop.f32.mrb[0].mxu0
    %v684 = vadd.f32 %v335, %v683
    %v685 = vpop.f32.mrb[0].mxu0
    %686 = vmatprep.mubr.bf16.mxu0 0
    %687 = vmatmul.mubr.bf16.gmra.mrb[0].mxu0 %v575
    %v688 = vpop.f32.mrb[0].mxu0
    %v689 = vadd.f32 %v340, %v688
    %v690 = vpop.f32.mrb[0].mxu0
    %v691 = vpop.f32.mrb[0].mxu0
    %v692 = vadd.f32 %v343, %v691
    %v693 = vpop.f32.mrb[0].mxu0
    %694 = vmatprep.mubr.bf16.mxu0 0
    %695 = vmatmul.mubr.bf16.gmra.mrb[0].mxu0 %v578
    %v696 = vpop.f32.mrb[0].mxu0
    %v697 = vadd.f32 %v348, %v696
    %v698 = vpop.f32.mrb[0].mxu0
    %v699 = vpop.f32.mrb[0].mxu0
    %v700 = vadd.f32 %v351, %v699
    %v701 = vpop.f32.mrb[0].mxu0
    %702 = vmatprep.mubr.bf16.mxu0 0
    %703 = vmatmul.mubr.bf16.gmra.mrb[0].mxu0 %v581
    %v704 = vpop.f32.mrb[0].mxu0
    %v705 = vadd.f32 %v356, %v704
    %v706 = vpop.f32.mrb[0].mxu0
    %v707 = vpop.f32.mrb[0].mxu0
    %v708 = vadd.f32 %v359, %v707
    %v709 = vpop.f32.mrb[0].mxu0
    %710 = vmatprep.mubr.bf16.mxu0 0
    %711 = vmatmul.mubr.bf16.gmra.mrb[0].mxu0 %v584
    %v712 = vpop.f32.mrb[0].mxu0
    %v713 = vadd.f32 %v364, %v712
    %v714 = vpop.f32.mrb[0].mxu0
    %v715 = vpop.f32.mrb[0].mxu0
    %v716 = vadd.f32 %v367, %v715
    %v717 = vpop.f32.mrb[0].mxu0
    %718 = vmatprep.mubr.bf16.mxu0 0
    %719 = vmatmul.mubr.bf16.gmra.mrb[0].mxu0 %v587
    %v720 = vpop.f32.mrb[0].mxu0
    %v721 = vadd.f32 %v372, %v720
    %v722 = vpop.f32.mrb[0].mxu0
    %v723 = vpop.f32.mrb[0].mxu0
    %v724 = vadd.f32 %v375, %v723
    %v725 = vpop.f32.mrb[0].mxu0
    %726 = vmatprep.mubr.bf16.mxu0 0
    %727 = vmatmul.mubr.bf16.gmra.mrb[0].mxu0 %v590
    %v728 = vpop.f32.mrb[0].mxu0
    %v729 = vadd.f32 %v380, %v728
    %v730 = vpop.f32.mrb[0].mxu0
    %v731 = vpop.f32.mrb[0].mxu0
    %v732 = vadd.f32 %v383, %v731
    %v733 = vpop.f32.mrb[0].mxu0
    %734 = vmatprep.mubr.bf16.mxu0 0
    %735 = vmatmul.mubr.bf16.gmra.mrb[0].mxu0 %v593
    %v736 = vpop.f32.mrb[0].mxu0
    %v737 = vadd.f32 %v388, %v736
    %v738 = vpop.f32.mrb[0].mxu0
    %v739 = vpop.f32.mrb[0].mxu0
    %v740 = vadd.f32 %v391, %v739
    %v741 = vpop.f32.mrb[0].mxu0
    %742 = vmatprep.mubr.bf16.mxu0 0
    %743 = vmatmul.mubr.bf16.gmra.mrb[0].mxu0 %v596
    %v744 = vpop.f32.mrb[0].mxu0
    %v745 = vadd.f32 %v396, %v744
    %v746 = vpop.f32.mrb[0].mxu0
    %v747 = vpop.f32.mrb[0].mxu0
    %v748 = vadd.f32 %v399, %v747
    %v749 = vpop.f32.mrb[0].mxu0
    %750 = vmatprep.mubr.bf16.mxu0 0
    %751 = vmatmul.mubr.bf16.gmra.mrb[0].mxu0 %v599
    %v752 = vpop.f32.mrb[0].mxu0
    %v753 = vadd.f32 %v404, %v752
    %v754 = vpop.f32.mrb[0].mxu0
    %v755 = vpop.f32.mrb[0].mxu0
    %v756 = vadd.f32 %v407, %v755
    %v757 = vpop.f32.mrb[0].mxu0
    %758 = vmatprep.mubr.bf16.mxu0 0
    %759 = vmatmul.mubr.bf16.gmra.mrb[0].mxu0 %v602
    %v760 = vpop.f32.mrb[0].mxu0
    %v761 = vadd.f32 %v412, %v760
    %v762 = vpop.f32.mrb[0].mxu0
    %v763 = vpop.f32.mrb[0].mxu0
    %v764 = vadd.f32 %v415, %v763
    %v765 = vpop.f32.mrb[0].mxu0
    %766 = vmatprep.mubr.bf16.mxu0 0
    %767 = vmatmul.mubr.bf16.gmra.mrb[0].mxu0 %v605
    %v768 = vpop.f32.mrb[0].mxu0
    %v769 = vadd.f32 %v420, %v768
    %v770 = vpop.f32.mrb[0].mxu0
    %v771 = vpop.f32.mrb[0].mxu0
    %v772 = vadd.f32 %v423, %v771
    %v773 = vpop.f32.mrb[0].mxu0
    %774 = vmatprep.mubr.bf16.mxu0 0
    %775 = vmatmul.mubr.bf16.gmra.mrb[0].mxu0 %v608
    %v776 = vpop.f32.mrb[0].mxu0
    %v777 = vadd.f32 %v428, %v776
    %v778 = vpop.f32.mrb[0].mxu0
    %v779 = vpop.f32.mrb[0].mxu0
    %v780 = vadd.f32 %v431, %v779
    %v781 = vpop.f32.mrb[0].mxu0
    %782 = vmatprep.mubr.bf16.mxu0 0
    %783 = vmatmul.mubr.bf16.gmra.mrb[0].mxu0 %v611
    %v784 = vpop.f32.mrb[0].mxu0
    %v785 = vadd.f32 %v436, %v784
    %v786 = vpop.f32.mrb[0].mxu0
    %v787 = vpop.f32.mrb[0].mxu0
    %v788 = vadd.f32 %v439, %v787
    %v789 = vpop.f32.mrb[0].mxu0
    %790 = vmatprep.mubr.bf16.mxu0 0
    %791 = vmatmul.mubr.bf16.gmra.mrb[0].mxu0 %v614
    %v792 = vpop.f32.mrb[0].mxu0
    %v793 = vadd.f32 %v444, %v792
    %v794 = vpop.f32.mrb[0].mxu0
    %v795 = vpop.f32.mrb[0].mxu0
    %v796 = vadd.f32 %v447, %v795
    %v797 = vpop.f32.mrb[0].mxu0
    %798 = vmatprep.mubr.bf16.mxu0 0
    %799 = vmatmul.mubr.bf16.gmra.mrb[0].mxu0 %v617
    %v800 = vpop.f32.mrb[0].mxu0
    %v801 = vadd.f32 %v452, %v800
    %v802 = vpop.f32.mrb[0].mxu0
    %v803 = vpop.f32.mrb[0].mxu0
    %v804 = vadd.f32 %v455, %v803
    %v805 = vpop.f32.mrb[0].mxu0
    %806 = vmatprep.mubr.bf16.mxu0 0
    %807 = vmatmul.mubr.bf16.gmra.mrb[0].mxu0 %v620
    %v808 = vpop.f32.mrb[0].mxu0
    %v809 = vadd.f32 %v460, %v808
    %v810 = vpop.f32.mrb[0].mxu0
    %v811 = vpop.f32.mrb[0].mxu0
    %v812 = vadd.f32 %v463, %v811
    %v813 = vpop.f32.mrb[0].mxu0
    %814 = vmatprep.mubr.bf16.mxu0 0
    %815 = vmatmul.mubr.bf16.gmra.mrb[0].mxu0 %v623
    %v816 = vpop.f32.mrb[0].mxu0
    %v817 = vadd.f32 %v468, %v816
    %v818 = vpop.f32.mrb[0].mxu0
    %v819 = vpop.f32.mrb[0].mxu0
    %v820 = vadd.f32 %v471, %v819
    %v821 = vpop.f32.mrb[0].mxu0
    %822 = vmatprep.mubr.bf16.mxu0 0
    %823 = vmatmul.mubr.bf16.gmra.mrb[0].mxu0 %v626
    %v824 = vpop.f32.mrb[0].mxu0
    %v825 = vadd.f32 %v476, %v824
    %v826 = vpop.f32.mrb[0].mxu0
    %v827 = vpop.f32.mrb[0].mxu0
    %v828 = vadd.f32 %v479, %v827
    %v829 = vpop.f32.mrb[0].mxu0
    %830 = vmatprep.mubr.bf16.mxu0 0
    %831 = vmatmul.mubr.bf16.gmra.mrb[0].mxu0 %v629
    %v832 = vpop.f32.mrb[0].mxu0
    %v833 = vadd.f32 %v484, %v832
    %v834 = vpop.f32.mrb[0].mxu0
    %v835 = vpop.f32.mrb[0].mxu0
    %v836 = vadd.f32 %v487, %v835
    %v837 = vpop.f32.mrb[0].mxu0
    %838 = vmatprep.mubr.bf16.mxu0 0
    %839 = vmatmul.mubr.bf16.gmra.mrb[0].mxu0 %v632
    %v840 = vpop.f32.mrb[0].mxu0
    %v841 = vadd.f32 %v492, %v840
    %v842 = vpop.f32.mrb[0].mxu0
    %v843 = vpop.f32.mrb[0].mxu0
    %v844 = vadd.f32 %v495, %v843
    %v845 = vpop.f32.mrb[0].mxu0
    %846 = vmatprep.mubr.bf16.mxu0 0
    %847 = vmatmul.mubr.bf16.gmra.mrb[0].mxu0 %v635
    %v848 = vpop.f32.mrb[0].mxu0
    %v849 = vadd.f32 %v500, %v848
    %v850 = vpop.f32.mrb[0].mxu0
    %v851 = vpop.f32.mrb[0].mxu0
    %v852 = vadd.f32 %v503, %v851
    %v853 = vpop.f32.mrb[0].mxu0
    %854 = vmatprep.mubr.bf16.mxu0 0
    %855 = vmatmul.mubr.bf16.gmra.mrb[0].mxu0 %v638
    %v856 = vpop.f32.mrb[0].mxu0
    %v857 = vadd.f32 %v508, %v856
    %v858 = vpop.f32.mrb[0].mxu0
    %v859 = vpop.f32.mrb[0].mxu0
    %v860 = vadd.f32 %v511, %v859
    %v861 = vpop.f32.mrb[0].mxu0
    %862 = vmatprep.mubr.bf16.mxu0 0
    %863 = vmatmul.mubr.bf16.gmra.mrb[0].mxu0 %v641
    %v864 = vpop.f32.mrb[0].mxu0
    %v865 = vadd.f32 %v516, %v864
    %v866 = vpop.f32.mrb[0].mxu0
    %v867 = vpop.f32.mrb[0].mxu0
    %v868 = vadd.f32 %v519, %v867
    %v869 = vpop.f32.mrb[0].mxu0
    %870 = vdwg.mxu0
    %v871 = vld [vmem:[%s0 + $0x8] sm:$0xf]
    %v872 = vld [vmem:[%s0 + $0xc] sm:$0xf]
    %v873 = vld [vmem:[%s0 + $0x10] sm:$0xf]
    %v874 = vld [vmem:[%s0 + $0x14] sm:$0xf]
    %v875 = vld [vmem:[%s0 + $0x18] sm:$0xf]
    %v876 = vld [vmem:[%s0 + $0x1c] sm:$0xf]
    %v877 = vld [vmem:[%s0 + $0x28] sm:$0xf]
    %v878 = vld [vmem:[%s0 + $0x2c] sm:$0xf]
    %v879 = vld [vmem:[%s0 + $0x30] sm:$0xf]
    %v880 = vld [vmem:[%s0 + $0x34] sm:$0xf]
    %v881 = vld [vmem:[%s0 + $0x38] sm:$0xf]
    %v882 = vld [vmem:[%s0 + $0x3c] sm:$0xf]
    %v883 = vld [vmem:[%s0 + $0x48] sm:$0xf]
    %v884 = vld [vmem:[%s0 + $0x4c] sm:$0xf]
    %v885 = vld [vmem:[%s0 + $0x50] sm:$0xf]
    %v886 = vld [vmem:[%s0 + $0x54] sm:$0xf]
    %v887 = vld [vmem:[%s0 + $0x58] sm:$0xf]
    %v888 = vld [vmem:[%s0 + $0x5c] sm:$0xf]
    %v889 = vld [vmem:[%s0 + $0x68] sm:$0xf]
    %v890 = vld [vmem:[%s0 + $0x6c] sm:$0xf]
    %v891 = vld [vmem:[%s0 + $0x70] sm:$0xf]
    %v892 = vld [vmem:[%s0 + $0x74] sm:$0xf]
    %v893 = vld [vmem:[%s0 + $0x78] sm:$0xf]
    %v894 = vld [vmem:[%s0 + $0x7c] sm:$0xf]
    %v895 = vld [vmem:[%s0 + $0x88] sm:$0xf]
    %v896 = vld [vmem:[%s0 + $0x8c] sm:$0xf]
    %v897 = vld [vmem:[%s0 + $0x90] sm:$0xf]
    %v898 = vld [vmem:[%s0 + $0x94] sm:$0xf]
    %v899 = vld [vmem:[%s0 + $0x98] sm:$0xf]
    %v900 = vld [vmem:[%s0 + $0x9c] sm:$0xf]
    %v901 = vld [vmem:[%s0 + $0xa8] sm:$0xf]
    %v902 = vld [vmem:[%s0 + $0xac] sm:$0xf]
    %v903 = vld [vmem:[%s0 + $0xb0] sm:$0xf]
    %v904 = vld [vmem:[%s0 + $0xb4] sm:$0xf]
    %v905 = vld [vmem:[%s0 + $0xb8] sm:$0xf]
    %v906 = vld [vmem:[%s0 + $0xbc] sm:$0xf]
    %v907 = vld [vmem:[%s0 + $0xc8] sm:$0xf]
    %v908 = vld [vmem:[%s0 + $0xcc] sm:$0xf]
    %v909 = vld [vmem:[%s0 + $0xd0] sm:$0xf]
    %v910 = vld [vmem:[%s0 + $0xd4] sm:$0xf]
    %v911 = vld [vmem:[%s0 + $0xd8] sm:$0xf]
    %v912 = vld [vmem:[%s0 + $0xdc] sm:$0xf]
    %v913 = vld [vmem:[%s0 + $0xe8] sm:$0xf]
    %v914 = vld [vmem:[%s0 + $0xec] sm:$0xf]
    %v915 = vld [vmem:[%s0 + $0xf0] sm:$0xf]
    %v916 = vld [vmem:[%s0 + $0xf4] sm:$0xf]
    %v917 = vld [vmem:[%s0 + $0xf8] sm:$0xf]
    %v918 = vld [vmem:[%s0 + $0xfc] sm:$0xf]
    %s919 = scalar_lea.vmem %s1, 24
    %v920 = vld [vmem:[%s919] sm:$0xf]
    %v921 = vld [vmem:[%s919 + $0x4] sm:$0xf]
    %v922 = vld [vmem:[%s919 + $0x8] sm:$0xf]
    %v971 = vunpack.c.l.b16 %v871
    %v972 = vunpack.c.l.b16 %v872
    %v973 = vunpack.c.l.b16 %v873
    %v974 = vunpack.c.l.b16 %v874
    %v975 = vunpack.c.l.b16 %v875
    %v976 = vunpack.c.l.b16 %v876
    %v977 = vunpack.c.l.b16 %v877
    %v978 = vunpack.c.l.b16 %v878
    %v979 = vunpack.c.l.b16 %v879
    %v980 = vunpack.c.l.b16 %v880
    %v981 = vunpack.c.l.b16 %v881
    %v982 = vunpack.c.l.b16 %v882
    %v983 = vunpack.c.l.b16 %v883
    %v984 = vunpack.c.l.b16 %v884
    %v985 = vunpack.c.l.b16 %v885
    %v986 = vunpack.c.l.b16 %v886
    %v987 = vunpack.c.l.b16 %v887
    %v988 = vunpack.c.l.b16 %v888
    %v989 = vunpack.c.l.b16 %v889
    %v990 = vunpack.c.l.b16 %v890
    %v991 = vunpack.c.l.b16 %v891
    %v992 = vunpack.c.l.b16 %v892
    %v993 = vunpack.c.l.b16 %v893
    %v994 = vunpack.c.l.b16 %v894
    %v995 = vunpack.c.l.b16 %v895
    %v996 = vunpack.c.l.b16 %v896
    %v997 = vunpack.c.l.b16 %v897
    %v998 = vunpack.c.l.b16 %v898
    %v999 = vunpack.c.l.b16 %v899
    %v1000 = vunpack.c.l.b16 %v900
    %v1001 = vunpack.c.l.b16 %v901
    %v1002 = vunpack.c.l.b16 %v902
    %v1003 = vunpack.c.l.b16 %v903
    %v1004 = vunpack.c.l.b16 %v904
    %v1005 = vunpack.c.l.b16 %v905
    %v1006 = vunpack.c.l.b16 %v906
    %v1007 = vunpack.c.l.b16 %v907
    %v1008 = vunpack.c.l.b16 %v908
    %v1009 = vunpack.c.l.b16 %v909
    %v1010 = vunpack.c.l.b16 %v910
    %v1011 = vunpack.c.l.b16 %v911
    %v1012 = vunpack.c.l.b16 %v912
    %v1013 = vunpack.c.l.b16 %v913
    %v1014 = vunpack.c.l.b16 %v914
    %v1015 = vunpack.c.l.b16 %v915
    %v1016 = vunpack.c.l.b16 %v916
    %v1017 = vunpack.c.l.b16 %v917
    %v1018 = vunpack.c.l.b16 %v918
    %v1019 = vpack.c.b16 %v972, %v971
    %v1020 = vpack.c.b16 %v974, %v973
    %v1021 = vpack.c.b16 %v976, %v975
    %v1022 = vpack.c.b16 %v978, %v977
    %v1023 = vpack.c.b16 %v980, %v979
    %v1024 = vpack.c.b16 %v982, %v981
    %v1025 = vpack.c.b16 %v984, %v983
    %v1026 = vpack.c.b16 %v986, %v985
    %v1027 = vpack.c.b16 %v988, %v987
    %v1028 = vpack.c.b16 %v990, %v989
    %v1029 = vpack.c.b16 %v992, %v991
    %v1030 = vpack.c.b16 %v994, %v993
    %v1031 = vpack.c.b16 %v996, %v995
    %v1032 = vpack.c.b16 %v998, %v997
    %v1033 = vpack.c.b16 %v1000, %v999
    %v1034 = vpack.c.b16 %v1002, %v1001
    %v1035 = vpack.c.b16 %v1004, %v1003
    %v1036 = vpack.c.b16 %v1006, %v1005
    %v1037 = vpack.c.b16 %v1008, %v1007
    %v1038 = vpack.c.b16 %v1010, %v1009
    %v1039 = vpack.c.b16 %v1012, %v1011
    %v1040 = vpack.c.b16 %v1014, %v1013
    %v1041 = vpack.c.b16 %v1016, %v1015
    %v1042 = vpack.c.b16 %v1018, %v1017
    %v1046 = vunpack.c.l.b16 %v920
    %v1047 = vunpack.c.l.b16 %v921
    %v1048 = vunpack.c.l.b16 %v922
    %v1049 = vpack.c.b16 %v1047, %v1046
    %v1050 = vpack.c.b16 %v1048, %v1048
    %v1053 = vsel %vm220, %v1019, 0
    %v1056 = vsel %vm220, %v1020, 0
    %v1059 = vsel %vm220, %v1021, 0
    %v1062 = vsel %vm220, %v1022, 0
    %v1065 = vsel %vm220, %v1023, 0
    %v1068 = vsel %vm220, %v1024, 0
    %v1071 = vsel %vm220, %v1025, 0
    %v1074 = vsel %vm220, %v1026, 0
    %v1077 = vsel %vm220, %v1027, 0
    %v1080 = vsel %vm220, %v1028, 0
    %v1083 = vsel %vm220, %v1029, 0
    %v1086 = vsel %vm220, %v1030, 0
    %v1089 = vsel %vm220, %v1031, 0
    %v1092 = vsel %vm220, %v1032, 0
    %v1095 = vsel %vm220, %v1033, 0
    %v1098 = vsel %vm220, %v1034, 0
    %v1101 = vsel %vm220, %v1035, 0
    %v1104 = vsel %vm220, %v1036, 0
    %v1107 = vsel %vm220, %v1037, 0
    %v1110 = vsel %vm220, %v1038, 0
    %v1113 = vsel %vm220, %v1039, 0
    %v1116 = vsel %vm220, %v1040, 0
    %v1119 = vsel %vm220, %v1041, 0
    %v1122 = vsel %vm220, %v1042, 0
    %v1125 = vsel %vm293, %v1050, 0
    %1127 = vmatprep.subr.bf16.mxu0 0
    %1128 = vmatpush1.bf16.msra.mxu0 %v1049
    %1129 = vmatprep.subr.bf16.mxu0 0
    %1130 = vmatpush1.bf16.msra.mxu0 %v1125
    %1131 = vmatprep.subr.bf16.mxu0 0
    %1132 = vmatpush1.bf16.msra.mxu0 0
    %1133 = vmatprep.subr.bf16.mxu0 0
    %1134 = vmatpush1.bf16.msra.mxu0 0
    %1135 = vmatprep.subr.bf16.mxu0 0
    %1136 = vmatpush1.bf16.msra.mxu0 0
    %1137 = vmatprep.subr.bf16.mxu0 0
    %1138 = vmatpush1.bf16.msra.mxu0 0
    %1139 = vmatprep.subr.bf16.mxu0 0
    %1140 = vmatpush1.bf16.msra.mxu0 0
    %1141 = vmatprep.subr.bf16.mxu0 0
    %1142 = vmatpush1.bf16.msra.mxu0 0
    %1143 = vmatprep.subr.bf16.mxu0 0
    %1144 = vmatpush1.bf16.msra.mxu0 0
    %1145 = vmatprep.subr.bf16.mxu0 0
    %1146 = vmatpush1.bf16.msra.mxu0 0
    %1147 = vmatprep.subr.bf16.mxu0 0
    %1148 = vmatpush1.bf16.msra.mxu0 0
    %1149 = vmatprep.subr.bf16.mxu0 0
    %1150 = vmatpush1.bf16.msra.mxu0 0
    %1151 = vmatprep.subr.bf16.mxu0 0
    %1152 = vmatpush1.bf16.msra.mxu0 0
    %1153 = vmatprep.subr.bf16.mxu0 0
    %1154 = vmatpush1.bf16.msra.mxu0 0
    %1155 = vmatprep.subr.bf16.mxu0 0
    %1156 = vmatpush1.bf16.msra.mxu0 0
    %1157 = vmatprep.subr.bf16.mxu0 0
    %1158 = vmatpush1.bf16.msra.mxu0 0
    %1159 = vmatprep.mubr.bf16.mxu0 0
    %1160 = vmatmul.mubr.bf16.gmra.mrb[0].mxu0 %v1053
    %v1161 = vpop.f32.mrb[0].mxu0
    %v1162 = vadd.f32 0.0, %v1161
    %v1163 = vpop.f32.mrb[0].mxu0
    %v1164 = vpop.f32.mrb[0].mxu0
    %v1165 = vadd.f32 0.0, %v1164
    %v1166 = vpop.f32.mrb[0].mxu0
    %1167 = vmatprep.mubr.bf16.mxu0 0
    %1168 = vmatmul.mubr.bf16.gmra.mrb[0].mxu0 %v1056
    %v1169 = vpop.f32.mrb[0].mxu0
    %v1170 = vadd.f32 0.0, %v1169
    %v1171 = vpop.f32.mrb[0].mxu0
    %v1172 = vpop.f32.mrb[0].mxu0
    %v1173 = vadd.f32 0.0, %v1172
    %v1174 = vpop.f32.mrb[0].mxu0
    %1175 = vmatprep.mubr.bf16.mxu0 0
    %1176 = vmatmul.mubr.bf16.gmra.mrb[0].mxu0 %v1059
    %v1177 = vpop.f32.mrb[0].mxu0
    %v1178 = vadd.f32 0.0, %v1177
    %v1179 = vpop.f32.mrb[0].mxu0
    %v1180 = vpop.f32.mrb[0].mxu0
    %v1181 = vadd.f32 0.0, %v1180
    %v1182 = vpop.f32.mrb[0].mxu0
    %1183 = vmatprep.mubr.bf16.mxu0 0
    %1184 = vmatmul.mubr.bf16.gmra.mrb[0].mxu0 %v1062
    %v1185 = vpop.f32.mrb[0].mxu0
    %v1186 = vadd.f32 0.0, %v1185
    %v1187 = vpop.f32.mrb[0].mxu0
    %v1188 = vpop.f32.mrb[0].mxu0
    %v1189 = vadd.f32 0.0, %v1188
    %v1190 = vpop.f32.mrb[0].mxu0
    %1191 = vmatprep.mubr.bf16.mxu0 0
    %1192 = vmatmul.mubr.bf16.gmra.mrb[0].mxu0 %v1065
    %v1193 = vpop.f32.mrb[0].mxu0
    %v1194 = vadd.f32 0.0, %v1193
    %v1195 = vpop.f32.mrb[0].mxu0
    %v1196 = vpop.f32.mrb[0].mxu0
    %v1197 = vadd.f32 0.0, %v1196
    %v1198 = vpop.f32.mrb[0].mxu0
    %1199 = vmatprep.mubr.bf16.mxu0 0
    %1200 = vmatmul.mubr.bf16.gmra.mrb[0].mxu0 %v1068
    %v1201 = vpop.f32.mrb[0].mxu0
    %v1202 = vadd.f32 0.0, %v1201
    %v1203 = vpop.f32.mrb[0].mxu0
    %v1204 = vpop.f32.mrb[0].mxu0
    %v1205 = vadd.f32 0.0, %v1204
    %v1206 = vpop.f32.mrb[0].mxu0
    %1207 = vmatprep.mubr.bf16.mxu0 0
    %1208 = vmatmul.mubr.bf16.gmra.mrb[0].mxu0 %v1071
    %v1209 = vpop.f32.mrb[0].mxu0
    %v1210 = vadd.f32 0.0, %v1209
    %v1211 = vpop.f32.mrb[0].mxu0
    %v1212 = vpop.f32.mrb[0].mxu0
    %v1213 = vadd.f32 0.0, %v1212
    %v1214 = vpop.f32.mrb[0].mxu0
    %1215 = vmatprep.mubr.bf16.mxu0 0
    %1216 = vmatmul.mubr.bf16.gmra.mrb[0].mxu0 %v1074
    %v1217 = vpop.f32.mrb[0].mxu0
    %v1218 = vadd.f32 0.0, %v1217
    %v1219 = vpop.f32.mrb[0].mxu0
    %v1220 = vpop.f32.mrb[0].mxu0
    %v1221 = vadd.f32 0.0, %v1220
    %v1222 = vpop.f32.mrb[0].mxu0
    %1223 = vmatprep.mubr.bf16.mxu0 0
    %1224 = vmatmul.mubr.bf16.gmra.mrb[0].mxu0 %v1077
    %v1225 = vpop.f32.mrb[0].mxu0
    %v1226 = vadd.f32 0.0, %v1225
    %v1227 = vpop.f32.mrb[0].mxu0
    %v1228 = vpop.f32.mrb[0].mxu0
    %v1229 = vadd.f32 0.0, %v1228
    %v1230 = vpop.f32.mrb[0].mxu0
    %1231 = vmatprep.mubr.bf16.mxu0 0
    %1232 = vmatmul.mubr.bf16.gmra.mrb[0].mxu0 %v1080
    %v1233 = vpop.f32.mrb[0].mxu0
    %v1234 = vadd.f32 0.0, %v1233
    %v1235 = vpop.f32.mrb[0].mxu0
    %v1236 = vpop.f32.mrb[0].mxu0
    %v1237 = vadd.f32 0.0, %v1236
    %v1238 = vpop.f32.mrb[0].mxu0
    %1239 = vmatprep.mubr.bf16.mxu0 0
    %1240 = vmatmul.mubr.bf16.gmra.mrb[0].mxu0 %v1083
    %v1241 = vpop.f32.mrb[0].mxu0
    %v1242 = vadd.f32 0.0, %v1241
    %v1243 = vpop.f32.mrb[0].mxu0
    %v1244 = vpop.f32.mrb[0].mxu0
    %v1245 = vadd.f32 0.0, %v1244
    %v1246 = vpop.f32.mrb[0].mxu0
    %1247 = vmatprep.mubr.bf16.mxu0 0
    %1248 = vmatmul.mubr.bf16.gmra.mrb[0].mxu0 %v1086
    %v1249 = vpop.f32.mrb[0].mxu0
    %v1250 = vadd.f32 0.0, %v1249
    %v1251 = vpop.f32.mrb[0].mxu0
    %v1252 = vpop.f32.mrb[0].mxu0
    %v1253 = vadd.f32 0.0, %v1252
    %v1254 = vpop.f32.mrb[0].mxu0
    %1255 = vmatprep.mubr.bf16.mxu0 0
    %1256 = vmatmul.mubr.bf16.gmra.mrb[0].mxu0 %v1089
    %v1257 = vpop.f32.mrb[0].mxu0
    %v1258 = vadd.f32 0.0, %v1257
    %v1259 = vpop.f32.mrb[0].mxu0
    %v1260 = vpop.f32.mrb[0].mxu0
    %v1261 = vadd.f32 0.0, %v1260
    %v1262 = vpop.f32.mrb[0].mxu0
    %1263 = vmatprep.mubr.bf16.mxu0 0
    %1264 = vmatmul.mubr.bf16.gmra.mrb[0].mxu0 %v1092
    %v1265 = vpop.f32.mrb[0].mxu0
    %v1266 = vadd.f32 0.0, %v1265
    %v1267 = vpop.f32.mrb[0].mxu0
    %v1268 = vpop.f32.mrb[0].mxu0
    %v1269 = vadd.f32 0.0, %v1268
    %v1270 = vpop.f32.mrb[0].mxu0
    %1271 = vmatprep.mubr.bf16.mxu0 0
    %1272 = vmatmul.mubr.bf16.gmra.mrb[0].mxu0 %v1095
    %v1273 = vpop.f32.mrb[0].mxu0
    %v1274 = vadd.f32 0.0, %v1273
    %v1275 = vpop.f32.mrb[0].mxu0
    %v1276 = vpop.f32.mrb[0].mxu0
    %v1277 = vadd.f32 0.0, %v1276
    %v1278 = vpop.f32.mrb[0].mxu0
    %1279 = vmatprep.mubr.bf16.mxu0 0
    %1280 = vmatmul.mubr.bf16.gmra.mrb[0].mxu0 %v1098
    %v1281 = vpop.f32.mrb[0].mxu0
    %v1282 = vadd.f32 0.0, %v1281
    %v1283 = vpop.f32.mrb[0].mxu0
    %v1284 = vpop.f32.mrb[0].mxu0
    %v1285 = vadd.f32 0.0, %v1284
    %v1286 = vpop.f32.mrb[0].mxu0
    %1287 = vmatprep.mubr.bf16.mxu0 0
    %1288 = vmatmul.mubr.bf16.gmra.mrb[0].mxu0 %v1101
    %v1289 = vpop.f32.mrb[0].mxu0
    %v1290 = vadd.f32 0.0, %v1289
    %v1291 = vpop.f32.mrb[0].mxu0
    %v1292 = vpop.f32.mrb[0].mxu0
    %v1293 = vadd.f32 0.0, %v1292
    %v1294 = vpop.f32.mrb[0].mxu0
    %1295 = vmatprep.mubr.bf16.mxu0 0
    %1296 = vmatmul.mubr.bf16.gmra.mrb[0].mxu0 %v1104
    %v1297 = vpop.f32.mrb[0].mxu0
    %v1298 = vadd.f32 0.0, %v1297
    %v1299 = vpop.f32.mrb[0].mxu0
    %v1300 = vpop.f32.mrb[0].mxu0
    %v1301 = vadd.f32 0.0, %v1300
    %v1302 = vpop.f32.mrb[0].mxu0
    %1303 = vmatprep.mubr.bf16.mxu0 0
    %1304 = vmatmul.mubr.bf16.gmra.mrb[0].mxu0 %v1107
    %v1305 = vpop.f32.mrb[0].mxu0
    %v1306 = vadd.f32 0.0, %v1305
    %v1307 = vpop.f32.mrb[0].mxu0
    %v1308 = vpop.f32.mrb[0].mxu0
    %v1309 = vadd.f32 0.0, %v1308
    %v1310 = vpop.f32.mrb[0].mxu0
    %1311 = vmatprep.mubr.bf16.mxu0 0
    %1312 = vmatmul.mubr.bf16.gmra.mrb[0].mxu0 %v1110
    %v1313 = vpop.f32.mrb[0].mxu0
    %v1314 = vadd.f32 0.0, %v1313
    %v1315 = vpop.f32.mrb[0].mxu0
    %v1316 = vpop.f32.mrb[0].mxu0
    %v1317 = vadd.f32 0.0, %v1316
    %v1318 = vpop.f32.mrb[0].mxu0
    %1319 = vmatprep.mubr.bf16.mxu0 0
    %1320 = vmatmul.mubr.bf16.gmra.mrb[0].mxu0 %v1113
    %v1321 = vpop.f32.mrb[0].mxu0
    %v1322 = vadd.f32 0.0, %v1321
    %v1323 = vpop.f32.mrb[0].mxu0
    %v1324 = vpop.f32.mrb[0].mxu0
    %v1325 = vadd.f32 0.0, %v1324
    %v1326 = vpop.f32.mrb[0].mxu0
    %1327 = vmatprep.mubr.bf16.mxu0 0
    %1328 = vmatmul.mubr.bf16.gmra.mrb[0].mxu0 %v1116
    %v1329 = vpop.f32.mrb[0].mxu0
    %v1330 = vadd.f32 0.0, %v1329
    %v1331 = vpop.f32.mrb[0].mxu0
    %v1332 = vpop.f32.mrb[0].mxu0
    %v1333 = vadd.f32 0.0, %v1332
    %v1334 = vpop.f32.mrb[0].mxu0
    %1335 = vmatprep.mubr.bf16.mxu0 0
    %1336 = vmatmul.mubr.bf16.gmra.mrb[0].mxu0 %v1119
    %v1337 = vpop.f32.mrb[0].mxu0
    %v1338 = vadd.f32 0.0, %v1337
    %v1339 = vpop.f32.mrb[0].mxu0
    %v1340 = vpop.f32.mrb[0].mxu0
    %v1341 = vadd.f32 0.0, %v1340
    %v1342 = vpop.f32.mrb[0].mxu0
    %1343 = vmatprep.mubr.bf16.mxu0 0
    %1344 = vmatmul.mubr.bf16.gmra.mrb[0].mxu0 %v1122
    %v1345 = vpop.f32.mrb[0].mxu0
    %v1346 = vadd.f32 0.0, %v1345
    %v1347 = vpop.f32.mrb[0].mxu0
    %v1348 = vpop.f32.mrb[0].mxu0
    %v1349 = vadd.f32 0.0, %v1348
    %v1350 = vpop.f32.mrb[0].mxu0
    %1351 = vdwg.mxu0
    %v1352 = vadd.f32 %v681, %v1162
    %v1353 = vadd.f32 %v684, %v1165
    %v1354 = vadd.f32 %v689, %v1170
    %v1355 = vadd.f32 %v692, %v1173
    %v1356 = vadd.f32 %v697, %v1178
    %v1357 = vadd.f32 %v700, %v1181
    %v1358 = vadd.f32 %v705, %v1186
    %v1359 = vadd.f32 %v708, %v1189
    %v1360 = vadd.f32 %v713, %v1194
    %v1361 = vadd.f32 %v716, %v1197
    %v1362 = vadd.f32 %v721, %v1202
    %v1363 = vadd.f32 %v724, %v1205
    %v1364 = vadd.f32 %v729, %v1210
    %v1365 = vadd.f32 %v732, %v1213
    %v1366 = vadd.f32 %v737, %v1218
    %v1367 = vadd.f32 %v740, %v1221
    %v1368 = vadd.f32 %v745, %v1226
    %v1369 = vadd.f32 %v748, %v1229
    %v1370 = vadd.f32 %v753, %v1234
    %v1371 = vadd.f32 %v756, %v1237
    %v1372 = vadd.f32 %v761, %v1242
    %v1373 = vadd.f32 %v764, %v1245
    %v1374 = vadd.f32 %v769, %v1250
    %v1375 = vadd.f32 %v772, %v1253
    %v1376 = vadd.f32 %v777, %v1258
    %v1377 = vadd.f32 %v780, %v1261
    %v1378 = vadd.f32 %v785, %v1266
    %v1379 = vadd.f32 %v788, %v1269
    %v1380 = vadd.f32 %v793, %v1274
    %v1381 = vadd.f32 %v796, %v1277
    %v1382 = vadd.f32 %v801, %v1282
    %v1383 = vadd.f32 %v804, %v1285
    %v1384 = vadd.f32 %v809, %v1290
    %v1385 = vadd.f32 %v812, %v1293
    %v1386 = vadd.f32 %v817, %v1298
    %v1387 = vadd.f32 %v820, %v1301
    %v1388 = vadd.f32 %v825, %v1306
    %v1389 = vadd.f32 %v828, %v1309
    %v1390 = vadd.f32 %v833, %v1314
    %v1391 = vadd.f32 %v836, %v1317
    %v1392 = vadd.f32 %v841, %v1322
    %v1393 = vadd.f32 %v844, %v1325
    %v1394 = vadd.f32 %v849, %v1330
    %v1395 = vadd.f32 %v852, %v1333
    %v1396 = vadd.f32 %v857, %v1338
    %v1397 = vadd.f32 %v860, %v1341
    %v1398 = vadd.f32 %v865, %v1346
    %v1399 = vadd.f32 %v868, %v1349
    %v1400 = vld [vmem:[%s2] sm:$0x1]
    %v1402 = vlaneseq
    %v1403 = vshrl.u32 %v1402, 7
    %v1404 = vsub.s32 0, %v1403
    %v1405 = vrot.slane %v1400, %v1404
    %v1407 = vadd.f32 %v1352, %v1405
    %v1408 = vadd.f32 %v1353, %v1405
    %v1409 = vadd.f32 %v1354, %v1405
    %v1410 = vadd.f32 %v1355, %v1405
    %v1411 = vadd.f32 %v1356, %v1405
    %v1412 = vadd.f32 %v1357, %v1405
    %v1413 = vadd.f32 %v1358, %v1405
    %v1414 = vadd.f32 %v1359, %v1405
    %v1415 = vadd.f32 %v1360, %v1405
    %v1416 = vadd.f32 %v1361, %v1405
    %v1417 = vadd.f32 %v1362, %v1405
    %v1418 = vadd.f32 %v1363, %v1405
    %v1419 = vadd.f32 %v1364, %v1405
    %v1420 = vadd.f32 %v1365, %v1405
    %v1421 = vadd.f32 %v1366, %v1405
    %v1422 = vadd.f32 %v1367, %v1405
    %v1423 = vadd.f32 %v1368, %v1405
    %v1424 = vadd.f32 %v1369, %v1405
    %v1425 = vadd.f32 %v1370, %v1405
    %v1426 = vadd.f32 %v1371, %v1405
    %v1427 = vadd.f32 %v1372, %v1405
    %v1428 = vadd.f32 %v1373, %v1405
    %v1429 = vadd.f32 %v1374, %v1405
    %v1430 = vadd.f32 %v1375, %v1405
    %v1431 = vadd.f32 %v1376, %v1405
    %v1432 = vadd.f32 %v1377, %v1405
    %v1433 = vadd.f32 %v1378, %v1405
    %v1434 = vadd.f32 %v1379, %v1405
    %v1435 = vadd.f32 %v1380, %v1405
    %v1436 = vadd.f32 %v1381, %v1405
    %v1437 = vadd.f32 %v1382, %v1405
    %v1438 = vadd.f32 %v1383, %v1405
    %v1439 = vadd.f32 %v1384, %v1405
    %v1440 = vadd.f32 %v1385, %v1405
    %v1441 = vadd.f32 %v1386, %v1405
    %v1442 = vadd.f32 %v1387, %v1405
    %v1443 = vadd.f32 %v1388, %v1405
    %v1444 = vadd.f32 %v1389, %v1405
    %v1445 = vadd.f32 %v1390, %v1405
    %v1446 = vadd.f32 %v1391, %v1405
    %v1447 = vadd.f32 %v1392, %v1405
    %v1448 = vadd.f32 %v1393, %v1405
    %v1449 = vadd.f32 %v1394, %v1405
    %v1450 = vadd.f32 %v1395, %v1405
    %v1451 = vadd.f32 %v1396, %v1405
    %v1452 = vadd.f32 %v1397, %v1405
    %v1453 = vadd.f32 %v1398, %v1405
    %v1454 = vadd.f32 %v1399, %v1405
    %v1455 = vmax.f32 %v1407, 0.0
    %v1456 = vmax.f32 %v1408, 0.0
    %v1457 = vmax.f32 %v1409, 0.0
    %v1458 = vmax.f32 %v1410, 0.0
    %v1459 = vmax.f32 %v1411, 0.0
    %v1460 = vmax.f32 %v1412, 0.0
    %v1461 = vmax.f32 %v1413, 0.0
    %v1462 = vmax.f32 %v1414, 0.0
    %v1463 = vmax.f32 %v1415, 0.0
    %v1464 = vmax.f32 %v1416, 0.0
    %v1465 = vmax.f32 %v1417, 0.0
    %v1466 = vmax.f32 %v1418, 0.0
    %v1467 = vmax.f32 %v1419, 0.0
    %v1468 = vmax.f32 %v1420, 0.0
    %v1469 = vmax.f32 %v1421, 0.0
    %v1470 = vmax.f32 %v1422, 0.0
    %v1471 = vmax.f32 %v1423, 0.0
    %v1472 = vmax.f32 %v1424, 0.0
    %v1473 = vmax.f32 %v1425, 0.0
    %v1474 = vmax.f32 %v1426, 0.0
    %v1475 = vmax.f32 %v1427, 0.0
    %v1476 = vmax.f32 %v1428, 0.0
    %v1477 = vmax.f32 %v1429, 0.0
    %v1478 = vmax.f32 %v1430, 0.0
    %v1479 = vmax.f32 %v1431, 0.0
    %v1480 = vmax.f32 %v1432, 0.0
    %v1481 = vmax.f32 %v1433, 0.0
    %v1482 = vmax.f32 %v1434, 0.0
    %v1483 = vmax.f32 %v1435, 0.0
    %v1484 = vmax.f32 %v1436, 0.0
    %v1485 = vmax.f32 %v1437, 0.0
    %v1486 = vmax.f32 %v1438, 0.0
    %v1487 = vmax.f32 %v1439, 0.0
    %v1488 = vmax.f32 %v1440, 0.0
    %v1489 = vmax.f32 %v1441, 0.0
    %v1490 = vmax.f32 %v1442, 0.0
    %v1491 = vmax.f32 %v1443, 0.0
    %v1492 = vmax.f32 %v1444, 0.0
    %v1493 = vmax.f32 %v1445, 0.0
    %v1494 = vmax.f32 %v1446, 0.0
    %v1495 = vmax.f32 %v1447, 0.0
    %v1496 = vmax.f32 %v1448, 0.0
    %v1497 = vmax.f32 %v1449, 0.0
    %v1498 = vmax.f32 %v1450, 0.0
    %v1499 = vmax.f32 %v1451, 0.0
    %v1500 = vmax.f32 %v1452, 0.0
    %v1501 = vmax.f32 %v1453, 0.0
    %v1502 = vmax.f32 %v1454, 0.0
    %v1503 = vpack.c.bf16 %v1456, %v1455
    %v1504 = vpack.c.bf16 %v1458, %v1457
    %v1505 = vpack.c.bf16 %v1460, %v1459
    %v1506 = vpack.c.bf16 %v1462, %v1461
    %v1507 = vpack.c.bf16 %v1464, %v1463
    %v1508 = vpack.c.bf16 %v1466, %v1465
    %v1509 = vpack.c.bf16 %v1468, %v1467
    %v1510 = vpack.c.bf16 %v1470, %v1469
    %v1511 = vpack.c.bf16 %v1472, %v1471
    %v1512 = vpack.c.bf16 %v1474, %v1473
    %v1513 = vpack.c.bf16 %v1476, %v1475
    %v1514 = vpack.c.bf16 %v1478, %v1477
    %v1515 = vpack.c.bf16 %v1480, %v1479
    %v1516 = vpack.c.bf16 %v1482, %v1481
    %v1517 = vpack.c.bf16 %v1484, %v1483
    %v1518 = vpack.c.bf16 %v1486, %v1485
    %v1519 = vpack.c.bf16 %v1488, %v1487
    %v1520 = vpack.c.bf16 %v1490, %v1489
    %v1521 = vpack.c.bf16 %v1492, %v1491
    %v1522 = vpack.c.bf16 %v1494, %v1493
    %v1523 = vpack.c.bf16 %v1496, %v1495
    %v1524 = vpack.c.bf16 %v1498, %v1497
    %v1525 = vpack.c.bf16 %v1500, %v1499
    %v1526 = vpack.c.bf16 %v1502, %v1501
    %v1551 = vunpack.c.l.b16 %v1503
    %v1552 = vunpack.c.h.b16 %v1503
    %v1553 = vunpack.c.l.b16 %v1504
    %v1554 = vunpack.c.h.b16 %v1504
    %v1555 = vunpack.c.l.b16 %v1505
    %v1556 = vunpack.c.l.b16 %v1506
    %v1557 = vunpack.c.h.b16 %v1506
    %v1558 = vunpack.c.l.b16 %v1507
    %v1559 = vunpack.c.h.b16 %v1507
    %v1560 = vunpack.c.l.b16 %v1508
    %v1561 = vunpack.c.l.b16 %v1509
    %v1562 = vunpack.c.h.b16 %v1509
    %v1563 = vunpack.c.l.b16 %v1510
    %v1564 = vunpack.c.h.b16 %v1510
    %v1565 = vunpack.c.l.b16 %v1511
    %v1566 = vunpack.c.l.b16 %v1512
    %v1567 = vunpack.c.h.b16 %v1512
    %v1568 = vunpack.c.l.b16 %v1513
    %v1569 = vunpack.c.h.b16 %v1513
    %v1570 = vunpack.c.l.b16 %v1514
    %v1571 = vunpack.c.l.b16 %v1515
    %v1572 = vunpack.c.h.b16 %v1515
    %v1573 = vunpack.c.l.b16 %v1516
    %v1574 = vunpack.c.h.b16 %v1516
    %v1575 = vunpack.c.l.b16 %v1517
    %v1576 = vunpack.c.l.b16 %v1518
    %v1577 = vunpack.c.h.b16 %v1518
    %v1578 = vunpack.c.l.b16 %v1519
    %v1579 = vunpack.c.h.b16 %v1519
    %v1580 = vunpack.c.l.b16 %v1520
    %v1581 = vunpack.c.l.b16 %v1521
    %v1582 = vunpack.c.h.b16 %v1521
    %v1583 = vunpack.c.l.b16 %v1522
    %v1584 = vunpack.c.h.b16 %v1522
    %v1585 = vunpack.c.l.b16 %v1523
    %v1586 = vunpack.c.l.b16 %v1524
    %v1587 = vunpack.c.h.b16 %v1524
    %v1588 = vunpack.c.l.b16 %v1525
    %v1589 = vunpack.c.h.b16 %v1525
    %v1590 = vunpack.c.l.b16 %v1526
    %v1591 = vpack.c.b16 %v1551, %v1551
    %v1592 = vpack.c.b16 %v1552, %v1552
    %v1593 = vpack.c.b16 %v1553, %v1553
    %v1594 = vpack.c.b16 %v1554, %v1554
    %v1595 = vpack.c.b16 %v1555, %v1555
    %v1596 = vpack.c.b16 %v1556, %v1556
    %v1597 = vpack.c.b16 %v1557, %v1557
    %v1598 = vpack.c.b16 %v1558, %v1558
    %v1599 = vpack.c.b16 %v1559, %v1559
    %v1600 = vpack.c.b16 %v1560, %v1560
    %v1601 = vpack.c.b16 %v1561, %v1561
    %v1602 = vpack.c.b16 %v1562, %v1562
    %v1603 = vpack.c.b16 %v1563, %v1563
    %v1604 = vpack.c.b16 %v1564, %v1564
    %v1605 = vpack.c.b16 %v1565, %v1565
    %v1606 = vpack.c.b16 %v1566, %v1566
    %v1607 = vpack.c.b16 %v1567, %v1567
    %v1608 = vpack.c.b16 %v1568, %v1568
    %v1609 = vpack.c.b16 %v1569, %v1569
    %v1610 = vpack.c.b16 %v1570, %v1570
    %v1611 = vpack.c.b16 %v1571, %v1571
    %v1612 = vpack.c.b16 %v1572, %v1572
    %v1613 = vpack.c.b16 %v1573, %v1573
    %v1614 = vpack.c.b16 %v1574, %v1574
    %v1615 = vpack.c.b16 %v1575, %v1575
    %v1616 = vpack.c.b16 %v1576, %v1576
    %v1617 = vpack.c.b16 %v1577, %v1577
    %v1618 = vpack.c.b16 %v1578, %v1578
    %v1619 = vpack.c.b16 %v1579, %v1579
    %v1620 = vpack.c.b16 %v1580, %v1580
    %v1621 = vpack.c.b16 %v1581, %v1581
    %v1622 = vpack.c.b16 %v1582, %v1582
    %v1623 = vpack.c.b16 %v1583, %v1583
    %v1624 = vpack.c.b16 %v1584, %v1584
    %v1625 = vpack.c.b16 %v1585, %v1585
    %v1626 = vpack.c.b16 %v1586, %v1586
    %v1627 = vpack.c.b16 %v1587, %v1587
    %v1628 = vpack.c.b16 %v1588, %v1588
    %v1629 = vpack.c.b16 %v1589, %v1589
    %v1630 = vpack.c.b16 %v1590, %v1590
    %vm1671 = vcmask 257024
    %1672 = vst.msk [vmem:[#allocation2] sm:$0xf] %vm1671, %v1591
    %1673 = vst.msk [vmem:[#allocation2 + $0x8] sm:$0xf] %vm1671, %v1592
    %1674 = vst.msk [vmem:[#allocation2 + $0x10] sm:$0xf] %vm1671, %v1593
    %1675 = vst.msk [vmem:[#allocation2 + $0x18] sm:$0xf] %vm1671, %v1594
    %1676 = vst.msk [vmem:[#allocation2 + $0x20] sm:$0xf] %vm1671, %v1595
    %1677 = vst.msk [vmem:[#allocation2 + $0x28] sm:$0xf] %vm1671, %v1596
    %1678 = vst.msk [vmem:[#allocation2 + $0x30] sm:$0xf] %vm1671, %v1597
    %1679 = vst.msk [vmem:[#allocation2 + $0x38] sm:$0xf] %vm1671, %v1598
    %1680 = vst.msk [vmem:[#allocation2 + $0x40] sm:$0xf] %vm1671, %v1599
    %1681 = vst.msk [vmem:[#allocation2 + $0x48] sm:$0xf] %vm1671, %v1600
    %1682 = vst.msk [vmem:[#allocation2 + $0x50] sm:$0xf] %vm1671, %v1601
    %1683 = vst.msk [vmem:[#allocation2 + $0x58] sm:$0xf] %vm1671, %v1602
    %1684 = vst.msk [vmem:[#allocation2 + $0x60] sm:$0xf] %vm1671, %v1603
    %1685 = vst.msk [vmem:[#allocation2 + $0x68] sm:$0xf] %vm1671, %v1604
    %1686 = vst.msk [vmem:[#allocation2 + $0x70] sm:$0xf] %vm1671, %v1605
    %1687 = vst.msk [vmem:[#allocation2 + $0x78] sm:$0xf] %vm1671, %v1606
    %1688 = vst.msk [vmem:[#allocation2 + $0x80] sm:$0xf] %vm1671, %v1607
    %1689 = vst.msk [vmem:[#allocation2 + $0x88] sm:$0xf] %vm1671, %v1608
    %1690 = vst.msk [vmem:[#allocation2 + $0x90] sm:$0xf] %vm1671, %v1609
    %1691 = vst.msk [vmem:[#allocation2 + $0x98] sm:$0xf] %vm1671, %v1610
    %1692 = vst.msk [vmem:[#allocation2 + $0xa0] sm:$0xf] %vm1671, %v1611
    %1693 = vst.msk [vmem:[#allocation2 + $0xa8] sm:$0xf] %vm1671, %v1612
    %1694 = vst.msk [vmem:[#allocation2 + $0xb0] sm:$0xf] %vm1671, %v1613
    %1695 = vst.msk [vmem:[#allocation2 + $0xb8] sm:$0xf] %vm1671, %v1614
    %1696 = vst.msk [vmem:[#allocation2 + $0xc0] sm:$0xf] %vm1671, %v1615
    %1697 = vst.msk [vmem:[#allocation2 + $0xc8] sm:$0xf] %vm1671, %v1616
    %1698 = vst.msk [vmem:[#allocation2 + $0xd0] sm:$0xf] %vm1671, %v1617
    %1699 = vst.msk [vmem:[#allocation2 + $0xd8] sm:$0xf] %vm1671, %v1618
    %1700 = vst.msk [vmem:[#allocation2 + $0xe0] sm:$0xf] %vm1671, %v1619
    %1701 = vst.msk [vmem:[#allocation2 + $0xe8] sm:$0xf] %vm1671, %v1620
    %1702 = vst.msk [vmem:[#allocation2 + $0xf0] sm:$0xf] %vm1671, %v1621
    %1703 = vst.msk [vmem:[#allocation2 + $0xf8] sm:$0xf] %vm1671, %v1622
    %1704 = vst.msk [vmem:[#allocation2 + $0x100] sm:$0xf] %vm1671, %v1623
    %1705 = vst.msk [vmem:[#allocation2 + $0x108] sm:$0xf] %vm1671, %v1624
    %1706 = vst.msk [vmem:[#allocation2 + $0x110] sm:$0xf] %vm1671, %v1625
    %1707 = vst.msk [vmem:[#allocation2 + $0x118] sm:$0xf] %vm1671, %v1626
    %1708 = vst.msk [vmem:[#allocation2 + $0x120] sm:$0xf] %vm1671, %v1627
    %1709 = vst.msk [vmem:[#allocation2 + $0x128] sm:$0xf] %vm1671, %v1628
    %1710 = vst.msk [vmem:[#allocation2 + $0x130] sm:$0xf] %vm1671, %v1629
    %1711 = vst.msk [vmem:[#allocation2 + $0x138] sm:$0xf] %vm1671, %v1630
    %v1712 = vunpack.c.h.b16 %v1505
    %v1713 = vunpack.c.h.b16 %v1508
    %v1714 = vunpack.c.h.b16 %v1511
    %v1715 = vunpack.c.h.b16 %v1514
    %v1716 = vunpack.c.h.b16 %v1517
    %v1717 = vunpack.c.h.b16 %v1520
    %v1718 = vunpack.c.h.b16 %v1523
    %v1719 = vunpack.c.h.b16 %v1526
    %v1720 = vpack.c.b16 %v1712, %v1712
    %v1721 = vpack.c.b16 %v1713, %v1713
    %v1722 = vpack.c.b16 %v1714, %v1714
    %v1723 = vpack.c.b16 %v1715, %v1715
    %v1724 = vpack.c.b16 %v1716, %v1716
    %v1725 = vpack.c.b16 %v1717, %v1717
    %v1726 = vpack.c.b16 %v1718, %v1718
    %v1727 = vpack.c.b16 %v1719, %v1719
    %vm1728 = vsmask.f32 3328
    %vm1729 = vsmask.f32 7440
    %vm1730 = vmor %vm1728, %vm1729
    %v1732 = vshrl.u32 %v1591, 16
    %v1734 = vrot.slane %v1732, 4
    %v1735 = vshll.u32 %v1591, 16
    %v1737 = vrot.slane %v1735, 5
    %v1738 = vor.u32 %v1734, %v1737
    %v1739 = vrot.slane %v1738, 4
    %v1741 = vshll.u32 %v1592, 16
    %v1743 = vrot.slane %v1741, 5
    %v1744 = vsel %vm1730, %v1739, %v1743
    %v1745 = vshrl.u32 %v1592, 16
    %v1747 = vrot.slane %v1745, 4
    %v1748 = vor.u32 %v1747, %v1743
    %v1749 = vrot.slane %v1748, 4
    %v1751 = vshll.u32 %v1593, 16
    %v1753 = vrot.slane %v1751, 5
    %v1754 = vsel %vm1730, %v1749, %v1753
    %v1755 = vshrl.u32 %v1593, 16
    %v1757 = vrot.slane %v1755, 4
    %v1758 = vor.u32 %v1757, %v1753
    %v1759 = vrot.slane %v1758, 4
    %v1761 = vshll.u32 %v1594, 16
    %v1763 = vrot.slane %v1761, 5
    %v1764 = vsel %vm1730, %v1759, %v1763
    %v1765 = vshrl.u32 %v1594, 16
    %v1767 = vrot.slane %v1765, 4
    %v1768 = vor.u32 %v1767, %v1763
    %v1769 = vrot.slane %v1768, 4
    %v1771 = vshll.u32 %v1595, 16
    %v1773 = vrot.slane %v1771, 5
    %v1774 = vsel %vm1730, %v1769, %v1773
    %v1775 = vshrl.u32 %v1595, 16
    %v1777 = vrot.slane %v1775, 4
    %v1778 = vor.u32 %v1777, %v1773
    %v1779 = vrot.slane %v1778, 4
    %v1781 = vshll.u32 %v1720, 16
    %v1783 = vrot.slane %v1781, 5
    %v1784 = vsel %vm1730, %v1779, %v1783
    %v1786 = vshrl.u32 %v1596, 16
    %v1788 = vrot.slane %v1786, 4
    %v1789 = vshll.u32 %v1596, 16
    %v1791 = vrot.slane %v1789, 5
    %v1792 = vor.u32 %v1788, %v1791
    %v1793 = vrot.slane %v1792, 4
    %v1795 = vshll.u32 %v1597, 16
    %v1797 = vrot.slane %v1795, 5
    %v1798 = vsel %vm1730, %v1793, %v1797
    %v1799 = vshrl.u32 %v1597, 16
    %v1801 = vrot.slane %v1799, 4
    %v1802 = vor.u32 %v1801, %v1797
    %v1803 = vrot.slane %v1802, 4
    %v1805 = vshll.u32 %v1598, 16
    %v1807 = vrot.slane %v1805, 5
    %v1808 = vsel %vm1730, %v1803, %v1807
    %v1809 = vshrl.u32 %v1598, 16
    %v1811 = vrot.slane %v1809, 4
    %v1812 = vor.u32 %v1811, %v1807
    %v1813 = vrot.slane %v1812, 4
    %v1815 = vshll.u32 %v1599, 16
    %v1817 = vrot.slane %v1815, 5
    %v1818 = vsel %vm1730, %v1813, %v1817
    %v1819 = vshrl.u32 %v1599, 16
    %v1821 = vrot.slane %v1819, 4
    %v1822 = vor.u32 %v1821, %v1817
    %v1823 = vrot.slane %v1822, 4
    %v1825 = vshll.u32 %v1600, 16
    %v1827 = vrot.slane %v1825, 5
    %v1828 = vsel %vm1730, %v1823, %v1827
    %v1829 = vshrl.u32 %v1600, 16
    %v1831 = vrot.slane %v1829, 4
    %v1832 = vor.u32 %v1831, %v1827
    %v1833 = vrot.slane %v1832, 4
    %v1835 = vshll.u32 %v1721, 16
    %v1837 = vrot.slane %v1835, 5
    %v1838 = vsel %vm1730, %v1833, %v1837
    %v1840 = vshrl.u32 %v1601, 16
    %v1842 = vrot.slane %v1840, 4
    %v1843 = vshll.u32 %v1601, 16
    %v1845 = vrot.slane %v1843, 5
    %v1846 = vor.u32 %v1842, %v1845
    %v1847 = vrot.slane %v1846, 4
    %v1849 = vshll.u32 %v1602, 16
    %v1851 = vrot.slane %v1849, 5
    %v1852 = vsel %vm1730, %v1847, %v1851
    %v1853 = vshrl.u32 %v1602, 16
    %v1855 = vrot.slane %v1853, 4
    %v1856 = vor.u32 %v1855, %v1851
    %v1857 = vrot.slane %v1856, 4
    %v1859 = vshll.u32 %v1603, 16
    %v1861 = vrot.slane %v1859, 5
    %v1862 = vsel %vm1730, %v1857, %v1861
    %v1863 = vshrl.u32 %v1603, 16
    %v1865 = vrot.slane %v1863, 4
    %v1866 = vor.u32 %v1865, %v1861
    %v1867 = vrot.slane %v1866, 4
    %v1869 = vshll.u32 %v1604, 16
    %v1871 = vrot.slane %v1869, 5
    %v1872 = vsel %vm1730, %v1867, %v1871
    %v1873 = vshrl.u32 %v1604, 16
    %v1875 = vrot.slane %v1873, 4
    %v1876 = vor.u32 %v1875, %v1871
    %v1877 = vrot.slane %v1876, 4
    %v1879 = vshll.u32 %v1605, 16
    %v1881 = vrot.slane %v1879, 5
    %v1882 = vsel %vm1730, %v1877, %v1881
    %v1883 = vshrl.u32 %v1605, 16
    %v1885 = vrot.slane %v1883, 4
    %v1886 = vor.u32 %v1885, %v1881
    %v1887 = vrot.slane %v1886, 4
    %v1889 = vshll.u32 %v1722, 16
    %v1891 = vrot.slane %v1889, 5
    %v1892 = vsel %vm1730, %v1887, %v1891
    %v1894 = vshrl.u32 %v1606, 16
    %v1896 = vrot.slane %v1894, 4
    %v1897 = vshll.u32 %v1606, 16
    %v1899 = vrot.slane %v1897, 5
    %v1900 = vor.u32 %v1896, %v1899
    %v1901 = vrot.slane %v1900, 4
    %v1903 = vshll.u32 %v1607, 16
    %v1905 = vrot.slane %v1903, 5
    %v1906 = vsel %vm1730, %v1901, %v1905
    %v1907 = vshrl.u32 %v1607, 16
    %v1909 = vrot.slane %v1907, 4
    %v1910 = vor.u32 %v1909, %v1905
    %v1911 = vrot.slane %v1910, 4
    %v1913 = vshll.u32 %v1608, 16
    %v1915 = vrot.slane %v1913, 5
    %v1916 = vsel %vm1730, %v1911, %v1915
    %v1917 = vshrl.u32 %v1608, 16
    %v1919 = vrot.slane %v1917, 4
    %v1920 = vor.u32 %v1919, %v1915
    %v1921 = vrot.slane %v1920, 4
    %v1923 = vshll.u32 %v1609, 16
    %v1925 = vrot.slane %v1923, 5
    %v1926 = vsel %vm1730, %v1921, %v1925
    %v1927 = vshrl.u32 %v1609, 16
    %v1929 = vrot.slane %v1927, 4
    %v1930 = vor.u32 %v1929, %v1925
    %v1931 = vrot.slane %v1930, 4
    %v1933 = vshll.u32 %v1610, 16
    %v1935 = vrot.slane %v1933, 5
    %v1936 = vsel %vm1730, %v1931, %v1935
    %v1937 = vshrl.u32 %v1610, 16
    %v1939 = vrot.slane %v1937, 4
    %v1940 = vor.u32 %v1939, %v1935
    %v1941 = vrot.slane %v1940, 4
    %v1943 = vshll.u32 %v1723, 16
    %v1945 = vrot.slane %v1943, 5
    %v1946 = vsel %vm1730, %v1941, %v1945
    %v1948 = vshrl.u32 %v1611, 16
    %v1950 = vrot.slane %v1948, 4
    %v1951 = vshll.u32 %v1611, 16
    %v1953 = vrot.slane %v1951, 5
    %v1954 = vor.u32 %v1950, %v1953
    %v1955 = vrot.slane %v1954, 4
    %v1957 = vshll.u32 %v1612, 16
    %v1959 = vrot.slane %v1957, 5
    %v1960 = vsel %vm1730, %v1955, %v1959
    %v1961 = vshrl.u32 %v1612, 16
    %v1963 = vrot.slane %v1961, 4
    %v1964 = vor.u32 %v1963, %v1959
    %v1965 = vrot.slane %v1964, 4
    %v1967 = vshll.u32 %v1613, 16
    %v1969 = vrot.slane %v1967, 5
    %v1970 = vsel %vm1730, %v1965, %v1969
    %v1971 = vshrl.u32 %v1613, 16
    %v1973 = vrot.slane %v1971, 4
    %v1974 = vor.u32 %v1973, %v1969
    %v1975 = vrot.slane %v1974, 4
    %v1977 = vshll.u32 %v1614, 16
    %v1979 = vrot.slane %v1977, 5
    %v1980 = vsel %vm1730, %v1975, %v1979
    %v1981 = vshrl.u32 %v1614, 16
    %v1983 = vrot.slane %v1981, 4
    %v1984 = vor.u32 %v1983, %v1979
    %v1985 = vrot.slane %v1984, 4
    %v1987 = vshll.u32 %v1615, 16
    %v1989 = vrot.slane %v1987, 5
    %v1990 = vsel %vm1730, %v1985, %v1989
    %v1991 = vshrl.u32 %v1615, 16
    %v1993 = vrot.slane %v1991, 4
    %v1994 = vor.u32 %v1993, %v1989
    %v1995 = vrot.slane %v1994, 4
    %v1997 = vshll.u32 %v1724, 16
    %v1999 = vrot.slane %v1997, 5
    %v2000 = vsel %vm1730, %v1995, %v1999
    %v2002 = vshrl.u32 %v1616, 16
    %v2004 = vrot.slane %v2002, 4
    %v2005 = vshll.u32 %v1616, 16
    %v2007 = vrot.slane %v2005, 5
    %v2008 = vor.u32 %v2004, %v2007
    %v2009 = vrot.slane %v2008, 4
    %v2011 = vshll.u32 %v1617, 16
    %v2013 = vrot.slane %v2011, 5
    %v2014 = vsel %vm1730, %v2009, %v2013
    %v2015 = vshrl.u32 %v1617, 16
    %v2017 = vrot.slane %v2015, 4
    %v2018 = vor.u32 %v2017, %v2013
    %v2019 = vrot.slane %v2018, 4
    %v2021 = vshll.u32 %v1618, 16
    %v2023 = vrot.slane %v2021, 5
    %v2024 = vsel %vm1730, %v2019, %v2023
    %v2025 = vshrl.u32 %v1618, 16
    %v2027 = vrot.slane %v2025, 4
    %v2028 = vor.u32 %v2027, %v2023
    %v2029 = vrot.slane %v2028, 4
    %v2031 = vshll.u32 %v1619, 16
    %v2033 = vrot.slane %v2031, 5
    %v2034 = vsel %vm1730, %v2029, %v2033
    %v2035 = vshrl.u32 %v1619, 16
    %v2037 = vrot.slane %v2035, 4
    %v2038 = vor.u32 %v2037, %v2033
    %v2039 = vrot.slane %v2038, 4
    %v2041 = vshll.u32 %v1620, 16
    %v2043 = vrot.slane %v2041, 5
    %v2044 = vsel %vm1730, %v2039, %v2043
    %v2045 = vshrl.u32 %v1620, 16
    %v2047 = vrot.slane %v2045, 4
    %v2048 = vor.u32 %v2047, %v2043
    %v2049 = vrot.slane %v2048, 4
    %v2051 = vshll.u32 %v1725, 16
    %v2053 = vrot.slane %v2051, 5
    %v2054 = vsel %vm1730, %v2049, %v2053
    %v2056 = vshrl.u32 %v1621, 16
    %v2058 = vrot.slane %v2056, 4
    %v2059 = vshll.u32 %v1621, 16
    %v2061 = vrot.slane %v2059, 5
    %v2062 = vor.u32 %v2058, %v2061
    %v2063 = vrot.slane %v2062, 4
    %v2065 = vshll.u32 %v1622, 16
    %v2067 = vrot.slane %v2065, 5
    %v2068 = vsel %vm1730, %v2063, %v2067
    %v2069 = vshrl.u32 %v1622, 16
    %v2071 = vrot.slane %v2069, 4
    %v2072 = vor.u32 %v2071, %v2067
    %v2073 = vrot.slane %v2072, 4
    %v2075 = vshll.u32 %v1623, 16
    %v2077 = vrot.slane %v2075, 5
    %v2078 = vsel %vm1730, %v2073, %v2077
    %v2079 = vshrl.u32 %v1623, 16
    %v2081 = vrot.slane %v2079, 4
    %v2082 = vor.u32 %v2081, %v2077
    %v2083 = vrot.slane %v2082, 4
    %v2085 = vshll.u32 %v1624, 16
    %v2087 = vrot.slane %v2085, 5
    %v2088 = vsel %vm1730, %v2083, %v2087
    %v2089 = vshrl.u32 %v1624, 16
    %v2091 = vrot.slane %v2089, 4
    %v2092 = vor.u32 %v2091, %v2087
    %v2093 = vrot.slane %v2092, 4
    %v2095 = vshll.u32 %v1625, 16
    %v2097 = vrot.slane %v2095, 5
    %v2098 = vsel %vm1730, %v2093, %v2097
    %v2099 = vshrl.u32 %v1625, 16
    %v2101 = vrot.slane %v2099, 4
    %v2102 = vor.u32 %v2101, %v2097
    %v2103 = vrot.slane %v2102, 4
    %v2105 = vshll.u32 %v1726, 16
    %v2107 = vrot.slane %v2105, 5
    %v2108 = vsel %vm1730, %v2103, %v2107
    %v2110 = vshrl.u32 %v1626, 16
    %v2112 = vrot.slane %v2110, 4
    %v2113 = vshll.u32 %v1626, 16
    %v2115 = vrot.slane %v2113, 5
    %v2116 = vor.u32 %v2112, %v2115
    %v2117 = vrot.slane %v2116, 4
    %v2119 = vshll.u32 %v1627, 16
    %v2121 = vrot.slane %v2119, 5
    %v2122 = vsel %vm1730, %v2117, %v2121
    %v2123 = vshrl.u32 %v1627, 16
    %v2125 = vrot.slane %v2123, 4
    %v2126 = vor.u32 %v2125, %v2121
    %v2127 = vrot.slane %v2126, 4
    %v2129 = vshll.u32 %v1628, 16
    %v2131 = vrot.slane %v2129, 5
    %v2132 = vsel %vm1730, %v2127, %v2131
    %v2133 = vshrl.u32 %v1628, 16
    %v2135 = vrot.slane %v2133, 4
    %v2136 = vor.u32 %v2135, %v2131
    %v2137 = vrot.slane %v2136, 4
    %v2139 = vshll.u32 %v1629, 16
    %v2141 = vrot.slane %v2139, 5
    %v2142 = vsel %vm1730, %v2137, %v2141
    %v2143 = vshrl.u32 %v1629, 16
    %v2145 = vrot.slane %v2143, 4
    %v2146 = vor.u32 %v2145, %v2141
    %v2147 = vrot.slane %v2146, 4
    %v2149 = vshll.u32 %v1630, 16
    %v2151 = vrot.slane %v2149, 5
    %v2152 = vsel %vm1730, %v2147, %v2151
    %v2153 = vshrl.u32 %v1630, 16
    %v2155 = vrot.slane %v2153, 4
    %v2156 = vor.u32 %v2155, %v2151
    %v2157 = vrot.slane %v2156, 4
    %v2159 = vshll.u32 %v1727, 16
    %v2161 = vrot.slane %v2159, 5
    %v2162 = vsel %vm1730, %v2157, %v2161
    %2163 = vrot.lane.b32.xlu0 %v1744, 32
    %v2164 = vpop.permute.xlu0 %2163
    %2165 = vrot.lane.b32.xlu0 %v1754, 32
    %v2166 = vpop.permute.xlu0 %2165
    %2167 = vrot.lane.b32.xlu0 %v1764, 32
    %v2168 = vpop.permute.xlu0 %2167
    %2169 = vrot.lane.b32.xlu0 %v1774, 32
    %v2170 = vpop.permute.xlu0 %2169
    %2171 = vrot.lane.b32.xlu0 %v1784, 32
    %v2172 = vpop.permute.xlu0 %2171
    %2173 = vrot.lane.b32.xlu0 %v1798, 32
    %v2174 = vpop.permute.xlu0 %2173
    %2175 = vrot.lane.b32.xlu0 %v1808, 32
    %v2176 = vpop.permute.xlu0 %2175
    %2177 = vrot.lane.b32.xlu0 %v1818, 32
    %v2178 = vpop.permute.xlu0 %2177
    %2179 = vrot.lane.b32.xlu0 %v1828, 32
    %v2180 = vpop.permute.xlu0 %2179
    %2181 = vrot.lane.b32.xlu0 %v1838, 32
    %v2182 = vpop.permute.xlu0 %2181
    %2183 = vrot.lane.b32.xlu0 %v1852, 32
    %v2184 = vpop.permute.xlu0 %2183
    %2185 = vrot.lane.b32.xlu0 %v1862, 32
    %v2186 = vpop.permute.xlu0 %2185
    %2187 = vrot.lane.b32.xlu0 %v1872, 32
    %v2188 = vpop.permute.xlu0 %2187
    %2189 = vrot.lane.b32.xlu0 %v1882, 32
    %v2190 = vpop.permute.xlu0 %2189
    %2191 = vrot.lane.b32.xlu0 %v1892, 32
    %v2192 = vpop.permute.xlu0 %2191
    %2193 = vrot.lane.b32.xlu0 %v1906, 32
    %v2194 = vpop.permute.xlu0 %2193
    %2195 = vrot.lane.b32.xlu0 %v1916, 32
    %v2196 = vpop.permute.xlu0 %2195
    %2197 = vrot.lane.b32.xlu0 %v1926, 32
    %v2198 = vpop.permute.xlu0 %2197
    %2199 = vrot.lane.b32.xlu0 %v1936, 32
    %v2200 = vpop.permute.xlu0 %2199
    %2201 = vrot.lane.b32.xlu0 %v1946, 32
    %v2202 = vpop.permute.xlu0 %2201
    %2203 = vrot.lane.b32.xlu0 %v1960, 32
    %v2204 = vpop.permute.xlu0 %2203
    %2205 = vrot.lane.b32.xlu0 %v1970, 32
    %v2206 = vpop.permute.xlu0 %2205
    %2207 = vrot.lane.b32.xlu0 %v1980, 32
    %v2208 = vpop.permute.xlu0 %2207
    %2209 = vrot.lane.b32.xlu0 %v1990, 32
    %v2210 = vpop.permute.xlu0 %2209
    %2211 = vrot.lane.b32.xlu0 %v2000, 32
    %v2212 = vpop.permute.xlu0 %2211
    %2213 = vrot.lane.b32.xlu0 %v2014, 32
    %v2214 = vpop.permute.xlu0 %2213
    %2215 = vrot.lane.b32.xlu0 %v2024, 32
    %v2216 = vpop.permute.xlu0 %2215
    %2217 = vrot.lane.b32.xlu0 %v2034, 32
    %v2218 = vpop.permute.xlu0 %2217
    %2219 = vrot.lane.b32.xlu0 %v2044, 32
    %v2220 = vpop.permute.xlu0 %2219
    %2221 = vrot.lane.b32.xlu0 %v2054, 32
    %v2222 = vpop.permute.xlu0 %2221
    %2223 = vrot.lane.b32.xlu0 %v2068, 32
    %v2224 = vpop.permute.xlu0 %2223
    %2225 = vrot.lane.b32.xlu0 %v2078, 32
    %v2226 = vpop.permute.xlu0 %2225
    %2227 = vrot.lane.b32.xlu0 %v2088, 32
    %v2228 = vpop.permute.xlu0 %2227
    %2229 = vrot.lane.b32.xlu0 %v2098, 32
    %v2230 = vpop.permute.xlu0 %2229
    %2231 = vrot.lane.b32.xlu0 %v2108, 32
    %v2232 = vpop.permute.xlu0 %2231
    %2233 = vrot.lane.b32.xlu0 %v2122, 32
    %v2234 = vpop.permute.xlu0 %2233
    %2235 = vrot.lane.b32.xlu0 %v2132, 32
    %v2236 = vpop.permute.xlu0 %2235
    %2237 = vrot.lane.b32.xlu0 %v2142, 32
    %v2238 = vpop.permute.xlu0 %2237
    %2239 = vrot.lane.b32.xlu0 %v2152, 32
    %v2240 = vpop.permute.xlu0 %2239
    %2241 = vrot.lane.b32.xlu0 %v2162, 32
    %v2242 = vpop.permute.xlu0 %2241
    %vm2283 = vcmask 519424
    %2284 = vst.msk [vmem:[#allocation2] sm:$0xf] %vm2283, %v2164
    %2285 = vst.msk [vmem:[#allocation2 + $0x8] sm:$0xf] %vm2283, %v2166
    %2286 = vst.msk [vmem:[#allocation2 + $0x10] sm:$0xf] %vm2283, %v2168
    %2287 = vst.msk [vmem:[#allocation2 + $0x18] sm:$0xf] %vm2283, %v2170
    %2288 = vst.msk [vmem:[#allocation2 + $0x20] sm:$0xf] %vm2283, %v2172
    %2289 = vst.msk [vmem:[#allocation2 + $0x28] sm:$0xf] %vm2283, %v2174
    %2290 = vst.msk [vmem:[#allocation2 + $0x30] sm:$0xf] %vm2283, %v2176
    %2291 = vst.msk [vmem:[#allocation2 + $0x38] sm:$0xf] %vm2283, %v2178
    %2292 = vst.msk [vmem:[#allocation2 + $0x40] sm:$0xf] %vm2283, %v2180
    %2293 = vst.msk [vmem:[#allocation2 + $0x48] sm:$0xf] %vm2283, %v2182
    %2294 = vst.msk [vmem:[#allocation2 + $0x50] sm:$0xf] %vm2283, %v2184
    %2295 = vst.msk [vmem:[#allocation2 + $0x58] sm:$0xf] %vm2283, %v2186
    %2296 = vst.msk [vmem:[#allocation2 + $0x60] sm:$0xf] %vm2283, %v2188
    %2297 = vst.msk [vmem:[#allocation2 + $0x68] sm:$0xf] %vm2283, %v2190
    %2298 = vst.msk [vmem:[#allocation2 + $0x70] sm:$0xf] %vm2283, %v2192
    %2299 = vst.msk [vmem:[#allocation2 + $0x78] sm:$0xf] %vm2283, %v2194
    %2300 = vst.msk [vmem:[#allocation2 + $0x80] sm:$0xf] %vm2283, %v2196
    %2301 = vst.msk [vmem:[#allocation2 + $0x88] sm:$0xf] %vm2283, %v2198
    %2302 = vst.msk [vmem:[#allocation2 + $0x90] sm:$0xf] %vm2283, %v2200
    %2303 = vst.msk [vmem:[#allocation2 + $0x98] sm:$0xf] %vm2283, %v2202
    %2304 = vst.msk [vmem:[#allocation2 + $0xa0] sm:$0xf] %vm2283, %v2204
    %2305 = vst.msk [vmem:[#allocation2 + $0xa8] sm:$0xf] %vm2283, %v2206
    %2306 = vst.msk [vmem:[#allocation2 + $0xb0] sm:$0xf] %vm2283, %v2208
    %2307 = vst.msk [vmem:[#allocation2 + $0xb8] sm:$0xf] %vm2283, %v2210
    %2308 = vst.msk [vmem:[#allocation2 + $0xc0] sm:$0xf] %vm2283, %v2212
    %2309 = vst.msk [vmem:[#allocation2 + $0xc8] sm:$0xf] %vm2283, %v2214
    %2310 = vst.msk [vmem:[#allocation2 + $0xd0] sm:$0xf] %vm2283, %v2216
    %2311 = vst.msk [vmem:[#allocation2 + $0xd8] sm:$0xf] %vm2283, %v2218
    %2312 = vst.msk [vmem:[#allocation2 + $0xe0] sm:$0xf] %vm2283, %v2220
    %2313 = vst.msk [vmem:[#allocation2 + $0xe8] sm:$0xf] %vm2283, %v2222
    %2314 = vst.msk [vmem:[#allocation2 + $0xf0] sm:$0xf] %vm2283, %v2224
    %2315 = vst.msk [vmem:[#allocation2 + $0xf8] sm:$0xf] %vm2283, %v2226
    %2316 = vst.msk [vmem:[#allocation2 + $0x100] sm:$0xf] %vm2283, %v2228
    %2317 = vst.msk [vmem:[#allocation2 + $0x108] sm:$0xf] %vm2283, %v2230
    %2318 = vst.msk [vmem:[#allocation2 + $0x110] sm:$0xf] %vm2283, %v2232
    %2319 = vst.msk [vmem:[#allocation2 + $0x118] sm:$0xf] %vm2283, %v2234
    %2320 = vst.msk [vmem:[#allocation2 + $0x120] sm:$0xf] %vm2283, %v2236
    %2321 = vst.msk [vmem:[#allocation2 + $0x128] sm:$0xf] %vm2283, %v2238
    %2322 = vst.msk [vmem:[#allocation2 + $0x130] sm:$0xf] %vm2283, %v2240
    %2323 = vst.msk [vmem:[#allocation2 + $0x138] sm:$0xf] %vm2283, %v2242
    %vm2324 = vcmask 1042432
    %vm2325 = vcmask 1046532
    %vm2326 = vmor %vm2324, %vm2325
    %v2327 = vrot.slane %v1591, 5
    %v2328 = vrot.slane %v2327, 4
    %v2329 = vrot.slane %v1592, 5
    %v2330 = vsel %vm2326, %v2328, %v2329
    %v2331 = vrot.slane %v2329, 4
    %v2332 = vrot.slane %v1593, 5
    %v2333 = vsel %vm2326, %v2331, %v2332
    %v2334 = vrot.slane %v2332, 4
    %v2335 = vrot.slane %v1594, 5
    %v2336 = vsel %vm2326, %v2334, %v2335
    %v2337 = vrot.slane %v2335, 4
    %v2338 = vrot.slane %v1595, 5
    %v2339 = vsel %vm2326, %v2337, %v2338
    %v2340 = vrot.slane %v2338, 4
    %v2341 = vrot.slane %v1720, 5
    %v2342 = vsel %vm2326, %v2340, %v2341
    %v2343 = vrot.slane %v1596, 5
    %v2344 = vrot.slane %v2343, 4
    %v2345 = vrot.slane %v1597, 5
    %v2346 = vsel %vm2326, %v2344, %v2345
    %v2347 = vrot.slane %v2345, 4
    %v2348 = vrot.slane %v1598, 5
    %v2349 = vsel %vm2326, %v2347, %v2348
    %v2350 = vrot.slane %v2348, 4
    %v2351 = vrot.slane %v1599, 5
    %v2352 = vsel %vm2326, %v2350, %v2351
    %v2353 = vrot.slane %v2351, 4
    %v2354 = vrot.slane %v1600, 5
    %v2355 = vsel %vm2326, %v2353, %v2354
    %v2356 = vrot.slane %v2354, 4
    %v2357 = vrot.slane %v1721, 5
    %v2358 = vsel %vm2326, %v2356, %v2357
    %v2359 = vrot.slane %v1601, 5
    %v2360 = vrot.slane %v2359, 4
    %v2361 = vrot.slane %v1602, 5
    %v2362 = vsel %vm2326, %v2360, %v2361
    %v2363 = vrot.slane %v2361, 4
    %v2364 = vrot.slane %v1603, 5
    %v2365 = vsel %vm2326, %v2363, %v2364
    %v2366 = vrot.slane %v2364, 4
    %v2367 = vrot.slane %v1604, 5
    %v2368 = vsel %vm2326, %v2366, %v2367
    %v2369 = vrot.slane %v2367, 4
    %v2370 = vrot.slane %v1605, 5
    %v2371 = vsel %vm2326, %v2369, %v2370
    %v2372 = vrot.slane %v2370, 4
    %v2373 = vrot.slane %v1722, 5
    %v2374 = vsel %vm2326, %v2372, %v2373
    %v2375 = vrot.slane %v1606, 5
    %v2376 = vrot.slane %v2375, 4
    %v2377 = vrot.slane %v1607, 5
    %v2378 = vsel %vm2326, %v2376, %v2377
    %v2379 = vrot.slane %v2377, 4
    %v2380 = vrot.slane %v1608, 5
    %v2381 = vsel %vm2326, %v2379, %v2380
    %v2382 = vrot.slane %v2380, 4
    %v2383 = vrot.slane %v1609, 5
    %v2384 = vsel %vm2326, %v2382, %v2383
    %v2385 = vrot.slane %v2383, 4
    %v2386 = vrot.slane %v1610, 5
    %v2387 = vsel %vm2326, %v2385, %v2386
    %v2388 = vrot.slane %v2386, 4
    %v2389 = vrot.slane %v1723, 5
    %v2390 = vsel %vm2326, %v2388, %v2389
    %v2391 = vrot.slane %v1611, 5
    %v2392 = vrot.slane %v2391, 4
    %v2393 = vrot.slane %v1612, 5
    %v2394 = vsel %vm2326, %v2392, %v2393
    %v2395 = vrot.slane %v2393, 4
    %v2396 = vrot.slane %v1613, 5
    %v2397 = vsel %vm2326, %v2395, %v2396
    %v2398 = vrot.slane %v2396, 4
    %v2399 = vrot.slane %v1614, 5
    %v2400 = vsel %vm2326, %v2398, %v2399
    %v2401 = vrot.slane %v2399, 4
    %v2402 = vrot.slane %v1615, 5
    %v2403 = vsel %vm2326, %v2401, %v2402
    %v2404 = vrot.slane %v2402, 4
    %v2405 = vrot.slane %v1724, 5
    %v2406 = vsel %vm2326, %v2404, %v2405
    %v2407 = vrot.slane %v1616, 5
    %v2408 = vrot.slane %v2407, 4
    %v2409 = vrot.slane %v1617, 5
    %v2410 = vsel %vm2326, %v2408, %v2409
    %v2411 = vrot.slane %v2409, 4
    %v2412 = vrot.slane %v1618, 5
    %v2413 = vsel %vm2326, %v2411, %v2412
    %v2414 = vrot.slane %v2412, 4
    %v2415 = vrot.slane %v1619, 5
    %v2416 = vsel %vm2326, %v2414, %v2415
    %v2417 = vrot.slane %v2415, 4
    %v2418 = vrot.slane %v1620, 5
    %v2419 = vsel %vm2326, %v2417, %v2418
    %v2420 = vrot.slane %v2418, 4
    %v2421 = vrot.slane %v1725, 5
    %v2422 = vsel %vm2326, %v2420, %v2421
    %v2423 = vrot.slane %v1621, 5
    %v2424 = vrot.slane %v2423, 4
    %v2425 = vrot.slane %v1622, 5
    %v2426 = vsel %vm2326, %v2424, %v2425
    %v2427 = vrot.slane %v2425, 4
    %v2428 = vrot.slane %v1623, 5
    %v2429 = vsel %vm2326, %v2427, %v2428
    %v2430 = vrot.slane %v2428, 4
    %v2431 = vrot.slane %v1624, 5
    %v2432 = vsel %vm2326, %v2430, %v2431
    %v2433 = vrot.slane %v2431, 4
    %v2434 = vrot.slane %v1625, 5
    %v2435 = vsel %vm2326, %v2433, %v2434
    %v2436 = vrot.slane %v2434, 4
    %v2437 = vrot.slane %v1726, 5
    %v2438 = vsel %vm2326, %v2436, %v2437
    %v2439 = vrot.slane %v1626, 5
    %v2440 = vrot.slane %v2439, 4
    %v2441 = vrot.slane %v1627, 5
    %v2442 = vsel %vm2326, %v2440, %v2441
    %v2443 = vrot.slane %v2441, 4
    %v2444 = vrot.slane %v1628, 5
    %v2445 = vsel %vm2326, %v2443, %v2444
    %v2446 = vrot.slane %v2444, 4
    %v2447 = vrot.slane %v1629, 5
    %v2448 = vsel %vm2326, %v2446, %v2447
    %v2449 = vrot.slane %v2447, 4
    %v2450 = vrot.slane %v1630, 5
    %v2451 = vsel %vm2326, %v2449, %v2450
    %v2452 = vrot.slane %v2450, 4
    %v2453 = vrot.slane %v1727, 5
    %v2454 = vsel %vm2326, %v2452, %v2453
    %2455 = vrot.lane.b32.xlu0 %v2330, 64
    %v2456 = vpop.permute.xlu0 %2455
    %2457 = vrot.lane.b32.xlu0 %v2333, 64
    %v2458 = vpop.permute.xlu0 %2457
    %2459 = vrot.lane.b32.xlu0 %v2336, 64
    %v2460 = vpop.permute.xlu0 %2459
    %2461 = vrot.lane.b32.xlu0 %v2339, 64
    %v2462 = vpop.permute.xlu0 %2461
    %2463 = vrot.lane.b32.xlu0 %v2342, 64
    %v2464 = vpop.permute.xlu0 %2463
    %2465 = vrot.lane.b32.xlu0 %v2346, 64
    %v2466 = vpop.permute.xlu0 %2465
    %2467 = vrot.lane.b32.xlu0 %v2349, 64
    %v2468 = vpop.permute.xlu0 %2467
    %2469 = vrot.lane.b32.xlu0 %v2352, 64
    %v2470 = vpop.permute.xlu0 %2469
    %2471 = vrot.lane.b32.xlu0 %v2355, 64
    %v2472 = vpop.permute.xlu0 %2471
    %2473 = vrot.lane.b32.xlu0 %v2358, 64
    %v2474 = vpop.permute.xlu0 %2473
    %2475 = vrot.lane.b32.xlu0 %v2362, 64
    %v2476 = vpop.permute.xlu0 %2475
    %2477 = vrot.lane.b32.xlu0 %v2365, 64
    %v2478 = vpop.permute.xlu0 %2477
    %2479 = vrot.lane.b32.xlu0 %v2368, 64
    %v2480 = vpop.permute.xlu0 %2479
    %2481 = vrot.lane.b32.xlu0 %v2371, 64
    %v2482 = vpop.permute.xlu0 %2481
    %2483 = vrot.lane.b32.xlu0 %v2374, 64
    %v2484 = vpop.permute.xlu0 %2483
    %2485 = vrot.lane.b32.xlu0 %v2378, 64
    %v2486 = vpop.permute.xlu0 %2485
    %2487 = vrot.lane.b32.xlu0 %v2381, 64
    %v2488 = vpop.permute.xlu0 %2487
    %2489 = vrot.lane.b32.xlu0 %v2384, 64
    %v2490 = vpop.permute.xlu0 %2489
    %2491 = vrot.lane.b32.xlu0 %v2387, 64
    %v2492 = vpop.permute.xlu0 %2491
    %2493 = vrot.lane.b32.xlu0 %v2390, 64
    %v2494 = vpop.permute.xlu0 %2493
    %2495 = vrot.lane.b32.xlu0 %v2394, 64
    %v2496 = vpop.permute.xlu0 %2495
    %2497 = vrot.lane.b32.xlu0 %v2397, 64
    %v2498 = vpop.permute.xlu0 %2497
    %2499 = vrot.lane.b32.xlu0 %v2400, 64
    %v2500 = vpop.permute.xlu0 %2499
    %2501 = vrot.lane.b32.xlu0 %v2403, 64
    %v2502 = vpop.permute.xlu0 %2501
    %2503 = vrot.lane.b32.xlu0 %v2406, 64
    %v2504 = vpop.permute.xlu0 %2503
    %2505 = vrot.lane.b32.xlu0 %v2410, 64
    %v2506 = vpop.permute.xlu0 %2505
    %2507 = vrot.lane.b32.xlu0 %v2413, 64
    %v2508 = vpop.permute.xlu0 %2507
    %2509 = vrot.lane.b32.xlu0 %v2416, 64
    %v2510 = vpop.permute.xlu0 %2509
    %2511 = vrot.lane.b32.xlu0 %v2419, 64
    %v2512 = vpop.permute.xlu0 %2511
    %2513 = vrot.lane.b32.xlu0 %v2422, 64
    %v2514 = vpop.permute.xlu0 %2513
    %2515 = vrot.lane.b32.xlu0 %v2426, 64
    %v2516 = vpop.permute.xlu0 %2515
    %2517 = vrot.lane.b32.xlu0 %v2429, 64
    %v2518 = vpop.permute.xlu0 %2517
    %2519 = vrot.lane.b32.xlu0 %v2432, 64
    %v2520 = vpop.permute.xlu0 %2519
    %2521 = vrot.lane.b32.xlu0 %v2435, 64
    %v2522 = vpop.permute.xlu0 %2521
    %2523 = vrot.lane.b32.xlu0 %v2438, 64
    %v2524 = vpop.permute.xlu0 %2523
    %2525 = vrot.lane.b32.xlu0 %v2442, 64
    %v2526 = vpop.permute.xlu0 %2525
    %2527 = vrot.lane.b32.xlu0 %v2445, 64
    %v2528 = vpop.permute.xlu0 %2527
    %2529 = vrot.lane.b32.xlu0 %v2448, 64
    %v2530 = vpop.permute.xlu0 %2529
    %2531 = vrot.lane.b32.xlu0 %v2451, 64
    %v2532 = vpop.permute.xlu0 %2531
    %2533 = vrot.lane.b32.xlu0 %v2454, 64
    %v2534 = vpop.permute.xlu0 %2533
    %vm2575 = vcmask 781824
    %2576 = vst.msk [vmem:[#allocation2] sm:$0xf] %vm2575, %v2456
    %2577 = vst.msk [vmem:[#allocation2 + $0x8] sm:$0xf] %vm2575, %v2458
    %2578 = vst.msk [vmem:[#allocation2 + $0x10] sm:$0xf] %vm2575, %v2460
    %2579 = vst.msk [vmem:[#allocation2 + $0x18] sm:$0xf] %vm2575, %v2462
    %2580 = vst.msk [vmem:[#allocation2 + $0x20] sm:$0xf] %vm2575, %v2464
    %2581 = vst.msk [vmem:[#allocation2 + $0x28] sm:$0xf] %vm2575, %v2466
    %2582 = vst.msk [vmem:[#allocation2 + $0x30] sm:$0xf] %vm2575, %v2468
    %2583 = vst.msk [vmem:[#allocation2 + $0x38] sm:$0xf] %vm2575, %v2470
    %2584 = vst.msk [vmem:[#allocation2 + $0x40] sm:$0xf] %vm2575, %v2472
    %2585 = vst.msk [vmem:[#allocation2 + $0x48] sm:$0xf] %vm2575, %v2474
    %2586 = vst.msk [vmem:[#allocation2 + $0x50] sm:$0xf] %vm2575, %v2476
    %2587 = vst.msk [vmem:[#allocation2 + $0x58] sm:$0xf] %vm2575, %v2478
    %2588 = vst.msk [vmem:[#allocation2 + $0x60] sm:$0xf] %vm2575, %v2480
    %2589 = vst.msk [vmem:[#allocation2 + $0x68] sm:$0xf] %vm2575, %v2482
    %2590 = vst.msk [vmem:[#allocation2 + $0x70] sm:$0xf] %vm2575, %v2484
    %2591 = vst.msk [vmem:[#allocation2 + $0x78] sm:$0xf] %vm2575, %v2486
    %2592 = vst.msk [vmem:[#allocation2 + $0x80] sm:$0xf] %vm2575, %v2488
    %2593 = vst.msk [vmem:[#allocation2 + $0x88] sm:$0xf] %vm2575, %v2490
    %2594 = vst.msk [vmem:[#allocation2 + $0x90] sm:$0xf] %vm2575, %v2492
    %2595 = vst.msk [vmem:[#allocation2 + $0x98] sm:$0xf] %vm2575, %v2494
    %2596 = vst.msk [vmem:[#allocation2 + $0xa0] sm:$0xf] %vm2575, %v2496
    %2597 = vst.msk [vmem:[#allocation2 + $0xa8] sm:$0xf] %vm2575, %v2498
    %2598 = vst.msk [vmem:[#allocation2 + $0xb0] sm:$0xf] %vm2575, %v2500
    %2599 = vst.msk [vmem:[#allocation2 + $0xb8] sm:$0xf] %vm2575, %v2502
    %2600 = vst.msk [vmem:[#allocation2 + $0xc0] sm:$0xf] %vm2575, %v2504
    %2601 = vst.msk [vmem:[#allocation2 + $0xc8] sm:$0xf] %vm2575, %v2506
    %2602 = vst.msk [vmem:[#allocation2 + $0xd0] sm:$0xf] %vm2575, %v2508
    %2603 = vst.msk [vmem:[#allocation2 + $0xd8] sm:$0xf] %vm2575, %v2510
    %2604 = vst.msk [vmem:[#allocation2 + $0xe0] sm:$0xf] %vm2575, %v2512
    %2605 = vst.msk [vmem:[#allocation2 + $0xe8] sm:$0xf] %vm2575, %v2514
    %2606 = vst.msk [vmem:[#allocation2 + $0xf0] sm:$0xf] %vm2575, %v2516
    %2607 = vst.msk [vmem:[#allocation2 + $0xf8] sm:$0xf] %vm2575, %v2518
    %2608 = vst.msk [vmem:[#allocation2 + $0x100] sm:$0xf] %vm2575, %v2520
    %2609 = vst.msk [vmem:[#allocation2 + $0x108] sm:$0xf] %vm2575, %v2522
    %2610 = vst.msk [vmem:[#allocation2 + $0x110] sm:$0xf] %vm2575, %v2524
    %2611 = vst.msk [vmem:[#allocation2 + $0x118] sm:$0xf] %vm2575, %v2526
    %2612 = vst.msk [vmem:[#allocation2 + $0x120] sm:$0xf] %vm2575, %v2528
    %2613 = vst.msk [vmem:[#allocation2 + $0x128] sm:$0xf] %vm2575, %v2530
    %2614 = vst.msk [vmem:[#allocation2 + $0x130] sm:$0xf] %vm2575, %v2532
    %2615 = vst.msk [vmem:[#allocation2 + $0x138] sm:$0xf] %vm2575, %v2534
    %vm2616 = vsmask.f32 2304
    %vm2617 = vsmask.f32 6416
    %vm2618 = vmor %vm2616, %vm2617
    %v2619 = vrot.slane %v1732, 5
    %v2620 = vrot.slane %v1735, 6
    %v2621 = vor.u32 %v2619, %v2620
    %v2622 = vrot.slane %v2621, 4
    %v2623 = vrot.slane %v1745, 5
    %v2624 = vrot.slane %v1741, 6
    %v2625 = vor.u32 %v2623, %v2624
    %v2626 = vsel %vm2618, %v2622, %v2625
    %v2627 = vrot.slane %v2625, 4
    %v2628 = vrot.slane %v1755, 5
    %v2629 = vrot.slane %v1751, 6
    %v2630 = vor.u32 %v2628, %v2629
    %v2631 = vsel %vm2618, %v2627, %v2630
    %v2632 = vrot.slane %v2630, 4
    %v2633 = vrot.slane %v1765, 5
    %v2634 = vrot.slane %v1761, 6
    %v2635 = vor.u32 %v2633, %v2634
    %v2636 = vsel %vm2618, %v2632, %v2635
    %v2637 = vrot.slane %v2635, 4
    %v2638 = vrot.slane %v1775, 5
    %v2639 = vrot.slane %v1771, 6
    %v2640 = vor.u32 %v2638, %v2639
    %v2641 = vsel %vm2618, %v2637, %v2640
    %v2642 = vrot.slane %v2640, 4
    %v2643 = vshrl.u32 %v1720, 16
    %v2645 = vrot.slane %v2643, 5
    %v2646 = vrot.slane %v1781, 6
    %v2647 = vor.u32 %v2645, %v2646
    %v2648 = vsel %vm2618, %v2642, %v2647
    %v2649 = vrot.slane %v1786, 5
    %v2650 = vrot.slane %v1789, 6
    %v2651 = vor.u32 %v2649, %v2650
    %v2652 = vrot.slane %v2651, 4
    %v2653 = vrot.slane %v1799, 5
    %v2654 = vrot.slane %v1795, 6
    %v2655 = vor.u32 %v2653, %v2654
    %v2656 = vsel %vm2618, %v2652, %v2655
    %v2657 = vrot.slane %v2655, 4
    %v2658 = vrot.slane %v1809, 5
    %v2659 = vrot.slane %v1805, 6
    %v2660 = vor.u32 %v2658, %v2659
    %v2661 = vsel %vm2618, %v2657, %v2660
    %v2662 = vrot.slane %v2660, 4
    %v2663 = vrot.slane %v1819, 5
    %v2664 = vrot.slane %v1815, 6
    %v2665 = vor.u32 %v2663, %v2664
    %v2666 = vsel %vm2618, %v2662, %v2665
    %v2667 = vrot.slane %v2665, 4
    %v2668 = vrot.slane %v1829, 5
    %v2669 = vrot.slane %v1825, 6
    %v2670 = vor.u32 %v2668, %v2669
    %v2671 = vsel %vm2618, %v2667, %v2670
    %v2672 = vrot.slane %v2670, 4
    %v2673 = vshrl.u32 %v1721, 16
    %v2675 = vrot.slane %v2673, 5
    %v2676 = vrot.slane %v1835, 6
    %v2677 = vor.u32 %v2675, %v2676
    %v2678 = vsel %vm2618, %v2672, %v2677
    %v2679 = vrot.slane %v1840, 5
    %v2680 = vrot.slane %v1843, 6
    %v2681 = vor.u32 %v2679, %v2680
    %v2682 = vrot.slane %v2681, 4
    %v2683 = vrot.slane %v1853, 5
    %v2684 = vrot.slane %v1849, 6
    %v2685 = vor.u32 %v2683, %v2684
    %v2686 = vsel %vm2618, %v2682, %v2685
    %v2687 = vrot.slane %v2685, 4
    %v2688 = vrot.slane %v1863, 5
    %v2689 = vrot.slane %v1859, 6
    %v2690 = vor.u32 %v2688, %v2689
    %v2691 = vsel %vm2618, %v2687, %v2690
    %v2692 = vrot.slane %v2690, 4
    %v2693 = vrot.slane %v1873, 5
    %v2694 = vrot.slane %v1869, 6
    %v2695 = vor.u32 %v2693, %v2694
    %v2696 = vsel %vm2618, %v2692, %v2695
    %v2697 = vrot.slane %v2695, 4
    %v2698 = vrot.slane %v1883, 5
    %v2699 = vrot.slane %v1879, 6
    %v2700 = vor.u32 %v2698, %v2699
    %v2701 = vsel %vm2618, %v2697, %v2700
    %v2702 = vrot.slane %v2700, 4
    %v2703 = vshrl.u32 %v1722, 16
    %v2705 = vrot.slane %v2703, 5
    %v2706 = vrot.slane %v1889, 6
    %v2707 = vor.u32 %v2705, %v2706
    %v2708 = vsel %vm2618, %v2702, %v2707
    %v2709 = vrot.slane %v1894, 5
    %v2710 = vrot.slane %v1897, 6
    %v2711 = vor.u32 %v2709, %v2710
    %v2712 = vrot.slane %v2711, 4
    %v2713 = vrot.slane %v1907, 5
    %v2714 = vrot.slane %v1903, 6
    %v2715 = vor.u32 %v2713, %v2714
    %v2716 = vsel %vm2618, %v2712, %v2715
    %v2717 = vrot.slane %v2715, 4
    %v2718 = vrot.slane %v1917, 5
    %v2719 = vrot.slane %v1913, 6
    %v2720 = vor.u32 %v2718, %v2719
    %v2721 = vsel %vm2618, %v2717, %v2720
    %v2722 = vrot.slane %v2720, 4
    %v2723 = vrot.slane %v1927, 5
    %v2724 = vrot.slane %v1923, 6
    %v2725 = vor.u32 %v2723, %v2724
    %v2726 = vsel %vm2618, %v2722, %v2725
    %v2727 = vrot.slane %v2725, 4
    %v2728 = vrot.slane %v1937, 5
    %v2729 = vrot.slane %v1933, 6
    %v2730 = vor.u32 %v2728, %v2729
    %v2731 = vsel %vm2618, %v2727, %v2730
    %v2732 = vrot.slane %v2730, 4
    %v2733 = vshrl.u32 %v1723, 16
    %v2735 = vrot.slane %v2733, 5
    %v2736 = vrot.slane %v1943, 6
    %v2737 = vor.u32 %v2735, %v2736
    %v2738 = vsel %vm2618, %v2732, %v2737
    %v2739 = vrot.slane %v1948, 5
    %v2740 = vrot.slane %v1951, 6
    %v2741 = vor.u32 %v2739, %v2740
    %v2742 = vrot.slane %v2741, 4
    %v2743 = vrot.slane %v1961, 5
    %v2744 = vrot.slane %v1957, 6
    %v2745 = vor.u32 %v2743, %v2744
    %v2746 = vsel %vm2618, %v2742, %v2745
    %v2747 = vrot.slane %v2745, 4
    %v2748 = vrot.slane %v1971, 5
    %v2749 = vrot.slane %v1967, 6
    %v2750 = vor.u32 %v2748, %v2749
    %v2751 = vsel %vm2618, %v2747, %v2750
    %v2752 = vrot.slane %v2750, 4
    %v2753 = vrot.slane %v1981, 5
    %v2754 = vrot.slane %v1977, 6
    %v2755 = vor.u32 %v2753, %v2754
    %v2756 = vsel %vm2618, %v2752, %v2755
    %v2757 = vrot.slane %v2755, 4
    %v2758 = vrot.slane %v1991, 5
    %v2759 = vrot.slane %v1987, 6
    %v2760 = vor.u32 %v2758, %v2759
    %v2761 = vsel %vm2618, %v2757, %v2760
    %v2762 = vrot.slane %v2760, 4
    %v2763 = vshrl.u32 %v1724, 16
    %v2765 = vrot.slane %v2763, 5
    %v2766 = vrot.slane %v1997, 6
    %v2767 = vor.u32 %v2765, %v2766
    %v2768 = vsel %vm2618, %v2762, %v2767
    %v2769 = vrot.slane %v2002, 5
    %v2770 = vrot.slane %v2005, 6
    %v2771 = vor.u32 %v2769, %v2770
    %v2772 = vrot.slane %v2771, 4
    %v2773 = vrot.slane %v2015, 5
    %v2774 = vrot.slane %v2011, 6
    %v2775 = vor.u32 %v2773, %v2774
    %v2776 = vsel %vm2618, %v2772, %v2775
    %v2777 = vrot.slane %v2775, 4
    %v2778 = vrot.slane %v2025, 5
    %v2779 = vrot.slane %v2021, 6
    %v2780 = vor.u32 %v2778, %v2779
    %v2781 = vsel %vm2618, %v2777, %v2780
    %v2782 = vrot.slane %v2780, 4
    %v2783 = vrot.slane %v2035, 5
    %v2784 = vrot.slane %v2031, 6
    %v2785 = vor.u32 %v2783, %v2784
    %v2786 = vsel %vm2618, %v2782, %v2785
    %v2787 = vrot.slane %v2785, 4
    %v2788 = vrot.slane %v2045, 5
    %v2789 = vrot.slane %v2041, 6
    %v2790 = vor.u32 %v2788, %v2789
    %v2791 = vsel %vm2618, %v2787, %v2790
    %v2792 = vrot.slane %v2790, 4
    %v2793 = vshrl.u32 %v1725, 16
    %v2795 = vrot.slane %v2793, 5
    %v2796 = vrot.slane %v2051, 6
    %v2797 = vor.u32 %v2795, %v2796
    %v2798 = vsel %vm2618, %v2792, %v2797
    %v2799 = vrot.slane %v2056, 5
    %v2800 = vrot.slane %v2059, 6
    %v2801 = vor.u32 %v2799, %v2800
    %v2802 = vrot.slane %v2801, 4
    %v2803 = vrot.slane %v2069, 5
    %v2804 = vrot.slane %v2065, 6
    %v2805 = vor.u32 %v2803, %v2804
    %v2806 = vsel %vm2618, %v2802, %v2805
    %v2807 = vrot.slane %v2805, 4
    %v2808 = vrot.slane %v2079, 5
    %v2809 = vrot.slane %v2075, 6
    %v2810 = vor.u32 %v2808, %v2809
    %v2811 = vsel %vm2618, %v2807, %v2810
    %v2812 = vrot.slane %v2810, 4
    %v2813 = vrot.slane %v2089, 5
    %v2814 = vrot.slane %v2085, 6
    %v2815 = vor.u32 %v2813, %v2814
    %v2816 = vsel %vm2618, %v2812, %v2815
    %v2817 = vrot.slane %v2815, 4
    %v2818 = vrot.slane %v2099, 5
    %v2819 = vrot.slane %v2095, 6
    %v2820 = vor.u32 %v2818, %v2819
    %v2821 = vsel %vm2618, %v2817, %v2820
    %v2822 = vrot.slane %v2820, 4
    %v2823 = vshrl.u32 %v1726, 16
    %v2825 = vrot.slane %v2823, 5
    %v2826 = vrot.slane %v2105, 6
    %v2827 = vor.u32 %v2825, %v2826
    %v2828 = vsel %vm2618, %v2822, %v2827
    %v2829 = vrot.slane %v2110, 5
    %v2830 = vrot.slane %v2113, 6
    %v2831 = vor.u32 %v2829, %v2830
    %v2832 = vrot.slane %v2831, 4
    %v2833 = vrot.slane %v2123, 5
    %v2834 = vrot.slane %v2119, 6
    %v2835 = vor.u32 %v2833, %v2834
    %v2836 = vsel %vm2618, %v2832, %v2835
    %v2837 = vrot.slane %v2835, 4
    %v2838 = vrot.slane %v2133, 5
    %v2839 = vrot.slane %v2129, 6
    %v2840 = vor.u32 %v2838, %v2839
    %v2841 = vsel %vm2618, %v2837, %v2840
    %v2842 = vrot.slane %v2840, 4
    %v2843 = vrot.slane %v2143, 5
    %v2844 = vrot.slane %v2139, 6
    %v2845 = vor.u32 %v2843, %v2844
    %v2846 = vsel %vm2618, %v2842, %v2845
    %v2847 = vrot.slane %v2845, 4
    %v2848 = vrot.slane %v2153, 5
    %v2849 = vrot.slane %v2149, 6
    %v2850 = vor.u32 %v2848, %v2849
    %v2851 = vsel %vm2618, %v2847, %v2850
    %v2852 = vrot.slane %v2850, 4
    %v2853 = vshrl.u32 %v1727, 16
    %v2855 = vrot.slane %v2853, 5
    %v2856 = vrot.slane %v2159, 6
    %v2857 = vor.u32 %v2855, %v2856
    %v2858 = vsel %vm2618, %v2852, %v2857
    %2859 = vrot.lane.b32.xlu0 %v2626, 96
    %v2860 = vpop.permute.xlu0 %2859
    %2861 = vrot.lane.b32.xlu0 %v2631, 96
    %v2862 = vpop.permute.xlu0 %2861
    %2863 = vrot.lane.b32.xlu0 %v2636, 96
    %v2864 = vpop.permute.xlu0 %2863
    %2865 = vrot.lane.b32.xlu0 %v2641, 96
    %v2866 = vpop.permute.xlu0 %2865
    %2867 = vrot.lane.b32.xlu0 %v2648, 96
    %v2868 = vpop.permute.xlu0 %2867
    %2869 = vrot.lane.b32.xlu0 %v2656, 96
    %v2870 = vpop.permute.xlu0 %2869
    %2871 = vrot.lane.b32.xlu0 %v2661, 96
    %v2872 = vpop.permute.xlu0 %2871
    %2873 = vrot.lane.b32.xlu0 %v2666, 96
    %v2874 = vpop.permute.xlu0 %2873
    %2875 = vrot.lane.b32.xlu0 %v2671, 96
    %v2876 = vpop.permute.xlu0 %2875
    %2877 = vrot.lane.b32.xlu0 %v2678, 96
    %v2878 = vpop.permute.xlu0 %2877
    %2879 = vrot.lane.b32.xlu0 %v2686, 96
    %v2880 = vpop.permute.xlu0 %2879
    %2881 = vrot.lane.b32.xlu0 %v2691, 96
    %v2882 = vpop.permute.xlu0 %2881
    %2883 = vrot.lane.b32.xlu0 %v2696, 96
    %v2884 = vpop.permute.xlu0 %2883
    %2885 = vrot.lane.b32.xlu0 %v2701, 96
    %v2886 = vpop.permute.xlu0 %2885
    %2887 = vrot.lane.b32.xlu0 %v2708, 96
    %v2888 = vpop.permute.xlu0 %2887
    %2889 = vrot.lane.b32.xlu0 %v2716, 96
    %v2890 = vpop.permute.xlu0 %2889
    %2891 = vrot.lane.b32.xlu0 %v2721, 96
    %v2892 = vpop.permute.xlu0 %2891
    %2893 = vrot.lane.b32.xlu0 %v2726, 96
    %v2894 = vpop.permute.xlu0 %2893
    %2895 = vrot.lane.b32.xlu0 %v2731, 96
    %v2896 = vpop.permute.xlu0 %2895
    %2897 = vrot.lane.b32.xlu0 %v2738, 96
    %v2898 = vpop.permute.xlu0 %2897
    %2899 = vrot.lane.b32.xlu0 %v2746, 96
    %v2900 = vpop.permute.xlu0 %2899
    %2901 = vrot.lane.b32.xlu0 %v2751, 96
    %v2902 = vpop.permute.xlu0 %2901
    %2903 = vrot.lane.b32.xlu0 %v2756, 96
    %v2904 = vpop.permute.xlu0 %2903
    %2905 = vrot.lane.b32.xlu0 %v2761, 96
    %v2906 = vpop.permute.xlu0 %2905
    %2907 = vrot.lane.b32.xlu0 %v2768, 96
    %v2908 = vpop.permute.xlu0 %2907
    %2909 = vrot.lane.b32.xlu0 %v2776, 96
    %v2910 = vpop.permute.xlu0 %2909
    %2911 = vrot.lane.b32.xlu0 %v2781, 96
    %v2912 = vpop.permute.xlu0 %2911
    %2913 = vrot.lane.b32.xlu0 %v2786, 96
    %v2914 = vpop.permute.xlu0 %2913
    %2915 = vrot.lane.b32.xlu0 %v2791, 96
    %v2916 = vpop.permute.xlu0 %2915
    %2917 = vrot.lane.b32.xlu0 %v2798, 96
    %v2918 = vpop.permute.xlu0 %2917
    %2919 = vrot.lane.b32.xlu0 %v2806, 96
    %v2920 = vpop.permute.xlu0 %2919
    %2921 = vrot.lane.b32.xlu0 %v2811, 96
    %v2922 = vpop.permute.xlu0 %2921
    %2923 = vrot.lane.b32.xlu0 %v2816, 96
    %v2924 = vpop.permute.xlu0 %2923
    %2925 = vrot.lane.b32.xlu0 %v2821, 96
    %v2926 = vpop.permute.xlu0 %2925
    %2927 = vrot.lane.b32.xlu0 %v2828, 96
    %v2928 = vpop.permute.xlu0 %2927
    %2929 = vrot.lane.b32.xlu0 %v2836, 96
    %v2930 = vpop.permute.xlu0 %2929
    %2931 = vrot.lane.b32.xlu0 %v2841, 96
    %v2932 = vpop.permute.xlu0 %2931
    %2933 = vrot.lane.b32.xlu0 %v2846, 96
    %v2934 = vpop.permute.xlu0 %2933
    %2935 = vrot.lane.b32.xlu0 %v2851, 96
    %v2936 = vpop.permute.xlu0 %2935
    %2937 = vrot.lane.b32.xlu0 %v2858, 96
    %v2938 = vpop.permute.xlu0 %2937
    %vm2979 = vcmask 1044224
    %2980 = vst.msk [vmem:[#allocation2] sm:$0xf] %vm2979, %v2860
    %2981 = vst.msk [vmem:[#allocation2 + $0x8] sm:$0xf] %vm2979, %v2862
    %2982 = vst.msk [vmem:[#allocation2 + $0x10] sm:$0xf] %vm2979, %v2864
    %2983 = vst.msk [vmem:[#allocation2 + $0x18] sm:$0xf] %vm2979, %v2866
    %2984 = vst.msk [vmem:[#allocation2 + $0x20] sm:$0xf] %vm2979, %v2868
    %2985 = vst.msk [vmem:[#allocation2 + $0x28] sm:$0xf] %vm2979, %v2870
    %2986 = vst.msk [vmem:[#allocation2 + $0x30] sm:$0xf] %vm2979, %v2872
    %2987 = vst.msk [vmem:[#allocation2 + $0x38] sm:$0xf] %vm2979, %v2874
    %2988 = vst.msk [vmem:[#allocation2 + $0x40] sm:$0xf] %vm2979, %v2876
    %2989 = vst.msk [vmem:[#allocation2 + $0x48] sm:$0xf] %vm2979, %v2878
    %2990 = vst.msk [vmem:[#allocation2 + $0x50] sm:$0xf] %vm2979, %v2880
    %2991 = vst.msk [vmem:[#allocation2 + $0x58] sm:$0xf] %vm2979, %v2882
    %2992 = vst.msk [vmem:[#allocation2 + $0x60] sm:$0xf] %vm2979, %v2884
    %2993 = vst.msk [vmem:[#allocation2 + $0x68] sm:$0xf] %vm2979, %v2886
    %2994 = vst.msk [vmem:[#allocation2 + $0x70] sm:$0xf] %vm2979, %v2888
    %2995 = vst.msk [vmem:[#allocation2 + $0x78] sm:$0xf] %vm2979, %v2890
    %2996 = vst.msk [vmem:[#allocation2 + $0x80] sm:$0xf] %vm2979, %v2892
    %2997 = vst.msk [vmem:[#allocation2 + $0x88] sm:$0xf] %vm2979, %v2894
    %2998 = vst.msk [vmem:[#allocation2 + $0x90] sm:$0xf] %vm2979, %v2896
    %2999 = vst.msk [vmem:[#allocation2 + $0x98] sm:$0xf] %vm2979, %v2898
    %3000 = vst.msk [vmem:[#allocation2 + $0xa0] sm:$0xf] %vm2979, %v2900
    %3001 = vst.msk [vmem:[#allocation2 + $0xa8] sm:$0xf] %vm2979, %v2902
    %3002 = vst.msk [vmem:[#allocation2 + $0xb0] sm:$0xf] %vm2979, %v2904
    %3003 = vst.msk [vmem:[#allocation2 + $0xb8] sm:$0xf] %vm2979, %v2906
    %3004 = vst.msk [vmem:[#allocation2 + $0xc0] sm:$0xf] %vm2979, %v2908
    %3005 = vst.msk [vmem:[#allocation2 + $0xc8] sm:$0xf] %vm2979, %v2910
    %3006 = vst.msk [vmem:[#allocation2 + $0xd0] sm:$0xf] %vm2979, %v2912
    %3007 = vst.msk [vmem:[#allocation2 + $0xd8] sm:$0xf] %vm2979, %v2914
    %3008 = vst.msk [vmem:[#allocation2 + $0xe0] sm:$0xf] %vm2979, %v2916
    %3009 = vst.msk [vmem:[#allocation2 + $0xe8] sm:$0xf] %vm2979, %v2918
    %3010 = vst.msk [vmem:[#allocation2 + $0xf0] sm:$0xf] %vm2979, %v2920
    %3011 = vst.msk [vmem:[#allocation2 + $0xf8] sm:$0xf] %vm2979, %v2922
    %3012 = vst.msk [vmem:[#allocation2 + $0x100] sm:$0xf] %vm2979, %v2924
    %3013 = vst.msk [vmem:[#allocation2 + $0x108] sm:$0xf] %vm2979, %v2926
    %3014 = vst.msk [vmem:[#allocation2 + $0x110] sm:$0xf] %vm2979, %v2928
    %3015 = vst.msk [vmem:[#allocation2 + $0x118] sm:$0xf] %vm2979, %v2930
    %3016 = vst.msk [vmem:[#allocation2 + $0x120] sm:$0xf] %vm2979, %v2932
    %3017 = vst.msk [vmem:[#allocation2 + $0x128] sm:$0xf] %vm2979, %v2934
    %3018 = vst.msk [vmem:[#allocation2 + $0x130] sm:$0xf] %vm2979, %v2936
    %3019 = vst.msk [vmem:[#allocation2 + $0x138] sm:$0xf] %vm2979, %v2938
    %vm3020 = vcmask 1041408
    %vm3021 = vcmask 1045508
    %vm3022 = vmor %vm3020, %vm3021
    %v3023 = vrot.slane %v1591, 6
    %v3024 = vrot.slane %v3023, 4
    %v3025 = vrot.slane %v1592, 6
    %v3026 = vsel %vm3022, %v3024, %v3025
    %v3027 = vrot.slane %v3025, 4
    %v3028 = vrot.slane %v1593, 6
    %v3029 = vsel %vm3022, %v3027, %v3028
    %v3030 = vrot.slane %v3028, 4
    %v3031 = vrot.slane %v1594, 6
    %v3032 = vsel %vm3022, %v3030, %v3031
    %v3033 = vrot.slane %v3031, 4
    %v3034 = vrot.slane %v1595, 6
    %v3035 = vsel %vm3022, %v3033, %v3034
    %v3036 = vrot.slane %v3034, 4
    %v3037 = vrot.slane %v1720, 6
    %v3038 = vsel %vm3022, %v3036, %v3037
    %v3039 = vrot.slane %v1596, 6
    %v3040 = vrot.slane %v3039, 4
    %v3041 = vrot.slane %v1597, 6
    %v3042 = vsel %vm3022, %v3040, %v3041
    %v3043 = vrot.slane %v3041, 4
    %v3044 = vrot.slane %v1598, 6
    %v3045 = vsel %vm3022, %v3043, %v3044
    %v3046 = vrot.slane %v3044, 4
    %v3047 = vrot.slane %v1599, 6
    %v3048 = vsel %vm3022, %v3046, %v3047
    %v3049 = vrot.slane %v3047, 4
    %v3050 = vrot.slane %v1600, 6
    %v3051 = vsel %vm3022, %v3049, %v3050
    %v3052 = vrot.slane %v3050, 4
    %v3053 = vrot.slane %v1721, 6
    %v3054 = vsel %vm3022, %v3052, %v3053
    %v3055 = vrot.slane %v1601, 6
    %v3056 = vrot.slane %v3055, 4
    %v3057 = vrot.slane %v1602, 6
    %v3058 = vsel %vm3022, %v3056, %v3057
    %v3059 = vrot.slane %v3057, 4
    %v3060 = vrot.slane %v1603, 6
    %v3061 = vsel %vm3022, %v3059, %v3060
    %v3062 = vrot.slane %v3060, 4
    %v3063 = vrot.slane %v1604, 6
    %v3064 = vsel %vm3022, %v3062, %v3063
    %v3065 = vrot.slane %v3063, 4
    %v3066 = vrot.slane %v1605, 6
    %v3067 = vsel %vm3022, %v3065, %v3066
    %v3068 = vrot.slane %v3066, 4
    %v3069 = vrot.slane %v1722, 6
    %v3070 = vsel %vm3022, %v3068, %v3069
    %v3071 = vrot.slane %v1606, 6
    %v3072 = vrot.slane %v3071, 4
    %v3073 = vrot.slane %v1607, 6
    %v3074 = vsel %vm3022, %v3072, %v3073
    %v3075 = vrot.slane %v3073, 4
    %v3076 = vrot.slane %v1608, 6
    %v3077 = vsel %vm3022, %v3075, %v3076
    %v3078 = vrot.slane %v3076, 4
    %v3079 = vrot.slane %v1609, 6
    %v3080 = vsel %vm3022, %v3078, %v3079
    %v3081 = vrot.slane %v3079, 4
    %v3082 = vrot.slane %v1610, 6
    %v3083 = vsel %vm3022, %v3081, %v3082
    %v3084 = vrot.slane %v3082, 4
    %v3085 = vrot.slane %v1723, 6
    %v3086 = vsel %vm3022, %v3084, %v3085
    %v3087 = vrot.slane %v1611, 6
    %v3088 = vrot.slane %v3087, 4
    %v3089 = vrot.slane %v1612, 6
    %v3090 = vsel %vm3022, %v3088, %v3089
    %v3091 = vrot.slane %v3089, 4
    %v3092 = vrot.slane %v1613, 6
    %v3093 = vsel %vm3022, %v3091, %v3092
    %v3094 = vrot.slane %v3092, 4
    %v3095 = vrot.slane %v1614, 6
    %v3096 = vsel %vm3022, %v3094, %v3095
    %v3097 = vrot.slane %v3095, 4
    %v3098 = vrot.slane %v1615, 6
    %v3099 = vsel %vm3022, %v3097, %v3098
    %v3100 = vrot.slane %v3098, 4
    %v3101 = vrot.slane %v1724, 6
    %v3102 = vsel %vm3022, %v3100, %v3101
    %v3103 = vrot.slane %v1616, 6
    %v3104 = vrot.slane %v3103, 4
    %v3105 = vrot.slane %v1617, 6
    %v3106 = vsel %vm3022, %v3104, %v3105
    %v3107 = vrot.slane %v3105, 4
    %v3108 = vrot.slane %v1618, 6
    %v3109 = vsel %vm3022, %v3107, %v3108
    %v3110 = vrot.slane %v3108, 4
    %v3111 = vrot.slane %v1619, 6
    %v3112 = vsel %vm3022, %v3110, %v3111
    %v3113 = vrot.slane %v3111, 4
    %v3114 = vrot.slane %v1620, 6
    %v3115 = vsel %vm3022, %v3113, %v3114
    %v3116 = vrot.slane %v3114, 4
    %v3117 = vrot.slane %v1725, 6
    %v3118 = vsel %vm3022, %v3116, %v3117
    %v3119 = vrot.slane %v1621, 6
    %v3120 = vrot.slane %v3119, 4
    %v3121 = vrot.slane %v1622, 6
    %v3122 = vsel %vm3022, %v3120, %v3121
    %v3123 = vrot.slane %v3121, 4
    %v3124 = vrot.slane %v1623, 6
    %v3125 = vsel %vm3022, %v3123, %v3124
    %v3126 = vrot.slane %v3124, 4
    %v3127 = vrot.slane %v1624, 6
    %v3128 = vsel %vm3022, %v3126, %v3127
    %v3129 = vrot.slane %v3127, 4
    %v3130 = vrot.slane %v1625, 6
    %v3131 = vsel %vm3022, %v3129, %v3130
    %v3132 = vrot.slane %v3130, 4
    %v3133 = vrot.slane %v1726, 6
    %v3134 = vsel %vm3022, %v3132, %v3133
    %v3135 = vrot.slane %v1626, 6
    %v3136 = vrot.slane %v3135, 4
    %v3137 = vrot.slane %v1627, 6
    %v3138 = vsel %vm3022, %v3136, %v3137
    %v3139 = vrot.slane %v3137, 4
    %v3140 = vrot.slane %v1628, 6
    %v3141 = vsel %vm3022, %v3139, %v3140
    %v3142 = vrot.slane %v3140, 4
    %v3143 = vrot.slane %v1629, 6
    %v3144 = vsel %vm3022, %v3142, %v3143
    %v3145 = vrot.slane %v3143, 4
    %v3146 = vrot.slane %v1630, 6
    %v3147 = vsel %vm3022, %v3145, %v3146
    %v3148 = vrot.slane %v3146, 4
    %v3149 = vrot.slane %v1727, 6
    %v3150 = vsel %vm3022, %v3148, %v3149
    %3191 = vst.msk [vmem:[#allocation2 + $0x4] sm:$0xf] %vm1671, %v3026
    %3192 = vst.msk [vmem:[#allocation2 + $0xc] sm:$0xf] %vm1671, %v3029
    %3193 = vst.msk [vmem:[#allocation2 + $0x14] sm:$0xf] %vm1671, %v3032
    %3194 = vst.msk [vmem:[#allocation2 + $0x1c] sm:$0xf] %vm1671, %v3035
    %3195 = vst.msk [vmem:[#allocation2 + $0x24] sm:$0xf] %vm1671, %v3038
    %3196 = vst.msk [vmem:[#allocation2 + $0x2c] sm:$0xf] %vm1671, %v3042
    %3197 = vst.msk [vmem:[#allocation2 + $0x34] sm:$0xf] %vm1671, %v3045
    %3198 = vst.msk [vmem:[#allocation2 + $0x3c] sm:$0xf] %vm1671, %v3048
    %3199 = vst.msk [vmem:[#allocation2 + $0x44] sm:$0xf] %vm1671, %v3051
    %3200 = vst.msk [vmem:[#allocation2 + $0x4c] sm:$0xf] %vm1671, %v3054
    %3201 = vst.msk [vmem:[#allocation2 + $0x54] sm:$0xf] %vm1671, %v3058
    %3202 = vst.msk [vmem:[#allocation2 + $0x5c] sm:$0xf] %vm1671, %v3061
    %3203 = vst.msk [vmem:[#allocation2 + $0x64] sm:$0xf] %vm1671, %v3064
    %3204 = vst.msk [vmem:[#allocation2 + $0x6c] sm:$0xf] %vm1671, %v3067
    %3205 = vst.msk [vmem:[#allocation2 + $0x74] sm:$0xf] %vm1671, %v3070
    %3206 = vst.msk [vmem:[#allocation2 + $0x7c] sm:$0xf] %vm1671, %v3074
    %3207 = vst.msk [vmem:[#allocation2 + $0x84] sm:$0xf] %vm1671, %v3077
    %3208 = vst.msk [vmem:[#allocation2 + $0x8c] sm:$0xf] %vm1671, %v3080
    %3209 = vst.msk [vmem:[#allocation2 + $0x94] sm:$0xf] %vm1671, %v3083
    %3210 = vst.msk [vmem:[#allocation2 + $0x9c] sm:$0xf] %vm1671, %v3086
    %3211 = vst.msk [vmem:[#allocation2 + $0xa4] sm:$0xf] %vm1671, %v3090
    %3212 = vst.msk [vmem:[#allocation2 + $0xac] sm:$0xf] %vm1671, %v3093
    %3213 = vst.msk [vmem:[#allocation2 + $0xb4] sm:$0xf] %vm1671, %v3096
    %3214 = vst.msk [vmem:[#allocation2 + $0xbc] sm:$0xf] %vm1671, %v3099
    %3215 = vst.msk [vmem:[#allocation2 + $0xc4] sm:$0xf] %vm1671, %v3102
    %3216 = vst.msk [vmem:[#allocation2 + $0xcc] sm:$0xf] %vm1671, %v3106
    %3217 = vst.msk [vmem:[#allocation2 + $0xd4] sm:$0xf] %vm1671, %v3109
    %3218 = vst.msk [vmem:[#allocation2 + $0xdc] sm:$0xf] %vm1671, %v3112
    %3219 = vst.msk [vmem:[#allocation2 + $0xe4] sm:$0xf] %vm1671, %v3115
    %3220 = vst.msk [vmem:[#allocation2 + $0xec] sm:$0xf] %vm1671, %v3118
    %3221 = vst.msk [vmem:[#allocation2 + $0xf4] sm:$0xf] %vm1671, %v3122
    %3222 = vst.msk [vmem:[#allocation2 + $0xfc] sm:$0xf] %vm1671, %v3125
    %3223 = vst.msk [vmem:[#allocation2 + $0x104] sm:$0xf] %vm1671, %v3128
    %3224 = vst.msk [vmem:[#allocation2 + $0x10c] sm:$0xf] %vm1671, %v3131
    %3225 = vst.msk [vmem:[#allocation2 + $0x114] sm:$0xf] %vm1671, %v3134
    %3226 = vst.msk [vmem:[#allocation2 + $0x11c] sm:$0xf] %vm1671, %v3138
    %3227 = vst.msk [vmem:[#allocation2 + $0x124] sm:$0xf] %vm1671, %v3141
    %3228 = vst.msk [vmem:[#allocation2 + $0x12c] sm:$0xf] %vm1671, %v3144
    %3229 = vst.msk [vmem:[#allocation2 + $0x134] sm:$0xf] %vm1671, %v3147
    %3230 = vst.msk [vmem:[#allocation2 + $0x13c] sm:$0xf] %vm1671, %v3150
    %vm3231 = vsmask.f32 1280
    %vm3232 = vsmask.f32 5392
    %vm3233 = vmor %vm3231, %vm3232
    %v3234 = vrot.slane %v1732, 6
    %v3235 = vrot.slane %v1735, 7
    %v3236 = vor.u32 %v3234, %v3235
    %v3237 = vrot.slane %v3236, 4
    %v3238 = vrot.slane %v1745, 6
    %v3239 = vrot.slane %v1741, 7
    %v3240 = vor.u32 %v3238, %v3239
    %v3241 = vsel %vm3233, %v3237, %v3240
    %v3242 = vrot.slane %v3240, 4
    %v3243 = vrot.slane %v1755, 6
    %v3244 = vrot.slane %v1751, 7
    %v3245 = vor.u32 %v3243, %v3244
    %v3246 = vsel %vm3233, %v3242, %v3245
    %v3247 = vrot.slane %v3245, 4
    %v3248 = vrot.slane %v1765, 6
    %v3249 = vrot.slane %v1761, 7
    %v3250 = vor.u32 %v3248, %v3249
    %v3251 = vsel %vm3233, %v3247, %v3250
    %v3252 = vrot.slane %v3250, 4
    %v3253 = vrot.slane %v1775, 6
    %v3254 = vrot.slane %v1771, 7
    %v3255 = vor.u32 %v3253, %v3254
    %v3256 = vsel %vm3233, %v3252, %v3255
    %v3257 = vrot.slane %v3255, 4
    %v3258 = vrot.slane %v2643, 6
    %v3259 = vrot.slane %v1781, 7
    %v3260 = vor.u32 %v3258, %v3259
    %v3261 = vsel %vm3233, %v3257, %v3260
    %v3262 = vrot.slane %v1786, 6
    %v3263 = vrot.slane %v1789, 7
    %v3264 = vor.u32 %v3262, %v3263
    %v3265 = vrot.slane %v3264, 4
    %v3266 = vrot.slane %v1799, 6
    %v3267 = vrot.slane %v1795, 7
    %v3268 = vor.u32 %v3266, %v3267
    %v3269 = vsel %vm3233, %v3265, %v3268
    %v3270 = vrot.slane %v3268, 4
    %v3271 = vrot.slane %v1809, 6
    %v3272 = vrot.slane %v1805, 7
    %v3273 = vor.u32 %v3271, %v3272
    %v3274 = vsel %vm3233, %v3270, %v3273
    %v3275 = vrot.slane %v3273, 4
    %v3276 = vrot.slane %v1819, 6
    %v3277 = vrot.slane %v1815, 7
    %v3278 = vor.u32 %v3276, %v3277
    %v3279 = vsel %vm3233, %v3275, %v3278
    %v3280 = vrot.slane %v3278, 4
    %v3281 = vrot.slane %v1829, 6
    %v3282 = vrot.slane %v1825, 7
    %v3283 = vor.u32 %v3281, %v3282
    %v3284 = vsel %vm3233, %v3280, %v3283
    %v3285 = vrot.slane %v3283, 4
    %v3286 = vrot.slane %v2673, 6
    %v3287 = vrot.slane %v1835, 7
    %v3288 = vor.u32 %v3286, %v3287
    %v3289 = vsel %vm3233, %v3285, %v3288
    %v3290 = vrot.slane %v1840, 6
    %v3291 = vrot.slane %v1843, 7
    %v3292 = vor.u32 %v3290, %v3291
    %v3293 = vrot.slane %v3292, 4
    %v3294 = vrot.slane %v1853, 6
    %v3295 = vrot.slane %v1849, 7
    %v3296 = vor.u32 %v3294, %v3295
    %v3297 = vsel %vm3233, %v3293, %v3296
    %v3298 = vrot.slane %v3296, 4
    %v3299 = vrot.slane %v1863, 6
    %v3300 = vrot.slane %v1859, 7
    %v3301 = vor.u32 %v3299, %v3300
    %v3302 = vsel %vm3233, %v3298, %v3301
    %v3303 = vrot.slane %v3301, 4
    %v3304 = vrot.slane %v1873, 6
    %v3305 = vrot.slane %v1869, 7
    %v3306 = vor.u32 %v3304, %v3305
    %v3307 = vsel %vm3233, %v3303, %v3306
    %v3308 = vrot.slane %v3306, 4
    %v3309 = vrot.slane %v1883, 6
    %v3310 = vrot.slane %v1879, 7
    %v3311 = vor.u32 %v3309, %v3310
    %v3312 = vsel %vm3233, %v3308, %v3311
    %v3313 = vrot.slane %v3311, 4
    %v3314 = vrot.slane %v2703, 6
    %v3315 = vrot.slane %v1889, 7
    %v3316 = vor.u32 %v3314, %v3315
    %v3317 = vsel %vm3233, %v3313, %v3316
    %v3318 = vrot.slane %v1894, 6
    %v3319 = vrot.slane %v1897, 7
    %v3320 = vor.u32 %v3318, %v3319
    %v3321 = vrot.slane %v3320, 4
    %v3322 = vrot.slane %v1907, 6
    %v3323 = vrot.slane %v1903, 7
    %v3324 = vor.u32 %v3322, %v3323
    %v3325 = vsel %vm3233, %v3321, %v3324
    %v3326 = vrot.slane %v3324, 4
    %v3327 = vrot.slane %v1917, 6
    %v3328 = vrot.slane %v1913, 7
    %v3329 = vor.u32 %v3327, %v3328
    %v3330 = vsel %vm3233, %v3326, %v3329
    %v3331 = vrot.slane %v3329, 4
    %v3332 = vrot.slane %v1927, 6
    %v3333 = vrot.slane %v1923, 7
    %v3334 = vor.u32 %v3332, %v3333
    %v3335 = vsel %vm3233, %v3331, %v3334
    %v3336 = vrot.slane %v3334, 4
    %v3337 = vrot.slane %v1937, 6
    %v3338 = vrot.slane %v1933, 7
    %v3339 = vor.u32 %v3337, %v3338
    %v3340 = vsel %vm3233, %v3336, %v3339
    %v3341 = vrot.slane %v3339, 4
    %v3342 = vrot.slane %v2733, 6
    %v3343 = vrot.slane %v1943, 7
    %v3344 = vor.u32 %v3342, %v3343
    %v3345 = vsel %vm3233, %v3341, %v3344
    %v3346 = vrot.slane %v1948, 6
    %v3347 = vrot.slane %v1951, 7
    %v3348 = vor.u32 %v3346, %v3347
    %v3349 = vrot.slane %v3348, 4
    %v3350 = vrot.slane %v1961, 6
    %v3351 = vrot.slane %v1957, 7
    %v3352 = vor.u32 %v3350, %v3351
    %v3353 = vsel %vm3233, %v3349, %v3352
    %v3354 = vrot.slane %v3352, 4
    %v3355 = vrot.slane %v1971, 6
    %v3356 = vrot.slane %v1967, 7
    %v3357 = vor.u32 %v3355, %v3356
    %v3358 = vsel %vm3233, %v3354, %v3357
    %v3359 = vrot.slane %v3357, 4
    %v3360 = vrot.slane %v1981, 6
    %v3361 = vrot.slane %v1977, 7
    %v3362 = vor.u32 %v3360, %v3361
    %v3363 = vsel %vm3233, %v3359, %v3362
    %v3364 = vrot.slane %v3362, 4
    %v3365 = vrot.slane %v1991, 6
    %v3366 = vrot.slane %v1987, 7
    %v3367 = vor.u32 %v3365, %v3366
    %v3368 = vsel %vm3233, %v3364, %v3367
    %v3369 = vrot.slane %v3367, 4
    %v3370 = vrot.slane %v2763, 6
    %v3371 = vrot.slane %v1997, 7
    %v3372 = vor.u32 %v3370, %v3371
    %v3373 = vsel %vm3233, %v3369, %v3372
    %v3374 = vrot.slane %v2002, 6
    %v3375 = vrot.slane %v2005, 7
    %v3376 = vor.u32 %v3374, %v3375
    %v3377 = vrot.slane %v3376, 4
    %v3378 = vrot.slane %v2015, 6
    %v3379 = vrot.slane %v2011, 7
    %v3380 = vor.u32 %v3378, %v3379
    %v3381 = vsel %vm3233, %v3377, %v3380
    %v3382 = vrot.slane %v3380, 4
    %v3383 = vrot.slane %v2025, 6
    %v3384 = vrot.slane %v2021, 7
    %v3385 = vor.u32 %v3383, %v3384
    %v3386 = vsel %vm3233, %v3382, %v3385
    %v3387 = vrot.slane %v3385, 4
    %v3388 = vrot.slane %v2035, 6
    %v3389 = vrot.slane %v2031, 7
    %v3390 = vor.u32 %v3388, %v3389
    %v3391 = vsel %vm3233, %v3387, %v3390
    %v3392 = vrot.slane %v3390, 4
    %v3393 = vrot.slane %v2045, 6
    %v3394 = vrot.slane %v2041, 7
    %v3395 = vor.u32 %v3393, %v3394
    %v3396 = vsel %vm3233, %v3392, %v3395
    %v3397 = vrot.slane %v3395, 4
    %v3398 = vrot.slane %v2793, 6
    %v3399 = vrot.slane %v2051, 7
    %v3400 = vor.u32 %v3398, %v3399
    %v3401 = vsel %vm3233, %v3397, %v3400
    %v3402 = vrot.slane %v2056, 6
    %v3403 = vrot.slane %v2059, 7
    %v3404 = vor.u32 %v3402, %v3403
    %v3405 = vrot.slane %v3404, 4
    %v3406 = vrot.slane %v2069, 6
    %v3407 = vrot.slane %v2065, 7
    %v3408 = vor.u32 %v3406, %v3407
    %v3409 = vsel %vm3233, %v3405, %v3408
    %v3410 = vrot.slane %v3408, 4
    %v3411 = vrot.slane %v2079, 6
    %v3412 = vrot.slane %v2075, 7
    %v3413 = vor.u32 %v3411, %v3412
    %v3414 = vsel %vm3233, %v3410, %v3413
    %v3415 = vrot.slane %v3413, 4
    %v3416 = vrot.slane %v2089, 6
    %v3417 = vrot.slane %v2085, 7
    %v3418 = vor.u32 %v3416, %v3417
    %v3419 = vsel %vm3233, %v3415, %v3418
    %v3420 = vrot.slane %v3418, 4
    %v3421 = vrot.slane %v2099, 6
    %v3422 = vrot.slane %v2095, 7
    %v3423 = vor.u32 %v3421, %v3422
    %v3424 = vsel %vm3233, %v3420, %v3423
    %v3425 = vrot.slane %v3423, 4
    %v3426 = vrot.slane %v2823, 6
    %v3427 = vrot.slane %v2105, 7
    %v3428 = vor.u32 %v3426, %v3427
    %v3429 = vsel %vm3233, %v3425, %v3428
    %v3430 = vrot.slane %v2110, 6
    %v3431 = vrot.slane %v2113, 7
    %v3432 = vor.u32 %v3430, %v3431
    %v3433 = vrot.slane %v3432, 4
    %v3434 = vrot.slane %v2123, 6
    %v3435 = vrot.slane %v2119, 7
    %v3436 = vor.u32 %v3434, %v3435
    %v3437 = vsel %vm3233, %v3433, %v3436
    %v3438 = vrot.slane %v3436, 4
    %v3439 = vrot.slane %v2133, 6
    %v3440 = vrot.slane %v2129, 7
    %v3441 = vor.u32 %v3439, %v3440
    %v3442 = vsel %vm3233, %v3438, %v3441
    %v3443 = vrot.slane %v3441, 4
    %v3444 = vrot.slane %v2143, 6
    %v3445 = vrot.slane %v2139, 7
    %v3446 = vor.u32 %v3444, %v3445
    %v3447 = vsel %vm3233, %v3443, %v3446
    %v3448 = vrot.slane %v3446, 4
    %v3449 = vrot.slane %v2153, 6
    %v3450 = vrot.slane %v2149, 7
    %v3451 = vor.u32 %v3449, %v3450
    %v3452 = vsel %vm3233, %v3448, %v3451
    %v3453 = vrot.slane %v3451, 4
    %v3454 = vrot.slane %v2853, 6
    %v3455 = vrot.slane %v2159, 7
    %v3456 = vor.u32 %v3454, %v3455
    %v3457 = vsel %vm3233, %v3453, %v3456
    %3458 = vrot.lane.b32.xlu0 %v3241, 32
    %v3459 = vpop.permute.xlu0 %3458
    %3460 = vrot.lane.b32.xlu0 %v3246, 32
    %v3461 = vpop.permute.xlu0 %3460
    %3462 = vrot.lane.b32.xlu0 %v3251, 32
    %v3463 = vpop.permute.xlu0 %3462
    %3464 = vrot.lane.b32.xlu0 %v3256, 32
    %v3465 = vpop.permute.xlu0 %3464
    %3466 = vrot.lane.b32.xlu0 %v3261, 32
    %v3467 = vpop.permute.xlu0 %3466
    %3468 = vrot.lane.b32.xlu0 %v3269, 32
    %v3469 = vpop.permute.xlu0 %3468
    %3470 = vrot.lane.b32.xlu0 %v3274, 32
    %v3471 = vpop.permute.xlu0 %3470
    %3472 = vrot.lane.b32.xlu0 %v3279, 32
    %v3473 = vpop.permute.xlu0 %3472
    %3474 = vrot.lane.b32.xlu0 %v3284, 32
    %v3475 = vpop.permute.xlu0 %3474
    %3476 = vrot.lane.b32.xlu0 %v3289, 32
    %v3477 = vpop.permute.xlu0 %3476
    %3478 = vrot.lane.b32.xlu0 %v3297, 32
    %v3479 = vpop.permute.xlu0 %3478
    %3480 = vrot.lane.b32.xlu0 %v3302, 32
    %v3481 = vpop.permute.xlu0 %3480
    %3482 = vrot.lane.b32.xlu0 %v3307, 32
    %v3483 = vpop.permute.xlu0 %3482
    %3484 = vrot.lane.b32.xlu0 %v3312, 32
    %v3485 = vpop.permute.xlu0 %3484
    %3486 = vrot.lane.b32.xlu0 %v3317, 32
    %v3487 = vpop.permute.xlu0 %3486
    %3488 = vrot.lane.b32.xlu0 %v3325, 32
    %v3489 = vpop.permute.xlu0 %3488
    %3490 = vrot.lane.b32.xlu0 %v3330, 32
    %v3491 = vpop.permute.xlu0 %3490
    %3492 = vrot.lane.b32.xlu0 %v3335, 32
    %v3493 = vpop.permute.xlu0 %3492
    %3494 = vrot.lane.b32.xlu0 %v3340, 32
    %v3495 = vpop.permute.xlu0 %3494
    %3496 = vrot.lane.b32.xlu0 %v3345, 32
    %v3497 = vpop.permute.xlu0 %3496
    %3498 = vrot.lane.b32.xlu0 %v3353, 32
    %v3499 = vpop.permute.xlu0 %3498
    %3500 = vrot.lane.b32.xlu0 %v3358, 32
    %v3501 = vpop.permute.xlu0 %3500
    %3502 = vrot.lane.b32.xlu0 %v3363, 32
    %v3503 = vpop.permute.xlu0 %3502
    %3504 = vrot.lane.b32.xlu0 %v3368, 32
    %v3505 = vpop.permute.xlu0 %3504
    %3506 = vrot.lane.b32.xlu0 %v3373, 32
    %v3507 = vpop.permute.xlu0 %3506
    %3508 = vrot.lane.b32.xlu0 %v3381, 32
    %v3509 = vpop.permute.xlu0 %3508
    %3510 = vrot.lane.b32.xlu0 %v3386, 32
    %v3511 = vpop.permute.xlu0 %3510
    %3512 = vrot.lane.b32.xlu0 %v3391, 32
    %v3513 = vpop.permute.xlu0 %3512
    %3514 = vrot.lane.b32.xlu0 %v3396, 32
    %v3515 = vpop.permute.xlu0 %3514
    %3516 = vrot.lane.b32.xlu0 %v3401, 32
    %v3517 = vpop.permute.xlu0 %3516
    %3518 = vrot.lane.b32.xlu0 %v3409, 32
    %v3519 = vpop.permute.xlu0 %3518
    %3520 = vrot.lane.b32.xlu0 %v3414, 32
    %v3521 = vpop.permute.xlu0 %3520
    %3522 = vrot.lane.b32.xlu0 %v3419, 32
    %v3523 = vpop.permute.xlu0 %3522
    %3524 = vrot.lane.b32.xlu0 %v3424, 32
    %v3525 = vpop.permute.xlu0 %3524
    %3526 = vrot.lane.b32.xlu0 %v3429, 32
    %v3527 = vpop.permute.xlu0 %3526
    %3528 = vrot.lane.b32.xlu0 %v3437, 32
    %v3529 = vpop.permute.xlu0 %3528
    %3530 = vrot.lane.b32.xlu0 %v3442, 32
    %v3531 = vpop.permute.xlu0 %3530
    %3532 = vrot.lane.b32.xlu0 %v3447, 32
    %v3533 = vpop.permute.xlu0 %3532
    %3534 = vrot.lane.b32.xlu0 %v3452, 32
    %v3535 = vpop.permute.xlu0 %3534
    %3536 = vrot.lane.b32.xlu0 %v3457, 32
    %v3537 = vpop.permute.xlu0 %3536
    %3578 = vst.msk [vmem:[#allocation2 + $0x4] sm:$0xf] %vm2283, %v3459
    %3579 = vst.msk [vmem:[#allocation2 + $0xc] sm:$0xf] %vm2283, %v3461
    %3580 = vst.msk [vmem:[#allocation2 + $0x14] sm:$0xf] %vm2283, %v3463
    %3581 = vst.msk [vmem:[#allocation2 + $0x1c] sm:$0xf] %vm2283, %v3465
    %3582 = vst.msk [vmem:[#allocation2 + $0x24] sm:$0xf] %vm2283, %v3467
    %3583 = vst.msk [vmem:[#allocation2 + $0x2c] sm:$0xf] %vm2283, %v3469
    %3584 = vst.msk [vmem:[#allocation2 + $0x34] sm:$0xf] %vm2283, %v3471
    %3585 = vst.msk [vmem:[#allocation2 + $0x3c] sm:$0xf] %vm2283, %v3473
    %3586 = vst.msk [vmem:[#allocation2 + $0x44] sm:$0xf] %vm2283, %v3475
    %3587 = vst.msk [vmem:[#allocation2 + $0x4c] sm:$0xf] %vm2283, %v3477
    %3588 = vst.msk [vmem:[#allocation2 + $0x54] sm:$0xf] %vm2283, %v3479
    %3589 = vst.msk [vmem:[#allocation2 + $0x5c] sm:$0xf] %vm2283, %v3481
    %3590 = vst.msk [vmem:[#allocation2 + $0x64] sm:$0xf] %vm2283, %v3483
    %3591 = vst.msk [vmem:[#allocation2 + $0x6c] sm:$0xf] %vm2283, %v3485
    %3592 = vst.msk [vmem:[#allocation2 + $0x74] sm:$0xf] %vm2283, %v3487
    %3593 = vst.msk [vmem:[#allocation2 + $0x7c] sm:$0xf] %vm2283, %v3489
    %3594 = vst.msk [vmem:[#allocation2 + $0x84] sm:$0xf] %vm2283, %v3491
    %3595 = vst.msk [vmem:[#allocation2 + $0x8c] sm:$0xf] %vm2283, %v3493
    %3596 = vst.msk [vmem:[#allocation2 + $0x94] sm:$0xf] %vm2283, %v3495
    %3597 = vst.msk [vmem:[#allocation2 + $0x9c] sm:$0xf] %vm2283, %v3497
    %3598 = vst.msk [vmem:[#allocation2 + $0xa4] sm:$0xf] %vm2283, %v3499
    %3599 = vst.msk [vmem:[#allocation2 + $0xac] sm:$0xf] %vm2283, %v3501
    %3600 = vst.msk [vmem:[#allocation2 + $0xb4] sm:$0xf] %vm2283, %v3503
    %3601 = vst.msk [vmem:[#allocation2 + $0xbc] sm:$0xf] %vm2283, %v3505
    %3602 = vst.msk [vmem:[#allocation2 + $0xc4] sm:$0xf] %vm2283, %v3507
    %3603 = vst.msk [vmem:[#allocation2 + $0xcc] sm:$0xf] %vm2283, %v3509
    %3604 = vst.msk [vmem:[#allocation2 + $0xd4] sm:$0xf] %vm2283, %v3511
    %3605 = vst.msk [vmem:[#allocation2 + $0xdc] sm:$0xf] %vm2283, %v3513
    %3606 = vst.msk [vmem:[#allocation2 + $0xe4] sm:$0xf] %vm2283, %v3515
    %3607 = vst.msk [vmem:[#allocation2 + $0xec] sm:$0xf] %vm2283, %v3517
    %3608 = vst.msk [vmem:[#allocation2 + $0xf4] sm:$0xf] %vm2283, %v3519
    %3609 = vst.msk [vmem:[#allocation2 + $0xfc] sm:$0xf] %vm2283, %v3521
    %3610 = vst.msk [vmem:[#allocation2 + $0x104] sm:$0xf] %vm2283, %v3523
    %3611 = vst.msk [vmem:[#allocation2 + $0x10c] sm:$0xf] %vm2283, %v3525
    %3612 = vst.msk [vmem:[#allocation2 + $0x114] sm:$0xf] %vm2283, %v3527
    %3613 = vst.msk [vmem:[#allocation2 + $0x11c] sm:$0xf] %vm2283, %v3529
    %3614 = vst.msk [vmem:[#allocation2 + $0x124] sm:$0xf] %vm2283, %v3531
    %3615 = vst.msk [vmem:[#allocation2 + $0x12c] sm:$0xf] %vm2283, %v3533
    %3616 = vst.msk [vmem:[#allocation2 + $0x134] sm:$0xf] %vm2283, %v3535
    %3617 = vst.msk [vmem:[#allocation2 + $0x13c] sm:$0xf] %vm2283, %v3537
    %vm3618 = vcmask 1040384
    %vm3619 = vcmask 1044484
    %vm3620 = vmor %vm3618, %vm3619
    %v3621 = vrot.slane %v1591, 7
    %v3622 = vrot.slane %v3621, 4
    %v3623 = vrot.slane %v1592, 7
    %v3624 = vsel %vm3620, %v3622, %v3623
    %v3625 = vrot.slane %v3623, 4
    %v3626 = vrot.slane %v1593, 7
    %v3627 = vsel %vm3620, %v3625, %v3626
    %v3628 = vrot.slane %v3626, 4
    %v3629 = vrot.slane %v1594, 7
    %v3630 = vsel %vm3620, %v3628, %v3629
    %v3631 = vrot.slane %v3629, 4
    %v3632 = vrot.slane %v1595, 7
    %v3633 = vsel %vm3620, %v3631, %v3632
    %v3634 = vrot.slane %v3632, 4
    %v3635 = vrot.slane %v1720, 7
    %v3636 = vsel %vm3620, %v3634, %v3635
    %v3637 = vrot.slane %v1596, 7
    %v3638 = vrot.slane %v3637, 4
    %v3639 = vrot.slane %v1597, 7
    %v3640 = vsel %vm3620, %v3638, %v3639
    %v3641 = vrot.slane %v3639, 4
    %v3642 = vrot.slane %v1598, 7
    %v3643 = vsel %vm3620, %v3641, %v3642
    %v3644 = vrot.slane %v3642, 4
    %v3645 = vrot.slane %v1599, 7
    %v3646 = vsel %vm3620, %v3644, %v3645
    %v3647 = vrot.slane %v3645, 4
    %v3648 = vrot.slane %v1600, 7
    %v3649 = vsel %vm3620, %v3647, %v3648
    %v3650 = vrot.slane %v3648, 4
    %v3651 = vrot.slane %v1721, 7
    %v3652 = vsel %vm3620, %v3650, %v3651
    %v3653 = vrot.slane %v1601, 7
    %v3654 = vrot.slane %v3653, 4
    %v3655 = vrot.slane %v1602, 7
    %v3656 = vsel %vm3620, %v3654, %v3655
    %v3657 = vrot.slane %v3655, 4
    %v3658 = vrot.slane %v1603, 7
    %v3659 = vsel %vm3620, %v3657, %v3658
    %v3660 = vrot.slane %v3658, 4
    %v3661 = vrot.slane %v1604, 7
    %v3662 = vsel %vm3620, %v3660, %v3661
    %v3663 = vrot.slane %v3661, 4
    %v3664 = vrot.slane %v1605, 7
    %v3665 = vsel %vm3620, %v3663, %v3664
    %v3666 = vrot.slane %v3664, 4
    %v3667 = vrot.slane %v1722, 7
    %v3668 = vsel %vm3620, %v3666, %v3667
    %v3669 = vrot.slane %v1606, 7
    %v3670 = vrot.slane %v3669, 4
    %v3671 = vrot.slane %v1607, 7
    %v3672 = vsel %vm3620, %v3670, %v3671
    %v3673 = vrot.slane %v3671, 4
    %v3674 = vrot.slane %v1608, 7
    %v3675 = vsel %vm3620, %v3673, %v3674
    %v3676 = vrot.slane %v3674, 4
    %v3677 = vrot.slane %v1609, 7
    %v3678 = vsel %vm3620, %v3676, %v3677
    %v3679 = vrot.slane %v3677, 4
    %v3680 = vrot.slane %v1610, 7
    %v3681 = vsel %vm3620, %v3679, %v3680
    %v3682 = vrot.slane %v3680, 4
    %v3683 = vrot.slane %v1723, 7
    %v3684 = vsel %vm3620, %v3682, %v3683
    %v3685 = vrot.slane %v1611, 7
    %v3686 = vrot.slane %v3685, 4
    %v3687 = vrot.slane %v1612, 7
    %v3688 = vsel %vm3620, %v3686, %v3687
    %v3689 = vrot.slane %v3687, 4
    %v3690 = vrot.slane %v1613, 7
    %v3691 = vsel %vm3620, %v3689, %v3690
    %v3692 = vrot.slane %v3690, 4
    %v3693 = vrot.slane %v1614, 7
    %v3694 = vsel %vm3620, %v3692, %v3693
    %v3695 = vrot.slane %v3693, 4
    %v3696 = vrot.slane %v1615, 7
    %v3697 = vsel %vm3620, %v3695, %v3696
    %v3698 = vrot.slane %v3696, 4
    %v3699 = vrot.slane %v1724, 7
    %v3700 = vsel %vm3620, %v3698, %v3699
    %v3701 = vrot.slane %v1616, 7
    %v3702 = vrot.slane %v3701, 4
    %v3703 = vrot.slane %v1617, 7
    %v3704 = vsel %vm3620, %v3702, %v3703
    %v3705 = vrot.slane %v3703, 4
    %v3706 = vrot.slane %v1618, 7
    %v3707 = vsel %vm3620, %v3705, %v3706
    %v3708 = vrot.slane %v3706, 4
    %v3709 = vrot.slane %v1619, 7
    %v3710 = vsel %vm3620, %v3708, %v3709
    %v3711 = vrot.slane %v3709, 4
    %v3712 = vrot.slane %v1620, 7
    %v3713 = vsel %vm3620, %v3711, %v3712
    %v3714 = vrot.slane %v3712, 4
    %v3715 = vrot.slane %v1725, 7
    %v3716 = vsel %vm3620, %v3714, %v3715
    %v3717 = vrot.slane %v1621, 7
    %v3718 = vrot.slane %v3717, 4
    %v3719 = vrot.slane %v1622, 7
    %v3720 = vsel %vm3620, %v3718, %v3719
    %v3721 = vrot.slane %v3719, 4
    %v3722 = vrot.slane %v1623, 7
    %v3723 = vsel %vm3620, %v3721, %v3722
    %v3724 = vrot.slane %v3722, 4
    %v3725 = vrot.slane %v1624, 7
    %v3726 = vsel %vm3620, %v3724, %v3725
    %v3727 = vrot.slane %v3725, 4
    %v3728 = vrot.slane %v1625, 7
    %v3729 = vsel %vm3620, %v3727, %v3728
    %v3730 = vrot.slane %v3728, 4
    %v3731 = vrot.slane %v1726, 7
    %v3732 = vsel %vm3620, %v3730, %v3731
    %v3733 = vrot.slane %v1626, 7
    %v3734 = vrot.slane %v3733, 4
    %v3735 = vrot.slane %v1627, 7
    %v3736 = vsel %vm3620, %v3734, %v3735
    %v3737 = vrot.slane %v3735, 4
    %v3738 = vrot.slane %v1628, 7
    %v3739 = vsel %vm3620, %v3737, %v3738
    %v3740 = vrot.slane %v3738, 4
    %v3741 = vrot.slane %v1629, 7
    %v3742 = vsel %vm3620, %v3740, %v3741
    %v3743 = vrot.slane %v3741, 4
    %v3744 = vrot.slane %v1630, 7
    %v3745 = vsel %vm3620, %v3743, %v3744
    %v3746 = vrot.slane %v3744, 4
    %v3747 = vrot.slane %v1727, 7
    %v3748 = vsel %vm3620, %v3746, %v3747
    %3749 = vrot.lane.b32.xlu0 %v3624, 64
    %v3750 = vpop.permute.xlu0 %3749
    %3751 = vrot.lane.b32.xlu0 %v3627, 64
    %v3752 = vpop.permute.xlu0 %3751
    %3753 = vrot.lane.b32.xlu0 %v3630, 64
    %v3754 = vpop.permute.xlu0 %3753
    %3755 = vrot.lane.b32.xlu0 %v3633, 64
    %v3756 = vpop.permute.xlu0 %3755
    %3757 = vrot.lane.b32.xlu0 %v3636, 64
    %v3758 = vpop.permute.xlu0 %3757
    %3759 = vrot.lane.b32.xlu0 %v3640, 64
    %v3760 = vpop.permute.xlu0 %3759
    %3761 = vrot.lane.b32.xlu0 %v3643, 64
    %v3762 = vpop.permute.xlu0 %3761
    %3763 = vrot.lane.b32.xlu0 %v3646, 64
    %v3764 = vpop.permute.xlu0 %3763
    %3765 = vrot.lane.b32.xlu0 %v3649, 64
    %v3766 = vpop.permute.xlu0 %3765
    %3767 = vrot.lane.b32.xlu0 %v3652, 64
    %v3768 = vpop.permute.xlu0 %3767
    %3769 = vrot.lane.b32.xlu0 %v3656, 64
    %v3770 = vpop.permute.xlu0 %3769
    %3771 = vrot.lane.b32.xlu0 %v3659, 64
    %v3772 = vpop.permute.xlu0 %3771
    %3773 = vrot.lane.b32.xlu0 %v3662, 64
    %v3774 = vpop.permute.xlu0 %3773
    %3775 = vrot.lane.b32.xlu0 %v3665, 64
    %v3776 = vpop.permute.xlu0 %3775
    %3777 = vrot.lane.b32.xlu0 %v3668, 64
    %v3778 = vpop.permute.xlu0 %3777
    %3779 = vrot.lane.b32.xlu0 %v3672, 64
    %v3780 = vpop.permute.xlu0 %3779
    %3781 = vrot.lane.b32.xlu0 %v3675, 64
    %v3782 = vpop.permute.xlu0 %3781
    %3783 = vrot.lane.b32.xlu0 %v3678, 64
    %v3784 = vpop.permute.xlu0 %3783
    %3785 = vrot.lane.b32.xlu0 %v3681, 64
    %v3786 = vpop.permute.xlu0 %3785
    %3787 = vrot.lane.b32.xlu0 %v3684, 64
    %v3788 = vpop.permute.xlu0 %3787
    %3789 = vrot.lane.b32.xlu0 %v3688, 64
    %v3790 = vpop.permute.xlu0 %3789
    %3791 = vrot.lane.b32.xlu0 %v3691, 64
    %v3792 = vpop.permute.xlu0 %3791
    %3793 = vrot.lane.b32.xlu0 %v3694, 64
    %v3794 = vpop.permute.xlu0 %3793
    %3795 = vrot.lane.b32.xlu0 %v3697, 64
    %v3796 = vpop.permute.xlu0 %3795
    %3797 = vrot.lane.b32.xlu0 %v3700, 64
    %v3798 = vpop.permute.xlu0 %3797
    %3799 = vrot.lane.b32.xlu0 %v3704, 64
    %v3800 = vpop.permute.xlu0 %3799
    %3801 = vrot.lane.b32.xlu0 %v3707, 64
    %v3802 = vpop.permute.xlu0 %3801
    %3803 = vrot.lane.b32.xlu0 %v3710, 64
    %v3804 = vpop.permute.xlu0 %3803
    %3805 = vrot.lane.b32.xlu0 %v3713, 64
    %v3806 = vpop.permute.xlu0 %3805
    %3807 = vrot.lane.b32.xlu0 %v3716, 64
    %v3808 = vpop.permute.xlu0 %3807
    %3809 = vrot.lane.b32.xlu0 %v3720, 64
    %v3810 = vpop.permute.xlu0 %3809
    %3811 = vrot.lane.b32.xlu0 %v3723, 64
    %v3812 = vpop.permute.xlu0 %3811
    %3813 = vrot.lane.b32.xlu0 %v3726, 64
    %v3814 = vpop.permute.xlu0 %3813
    %3815 = vrot.lane.b32.xlu0 %v3729, 64
    %v3816 = vpop.permute.xlu0 %3815
    %3817 = vrot.lane.b32.xlu0 %v3732, 64
    %v3818 = vpop.permute.xlu0 %3817
    %3819 = vrot.lane.b32.xlu0 %v3736, 64
    %v3820 = vpop.permute.xlu0 %3819
    %3821 = vrot.lane.b32.xlu0 %v3739, 64
    %v3822 = vpop.permute.xlu0 %3821
    %3823 = vrot.lane.b32.xlu0 %v3742, 64
    %v3824 = vpop.permute.xlu0 %3823
    %3825 = vrot.lane.b32.xlu0 %v3745, 64
    %v3826 = vpop.permute.xlu0 %3825
    %3827 = vrot.lane.b32.xlu0 %v3748, 64
    %v3828 = vpop.permute.xlu0 %3827
    %3869 = vst.msk [vmem:[#allocation2 + $0x4] sm:$0xf] %vm2575, %v3750
    %3870 = vst.msk [vmem:[#allocation2 + $0xc] sm:$0xf] %vm2575, %v3752
    %3871 = vst.msk [vmem:[#allocation2 + $0x14] sm:$0xf] %vm2575, %v3754
    %3872 = vst.msk [vmem:[#allocation2 + $0x1c] sm:$0xf] %vm2575, %v3756
    %3873 = vst.msk [vmem:[#allocation2 + $0x24] sm:$0xf] %vm2575, %v3758
    %3874 = vst.msk [vmem:[#allocation2 + $0x2c] sm:$0xf] %vm2575, %v3760
    %3875 = vst.msk [vmem:[#allocation2 + $0x34] sm:$0xf] %vm2575, %v3762
    %3876 = vst.msk [vmem:[#allocation2 + $0x3c] sm:$0xf] %vm2575, %v3764
    %3877 = vst.msk [vmem:[#allocation2 + $0x44] sm:$0xf] %vm2575, %v3766
    %3878 = vst.msk [vmem:[#allocation2 + $0x4c] sm:$0xf] %vm2575, %v3768
    %3879 = vst.msk [vmem:[#allocation2 + $0x54] sm:$0xf] %vm2575, %v3770
    %3880 = vst.msk [vmem:[#allocation2 + $0x5c] sm:$0xf] %vm2575, %v3772
    %3881 = vst.msk [vmem:[#allocation2 + $0x64] sm:$0xf] %vm2575, %v3774
    %3882 = vst.msk [vmem:[#allocation2 + $0x6c] sm:$0xf] %vm2575, %v3776
    %3883 = vst.msk [vmem:[#allocation2 + $0x74] sm:$0xf] %vm2575, %v3778
    %3884 = vst.msk [vmem:[#allocation2 + $0x7c] sm:$0xf] %vm2575, %v3780
    %3885 = vst.msk [vmem:[#allocation2 + $0x84] sm:$0xf] %vm2575, %v3782
    %3886 = vst.msk [vmem:[#allocation2 + $0x8c] sm:$0xf] %vm2575, %v3784
    %3887 = vst.msk [vmem:[#allocation2 + $0x94] sm:$0xf] %vm2575, %v3786
    %3888 = vst.msk [vmem:[#allocation2 + $0x9c] sm:$0xf] %vm2575, %v3788
    %3889 = vst.msk [vmem:[#allocation2 + $0xa4] sm:$0xf] %vm2575, %v3790
    %3890 = vst.msk [vmem:[#allocation2 + $0xac] sm:$0xf] %vm2575, %v3792
    %3891 = vst.msk [vmem:[#allocation2 + $0xb4] sm:$0xf] %vm2575, %v3794
    %3892 = vst.msk [vmem:[#allocation2 + $0xbc] sm:$0xf] %vm2575, %v3796
    %3893 = vst.msk [vmem:[#allocation2 + $0xc4] sm:$0xf] %vm2575, %v3798
    %3894 = vst.msk [vmem:[#allocation2 + $0xcc] sm:$0xf] %vm2575, %v3800
    %3895 = vst.msk [vmem:[#allocation2 + $0xd4] sm:$0xf] %vm2575, %v3802
    %3896 = vst.msk [vmem:[#allocation2 + $0xdc] sm:$0xf] %vm2575, %v3804
    %3897 = vst.msk [vmem:[#allocation2 + $0xe4] sm:$0xf] %vm2575, %v3806
    %3898 = vst.msk [vmem:[#allocation2 + $0xec] sm:$0xf] %vm2575, %v3808
    %3899 = vst.msk [vmem:[#allocation2 + $0xf4] sm:$0xf] %vm2575, %v3810
    %3900 = vst.msk [vmem:[#allocation2 + $0xfc] sm:$0xf] %vm2575, %v3812
    %3901 = vst.msk [vmem:[#allocation2 + $0x104] sm:$0xf] %vm2575, %v3814
    %3902 = vst.msk [vmem:[#allocation2 + $0x10c] sm:$0xf] %vm2575, %v3816
    %3903 = vst.msk [vmem:[#allocation2 + $0x114] sm:$0xf] %vm2575, %v3818
    %3904 = vst.msk [vmem:[#allocation2 + $0x11c] sm:$0xf] %vm2575, %v3820
    %3905 = vst.msk [vmem:[#allocation2 + $0x124] sm:$0xf] %vm2575, %v3822
    %3906 = vst.msk [vmem:[#allocation2 + $0x12c] sm:$0xf] %vm2575, %v3824
    %3907 = vst.msk [vmem:[#allocation2 + $0x134] sm:$0xf] %vm2575, %v3826
    %3908 = vst.msk [vmem:[#allocation2 + $0x13c] sm:$0xf] %vm2575, %v3828
    %vm3909 = vsmask.f32 256
    %vm3910 = vsmask.f32 4368
    %vm3911 = vmor %vm3909, %vm3910
    %v3912 = vrot.slane %v1732, 7
    %v3913 = vrot.slane %v3912, 4
    %v3914 = vrot.slane %v1745, 7
    %v3915 = vor.u32 %v3914, %v1741
    %v3916 = vsel %vm3911, %v3913, %v3915
    %v3917 = vrot.slane %v3914, 4
    %v3918 = vrot.slane %v1755, 7
    %v3919 = vor.u32 %v3918, %v1751
    %v3920 = vsel %vm3911, %v3917, %v3919
    %v3921 = vrot.slane %v3918, 4
    %v3922 = vrot.slane %v1765, 7
    %v3923 = vor.u32 %v3922, %v1761
    %v3924 = vsel %vm3911, %v3921, %v3923
    %v3925 = vrot.slane %v3922, 4
    %v3926 = vrot.slane %v1775, 7
    %v3927 = vor.u32 %v3926, %v1771
    %v3928 = vsel %vm3911, %v3925, %v3927
    %v3929 = vrot.slane %v3926, 4
    %v3930 = vrot.slane %v2643, 7
    %v3931 = vor.u32 %v3930, %v1781
    %v3932 = vsel %vm3911, %v3929, %v3931
    %v3933 = vrot.slane %v1786, 7
    %v3934 = vrot.slane %v3933, 4
    %v3935 = vrot.slane %v1799, 7
    %v3936 = vor.u32 %v3935, %v1795
    %v3937 = vsel %vm3911, %v3934, %v3936
    %v3938 = vrot.slane %v3935, 4
    %v3939 = vrot.slane %v1809, 7
    %v3940 = vor.u32 %v3939, %v1805
    %v3941 = vsel %vm3911, %v3938, %v3940
    %v3942 = vrot.slane %v3939, 4
    %v3943 = vrot.slane %v1819, 7
    %v3944 = vor.u32 %v3943, %v1815
    %v3945 = vsel %vm3911, %v3942, %v3944
    %v3946 = vrot.slane %v3943, 4
    %v3947 = vrot.slane %v1829, 7
    %v3948 = vor.u32 %v3947, %v1825
    %v3949 = vsel %vm3911, %v3946, %v3948
    %v3950 = vrot.slane %v3947, 4
    %v3951 = vrot.slane %v2673, 7
    %v3952 = vor.u32 %v3951, %v1835
    %v3953 = vsel %vm3911, %v3950, %v3952
    %v3954 = vrot.slane %v1840, 7
    %v3955 = vrot.slane %v3954, 4
    %v3956 = vrot.slane %v1853, 7
    %v3957 = vor.u32 %v3956, %v1849
    %v3958 = vsel %vm3911, %v3955, %v3957
    %v3959 = vrot.slane %v3956, 4
    %v3960 = vrot.slane %v1863, 7
    %v3961 = vor.u32 %v3960, %v1859
    %v3962 = vsel %vm3911, %v3959, %v3961
    %v3963 = vrot.slane %v3960, 4
    %v3964 = vrot.slane %v1873, 7
    %v3965 = vor.u32 %v3964, %v1869
    %v3966 = vsel %vm3911, %v3963, %v3965
    %v3967 = vrot.slane %v3964, 4
    %v3968 = vrot.slane %v1883, 7
    %v3969 = vor.u32 %v3968, %v1879
    %v3970 = vsel %vm3911, %v3967, %v3969
    %v3971 = vrot.slane %v3968, 4
    %v3972 = vrot.slane %v2703, 7
    %v3973 = vor.u32 %v3972, %v1889
    %v3974 = vsel %vm3911, %v3971, %v3973
    %v3975 = vrot.slane %v1894, 7
    %v3976 = vrot.slane %v3975, 4
    %v3977 = vrot.slane %v1907, 7
    %v3978 = vor.u32 %v3977, %v1903
    %v3979 = vsel %vm3911, %v3976, %v3978
    %v3980 = vrot.slane %v3977, 4
    %v3981 = vrot.slane %v1917, 7
    %v3982 = vor.u32 %v3981, %v1913
    %v3983 = vsel %vm3911, %v3980, %v3982
    %v3984 = vrot.slane %v3981, 4
    %v3985 = vrot.slane %v1927, 7
    %v3986 = vor.u32 %v3985, %v1923
    %v3987 = vsel %vm3911, %v3984, %v3986
    %v3988 = vrot.slane %v3985, 4
    %v3989 = vrot.slane %v1937, 7
    %v3990 = vor.u32 %v3989, %v1933
    %v3991 = vsel %vm3911, %v3988, %v3990
    %v3992 = vrot.slane %v3989, 4
    %v3993 = vrot.slane %v2733, 7
    %v3994 = vor.u32 %v3993, %v1943
    %v3995 = vsel %vm3911, %v3992, %v3994
    %v3996 = vrot.slane %v1948, 7
    %v3997 = vrot.slane %v3996, 4
    %v3998 = vrot.slane %v1961, 7
    %v3999 = vor.u32 %v3998, %v1957
    %v4000 = vsel %vm3911, %v3997, %v3999
    %v4001 = vrot.slane %v3998, 4
    %v4002 = vrot.slane %v1971, 7
    %v4003 = vor.u32 %v4002, %v1967
    %v4004 = vsel %vm3911, %v4001, %v4003
    %v4005 = vrot.slane %v4002, 4
    %v4006 = vrot.slane %v1981, 7
    %v4007 = vor.u32 %v4006, %v1977
    %v4008 = vsel %vm3911, %v4005, %v4007
    %v4009 = vrot.slane %v4006, 4
    %v4010 = vrot.slane %v1991, 7
    %v4011 = vor.u32 %v4010, %v1987
    %v4012 = vsel %vm3911, %v4009, %v4011
    %v4013 = vrot.slane %v4010, 4
    %v4014 = vrot.slane %v2763, 7
    %v4015 = vor.u32 %v4014, %v1997
    %v4016 = vsel %vm3911, %v4013, %v4015
    %v4017 = vrot.slane %v2002, 7
    %v4018 = vrot.slane %v4017, 4
    %v4019 = vrot.slane %v2015, 7
    %v4020 = vor.u32 %v4019, %v2011
    %v4021 = vsel %vm3911, %v4018, %v4020
    %v4022 = vrot.slane %v4019, 4
    %v4023 = vrot.slane %v2025, 7
    %v4024 = vor.u32 %v4023, %v2021
    %v4025 = vsel %vm3911, %v4022, %v4024
    %v4026 = vrot.slane %v4023, 4
    %v4027 = vrot.slane %v2035, 7
    %v4028 = vor.u32 %v4027, %v2031
    %v4029 = vsel %vm3911, %v4026, %v4028
    %v4030 = vrot.slane %v4027, 4
    %v4031 = vrot.slane %v2045, 7
    %v4032 = vor.u32 %v4031, %v2041
    %v4033 = vsel %vm3911, %v4030, %v4032
    %v4034 = vrot.slane %v4031, 4
    %v4035 = vrot.slane %v2793, 7
    %v4036 = vor.u32 %v4035, %v2051
    %v4037 = vsel %vm3911, %v4034, %v4036
    %v4038 = vrot.slane %v2056, 7
    %v4039 = vrot.slane %v4038, 4
    %v4040 = vrot.slane %v2069, 7
    %v4041 = vor.u32 %v4040, %v2065
    %v4042 = vsel %vm3911, %v4039, %v4041
    %v4043 = vrot.slane %v4040, 4
    %v4044 = vrot.slane %v2079, 7
    %v4045 = vor.u32 %v4044, %v2075
    %v4046 = vsel %vm3911, %v4043, %v4045
    %v4047 = vrot.slane %v4044, 4
    %v4048 = vrot.slane %v2089, 7
    %v4049 = vor.u32 %v4048, %v2085
    %v4050 = vsel %vm3911, %v4047, %v4049
    %v4051 = vrot.slane %v4048, 4
    %v4052 = vrot.slane %v2099, 7
    %v4053 = vor.u32 %v4052, %v2095
    %v4054 = vsel %vm3911, %v4051, %v4053
    %v4055 = vrot.slane %v4052, 4
    %v4056 = vrot.slane %v2823, 7
    %v4057 = vor.u32 %v4056, %v2105
    %v4058 = vsel %vm3911, %v4055, %v4057
    %v4059 = vrot.slane %v2110, 7
    %v4060 = vrot.slane %v4059, 4
    %v4061 = vrot.slane %v2123, 7
    %v4062 = vor.u32 %v4061, %v2119
    %v4063 = vsel %vm3911, %v4060, %v4062
    %v4064 = vrot.slane %v4061, 4
    %v4065 = vrot.slane %v2133, 7
    %v4066 = vor.u32 %v4065, %v2129
    %v4067 = vsel %vm3911, %v4064, %v4066
    %v4068 = vrot.slane %v4065, 4
    %v4069 = vrot.slane %v2143, 7
    %v4070 = vor.u32 %v4069, %v2139
    %v4071 = vsel %vm3911, %v4068, %v4070
    %v4072 = vrot.slane %v4069, 4
    %v4073 = vrot.slane %v2153, 7
    %v4074 = vor.u32 %v4073, %v2149
    %v4075 = vsel %vm3911, %v4072, %v4074
    %v4076 = vrot.slane %v4073, 4
    %v4077 = vrot.slane %v2853, 7
    %v4078 = vor.u32 %v4077, %v2159
    %v4079 = vsel %vm3911, %v4076, %v4078
    %4080 = vrot.lane.b32.xlu0 %v3916, 96
    %v4081 = vpop.permute.xlu0 %4080
    %4082 = vrot.lane.b32.xlu0 %v3920, 96
    %v4083 = vpop.permute.xlu0 %4082
    %4084 = vrot.lane.b32.xlu0 %v3924, 96
    %v4085 = vpop.permute.xlu0 %4084
    %4086 = vrot.lane.b32.xlu0 %v3928, 96
    %v4087 = vpop.permute.xlu0 %4086
    %4088 = vrot.lane.b32.xlu0 %v3932, 96
    %v4089 = vpop.permute.xlu0 %4088
    %4090 = vrot.lane.b32.xlu0 %v3937, 96
    %v4091 = vpop.permute.xlu0 %4090
    %4092 = vrot.lane.b32.xlu0 %v3941, 96
    %v4093 = vpop.permute.xlu0 %4092
    %4094 = vrot.lane.b32.xlu0 %v3945, 96
    %v4095 = vpop.permute.xlu0 %4094
    %4096 = vrot.lane.b32.xlu0 %v3949, 96
    %v4097 = vpop.permute.xlu0 %4096
    %4098 = vrot.lane.b32.xlu0 %v3953, 96
    %v4099 = vpop.permute.xlu0 %4098
    %4100 = vrot.lane.b32.xlu0 %v3958, 96
    %v4101 = vpop.permute.xlu0 %4100
    %4102 = vrot.lane.b32.xlu0 %v3962, 96
    %v4103 = vpop.permute.xlu0 %4102
    %4104 = vrot.lane.b32.xlu0 %v3966, 96
    %v4105 = vpop.permute.xlu0 %4104
    %4106 = vrot.lane.b32.xlu0 %v3970, 96
    %v4107 = vpop.permute.xlu0 %4106
    %4108 = vrot.lane.b32.xlu0 %v3974, 96
    %v4109 = vpop.permute.xlu0 %4108
    %4110 = vrot.lane.b32.xlu0 %v3979, 96
    %v4111 = vpop.permute.xlu0 %4110
    %4112 = vrot.lane.b32.xlu0 %v3983, 96
    %v4113 = vpop.permute.xlu0 %4112
    %4114 = vrot.lane.b32.xlu0 %v3987, 96
    %v4115 = vpop.permute.xlu0 %4114
    %4116 = vrot.lane.b32.xlu0 %v3991, 96
    %v4117 = vpop.permute.xlu0 %4116
    %4118 = vrot.lane.b32.xlu0 %v3995, 96
    %v4119 = vpop.permute.xlu0 %4118
    %4120 = vrot.lane.b32.xlu0 %v4000, 96
    %v4121 = vpop.permute.xlu0 %4120
    %4122 = vrot.lane.b32.xlu0 %v4004, 96
    %v4123 = vpop.permute.xlu0 %4122
    %4124 = vrot.lane.b32.xlu0 %v4008, 96
    %v4125 = vpop.permute.xlu0 %4124
    %4126 = vrot.lane.b32.xlu0 %v4012, 96
    %v4127 = vpop.permute.xlu0 %4126
    %4128 = vrot.lane.b32.xlu0 %v4016, 96
    %v4129 = vpop.permute.xlu0 %4128
    %4130 = vrot.lane.b32.xlu0 %v4021, 96
    %v4131 = vpop.permute.xlu0 %4130
    %4132 = vrot.lane.b32.xlu0 %v4025, 96
    %v4133 = vpop.permute.xlu0 %4132
    %4134 = vrot.lane.b32.xlu0 %v4029, 96
    %v4135 = vpop.permute.xlu0 %4134
    %4136 = vrot.lane.b32.xlu0 %v4033, 96
    %v4137 = vpop.permute.xlu0 %4136
    %4138 = vrot.lane.b32.xlu0 %v4037, 96
    %v4139 = vpop.permute.xlu0 %4138
    %4140 = vrot.lane.b32.xlu0 %v4042, 96
    %v4141 = vpop.permute.xlu0 %4140
    %4142 = vrot.lane.b32.xlu0 %v4046, 96
    %v4143 = vpop.permute.xlu0 %4142
    %4144 = vrot.lane.b32.xlu0 %v4050, 96
    %v4145 = vpop.permute.xlu0 %4144
    %4146 = vrot.lane.b32.xlu0 %v4054, 96
    %v4147 = vpop.permute.xlu0 %4146
    %4148 = vrot.lane.b32.xlu0 %v4058, 96
    %v4149 = vpop.permute.xlu0 %4148
    %4150 = vrot.lane.b32.xlu0 %v4063, 96
    %v4151 = vpop.permute.xlu0 %4150
    %4152 = vrot.lane.b32.xlu0 %v4067, 96
    %v4153 = vpop.permute.xlu0 %4152
    %4154 = vrot.lane.b32.xlu0 %v4071, 96
    %v4155 = vpop.permute.xlu0 %4154
    %4156 = vrot.lane.b32.xlu0 %v4075, 96
    %v4157 = vpop.permute.xlu0 %4156
    %4158 = vrot.lane.b32.xlu0 %v4079, 96
    %v4159 = vpop.permute.xlu0 %4158
    %4200 = vst.msk [vmem:[#allocation2 + $0x4] sm:$0xf] %vm2979, %v4081
    %4201 = vst.msk [vmem:[#allocation2 + $0xc] sm:$0xf] %vm2979, %v4083
    %4202 = vst.msk [vmem:[#allocation2 + $0x14] sm:$0xf] %vm2979, %v4085
    %4203 = vst.msk [vmem:[#allocation2 + $0x1c] sm:$0xf] %vm2979, %v4087
    %4204 = vst.msk [vmem:[#allocation2 + $0x24] sm:$0xf] %vm2979, %v4089
    %4205 = vst.msk [vmem:[#allocation2 + $0x2c] sm:$0xf] %vm2979, %v4091
    %4206 = vst.msk [vmem:[#allocation2 + $0x34] sm:$0xf] %vm2979, %v4093
    %4207 = vst.msk [vmem:[#allocation2 + $0x3c] sm:$0xf] %vm2979, %v4095
    %4208 = vst.msk [vmem:[#allocation2 + $0x44] sm:$0xf] %vm2979, %v4097
    %4209 = vst.msk [vmem:[#allocation2 + $0x4c] sm:$0xf] %vm2979, %v4099
    %4210 = vst.msk [vmem:[#allocation2 + $0x54] sm:$0xf] %vm2979, %v4101
    %4211 = vst.msk [vmem:[#allocation2 + $0x5c] sm:$0xf] %vm2979, %v4103
    %4212 = vst.msk [vmem:[#allocation2 + $0x64] sm:$0xf] %vm2979, %v4105
    %4213 = vst.msk [vmem:[#allocation2 + $0x6c] sm:$0xf] %vm2979, %v4107
    %4214 = vst.msk [vmem:[#allocation2 + $0x74] sm:$0xf] %vm2979, %v4109
    %4215 = vst.msk [vmem:[#allocation2 + $0x7c] sm:$0xf] %vm2979, %v4111
    %4216 = vst.msk [vmem:[#allocation2 + $0x84] sm:$0xf] %vm2979, %v4113
    %4217 = vst.msk [vmem:[#allocation2 + $0x8c] sm:$0xf] %vm2979, %v4115
    %4218 = vst.msk [vmem:[#allocation2 + $0x94] sm:$0xf] %vm2979, %v4117
    %4219 = vst.msk [vmem:[#allocation2 + $0x9c] sm:$0xf] %vm2979, %v4119
    %4220 = vst.msk [vmem:[#allocation2 + $0xa4] sm:$0xf] %vm2979, %v4121
    %4221 = vst.msk [vmem:[#allocation2 + $0xac] sm:$0xf] %vm2979, %v4123
    %4222 = vst.msk [vmem:[#allocation2 + $0xb4] sm:$0xf] %vm2979, %v4125
    %4223 = vst.msk [vmem:[#allocation2 + $0xbc] sm:$0xf] %vm2979, %v4127
    %4224 = vst.msk [vmem:[#allocation2 + $0xc4] sm:$0xf] %vm2979, %v4129
    %4225 = vst.msk [vmem:[#allocation2 + $0xcc] sm:$0xf] %vm2979, %v4131
    %4226 = vst.msk [vmem:[#allocation2 + $0xd4] sm:$0xf] %vm2979, %v4133
    %4227 = vst.msk [vmem:[#allocation2 + $0xdc] sm:$0xf] %vm2979, %v4135
    %4228 = vst.msk [vmem:[#allocation2 + $0xe4] sm:$0xf] %vm2979, %v4137
    %4229 = vst.msk [vmem:[#allocation2 + $0xec] sm:$0xf] %vm2979, %v4139
    %4230 = vst.msk [vmem:[#allocation2 + $0xf4] sm:$0xf] %vm2979, %v4141
    %4231 = vst.msk [vmem:[#allocation2 + $0xfc] sm:$0xf] %vm2979, %v4143
    %4232 = vst.msk [vmem:[#allocation2 + $0x104] sm:$0xf] %vm2979, %v4145
    %4233 = vst.msk [vmem:[#allocation2 + $0x10c] sm:$0xf] %vm2979, %v4147
    %4234 = vst.msk [vmem:[#allocation2 + $0x114] sm:$0xf] %vm2979, %v4149
    %4235 = vst.msk [vmem:[#allocation2 + $0x11c] sm:$0xf] %vm2979, %v4151
    %4236 = vst.msk [vmem:[#allocation2 + $0x124] sm:$0xf] %vm2979, %v4153
    %4237 = vst.msk [vmem:[#allocation2 + $0x12c] sm:$0xf] %vm2979, %v4155
    %4238 = vst.msk [vmem:[#allocation2 + $0x134] sm:$0xf] %vm2979, %v4157
    %4239 = vst.msk [vmem:[#allocation2 + $0x13c] sm:$0xf] %vm2979, %v4159
    %v4240 = vld [vmem:[#allocation2] sm:$0xff]
    %v4241 = vld [vmem:[#allocation2 + $0x8] sm:$0xff]
    %v4242 = vld [vmem:[#allocation2 + $0x10] sm:$0xff]
    %v4243 = vld [vmem:[#allocation2 + $0x18] sm:$0xff]
    %v4244 = vld [vmem:[#allocation2 + $0x28] sm:$0xff]
    %v4245 = vld [vmem:[#allocation2 + $0x30] sm:$0xff]
    %v4246 = vld [vmem:[#allocation2 + $0x38] sm:$0xff]
    %v4247 = vld [vmem:[#allocation2 + $0x40] sm:$0xff]
    %v4248 = vld [vmem:[#allocation2 + $0x50] sm:$0xff]
    %v4249 = vld [vmem:[#allocation2 + $0x58] sm:$0xff]
    %v4250 = vld [vmem:[#allocation2 + $0x60] sm:$0xff]
    %v4251 = vld [vmem:[#allocation2 + $0x68] sm:$0xff]
    %v4252 = vld [vmem:[#allocation2 + $0x78] sm:$0xff]
    %v4253 = vld [vmem:[#allocation2 + $0x80] sm:$0xff]
    %v4254 = vld [vmem:[#allocation2 + $0x88] sm:$0xff]
    %v4255 = vld [vmem:[#allocation2 + $0x90] sm:$0xff]
    %v4256 = vld [vmem:[#allocation2 + $0xa0] sm:$0xff]
    %v4257 = vld [vmem:[#allocation2 + $0xa8] sm:$0xff]
    %v4258 = vld [vmem:[#allocation2 + $0xb0] sm:$0xff]
    %v4259 = vld [vmem:[#allocation2 + $0xb8] sm:$0xff]
    %v4260 = vld [vmem:[#allocation2 + $0xc8] sm:$0xff]
    %v4261 = vld [vmem:[#allocation2 + $0xd0] sm:$0xff]
    %v4262 = vld [vmem:[#allocation2 + $0xd8] sm:$0xff]
    %v4263 = vld [vmem:[#allocation2 + $0xe0] sm:$0xff]
    %v4264 = vld [vmem:[#allocation2 + $0xf0] sm:$0xff]
    %v4265 = vld [vmem:[#allocation2 + $0xf8] sm:$0xff]
    %v4266 = vld [vmem:[#allocation2 + $0x100] sm:$0xff]
    %v4267 = vld [vmem:[#allocation2 + $0x108] sm:$0xff]
    %v4268 = vld [vmem:[#allocation2 + $0x118] sm:$0xff]
    %v4269 = vld [vmem:[#allocation2 + $0x120] sm:$0xff]
    %v4270 = vld [vmem:[#allocation2 + $0x128] sm:$0xff]
    %v4271 = vld [vmem:[#allocation2 + $0x130] sm:$0xff]
    %v4272 = vld [vmem:[%s3] sm:$0xf]
    %v4273 = vld [vmem:[%s3 + $0x4] sm:$0xf]
    %v4274 = vld [vmem:[%s3 + $0x8] sm:$0xf]
    %v4275 = vld [vmem:[%s3 + $0xc] sm:$0xf]
    %v4276 = vld [vmem:[%s3 + $0x10] sm:$0xf]
    %v4277 = vld [vmem:[%s3 + $0x14] sm:$0xf]
    %v4278 = vld [vmem:[%s3 + $0x18] sm:$0xf]
    %v4279 = vld [vmem:[%s3 + $0x1c] sm:$0xf]
    %v4280 = vld [vmem:[%s3 + $0x20] sm:$0xf]
    %v4281 = vld [vmem:[%s3 + $0x24] sm:$0xf]
    %v4282 = vld [vmem:[%s3 + $0x28] sm:$0xf]
    %v4283 = vld [vmem:[%s3 + $0x2c] sm:$0xf]
    %v4284 = vld [vmem:[%s3 + $0x30] sm:$0xf]
    %v4285 = vld [vmem:[%s3 + $0x34] sm:$0xf]
    %v4286 = vld [vmem:[%s3 + $0x38] sm:$0xf]
    %v4287 = vld [vmem:[%s3 + $0x3c] sm:$0xf]
    %v4288 = vld [vmem:[%s3 + $0x40] sm:$0xf]
    %v4289 = vld [vmem:[%s3 + $0x44] sm:$0xf]
    %v4290 = vld [vmem:[%s3 + $0x48] sm:$0xf]
    %v4291 = vld [vmem:[%s3 + $0x4c] sm:$0xf]
    %v4292 = vld [vmem:[%s3 + $0x50] sm:$0xf]
    %v4293 = vld [vmem:[%s3 + $0x54] sm:$0xf]
    %v4294 = vld [vmem:[%s3 + $0x58] sm:$0xf]
    %v4295 = vld [vmem:[%s3 + $0x5c] sm:$0xf]
    %v4296 = vld [vmem:[%s3 + $0x60] sm:$0xf]
    %v4297 = vld [vmem:[%s3 + $0x64] sm:$0xf]
    %v4298 = vld [vmem:[%s3 + $0x68] sm:$0xf]
    %v4299 = vld [vmem:[%s3 + $0x6c] sm:$0xf]
    %v4300 = vld [vmem:[%s3 + $0x70] sm:$0xf]
    %v4301 = vld [vmem:[%s3 + $0x74] sm:$0xf]
    %v4302 = vld [vmem:[%s3 + $0x78] sm:$0xf]
    %v4303 = vld [vmem:[%s3 + $0x7c] sm:$0xf]
    %v4304 = vld [vmem:[#allocation2 + $0x8] sm:$0xff]
    %v4305 = vld [vmem:[#allocation2 + $0x10] sm:$0xff]
    %v4306 = vld [vmem:[#allocation2 + $0x18] sm:$0xff]
    %v4307 = vld [vmem:[#allocation2 + $0x20] sm:$0xff]
    %v4308 = vld [vmem:[#allocation2 + $0x30] sm:$0xff]
    %v4309 = vld [vmem:[#allocation2 + $0x38] sm:$0xff]
    %v4310 = vld [vmem:[#allocation2 + $0x40] sm:$0xff]
    %v4311 = vld [vmem:[#allocation2 + $0x48] sm:$0xff]
    %v4312 = vld [vmem:[#allocation2 + $0x58] sm:$0xff]
    %v4313 = vld [vmem:[#allocation2 + $0x60] sm:$0xff]
    %v4314 = vld [vmem:[#allocation2 + $0x68] sm:$0xff]
    %v4315 = vld [vmem:[#allocation2 + $0x70] sm:$0xff]
    %v4316 = vld [vmem:[#allocation2 + $0x80] sm:$0xff]
    %v4317 = vld [vmem:[#allocation2 + $0x88] sm:$0xff]
    %v4318 = vld [vmem:[#allocation2 + $0x90] sm:$0xff]
    %v4319 = vld [vmem:[#allocation2 + $0x98] sm:$0xff]
    %v4320 = vld [vmem:[#allocation2 + $0xa8] sm:$0xff]
    %v4321 = vld [vmem:[#allocation2 + $0xb0] sm:$0xff]
    %v4322 = vld [vmem:[#allocation2 + $0xb8] sm:$0xff]
    %v4323 = vld [vmem:[#allocation2 + $0xc0] sm:$0xff]
    %v4324 = vld [vmem:[#allocation2 + $0xd0] sm:$0xff]
    %v4325 = vld [vmem:[#allocation2 + $0xd8] sm:$0xff]
    %v4326 = vld [vmem:[#allocation2 + $0xe0] sm:$0xff]
    %v4327 = vld [vmem:[#allocation2 + $0xe8] sm:$0xff]
    %v4328 = vld [vmem:[#allocation2 + $0xf8] sm:$0xff]
    %v4329 = vld [vmem:[#allocation2 + $0x100] sm:$0xff]
    %v4330 = vld [vmem:[#allocation2 + $0x108] sm:$0xff]
    %v4331 = vld [vmem:[#allocation2 + $0x110] sm:$0xff]
    %v4332 = vld [vmem:[#allocation2 + $0x120] sm:$0xff]
    %v4333 = vld [vmem:[#allocation2 + $0x128] sm:$0xff]
    %v4334 = vld [vmem:[#allocation2 + $0x130] sm:$0xff]
    %v4335 = vld [vmem:[#allocation2 + $0x138] sm:$0xff]
    %s4336 = scalar_lea.vmem %s3, 128
    %v4337 = vld [vmem:[%s4336] sm:$0xf]
    %v4338 = vld [vmem:[%s4336 + $0x4] sm:$0xf]
    %v4339 = vld [vmem:[%s4336 + $0x8] sm:$0xf]
    %v4340 = vld [vmem:[%s4336 + $0xc] sm:$0xf]
    %v4341 = vld [vmem:[%s4336 + $0x10] sm:$0xf]
    %v4342 = vld [vmem:[%s4336 + $0x14] sm:$0xf]
    %v4343 = vld [vmem:[%s4336 + $0x18] sm:$0xf]
    %v4344 = vld [vmem:[%s4336 + $0x1c] sm:$0xf]
    %v4345 = vld [vmem:[%s4336 + $0x20] sm:$0xf]
    %v4346 = vld [vmem:[%s4336 + $0x24] sm:$0xf]
    %v4347 = vld [vmem:[%s4336 + $0x28] sm:$0xf]
    %v4348 = vld [vmem:[%s4336 + $0x2c] sm:$0xf]
    %v4349 = vld [vmem:[%s4336 + $0x30] sm:$0xf]
    %v4350 = vld [vmem:[%s4336 + $0x34] sm:$0xf]
    %v4351 = vld [vmem:[%s4336 + $0x38] sm:$0xf]
    %v4352 = vld [vmem:[%s4336 + $0x3c] sm:$0xf]
    %v4353 = vld [vmem:[%s4336 + $0x40] sm:$0xf]
    %v4354 = vld [vmem:[%s4336 + $0x44] sm:$0xf]
    %v4355 = vld [vmem:[%s4336 + $0x48] sm:$0xf]
    %v4356 = vld [vmem:[%s4336 + $0x4c] sm:$0xf]
    %v4357 = vld [vmem:[%s4336 + $0x50] sm:$0xf]
    %v4358 = vld [vmem:[%s4336 + $0x54] sm:$0xf]
    %v4359 = vld [vmem:[%s4336 + $0x58] sm:$0xf]
    %v4360 = vld [vmem:[%s4336 + $0x5c] sm:$0xf]
    %v4361 = vld [vmem:[%s4336 + $0x60] sm:$0xf]
    %v4362 = vld [vmem:[%s4336 + $0x64] sm:$0xf]
    %v4363 = vld [vmem:[%s4336 + $0x68] sm:$0xf]
    %v4364 = vld [vmem:[%s4336 + $0x6c] sm:$0xf]
    %v4365 = vld [vmem:[%s4336 + $0x70] sm:$0xf]
    %v4366 = vld [vmem:[%s4336 + $0x74] sm:$0xf]
    %v4367 = vld [vmem:[%s4336 + $0x78] sm:$0xf]
    %v4368 = vld [vmem:[%s4336 + $0x7c] sm:$0xf]
    %v4401 = vunpack.c.l.b16 %v4304
    %v4402 = vunpack.c.h.b16 %v4304
    %v4403 = vunpack.c.l.b16 %v4305
    %v4404 = vunpack.c.h.b16 %v4305
    %v4405 = vunpack.c.l.b16 %v4306
    %v4406 = vunpack.c.h.b16 %v4306
    %v4407 = vunpack.c.l.b16 %v4307
    %v4408 = vunpack.c.h.b16 %v4307
    %v4409 = vunpack.c.l.b16 %v4308
    %v4410 = vunpack.c.h.b16 %v4308
    %v4411 = vunpack.c.l.b16 %v4309
    %v4412 = vunpack.c.h.b16 %v4309
    %v4413 = vunpack.c.l.b16 %v4310
    %v4414 = vunpack.c.h.b16 %v4310
    %v4415 = vunpack.c.l.b16 %v4311
    %v4416 = vunpack.c.h.b16 %v4311
    %v4417 = vunpack.c.l.b16 %v4312
    %v4418 = vunpack.c.h.b16 %v4312
    %v4419 = vunpack.c.l.b16 %v4313
    %v4420 = vunpack.c.h.b16 %v4313
    %v4421 = vunpack.c.l.b16 %v4314
    %v4422 = vunpack.c.h.b16 %v4314
    %v4423 = vunpack.c.l.b16 %v4315
    %v4424 = vunpack.c.h.b16 %v4315
    %v4425 = vunpack.c.l.b16 %v4316
    %v4426 = vunpack.c.h.b16 %v4316
    %v4427 = vunpack.c.l.b16 %v4317
    %v4428 = vunpack.c.h.b16 %v4317
    %v4429 = vunpack.c.l.b16 %v4318
    %v4430 = vunpack.c.h.b16 %v4318
    %v4431 = vunpack.c.l.b16 %v4319
    %v4432 = vunpack.c.h.b16 %v4319
    %v4433 = vunpack.c.l.b16 %v4320
    %v4434 = vunpack.c.h.b16 %v4320
    %v4435 = vunpack.c.l.b16 %v4321
    %v4436 = vunpack.c.h.b16 %v4321
    %v4437 = vunpack.c.l.b16 %v4322
    %v4438 = vunpack.c.h.b16 %v4322
    %v4439 = vunpack.c.l.b16 %v4323
    %v4440 = vunpack.c.h.b16 %v4323
    %v4441 = vunpack.c.l.b16 %v4324
    %v4442 = vunpack.c.h.b16 %v4324
    %v4443 = vunpack.c.l.b16 %v4325
    %v4444 = vunpack.c.h.b16 %v4325
    %v4445 = vunpack.c.l.b16 %v4326
    %v4446 = vunpack.c.h.b16 %v4326
    %v4447 = vunpack.c.l.b16 %v4327
    %v4448 = vunpack.c.h.b16 %v4327
    %v4449 = vunpack.c.l.b16 %v4328
    %v4450 = vunpack.c.h.b16 %v4328
    %v4451 = vunpack.c.l.b16 %v4329
    %v4452 = vunpack.c.h.b16 %v4329
    %v4453 = vunpack.c.l.b16 %v4330
    %v4454 = vunpack.c.h.b16 %v4330
    %v4455 = vunpack.c.l.b16 %v4331
    %v4456 = vunpack.c.h.b16 %v4331
    %v4457 = vunpack.c.l.b16 %v4332
    %v4458 = vunpack.c.h.b16 %v4332
    %v4459 = vunpack.c.l.b16 %v4333
    %v4460 = vunpack.c.h.b16 %v4333
    %v4461 = vunpack.c.l.b16 %v4334
    %v4462 = vunpack.c.h.b16 %v4334
    %v4463 = vunpack.c.l.b16 %v4335
    %v4464 = vunpack.c.h.b16 %v4335
    %v4465 = vpack.c.b16 %v4403, %v4401
    %v4466 = vpack.c.b16 %v4404, %v4402
    %v4467 = vpack.c.b16 %v4407, %v4405
    %v4468 = vpack.c.b16 %v4408, %v4406
    %v4469 = vpack.c.b16 %v4411, %v4409
    %v4470 = vpack.c.b16 %v4412, %v4410
    %v4471 = vpack.c.b16 %v4415, %v4413
    %v4472 = vpack.c.b16 %v4416, %v4414
    %v4473 = vpack.c.b16 %v4419, %v4417
    %v4474 = vpack.c.b16 %v4420, %v4418
    %v4475 = vpack.c.b16 %v4423, %v4421
    %v4476 = vpack.c.b16 %v4424, %v4422
    %v4477 = vpack.c.b16 %v4427, %v4425
    %v4478 = vpack.c.b16 %v4428, %v4426
    %v4479 = vpack.c.b16 %v4431, %v4429
    %v4480 = vpack.c.b16 %v4432, %v4430
    %v4481 = vpack.c.b16 %v4435, %v4433
    %v4482 = vpack.c.b16 %v4436, %v4434
    %v4483 = vpack.c.b16 %v4439, %v4437
    %v4484 = vpack.c.b16 %v4440, %v4438
    %v4485 = vpack.c.b16 %v4443, %v4441
    %v4486 = vpack.c.b16 %v4444, %v4442
    %v4487 = vpack.c.b16 %v4447, %v4445
    %v4488 = vpack.c.b16 %v4448, %v4446
    %v4489 = vpack.c.b16 %v4451, %v4449
    %v4490 = vpack.c.b16 %v4452, %v4450
    %v4491 = vpack.c.b16 %v4455, %v4453
    %v4492 = vpack.c.b16 %v4456, %v4454
    %v4493 = vpack.c.b16 %v4459, %v4457
    %v4494 = vpack.c.b16 %v4460, %v4458
    %v4495 = vpack.c.b16 %v4463, %v4461
    %v4496 = vpack.c.b16 %v4464, %v4462
    %v4561 = vunpack.c.l.b16 %v4337
    %v4562 = vunpack.c.l.b16 %v4338
    %v4563 = vunpack.c.l.b16 %v4339
    %v4564 = vunpack.c.l.b16 %v4340
    %v4565 = vunpack.c.l.b16 %v4341
    %v4566 = vunpack.c.l.b16 %v4342
    %v4567 = vunpack.c.l.b16 %v4343
    %v4568 = vunpack.c.l.b16 %v4344
    %v4569 = vunpack.c.l.b16 %v4345
    %v4570 = vunpack.c.l.b16 %v4346
    %v4571 = vunpack.c.l.b16 %v4347
    %v4572 = vunpack.c.l.b16 %v4348
    %v4573 = vunpack.c.l.b16 %v4349
    %v4574 = vunpack.c.l.b16 %v4350
    %v4575 = vunpack.c.l.b16 %v4351
    %v4576 = vunpack.c.l.b16 %v4352
    %v4577 = vunpack.c.l.b16 %v4353
    %v4578 = vunpack.c.l.b16 %v4354
    %v4579 = vunpack.c.l.b16 %v4355
    %v4580 = vunpack.c.l.b16 %v4356
    %v4581 = vunpack.c.l.b16 %v4357
    %v4582 = vunpack.c.l.b16 %v4358
    %v4583 = vunpack.c.l.b16 %v4359
    %v4584 = vunpack.c.l.b16 %v4360
    %v4585 = vunpack.c.l.b16 %v4361
    %v4586 = vunpack.c.l.b16 %v4362
    %v4587 = vunpack.c.l.b16 %v4363
    %v4588 = vunpack.c.l.b16 %v4364
    %v4589 = vunpack.c.l.b16 %v4365
    %v4590 = vunpack.c.l.b16 %v4366
    %v4591 = vunpack.c.l.b16 %v4367
    %v4592 = vunpack.c.l.b16 %v4368
    %v4593 = vpack.c.b16 %v4562, %v4561
    %v4594 = vpack.c.b16 %v4564, %v4563
    %v4595 = vpack.c.b16 %v4566, %v4565
    %v4596 = vpack.c.b16 %v4568, %v4567
    %v4597 = vpack.c.b16 %v4570, %v4569
    %v4598 = vpack.c.b16 %v4572, %v4571
    %v4599 = vpack.c.b16 %v4574, %v4573
    %v4600 = vpack.c.b16 %v4576, %v4575
    %v4601 = vpack.c.b16 %v4578, %v4577
    %v4602 = vpack.c.b16 %v4580, %v4579
    %v4603 = vpack.c.b16 %v4582, %v4581
    %v4604 = vpack.c.b16 %v4584, %v4583
    %v4605 = vpack.c.b16 %v4586, %v4585
    %v4606 = vpack.c.b16 %v4588, %v4587
    %v4607 = vpack.c.b16 %v4590, %v4589
    %v4608 = vpack.c.b16 %v4592, %v4591
    %4625 = vmatprep.subr.bf16.mxu0 0
    %4626 = vmatpush1.bf16.msra.mxu0 %v4593
    %4627 = vmatprep.subr.bf16.mxu0 0
    %4628 = vmatpush1.bf16.msra.mxu0 %v4594
    %4629 = vmatprep.subr.bf16.mxu0 0
    %4630 = vmatpush1.bf16.msra.mxu0 %v4595
    %4631 = vmatprep.subr.bf16.mxu0 0
    %4632 = vmatpush1.bf16.msra.mxu0 %v4596
    %4633 = vmatprep.subr.bf16.mxu0 0
    %4634 = vmatpush1.bf16.msra.mxu0 %v4597
    %4635 = vmatprep.subr.bf16.mxu0 0
    %4636 = vmatpush1.bf16.msra.mxu0 %v4598
    %4637 = vmatprep.subr.bf16.mxu0 0
    %4638 = vmatpush1.bf16.msra.mxu0 %v4599
    %4639 = vmatprep.subr.bf16.mxu0 0
    %4640 = vmatpush1.bf16.msra.mxu0 %v4600
    %4641 = vmatprep.subr.bf16.mxu0 0
    %4642 = vmatpush1.bf16.msra.mxu0 %v4601
    %4643 = vmatprep.subr.bf16.mxu0 0
    %4644 = vmatpush1.bf16.msra.mxu0 %v4602
    %4645 = vmatprep.subr.bf16.mxu0 0
    %4646 = vmatpush1.bf16.msra.mxu0 %v4603
    %4647 = vmatprep.subr.bf16.mxu0 0
    %4648 = vmatpush1.bf16.msra.mxu0 %v4604
    %4649 = vmatprep.subr.bf16.mxu0 0
    %4650 = vmatpush1.bf16.msra.mxu0 %v4605
    %4651 = vmatprep.subr.bf16.mxu0 0
    %4652 = vmatpush1.bf16.msra.mxu0 %v4606
    %4653 = vmatprep.subr.bf16.mxu0 0
    %4654 = vmatpush1.bf16.msra.mxu0 %v4607
    %4655 = vmatprep.subr.bf16.mxu0 0
    %4656 = vmatpush1.bf16.msra.mxu0 %v4608
    %4657 = vmatprep.mubr.bf16.mxu0 %v4466
    %4658 = vmatmul.mubr.bf16.gmra.mrb[0].mxu0 %v4465
    %v4659 = vpop.f32.mrb[0].mxu0
    %v4660 = vadd.f32 0.0, %v4659
    %v4661 = vpop.f32.mrb[0].mxu0
    %v4662 = vpop.f32.mrb[0].mxu0
    %v4663 = vadd.f32 0.0, %v4662
    %v4664 = vpop.f32.mrb[0].mxu0
    %4665 = vmatprep.mubr.bf16.mxu0 %v4468
    %4666 = vmatmul.mubr.bf16.gmra.mrb[0].mxu0 %v4467
    %v4667 = vpop.f32.mrb[0].mxu0
    %v4668 = vadd.f32 0.0, %v4667
    %v4669 = vpop.f32.mrb[0].mxu0
    %v4670 = vpop.f32.mrb[0].mxu0
    %v4671 = vadd.f32 0.0, %v4670
    %v4672 = vpop.f32.mrb[0].mxu0
    %4673 = vmatprep.mubr.bf16.mxu0 %v4470
    %4674 = vmatmul.mubr.bf16.gmra.mrb[0].mxu0 %v4469
    %v4675 = vpop.f32.mrb[0].mxu0
    %v4676 = vadd.f32 0.0, %v4675
    %v4677 = vpop.f32.mrb[0].mxu0
    %v4678 = vpop.f32.mrb[0].mxu0
    %v4679 = vadd.f32 0.0, %v4678
    %v4680 = vpop.f32.mrb[0].mxu0
    %4681 = vmatprep.mubr.bf16.mxu0 %v4472
    %4682 = vmatmul.mubr.bf16.gmra.mrb[0].mxu0 %v4471
    %v4683 = vpop.f32.mrb[0].mxu0
    %v4684 = vadd.f32 0.0, %v4683
    %v4685 = vpop.f32.mrb[0].mxu0
    %v4686 = vpop.f32.mrb[0].mxu0
    %v4687 = vadd.f32 0.0, %v4686
    %v4688 = vpop.f32.mrb[0].mxu0
    %4689 = vmatprep.mubr.bf16.mxu0 %v4474
    %4690 = vmatmul.mubr.bf16.gmra.mrb[0].mxu0 %v4473
    %v4691 = vpop.f32.mrb[0].mxu0
    %v4692 = vadd.f32 0.0, %v4691
    %v4693 = vpop.f32.mrb[0].mxu0
    %v4694 = vpop.f32.mrb[0].mxu0
    %v4695 = vadd.f32 0.0, %v4694
    %v4696 = vpop.f32.mrb[0].mxu0
    %4697 = vmatprep.mubr.bf16.mxu0 %v4476
    %4698 = vmatmul.mubr.bf16.gmra.mrb[0].mxu0 %v4475
    %v4699 = vpop.f32.mrb[0].mxu0
    %v4700 = vadd.f32 0.0, %v4699
    %v4701 = vpop.f32.mrb[0].mxu0
    %v4702 = vpop.f32.mrb[0].mxu0
    %v4703 = vadd.f32 0.0, %v4702
    %v4704 = vpop.f32.mrb[0].mxu0
    %4705 = vmatprep.mubr.bf16.mxu0 %v4478
    %4706 = vmatmul.mubr.bf16.gmra.mrb[0].mxu0 %v4477
    %v4707 = vpop.f32.mrb[0].mxu0
    %v4708 = vadd.f32 0.0, %v4707
    %v4709 = vpop.f32.mrb[0].mxu0
    %v4710 = vpop.f32.mrb[0].mxu0
    %v4711 = vadd.f32 0.0, %v4710
    %v4712 = vpop.f32.mrb[0].mxu0
    %4713 = vmatprep.mubr.bf16.mxu0 %v4480
    %4714 = vmatmul.mubr.bf16.gmra.mrb[0].mxu0 %v4479
    %v4715 = vpop.f32.mrb[0].mxu0
    %v4716 = vadd.f32 0.0, %v4715
    %v4717 = vpop.f32.mrb[0].mxu0
    %v4718 = vpop.f32.mrb[0].mxu0
    %v4719 = vadd.f32 0.0, %v4718
    %v4720 = vpop.f32.mrb[0].mxu0
    %4721 = vmatprep.mubr.bf16.mxu0 %v4482
    %4722 = vmatmul.mubr.bf16.gmra.mrb[0].mxu0 %v4481
    %v4723 = vpop.f32.mrb[0].mxu0
    %v4724 = vadd.f32 0.0, %v4723
    %v4725 = vpop.f32.mrb[0].mxu0
    %v4726 = vpop.f32.mrb[0].mxu0
    %v4727 = vadd.f32 0.0, %v4726
    %v4728 = vpop.f32.mrb[0].mxu0
    %4729 = vmatprep.mubr.bf16.mxu0 %v4484
    %4730 = vmatmul.mubr.bf16.gmra.mrb[0].mxu0 %v4483
    %v4731 = vpop.f32.mrb[0].mxu0
    %v4732 = vadd.f32 0.0, %v4731
    %v4733 = vpop.f32.mrb[0].mxu0
    %v4734 = vpop.f32.mrb[0].mxu0
    %v4735 = vadd.f32 0.0, %v4734
    %v4736 = vpop.f32.mrb[0].mxu0
    %4737 = vmatprep.mubr.bf16.mxu0 %v4486
    %4738 = vmatmul.mubr.bf16.gmra.mrb[0].mxu0 %v4485
    %v4739 = vpop.f32.mrb[0].mxu0
    %v4740 = vadd.f32 0.0, %v4739
    %v4741 = vpop.f32.mrb[0].mxu0
    %v4742 = vpop.f32.mrb[0].mxu0
    %v4743 = vadd.f32 0.0, %v4742
    %v4744 = vpop.f32.mrb[0].mxu0
    %4745 = vmatprep.mubr.bf16.mxu0 %v4488
    %4746 = vmatmul.mubr.bf16.gmra.mrb[0].mxu0 %v4487
    %v4747 = vpop.f32.mrb[0].mxu0
    %v4748 = vadd.f32 0.0, %v4747
    %v4749 = vpop.f32.mrb[0].mxu0
    %v4750 = vpop.f32.mrb[0].mxu0
    %v4751 = vadd.f32 0.0, %v4750
    %v4752 = vpop.f32.mrb[0].mxu0
    %4753 = vmatprep.mubr.bf16.mxu0 %v4490
    %4754 = vmatmul.mubr.bf16.gmra.mrb[0].mxu0 %v4489
    %v4755 = vpop.f32.mrb[0].mxu0
    %v4756 = vadd.f32 0.0, %v4755
    %v4757 = vpop.f32.mrb[0].mxu0
    %v4758 = vpop.f32.mrb[0].mxu0
    %v4759 = vadd.f32 0.0, %v4758
    %v4760 = vpop.f32.mrb[0].mxu0
    %4761 = vmatprep.mubr.bf16.mxu0 %v4492
    %4762 = vmatmul.mubr.bf16.gmra.mrb[0].mxu0 %v4491
    %v4763 = vpop.f32.mrb[0].mxu0
    %v4764 = vadd.f32 0.0, %v4763
    %v4765 = vpop.f32.mrb[0].mxu0
    %v4766 = vpop.f32.mrb[0].mxu0
    %v4767 = vadd.f32 0.0, %v4766
    %v4768 = vpop.f32.mrb[0].mxu0
    %4769 = vmatprep.mubr.bf16.mxu0 %v4494
    %4770 = vmatmul.mubr.bf16.gmra.mrb[0].mxu0 %v4493
    %v4771 = vpop.f32.mrb[0].mxu0
    %v4772 = vadd.f32 0.0, %v4771
    %v4773 = vpop.f32.mrb[0].mxu0
    %v4774 = vpop.f32.mrb[0].mxu0
    %v4775 = vadd.f32 0.0, %v4774
    %v4776 = vpop.f32.mrb[0].mxu0
    %4777 = vmatprep.mubr.bf16.mxu0 %v4496
    %4778 = vmatmul.mubr.bf16.gmra.mrb[0].mxu0 %v4495
    %v4779 = vpop.f32.mrb[0].mxu0
    %v4780 = vadd.f32 0.0, %v4779
    %v4781 = vpop.f32.mrb[0].mxu0
    %v4782 = vpop.f32.mrb[0].mxu0
    %v4783 = vadd.f32 0.0, %v4782
    %v4784 = vpop.f32.mrb[0].mxu0
    %4785 = vdwg.mxu0
    %v4818 = vunpack.c.l.b16 %v4240
    %v4819 = vunpack.c.h.b16 %v4240
    %v4820 = vunpack.c.l.b16 %v4241
    %v4821 = vunpack.c.h.b16 %v4241
    %v4822 = vunpack.c.l.b16 %v4242
    %v4823 = vunpack.c.h.b16 %v4242
    %v4824 = vunpack.c.l.b16 %v4243
    %v4825 = vunpack.c.h.b16 %v4243
    %v4826 = vunpack.c.l.b16 %v4244
    %v4827 = vunpack.c.h.b16 %v4244
    %v4828 = vunpack.c.l.b16 %v4245
    %v4829 = vunpack.c.h.b16 %v4245
    %v4830 = vunpack.c.l.b16 %v4246
    %v4831 = vunpack.c.h.b16 %v4246
    %v4832 = vunpack.c.l.b16 %v4247
    %v4833 = vunpack.c.h.b16 %v4247
    %v4834 = vunpack.c.l.b16 %v4248
    %v4835 = vunpack.c.h.b16 %v4248
    %v4836 = vunpack.c.l.b16 %v4249
    %v4837 = vunpack.c.h.b16 %v4249
    %v4838 = vunpack.c.l.b16 %v4250
    %v4839 = vunpack.c.h.b16 %v4250
    %v4840 = vunpack.c.l.b16 %v4251
    %v4841 = vunpack.c.h.b16 %v4251
    %v4842 = vunpack.c.l.b16 %v4252
    %v4843 = vunpack.c.h.b16 %v4252
    %v4844 = vunpack.c.l.b16 %v4253
    %v4845 = vunpack.c.h.b16 %v4253
    %v4846 = vunpack.c.l.b16 %v4254
    %v4847 = vunpack.c.h.b16 %v4254
    %v4848 = vunpack.c.l.b16 %v4255
    %v4849 = vunpack.c.h.b16 %v4255
    %v4850 = vunpack.c.l.b16 %v4256
    %v4851 = vunpack.c.h.b16 %v4256
    %v4852 = vunpack.c.l.b16 %v4257
    %v4853 = vunpack.c.h.b16 %v4257
    %v4854 = vunpack.c.l.b16 %v4258
    %v4855 = vunpack.c.h.b16 %v4258
    %v4856 = vunpack.c.l.b16 %v4259
    %v4857 = vunpack.c.h.b16 %v4259
    %v4858 = vunpack.c.l.b16 %v4260
    %v4859 = vunpack.c.h.b16 %v4260
    %v4860 = vunpack.c.l.b16 %v4261
    %v4861 = vunpack.c.h.b16 %v4261
    %v4862 = vunpack.c.l.b16 %v4262
    %v4863 = vunpack.c.h.b16 %v4262
    %v4864 = vunpack.c.l.b16 %v4263
    %v4865 = vunpack.c.h.b16 %v4263
    %v4866 = vunpack.c.l.b16 %v4264
    %v4867 = vunpack.c.h.b16 %v4264
    %v4868 = vunpack.c.l.b16 %v4265
    %v4869 = vunpack.c.h.b16 %v4265
    %v4870 = vunpack.c.l.b16 %v4266
    %v4871 = vunpack.c.h.b16 %v4266
    %v4872 = vunpack.c.l.b16 %v4267
    %v4873 = vunpack.c.h.b16 %v4267
    %v4874 = vunpack.c.l.b16 %v4268
    %v4875 = vunpack.c.h.b16 %v4268
    %v4876 = vunpack.c.l.b16 %v4269
    %v4877 = vunpack.c.h.b16 %v4269
    %v4878 = vunpack.c.l.b16 %v4270
    %v4879 = vunpack.c.h.b16 %v4270
    %v4880 = vunpack.c.l.b16 %v4271
    %v4881 = vunpack.c.h.b16 %v4271
    %v4882 = vpack.c.b16 %v4820, %v4818
    %v4883 = vpack.c.b16 %v4821, %v4819
    %v4884 = vpack.c.b16 %v4824, %v4822
    %v4885 = vpack.c.b16 %v4825, %v4823
    %v4886 = vpack.c.b16 %v4828, %v4826
    %v4887 = vpack.c.b16 %v4829, %v4827
    %v4888 = vpack.c.b16 %v4832, %v4830
    %v4889 = vpack.c.b16 %v4833, %v4831
    %v4890 = vpack.c.b16 %v4836, %v4834
    %v4891 = vpack.c.b16 %v4837, %v4835
    %v4892 = vpack.c.b16 %v4840, %v4838
    %v4893 = vpack.c.b16 %v4841, %v4839
    %v4894 = vpack.c.b16 %v4844, %v4842
    %v4895 = vpack.c.b16 %v4845, %v4843
    %v4896 = vpack.c.b16 %v4848, %v4846
    %v4897 = vpack.c.b16 %v4849, %v4847
    %v4898 = vpack.c.b16 %v4852, %v4850
    %v4899 = vpack.c.b16 %v4853, %v4851
    %v4900 = vpack.c.b16 %v4856, %v4854
    %v4901 = vpack.c.b16 %v4857, %v4855
    %v4902 = vpack.c.b16 %v4860, %v4858
    %v4903 = vpack.c.b16 %v4861, %v4859
    %v4904 = vpack.c.b16 %v4864, %v4862
    %v4905 = vpack.c.b16 %v4865, %v4863
    %v4906 = vpack.c.b16 %v4868, %v4866
    %v4907 = vpack.c.b16 %v4869, %v4867
    %v4908 = vpack.c.b16 %v4872, %v4870
    %v4909 = vpack.c.b16 %v4873, %v4871
    %v4910 = vpack.c.b16 %v4876, %v4874
    %v4911 = vpack.c.b16 %v4877, %v4875
    %v4912 = vpack.c.b16 %v4880, %v4878
    %v4913 = vpack.c.b16 %v4881, %v4879
    %v4978 = vunpack.c.l.b16 %v4272
    %v4979 = vunpack.c.l.b16 %v4273
    %v4980 = vunpack.c.l.b16 %v4274
    %v4981 = vunpack.c.l.b16 %v4275
    %v4982 = vunpack.c.l.b16 %v4276
    %v4983 = vunpack.c.l.b16 %v4277
    %v4984 = vunpack.c.l.b16 %v4278
    %v4985 = vunpack.c.l.b16 %v4279
    %v4986 = vunpack.c.l.b16 %v4280
    %v4987 = vunpack.c.l.b16 %v4281
    %v4988 = vunpack.c.l.b16 %v4282
    %v4989 = vunpack.c.l.b16 %v4283
    %v4990 = vunpack.c.l.b16 %v4284
    %v4991 = vunpack.c.l.b16 %v4285
    %v4992 = vunpack.c.l.b16 %v4286
    %v4993 = vunpack.c.l.b16 %v4287
    %v4994 = vunpack.c.l.b16 %v4288
    %v4995 = vunpack.c.l.b16 %v4289
    %v4996 = vunpack.c.l.b16 %v4290
    %v4997 = vunpack.c.l.b16 %v4291
    %v4998 = vunpack.c.l.b16 %v4292
    %v4999 = vunpack.c.l.b16 %v4293
    %v5000 = vunpack.c.l.b16 %v4294
    %v5001 = vunpack.c.l.b16 %v4295
    %v5002 = vunpack.c.l.b16 %v4296
    %v5003 = vunpack.c.l.b16 %v4297
    %v5004 = vunpack.c.l.b16 %v4298
    %v5005 = vunpack.c.l.b16 %v4299
    %v5006 = vunpack.c.l.b16 %v4300
    %v5007 = vunpack.c.l.b16 %v4301
    %v5008 = vunpack.c.l.b16 %v4302
    %v5009 = vunpack.c.l.b16 %v4303
    %v5010 = vpack.c.b16 %v4979, %v4978
    %v5011 = vpack.c.b16 %v4981, %v4980
    %v5012 = vpack.c.b16 %v4983, %v4982
    %v5013 = vpack.c.b16 %v4985, %v4984
    %v5014 = vpack.c.b16 %v4987, %v4986
    %v5015 = vpack.c.b16 %v4989, %v4988
    %v5016 = vpack.c.b16 %v4991, %v4990
    %v5017 = vpack.c.b16 %v4993, %v4992
    %v5018 = vpack.c.b16 %v4995, %v4994
    %v5019 = vpack.c.b16 %v4997, %v4996
    %v5020 = vpack.c.b16 %v4999, %v4998
    %v5021 = vpack.c.b16 %v5001, %v5000
    %v5022 = vpack.c.b16 %v5003, %v5002
    %v5023 = vpack.c.b16 %v5005, %v5004
    %v5024 = vpack.c.b16 %v5007, %v5006
    %v5025 = vpack.c.b16 %v5009, %v5008
    %5042 = vmatprep.subr.bf16.mxu0 0
    %5043 = vmatpush1.bf16.msra.mxu0 %v5010
    %5044 = vmatprep.subr.bf16.mxu0 0
    %5045 = vmatpush1.bf16.msra.mxu0 %v5011
    %5046 = vmatprep.subr.bf16.mxu0 0
    %5047 = vmatpush1.bf16.msra.mxu0 %v5012
    %5048 = vmatprep.subr.bf16.mxu0 0
    %5049 = vmatpush1.bf16.msra.mxu0 %v5013
    %5050 = vmatprep.subr.bf16.mxu0 0
    %5051 = vmatpush1.bf16.msra.mxu0 %v5014
    %5052 = vmatprep.subr.bf16.mxu0 0
    %5053 = vmatpush1.bf16.msra.mxu0 %v5015
    %5054 = vmatprep.subr.bf16.mxu0 0
    %5055 = vmatpush1.bf16.msra.mxu0 %v5016
    %5056 = vmatprep.subr.bf16.mxu0 0
    %5057 = vmatpush1.bf16.msra.mxu0 %v5017
    %5058 = vmatprep.subr.bf16.mxu0 0
    %5059 = vmatpush1.bf16.msra.mxu0 %v5018
    %5060 = vmatprep.subr.bf16.mxu0 0
    %5061 = vmatpush1.bf16.msra.mxu0 %v5019
    %5062 = vmatprep.subr.bf16.mxu0 0
    %5063 = vmatpush1.bf16.msra.mxu0 %v5020
    %5064 = vmatprep.subr.bf16.mxu0 0
    %5065 = vmatpush1.bf16.msra.mxu0 %v5021
    %5066 = vmatprep.subr.bf16.mxu0 0
    %5067 = vmatpush1.bf16.msra.mxu0 %v5022
    %5068 = vmatprep.subr.bf16.mxu0 0
    %5069 = vmatpush1.bf16.msra.mxu0 %v5023
    %5070 = vmatprep.subr.bf16.mxu0 0
    %5071 = vmatpush1.bf16.msra.mxu0 %v5024
    %5072 = vmatprep.subr.bf16.mxu0 0
    %5073 = vmatpush1.bf16.msra.mxu0 %v5025
    %5074 = vmatprep.mubr.bf16.mxu0 %v4883
    %5075 = vmatmul.mubr.bf16.gmra.mrb[0].mxu0 %v4882
    %v5076 = vpop.f32.mrb[0].mxu0
    %v5077 = vadd.f32 %v4660, %v5076
    %v5078 = vpop.f32.mrb[0].mxu0
    %v5079 = vpop.f32.mrb[0].mxu0
    %v5080 = vadd.f32 %v4663, %v5079
    %v5081 = vpop.f32.mrb[0].mxu0
    %5082 = vmatprep.mubr.bf16.mxu0 %v4885
    %5083 = vmatmul.mubr.bf16.gmra.mrb[0].mxu0 %v4884
    %v5084 = vpop.f32.mrb[0].mxu0
    %v5085 = vadd.f32 %v4668, %v5084
    %v5086 = vpop.f32.mrb[0].mxu0
    %v5087 = vpop.f32.mrb[0].mxu0
    %v5088 = vadd.f32 %v4671, %v5087
    %v5089 = vpop.f32.mrb[0].mxu0
    %5090 = vmatprep.mubr.bf16.mxu0 %v4887
    %5091 = vmatmul.mubr.bf16.gmra.mrb[0].mxu0 %v4886
    %v5092 = vpop.f32.mrb[0].mxu0
    %v5093 = vadd.f32 %v4676, %v5092
    %v5094 = vpop.f32.mrb[0].mxu0
    %v5095 = vpop.f32.mrb[0].mxu0
    %v5096 = vadd.f32 %v4679, %v5095
    %v5097 = vpop.f32.mrb[0].mxu0
    %5098 = vmatprep.mubr.bf16.mxu0 %v4889
    %5099 = vmatmul.mubr.bf16.gmra.mrb[0].mxu0 %v4888
    %v5100 = vpop.f32.mrb[0].mxu0
    %v5101 = vadd.f32 %v4684, %v5100
    %v5102 = vpop.f32.mrb[0].mxu0
    %v5103 = vpop.f32.mrb[0].mxu0
    %v5104 = vadd.f32 %v4687, %v5103
    %v5105 = vpop.f32.mrb[0].mxu0
    %5106 = vmatprep.mubr.bf16.mxu0 %v4891
    %5107 = vmatmul.mubr.bf16.gmra.mrb[0].mxu0 %v4890
    %v5108 = vpop.f32.mrb[0].mxu0
    %v5109 = vadd.f32 %v4692, %v5108
    %v5110 = vpop.f32.mrb[0].mxu0
    %v5111 = vpop.f32.mrb[0].mxu0
    %v5112 = vadd.f32 %v4695, %v5111
    %v5113 = vpop.f32.mrb[0].mxu0
    %5114 = vmatprep.mubr.bf16.mxu0 %v4893
    %5115 = vmatmul.mubr.bf16.gmra.mrb[0].mxu0 %v4892
    %v5116 = vpop.f32.mrb[0].mxu0
    %v5117 = vadd.f32 %v4700, %v5116
    %v5118 = vpop.f32.mrb[0].mxu0
    %v5119 = vpop.f32.mrb[0].mxu0
    %v5120 = vadd.f32 %v4703, %v5119
    %v5121 = vpop.f32.mrb[0].mxu0
    %5122 = vmatprep.mubr.bf16.mxu0 %v4895
    %5123 = vmatmul.mubr.bf16.gmra.mrb[0].mxu0 %v4894
    %v5124 = vpop.f32.mrb[0].mxu0
    %v5125 = vadd.f32 %v4708, %v5124
    %v5126 = vpop.f32.mrb[0].mxu0
    %v5127 = vpop.f32.mrb[0].mxu0
    %v5128 = vadd.f32 %v4711, %v5127
    %v5129 = vpop.f32.mrb[0].mxu0
    %5130 = vmatprep.mubr.bf16.mxu0 %v4897
    %5131 = vmatmul.mubr.bf16.gmra.mrb[0].mxu0 %v4896
    %v5132 = vpop.f32.mrb[0].mxu0
    %v5133 = vadd.f32 %v4716, %v5132
    %v5134 = vpop.f32.mrb[0].mxu0
    %v5135 = vpop.f32.mrb[0].mxu0
    %v5136 = vadd.f32 %v4719, %v5135
    %v5137 = vpop.f32.mrb[0].mxu0
    %5138 = vmatprep.mubr.bf16.mxu0 %v4899
    %5139 = vmatmul.mubr.bf16.gmra.mrb[0].mxu0 %v4898
    %v5140 = vpop.f32.mrb[0].mxu0
    %v5141 = vadd.f32 %v4724, %v5140
    %v5142 = vpop.f32.mrb[0].mxu0
    %v5143 = vpop.f32.mrb[0].mxu0
    %v5144 = vadd.f32 %v4727, %v5143
    %v5145 = vpop.f32.mrb[0].mxu0
    %5146 = vmatprep.mubr.bf16.mxu0 %v4901
    %5147 = vmatmul.mubr.bf16.gmra.mrb[0].mxu0 %v4900
    %v5148 = vpop.f32.mrb[0].mxu0
    %v5149 = vadd.f32 %v4732, %v5148
    %v5150 = vpop.f32.mrb[0].mxu0
    %v5151 = vpop.f32.mrb[0].mxu0
    %v5152 = vadd.f32 %v4735, %v5151
    %v5153 = vpop.f32.mrb[0].mxu0
    %5154 = vmatprep.mubr.bf16.mxu0 %v4903
    %5155 = vmatmul.mubr.bf16.gmra.mrb[0].mxu0 %v4902
    %v5156 = vpop.f32.mrb[0].mxu0
    %v5157 = vadd.f32 %v4740, %v5156
    %v5158 = vpop.f32.mrb[0].mxu0
    %v5159 = vpop.f32.mrb[0].mxu0
    %v5160 = vadd.f32 %v4743, %v5159
    %v5161 = vpop.f32.mrb[0].mxu0
    %5162 = vmatprep.mubr.bf16.mxu0 %v4905
    %5163 = vmatmul.mubr.bf16.gmra.mrb[0].mxu0 %v4904
    %v5164 = vpop.f32.mrb[0].mxu0
    %v5165 = vadd.f32 %v4748, %v5164
    %v5166 = vpop.f32.mrb[0].mxu0
    %v5167 = vpop.f32.mrb[0].mxu0
    %v5168 = vadd.f32 %v4751, %v5167
    %v5169 = vpop.f32.mrb[0].mxu0
    %5170 = vmatprep.mubr.bf16.mxu0 %v4907
    %5171 = vmatmul.mubr.bf16.gmra.mrb[0].mxu0 %v4906
    %v5172 = vpop.f32.mrb[0].mxu0
    %v5173 = vadd.f32 %v4756, %v5172
    %v5174 = vpop.f32.mrb[0].mxu0
    %v5175 = vpop.f32.mrb[0].mxu0
    %v5176 = vadd.f32 %v4759, %v5175
    %v5177 = vpop.f32.mrb[0].mxu0
    %5178 = vmatprep.mubr.bf16.mxu0 %v4909
    %5179 = vmatmul.mubr.bf16.gmra.mrb[0].mxu0 %v4908
    %v5180 = vpop.f32.mrb[0].mxu0
    %v5181 = vadd.f32 %v4764, %v5180
    %v5182 = vpop.f32.mrb[0].mxu0
    %v5183 = vpop.f32.mrb[0].mxu0
    %v5184 = vadd.f32 %v4767, %v5183
    %v5185 = vpop.f32.mrb[0].mxu0
    %5186 = vmatprep.mubr.bf16.mxu0 %v4911
    %5187 = vmatmul.mubr.bf16.gmra.mrb[0].mxu0 %v4910
    %v5188 = vpop.f32.mrb[0].mxu0
    %v5189 = vadd.f32 %v4772, %v5188
    %v5190 = vpop.f32.mrb[0].mxu0
    %v5191 = vpop.f32.mrb[0].mxu0
    %v5192 = vadd.f32 %v4775, %v5191
    %v5193 = vpop.f32.mrb[0].mxu0
    %5194 = vmatprep.mubr.bf16.mxu0 %v4913
    %5195 = vmatmul.mubr.bf16.gmra.mrb[0].mxu0 %v4912
    %v5196 = vpop.f32.mrb[0].mxu0
    %v5197 = vadd.f32 %v4780, %v5196
    %v5198 = vpop.f32.mrb[0].mxu0
    %v5199 = vpop.f32.mrb[0].mxu0
    %v5200 = vadd.f32 %v4783, %v5199
    %v5201 = vpop.f32.mrb[0].mxu0
    %5202 = vdwg.mxu0
    %v5203 = vld [vmem:[%s4] sm:$0x1]
    %v5205 = vlaneseq
    %v5206 = vshrl.u32 %v5205, 7
    %v5207 = vsub.s32 0, %v5206
    %v5208 = vrot.slane %v5203, %v5207
    %v5210 = vadd.f32 %v5077, %v5208
    %v5211 = vadd.f32 %v5080, %v5208
    %v5212 = vadd.f32 %v5085, %v5208
    %v5213 = vadd.f32 %v5088, %v5208
    %v5214 = vadd.f32 %v5093, %v5208
    %v5215 = vadd.f32 %v5096, %v5208
    %v5216 = vadd.f32 %v5101, %v5208
    %v5217 = vadd.f32 %v5104, %v5208
    %v5218 = vadd.f32 %v5109, %v5208
    %v5219 = vadd.f32 %v5112, %v5208
    %v5220 = vadd.f32 %v5117, %v5208
    %v5221 = vadd.f32 %v5120, %v5208
    %v5222 = vadd.f32 %v5125, %v5208
    %v5223 = vadd.f32 %v5128, %v5208
    %v5224 = vadd.f32 %v5133, %v5208
    %v5225 = vadd.f32 %v5136, %v5208
    %v5226 = vadd.f32 %v5141, %v5208
    %v5227 = vadd.f32 %v5144, %v5208
    %v5228 = vadd.f32 %v5149, %v5208
    %v5229 = vadd.f32 %v5152, %v5208
    %v5230 = vadd.f32 %v5157, %v5208
    %v5231 = vadd.f32 %v5160, %v5208
    %v5232 = vadd.f32 %v5165, %v5208
    %v5233 = vadd.f32 %v5168, %v5208
    %v5234 = vadd.f32 %v5173, %v5208
    %v5235 = vadd.f32 %v5176, %v5208
    %v5236 = vadd.f32 %v5181, %v5208
    %v5237 = vadd.f32 %v5184, %v5208
    %v5238 = vadd.f32 %v5189, %v5208
    %v5239 = vadd.f32 %v5192, %v5208
    %v5240 = vadd.f32 %v5197, %v5208
    %v5241 = vadd.f32 %v5200, %v5208
    %v5242 = vmax.f32 %v5210, 0.0
    %v5243 = vmax.f32 %v5211, 0.0
    %v5244 = vmax.f32 %v5212, 0.0
    %v5245 = vmax.f32 %v5213, 0.0
    %v5246 = vmax.f32 %v5214, 0.0
    %v5247 = vmax.f32 %v5215, 0.0
    %v5248 = vmax.f32 %v5216, 0.0
    %v5249 = vmax.f32 %v5217, 0.0
    %v5250 = vmax.f32 %v5218, 0.0
    %v5251 = vmax.f32 %v5219, 0.0
    %v5252 = vmax.f32 %v5220, 0.0
    %v5253 = vmax.f32 %v5221, 0.0
    %v5254 = vmax.f32 %v5222, 0.0
    %v5255 = vmax.f32 %v5223, 0.0
    %v5256 = vmax.f32 %v5224, 0.0
    %v5257 = vmax.f32 %v5225, 0.0
    %v5258 = vmax.f32 %v5226, 0.0
    %v5259 = vmax.f32 %v5227, 0.0
    %v5260 = vmax.f32 %v5228, 0.0
    %v5261 = vmax.f32 %v5229, 0.0
    %v5262 = vmax.f32 %v5230, 0.0
    %v5263 = vmax.f32 %v5231, 0.0
    %v5264 = vmax.f32 %v5232, 0.0
    %v5265 = vmax.f32 %v5233, 0.0
    %v5266 = vmax.f32 %v5234, 0.0
    %v5267 = vmax.f32 %v5235, 0.0
    %v5268 = vmax.f32 %v5236, 0.0
    %v5269 = vmax.f32 %v5237, 0.0
    %v5270 = vmax.f32 %v5238, 0.0
    %v5271 = vmax.f32 %v5239, 0.0
    %v5272 = vmax.f32 %v5240, 0.0
    %v5273 = vmax.f32 %v5241, 0.0
    %v5274 = vpack.c.bf16 %v5243, %v5242
    %v5275 = vpack.c.bf16 %v5245, %v5244
    %v5276 = vpack.c.bf16 %v5247, %v5246
    %v5277 = vpack.c.bf16 %v5249, %v5248
    %v5278 = vpack.c.bf16 %v5251, %v5250
    %v5279 = vpack.c.bf16 %v5253, %v5252
    %v5280 = vpack.c.bf16 %v5255, %v5254
    %v5281 = vpack.c.bf16 %v5257, %v5256
    %v5282 = vpack.c.bf16 %v5259, %v5258
    %v5283 = vpack.c.bf16 %v5261, %v5260
    %v5284 = vpack.c.bf16 %v5263, %v5262
    %v5285 = vpack.c.bf16 %v5265, %v5264
    %v5286 = vpack.c.bf16 %v5267, %v5266
    %v5287 = vpack.c.bf16 %v5269, %v5268
    %v5288 = vpack.c.bf16 %v5271, %v5270
    %v5289 = vpack.c.bf16 %v5273, %v5272
    %v5306 = vunpack.c.l.b16 %v5274
    %v5307 = vunpack.c.h.b16 %v5274
    %v5308 = vunpack.c.l.b16 %v5275
    %v5309 = vunpack.c.l.b16 %v5276
    %v5310 = vunpack.c.h.b16 %v5276
    %v5311 = vunpack.c.l.b16 %v5277
    %v5312 = vunpack.c.l.b16 %v5278
    %v5313 = vunpack.c.h.b16 %v5278
    %v5314 = vunpack.c.l.b16 %v5279
    %v5315 = vunpack.c.l.b16 %v5280
    %v5316 = vunpack.c.h.b16 %v5280
    %v5317 = vunpack.c.l.b16 %v5281
    %v5318 = vunpack.c.l.b16 %v5282
    %v5319 = vunpack.c.h.b16 %v5282
    %v5320 = vunpack.c.l.b16 %v5283
    %v5321 = vunpack.c.l.b16 %v5284
    %v5322 = vunpack.c.h.b16 %v5284
    %v5323 = vunpack.c.l.b16 %v5285
    %v5324 = vunpack.c.l.b16 %v5286
    %v5325 = vunpack.c.h.b16 %v5286
    %v5326 = vunpack.c.l.b16 %v5287
    %v5327 = vunpack.c.l.b16 %v5288
    %v5328 = vunpack.c.h.b16 %v5288
    %v5329 = vunpack.c.l.b16 %v5289
    %v5330 = vpack.c.b16 %v5306, %v5306
    %v5331 = vpack.c.b16 %v5307, %v5307
    %v5332 = vpack.c.b16 %v5308, %v5308
    %v5333 = vpack.c.b16 %v5309, %v5309
    %v5334 = vpack.c.b16 %v5310, %v5310
    %v5335 = vpack.c.b16 %v5311, %v5311
    %v5336 = vpack.c.b16 %v5312, %v5312
    %v5337 = vpack.c.b16 %v5313, %v5313
    %v5338 = vpack.c.b16 %v5314, %v5314
    %v5339 = vpack.c.b16 %v5315, %v5315
    %v5340 = vpack.c.b16 %v5316, %v5316
    %v5341 = vpack.c.b16 %v5317, %v5317
    %v5342 = vpack.c.b16 %v5318, %v5318
    %v5343 = vpack.c.b16 %v5319, %v5319
    %v5344 = vpack.c.b16 %v5320, %v5320
    %v5345 = vpack.c.b16 %v5321, %v5321
    %v5346 = vpack.c.b16 %v5322, %v5322
    %v5347 = vpack.c.b16 %v5323, %v5323
    %v5348 = vpack.c.b16 %v5324, %v5324
    %v5349 = vpack.c.b16 %v5325, %v5325
    %v5350 = vpack.c.b16 %v5326, %v5326
    %v5351 = vpack.c.b16 %v5327, %v5327
    %v5352 = vpack.c.b16 %v5328, %v5328
    %v5353 = vpack.c.b16 %v5329, %v5329
    %vm5378 = vcmask 519168
    %5379 = vst.msk [vmem:[#allocation3] sm:$0xf] %vm5378, %v5330
    %5380 = vst.msk [vmem:[#allocation3 + $0x10] sm:$0xf] %vm5378, %v5331
    %5381 = vst.msk [vmem:[#allocation3 + $0x20] sm:$0xf] %vm5378, %v5332
    %5382 = vst.msk [vmem:[#allocation3 + $0x30] sm:$0xf] %vm5378, %v5333
    %5383 = vst.msk [vmem:[#allocation3 + $0x40] sm:$0xf] %vm5378, %v5334
    %5384 = vst.msk [vmem:[#allocation3 + $0x50] sm:$0xf] %vm5378, %v5335
    %5385 = vst.msk [vmem:[#allocation3 + $0x60] sm:$0xf] %vm5378, %v5336
    %5386 = vst.msk [vmem:[#allocation3 + $0x70] sm:$0xf] %vm5378, %v5337
    %5387 = vst.msk [vmem:[#allocation3 + $0x80] sm:$0xf] %vm5378, %v5338
    %5388 = vst.msk [vmem:[#allocation3 + $0x90] sm:$0xf] %vm5378, %v5339
    %5389 = vst.msk [vmem:[#allocation3 + $0xa0] sm:$0xf] %vm5378, %v5340
    %5390 = vst.msk [vmem:[#allocation3 + $0xb0] sm:$0xf] %vm5378, %v5341
    %5391 = vst.msk [vmem:[#allocation3 + $0xc0] sm:$0xf] %vm5378, %v5342
    %5392 = vst.msk [vmem:[#allocation3 + $0xd0] sm:$0xf] %vm5378, %v5343
    %5393 = vst.msk [vmem:[#allocation3 + $0xe0] sm:$0xf] %vm5378, %v5344
    %5394 = vst.msk [vmem:[#allocation3 + $0xf0] sm:$0xf] %vm5378, %v5345
    %5395 = vst.msk [vmem:[#allocation3 + $0x100] sm:$0xf] %vm5378, %v5346
    %5396 = vst.msk [vmem:[#allocation3 + $0x110] sm:$0xf] %vm5378, %v5347
    %5397 = vst.msk [vmem:[#allocation3 + $0x120] sm:$0xf] %vm5378, %v5348
    %5398 = vst.msk [vmem:[#allocation3 + $0x130] sm:$0xf] %vm5378, %v5349
    %5399 = vst.msk [vmem:[#allocation3 + $0x140] sm:$0xf] %vm5378, %v5350
    %5400 = vst.msk [vmem:[#allocation3 + $0x150] sm:$0xf] %vm5378, %v5351
    %5401 = vst.msk [vmem:[#allocation3 + $0x160] sm:$0xf] %vm5378, %v5352
    %5402 = vst.msk [vmem:[#allocation3 + $0x170] sm:$0xf] %vm5378, %v5353
    %v5403 = vunpack.c.h.b16 %v5275
    %v5404 = vunpack.c.h.b16 %v5277
    %v5405 = vunpack.c.h.b16 %v5279
    %v5406 = vunpack.c.h.b16 %v5281
    %v5407 = vunpack.c.h.b16 %v5283
    %v5408 = vunpack.c.h.b16 %v5285
    %v5409 = vunpack.c.h.b16 %v5287
    %v5410 = vunpack.c.h.b16 %v5289
    %v5411 = vpack.c.b16 %v5403, %v5403
    %v5412 = vpack.c.b16 %v5404, %v5404
    %v5413 = vpack.c.b16 %v5405, %v5405
    %v5414 = vpack.c.b16 %v5406, %v5406
    %v5415 = vpack.c.b16 %v5407, %v5407
    %v5416 = vpack.c.b16 %v5408, %v5408
    %v5417 = vpack.c.b16 %v5409, %v5409
    %v5418 = vpack.c.b16 %v5410, %v5410
    %v5420 = vshrl.u32 %v5330, 16
    %v5422 = vrot.slane %v5420, 4
    %v5423 = vshll.u32 %v5330, 16
    %v5425 = vrot.slane %v5423, 5
    %v5426 = vor.u32 %v5422, %v5425
    %v5427 = vrot.slane %v5426, 4
    %v5429 = vshll.u32 %v5331, 16
    %v5431 = vrot.slane %v5429, 5
    %v5432 = vsel %vm1730, %v5427, %v5431
    %v5433 = vshrl.u32 %v5331, 16
    %v5435 = vrot.slane %v5433, 4
    %v5436 = vor.u32 %v5435, %v5431
    %v5437 = vrot.slane %v5436, 4
    %v5439 = vshll.u32 %v5332, 16
    %v5441 = vrot.slane %v5439, 5
    %v5442 = vsel %vm1730, %v5437, %v5441
    %v5443 = vshrl.u32 %v5332, 16
    %v5445 = vrot.slane %v5443, 4
    %v5446 = vor.u32 %v5445, %v5441
    %v5447 = vrot.slane %v5446, 4
    %v5449 = vshll.u32 %v5411, 16
    %v5451 = vrot.slane %v5449, 5
    %v5452 = vsel %vm1730, %v5447, %v5451
    %v5454 = vshrl.u32 %v5333, 16
    %v5456 = vrot.slane %v5454, 4
    %v5457 = vshll.u32 %v5333, 16
    %v5459 = vrot.slane %v5457, 5
    %v5460 = vor.u32 %v5456, %v5459
    %v5461 = vrot.slane %v5460, 4
    %v5463 = vshll.u32 %v5334, 16
    %v5465 = vrot.slane %v5463, 5
    %v5466 = vsel %vm1730, %v5461, %v5465
    %v5467 = vshrl.u32 %v5334, 16
    %v5469 = vrot.slane %v5467, 4
    %v5470 = vor.u32 %v5469, %v5465
    %v5471 = vrot.slane %v5470, 4
    %v5473 = vshll.u32 %v5335, 16
    %v5475 = vrot.slane %v5473, 5
    %v5476 = vsel %vm1730, %v5471, %v5475
    %v5477 = vshrl.u32 %v5335, 16
    %v5479 = vrot.slane %v5477, 4
    %v5480 = vor.u32 %v5479, %v5475
    %v5481 = vrot.slane %v5480, 4
    %v5483 = vshll.u32 %v5412, 16
    %v5485 = vrot.slane %v5483, 5
    %v5486 = vsel %vm1730, %v5481, %v5485
    %v5488 = vshrl.u32 %v5336, 16
    %v5490 = vrot.slane %v5488, 4
    %v5491 = vshll.u32 %v5336, 16
    %v5493 = vrot.slane %v5491, 5
    %v5494 = vor.u32 %v5490, %v5493
    %v5495 = vrot.slane %v5494, 4
    %v5497 = vshll.u32 %v5337, 16
    %v5499 = vrot.slane %v5497, 5
    %v5500 = vsel %vm1730, %v5495, %v5499
    %v5501 = vshrl.u32 %v5337, 16
    %v5503 = vrot.slane %v5501, 4
    %v5504 = vor.u32 %v5503, %v5499
    %v5505 = vrot.slane %v5504, 4
    %v5507 = vshll.u32 %v5338, 16
    %v5509 = vrot.slane %v5507, 5
    %v5510 = vsel %vm1730, %v5505, %v5509
    %v5511 = vshrl.u32 %v5338, 16
    %v5513 = vrot.slane %v5511, 4
    %v5514 = vor.u32 %v5513, %v5509
    %v5515 = vrot.slane %v5514, 4
    %v5517 = vshll.u32 %v5413, 16
    %v5519 = vrot.slane %v5517, 5
    %v5520 = vsel %vm1730, %v5515, %v5519
    %v5522 = vshrl.u32 %v5339, 16
    %v5524 = vrot.slane %v5522, 4
    %v5525 = vshll.u32 %v5339, 16
    %v5527 = vrot.slane %v5525, 5
    %v5528 = vor.u32 %v5524, %v5527
    %v5529 = vrot.slane %v5528, 4
    %v5531 = vshll.u32 %v5340, 16
    %v5533 = vrot.slane %v5531, 5
    %v5534 = vsel %vm1730, %v5529, %v5533
    %v5535 = vshrl.u32 %v5340, 16
    %v5537 = vrot.slane %v5535, 4
    %v5538 = vor.u32 %v5537, %v5533
    %v5539 = vrot.slane %v5538, 4
    %v5541 = vshll.u32 %v5341, 16
    %v5543 = vrot.slane %v5541, 5
    %v5544 = vsel %vm1730, %v5539, %v5543
    %v5545 = vshrl.u32 %v5341, 16
    %v5547 = vrot.slane %v5545, 4
    %v5548 = vor.u32 %v5547, %v5543
    %v5549 = vrot.slane %v5548, 4
    %v5551 = vshll.u32 %v5414, 16
    %v5553 = vrot.slane %v5551, 5
    %v5554 = vsel %vm1730, %v5549, %v5553
    %v5556 = vshrl.u32 %v5342, 16
    %v5558 = vrot.slane %v5556, 4
    %v5559 = vshll.u32 %v5342, 16
    %v5561 = vrot.slane %v5559, 5
    %v5562 = vor.u32 %v5558, %v5561
    %v5563 = vrot.slane %v5562, 4
    %v5565 = vshll.u32 %v5343, 16
    %v5567 = vrot.slane %v5565, 5
    %v5568 = vsel %vm1730, %v5563, %v5567
    %v5569 = vshrl.u32 %v5343, 16
    %v5571 = vrot.slane %v5569, 4
    %v5572 = vor.u32 %v5571, %v5567
    %v5573 = vrot.slane %v5572, 4
    %v5575 = vshll.u32 %v5344, 16
    %v5577 = vrot.slane %v5575, 5
    %v5578 = vsel %vm1730, %v5573, %v5577
    %v5579 = vshrl.u32 %v5344, 16
    %v5581 = vrot.slane %v5579, 4
    %v5582 = vor.u32 %v5581, %v5577
    %v5583 = vrot.slane %v5582, 4
    %v5585 = vshll.u32 %v5415, 16
    %v5587 = vrot.slane %v5585, 5
    %v5588 = vsel %vm1730, %v5583, %v5587
    %v5590 = vshrl.u32 %v5345, 16
    %v5592 = vrot.slane %v5590, 4
    %v5593 = vshll.u32 %v5345, 16
    %v5595 = vrot.slane %v5593, 5
    %v5596 = vor.u32 %v5592, %v5595
    %v5597 = vrot.slane %v5596, 4
    %v5599 = vshll.u32 %v5346, 16
    %v5601 = vrot.slane %v5599, 5
    %v5602 = vsel %vm1730, %v5597, %v5601
    %v5603 = vshrl.u32 %v5346, 16
    %v5605 = vrot.slane %v5603, 4
    %v5606 = vor.u32 %v5605, %v5601
    %v5607 = vrot.slane %v5606, 4
    %v5609 = vshll.u32 %v5347, 16
    %v5611 = vrot.slane %v5609, 5
    %v5612 = vsel %vm1730, %v5607, %v5611
    %v5613 = vshrl.u32 %v5347, 16
    %v5615 = vrot.slane %v5613, 4
    %v5616 = vor.u32 %v5615, %v5611
    %v5617 = vrot.slane %v5616, 4
    %v5619 = vshll.u32 %v5416, 16
    %v5621 = vrot.slane %v5619, 5
    %v5622 = vsel %vm1730, %v5617, %v5621
    %v5624 = vshrl.u32 %v5348, 16
    %v5626 = vrot.slane %v5624, 4
    %v5627 = vshll.u32 %v5348, 16
    %v5629 = vrot.slane %v5627, 5
    %v5630 = vor.u32 %v5626, %v5629
    %v5631 = vrot.slane %v5630, 4
    %v5633 = vshll.u32 %v5349, 16
    %v5635 = vrot.slane %v5633, 5
    %v5636 = vsel %vm1730, %v5631, %v5635
    %v5637 = vshrl.u32 %v5349, 16
    %v5639 = vrot.slane %v5637, 4
    %v5640 = vor.u32 %v5639, %v5635
    %v5641 = vrot.slane %v5640, 4
    %v5643 = vshll.u32 %v5350, 16
    %v5645 = vrot.slane %v5643, 5
    %v5646 = vsel %vm1730, %v5641, %v5645
    %v5647 = vshrl.u32 %v5350, 16
    %v5649 = vrot.slane %v5647, 4
    %v5650 = vor.u32 %v5649, %v5645
    %v5651 = vrot.slane %v5650, 4
    %v5653 = vshll.u32 %v5417, 16
    %v5655 = vrot.slane %v5653, 5
    %v5656 = vsel %vm1730, %v5651, %v5655
    %v5658 = vshrl.u32 %v5351, 16
    %v5660 = vrot.slane %v5658, 4
    %v5661 = vshll.u32 %v5351, 16
    %v5663 = vrot.slane %v5661, 5
    %v5664 = vor.u32 %v5660, %v5663
    %v5665 = vrot.slane %v5664, 4
    %v5667 = vshll.u32 %v5352, 16
    %v5669 = vrot.slane %v5667, 5
    %v5670 = vsel %vm1730, %v5665, %v5669
    %v5671 = vshrl.u32 %v5352, 16
    %v5673 = vrot.slane %v5671, 4
    %v5674 = vor.u32 %v5673, %v5669
    %v5675 = vrot.slane %v5674, 4
    %v5677 = vshll.u32 %v5353, 16
    %v5679 = vrot.slane %v5677, 5
    %v5680 = vsel %vm1730, %v5675, %v5679
    %v5681 = vshrl.u32 %v5353, 16
    %v5683 = vrot.slane %v5681, 4
    %v5684 = vor.u32 %v5683, %v5679
    %v5685 = vrot.slane %v5684, 4
    %v5687 = vshll.u32 %v5418, 16
    %v5689 = vrot.slane %v5687, 5
    %v5690 = vsel %vm1730, %v5685, %v5689
    %5691 = vrot.lane.b32.xlu0 %v5432, 64
    %v5692 = vpop.permute.xlu0 %5691
    %5693 = vrot.lane.b32.xlu0 %v5442, 64
    %v5694 = vpop.permute.xlu0 %5693
    %5695 = vrot.lane.b32.xlu0 %v5452, 64
    %v5696 = vpop.permute.xlu0 %5695
    %5697 = vrot.lane.b32.xlu0 %v5466, 64
    %v5698 = vpop.permute.xlu0 %5697
    %5699 = vrot.lane.b32.xlu0 %v5476, 64
    %v5700 = vpop.permute.xlu0 %5699
    %5701 = vrot.lane.b32.xlu0 %v5486, 64
    %v5702 = vpop.permute.xlu0 %5701
    %5703 = vrot.lane.b32.xlu0 %v5500, 64
    %v5704 = vpop.permute.xlu0 %5703
    %5705 = vrot.lane.b32.xlu0 %v5510, 64
    %v5706 = vpop.permute.xlu0 %5705
    %5707 = vrot.lane.b32.xlu0 %v5520, 64
    %v5708 = vpop.permute.xlu0 %5707
    %5709 = vrot.lane.b32.xlu0 %v5534, 64
    %v5710 = vpop.permute.xlu0 %5709
    %5711 = vrot.lane.b32.xlu0 %v5544, 64
    %v5712 = vpop.permute.xlu0 %5711
    %5713 = vrot.lane.b32.xlu0 %v5554, 64
    %v5714 = vpop.permute.xlu0 %5713
    %5715 = vrot.lane.b32.xlu0 %v5568, 64
    %v5716 = vpop.permute.xlu0 %5715
    %5717 = vrot.lane.b32.xlu0 %v5578, 64
    %v5718 = vpop.permute.xlu0 %5717
    %5719 = vrot.lane.b32.xlu0 %v5588, 64
    %v5720 = vpop.permute.xlu0 %5719
    %5721 = vrot.lane.b32.xlu0 %v5602, 64
    %v5722 = vpop.permute.xlu0 %5721
    %5723 = vrot.lane.b32.xlu0 %v5612, 64
    %v5724 = vpop.permute.xlu0 %5723
    %5725 = vrot.lane.b32.xlu0 %v5622, 64
    %v5726 = vpop.permute.xlu0 %5725
    %5727 = vrot.lane.b32.xlu0 %v5636, 64
    %v5728 = vpop.permute.xlu0 %5727
    %5729 = vrot.lane.b32.xlu0 %v5646, 64
    %v5730 = vpop.permute.xlu0 %5729
    %5731 = vrot.lane.b32.xlu0 %v5656, 64
    %v5732 = vpop.permute.xlu0 %5731
    %5733 = vrot.lane.b32.xlu0 %v5670, 64
    %v5734 = vpop.permute.xlu0 %5733
    %5735 = vrot.lane.b32.xlu0 %v5680, 64
    %v5736 = vpop.permute.xlu0 %5735
    %5737 = vrot.lane.b32.xlu0 %v5690, 64
    %v5738 = vpop.permute.xlu0 %5737
    %vm5763 = vcmask 1043968
    %5764 = vst.msk [vmem:[#allocation3] sm:$0xf] %vm5763, %v5692
    %5765 = vst.msk [vmem:[#allocation3 + $0x10] sm:$0xf] %vm5763, %v5694
    %5766 = vst.msk [vmem:[#allocation3 + $0x20] sm:$0xf] %vm5763, %v5696
    %5767 = vst.msk [vmem:[#allocation3 + $0x30] sm:$0xf] %vm5763, %v5698
    %5768 = vst.msk [vmem:[#allocation3 + $0x40] sm:$0xf] %vm5763, %v5700
    %5769 = vst.msk [vmem:[#allocation3 + $0x50] sm:$0xf] %vm5763, %v5702
    %5770 = vst.msk [vmem:[#allocation3 + $0x60] sm:$0xf] %vm5763, %v5704
    %5771 = vst.msk [vmem:[#allocation3 + $0x70] sm:$0xf] %vm5763, %v5706
    %5772 = vst.msk [vmem:[#allocation3 + $0x80] sm:$0xf] %vm5763, %v5708
    %5773 = vst.msk [vmem:[#allocation3 + $0x90] sm:$0xf] %vm5763, %v5710
    %5774 = vst.msk [vmem:[#allocation3 + $0xa0] sm:$0xf] %vm5763, %v5712
    %5775 = vst.msk [vmem:[#allocation3 + $0xb0] sm:$0xf] %vm5763, %v5714
    %5776 = vst.msk [vmem:[#allocation3 + $0xc0] sm:$0xf] %vm5763, %v5716
    %5777 = vst.msk [vmem:[#allocation3 + $0xd0] sm:$0xf] %vm5763, %v5718
    %5778 = vst.msk [vmem:[#allocation3 + $0xe0] sm:$0xf] %vm5763, %v5720
    %5779 = vst.msk [vmem:[#allocation3 + $0xf0] sm:$0xf] %vm5763, %v5722
    %5780 = vst.msk [vmem:[#allocation3 + $0x100] sm:$0xf] %vm5763, %v5724
    %5781 = vst.msk [vmem:[#allocation3 + $0x110] sm:$0xf] %vm5763, %v5726
    %5782 = vst.msk [vmem:[#allocation3 + $0x120] sm:$0xf] %vm5763, %v5728
    %5783 = vst.msk [vmem:[#allocation3 + $0x130] sm:$0xf] %vm5763, %v5730
    %5784 = vst.msk [vmem:[#allocation3 + $0x140] sm:$0xf] %vm5763, %v5732
    %5785 = vst.msk [vmem:[#allocation3 + $0x150] sm:$0xf] %vm5763, %v5734
    %5786 = vst.msk [vmem:[#allocation3 + $0x160] sm:$0xf] %vm5763, %v5736
    %5787 = vst.msk [vmem:[#allocation3 + $0x170] sm:$0xf] %vm5763, %v5738
    %v5788 = vrot.slane %v5330, 5
    %v5789 = vrot.slane %v5788, 4
    %v5790 = vrot.slane %v5331, 5
    %v5791 = vsel %vm2326, %v5789, %v5790
    %v5792 = vrot.slane %v5790, 4
    %v5793 = vrot.slane %v5332, 5
    %v5794 = vsel %vm2326, %v5792, %v5793
    %v5795 = vrot.slane %v5793, 4
    %v5796 = vrot.slane %v5411, 5
    %v5797 = vsel %vm2326, %v5795, %v5796
    %v5798 = vrot.slane %v5333, 5
    %v5799 = vrot.slane %v5798, 4
    %v5800 = vrot.slane %v5334, 5
    %v5801 = vsel %vm2326, %v5799, %v5800
    %v5802 = vrot.slane %v5800, 4
    %v5803 = vrot.slane %v5335, 5
    %v5804 = vsel %vm2326, %v5802, %v5803
    %v5805 = vrot.slane %v5803, 4
    %v5806 = vrot.slane %v5412, 5
    %v5807 = vsel %vm2326, %v5805, %v5806
    %v5808 = vrot.slane %v5336, 5
    %v5809 = vrot.slane %v5808, 4
    %v5810 = vrot.slane %v5337, 5
    %v5811 = vsel %vm2326, %v5809, %v5810
    %v5812 = vrot.slane %v5810, 4
    %v5813 = vrot.slane %v5338, 5
    %v5814 = vsel %vm2326, %v5812, %v5813
    %v5815 = vrot.slane %v5813, 4
    %v5816 = vrot.slane %v5413, 5
    %v5817 = vsel %vm2326, %v5815, %v5816
    %v5818 = vrot.slane %v5339, 5
    %v5819 = vrot.slane %v5818, 4
    %v5820 = vrot.slane %v5340, 5
    %v5821 = vsel %vm2326, %v5819, %v5820
    %v5822 = vrot.slane %v5820, 4
    %v5823 = vrot.slane %v5341, 5
    %v5824 = vsel %vm2326, %v5822, %v5823
    %v5825 = vrot.slane %v5823, 4
    %v5826 = vrot.slane %v5414, 5
    %v5827 = vsel %vm2326, %v5825, %v5826
    %v5828 = vrot.slane %v5342, 5
    %v5829 = vrot.slane %v5828, 4
    %v5830 = vrot.slane %v5343, 5
    %v5831 = vsel %vm2326, %v5829, %v5830
    %v5832 = vrot.slane %v5830, 4
    %v5833 = vrot.slane %v5344, 5
    %v5834 = vsel %vm2326, %v5832, %v5833
    %v5835 = vrot.slane %v5833, 4
    %v5836 = vrot.slane %v5415, 5
    %v5837 = vsel %vm2326, %v5835, %v5836
    %v5838 = vrot.slane %v5345, 5
    %v5839 = vrot.slane %v5838, 4
    %v5840 = vrot.slane %v5346, 5
    %v5841 = vsel %vm2326, %v5839, %v5840
    %v5842 = vrot.slane %v5840, 4
    %v5843 = vrot.slane %v5347, 5
    %v5844 = vsel %vm2326, %v5842, %v5843
    %v5845 = vrot.slane %v5843, 4
    %v5846 = vrot.slane %v5416, 5
    %v5847 = vsel %vm2326, %v5845, %v5846
    %v5848 = vrot.slane %v5348, 5
    %v5849 = vrot.slane %v5848, 4
    %v5850 = vrot.slane %v5349, 5
    %v5851 = vsel %vm2326, %v5849, %v5850
    %v5852 = vrot.slane %v5850, 4
    %v5853 = vrot.slane %v5350, 5
    %v5854 = vsel %vm2326, %v5852, %v5853
    %v5855 = vrot.slane %v5853, 4
    %v5856 = vrot.slane %v5417, 5
    %v5857 = vsel %vm2326, %v5855, %v5856
    %v5858 = vrot.slane %v5351, 5
    %v5859 = vrot.slane %v5858, 4
    %v5860 = vrot.slane %v5352, 5
    %v5861 = vsel %vm2326, %v5859, %v5860
    %v5862 = vrot.slane %v5860, 4
    %v5863 = vrot.slane %v5353, 5
    %v5864 = vsel %vm2326, %v5862, %v5863
    %v5865 = vrot.slane %v5863, 4
    %v5866 = vrot.slane %v5418, 5
    %v5867 = vsel %vm2326, %v5865, %v5866
    %5892 = vst.msk [vmem:[#allocation3 + $0x4] sm:$0xf] %vm5378, %v5791
    %5893 = vst.msk [vmem:[#allocation3 + $0x14] sm:$0xf] %vm5378, %v5794
    %5894 = vst.msk [vmem:[#allocation3 + $0x24] sm:$0xf] %vm5378, %v5797
    %5895 = vst.msk [vmem:[#allocation3 + $0x34] sm:$0xf] %vm5378, %v5801
    %5896 = vst.msk [vmem:[#allocation3 + $0x44] sm:$0xf] %vm5378, %v5804
    %5897 = vst.msk [vmem:[#allocation3 + $0x54] sm:$0xf] %vm5378, %v5807
    %5898 = vst.msk [vmem:[#allocation3 + $0x64] sm:$0xf] %vm5378, %v5811
    %5899 = vst.msk [vmem:[#allocation3 + $0x74] sm:$0xf] %vm5378, %v5814
    %5900 = vst.msk [vmem:[#allocation3 + $0x84] sm:$0xf] %vm5378, %v5817
    %5901 = vst.msk [vmem:[#allocation3 + $0x94] sm:$0xf] %vm5378, %v5821
    %5902 = vst.msk [vmem:[#allocation3 + $0xa4] sm:$0xf] %vm5378, %v5824
    %5903 = vst.msk [vmem:[#allocation3 + $0xb4] sm:$0xf] %vm5378, %v5827
    %5904 = vst.msk [vmem:[#allocation3 + $0xc4] sm:$0xf] %vm5378, %v5831
    %5905 = vst.msk [vmem:[#allocation3 + $0xd4] sm:$0xf] %vm5378, %v5834
    %5906 = vst.msk [vmem:[#allocation3 + $0xe4] sm:$0xf] %vm5378, %v5837
    %5907 = vst.msk [vmem:[#allocation3 + $0xf4] sm:$0xf] %vm5378, %v5841
    %5908 = vst.msk [vmem:[#allocation3 + $0x104] sm:$0xf] %vm5378, %v5844
    %5909 = vst.msk [vmem:[#allocation3 + $0x114] sm:$0xf] %vm5378, %v5847
    %5910 = vst.msk [vmem:[#allocation3 + $0x124] sm:$0xf] %vm5378, %v5851
    %5911 = vst.msk [vmem:[#allocation3 + $0x134] sm:$0xf] %vm5378, %v5854
    %5912 = vst.msk [vmem:[#allocation3 + $0x144] sm:$0xf] %vm5378, %v5857
    %5913 = vst.msk [vmem:[#allocation3 + $0x154] sm:$0xf] %vm5378, %v5861
    %5914 = vst.msk [vmem:[#allocation3 + $0x164] sm:$0xf] %vm5378, %v5864
    %5915 = vst.msk [vmem:[#allocation3 + $0x174] sm:$0xf] %vm5378, %v5867
    %v5916 = vrot.slane %v5420, 5
    %v5917 = vrot.slane %v5423, 6
    %v5918 = vor.u32 %v5916, %v5917
    %v5919 = vrot.slane %v5918, 4
    %v5920 = vrot.slane %v5433, 5
    %v5921 = vrot.slane %v5429, 6
    %v5922 = vor.u32 %v5920, %v5921
    %v5923 = vsel %vm2618, %v5919, %v5922
    %v5924 = vrot.slane %v5922, 4
    %v5925 = vrot.slane %v5443, 5
    %v5926 = vrot.slane %v5439, 6
    %v5927 = vor.u32 %v5925, %v5926
    %v5928 = vsel %vm2618, %v5924, %v5927
    %v5929 = vrot.slane %v5927, 4
    %v5930 = vshrl.u32 %v5411, 16
    %v5932 = vrot.slane %v5930, 5
    %v5933 = vrot.slane %v5449, 6
    %v5934 = vor.u32 %v5932, %v5933
    %v5935 = vsel %vm2618, %v5929, %v5934
    %v5936 = vrot.slane %v5454, 5
    %v5937 = vrot.slane %v5457, 6
    %v5938 = vor.u32 %v5936, %v5937
    %v5939 = vrot.slane %v5938, 4
    %v5940 = vrot.slane %v5467, 5
    %v5941 = vrot.slane %v5463, 6
    %v5942 = vor.u32 %v5940, %v5941
    %v5943 = vsel %vm2618, %v5939, %v5942
    %v5944 = vrot.slane %v5942, 4
    %v5945 = vrot.slane %v5477, 5
    %v5946 = vrot.slane %v5473, 6
    %v5947 = vor.u32 %v5945, %v5946
    %v5948 = vsel %vm2618, %v5944, %v5947
    %v5949 = vrot.slane %v5947, 4
    %v5950 = vshrl.u32 %v5412, 16
    %v5952 = vrot.slane %v5950, 5
    %v5953 = vrot.slane %v5483, 6
    %v5954 = vor.u32 %v5952, %v5953
    %v5955 = vsel %vm2618, %v5949, %v5954
    %v5956 = vrot.slane %v5488, 5
    %v5957 = vrot.slane %v5491, 6
    %v5958 = vor.u32 %v5956, %v5957
    %v5959 = vrot.slane %v5958, 4
    %v5960 = vrot.slane %v5501, 5
    %v5961 = vrot.slane %v5497, 6
    %v5962 = vor.u32 %v5960, %v5961
    %v5963 = vsel %vm2618, %v5959, %v5962
    %v5964 = vrot.slane %v5962, 4
    %v5965 = vrot.slane %v5511, 5
    %v5966 = vrot.slane %v5507, 6
    %v5967 = vor.u32 %v5965, %v5966
    %v5968 = vsel %vm2618, %v5964, %v5967
    %v5969 = vrot.slane %v5967, 4
    %v5970 = vshrl.u32 %v5413, 16
    %v5972 = vrot.slane %v5970, 5
    %v5973 = vrot.slane %v5517, 6
    %v5974 = vor.u32 %v5972, %v5973
    %v5975 = vsel %vm2618, %v5969, %v5974
    %v5976 = vrot.slane %v5522, 5
    %v5977 = vrot.slane %v5525, 6
    %v5978 = vor.u32 %v5976, %v5977
    %v5979 = vrot.slane %v5978, 4
    %v5980 = vrot.slane %v5535, 5
    %v5981 = vrot.slane %v5531, 6
    %v5982 = vor.u32 %v5980, %v5981
    %v5983 = vsel %vm2618, %v5979, %v5982
    %v5984 = vrot.slane %v5982, 4
    %v5985 = vrot.slane %v5545, 5
    %v5986 = vrot.slane %v5541, 6
    %v5987 = vor.u32 %v5985, %v5986
    %v5988 = vsel %vm2618, %v5984, %v5987
    %v5989 = vrot.slane %v5987, 4
    %v5990 = vshrl.u32 %v5414, 16
    %v5992 = vrot.slane %v5990, 5
    %v5993 = vrot.slane %v5551, 6
    %v5994 = vor.u32 %v5992, %v5993
    %v5995 = vsel %vm2618, %v5989, %v5994
    %v5996 = vrot.slane %v5556, 5
    %v5997 = vrot.slane %v5559, 6
    %v5998 = vor.u32 %v5996, %v5997
    %v5999 = vrot.slane %v5998, 4
    %v6000 = vrot.slane %v5569, 5
    %v6001 = vrot.slane %v5565, 6
    %v6002 = vor.u32 %v6000, %v6001
    %v6003 = vsel %vm2618, %v5999, %v6002
    %v6004 = vrot.slane %v6002, 4
    %v6005 = vrot.slane %v5579, 5
    %v6006 = vrot.slane %v5575, 6
    %v6007 = vor.u32 %v6005, %v6006
    %v6008 = vsel %vm2618, %v6004, %v6007
    %v6009 = vrot.slane %v6007, 4
    %v6010 = vshrl.u32 %v5415, 16
    %v6012 = vrot.slane %v6010, 5
    %v6013 = vrot.slane %v5585, 6
    %v6014 = vor.u32 %v6012, %v6013
    %v6015 = vsel %vm2618, %v6009, %v6014
    %v6016 = vrot.slane %v5590, 5
    %v6017 = vrot.slane %v5593, 6
    %v6018 = vor.u32 %v6016, %v6017
    %v6019 = vrot.slane %v6018, 4
    %v6020 = vrot.slane %v5603, 5
    %v6021 = vrot.slane %v5599, 6
    %v6022 = vor.u32 %v6020, %v6021
    %v6023 = vsel %vm2618, %v6019, %v6022
    %v6024 = vrot.slane %v6022, 4
    %v6025 = vrot.slane %v5613, 5
    %v6026 = vrot.slane %v5609, 6
    %v6027 = vor.u32 %v6025, %v6026
    %v6028 = vsel %vm2618, %v6024, %v6027
    %v6029 = vrot.slane %v6027, 4
    %v6030 = vshrl.u32 %v5416, 16
    %v6032 = vrot.slane %v6030, 5
    %v6033 = vrot.slane %v5619, 6
    %v6034 = vor.u32 %v6032, %v6033
    %v6035 = vsel %vm2618, %v6029, %v6034
    %v6036 = vrot.slane %v5624, 5
    %v6037 = vrot.slane %v5627, 6
    %v6038 = vor.u32 %v6036, %v6037
    %v6039 = vrot.slane %v6038, 4
    %v6040 = vrot.slane %v5637, 5
    %v6041 = vrot.slane %v5633, 6
    %v6042 = vor.u32 %v6040, %v6041
    %v6043 = vsel %vm2618, %v6039, %v6042
    %v6044 = vrot.slane %v6042, 4
    %v6045 = vrot.slane %v5647, 5
    %v6046 = vrot.slane %v5643, 6
    %v6047 = vor.u32 %v6045, %v6046
    %v6048 = vsel %vm2618, %v6044, %v6047
    %v6049 = vrot.slane %v6047, 4
    %v6050 = vshrl.u32 %v5417, 16
    %v6052 = vrot.slane %v6050, 5
    %v6053 = vrot.slane %v5653, 6
    %v6054 = vor.u32 %v6052, %v6053
    %v6055 = vsel %vm2618, %v6049, %v6054
    %v6056 = vrot.slane %v5658, 5
    %v6057 = vrot.slane %v5661, 6
    %v6058 = vor.u32 %v6056, %v6057
    %v6059 = vrot.slane %v6058, 4
    %v6060 = vrot.slane %v5671, 5
    %v6061 = vrot.slane %v5667, 6
    %v6062 = vor.u32 %v6060, %v6061
    %v6063 = vsel %vm2618, %v6059, %v6062
    %v6064 = vrot.slane %v6062, 4
    %v6065 = vrot.slane %v5681, 5
    %v6066 = vrot.slane %v5677, 6
    %v6067 = vor.u32 %v6065, %v6066
    %v6068 = vsel %vm2618, %v6064, %v6067
    %v6069 = vrot.slane %v6067, 4
    %v6070 = vshrl.u32 %v5418, 16
    %v6072 = vrot.slane %v6070, 5
    %v6073 = vrot.slane %v5687, 6
    %v6074 = vor.u32 %v6072, %v6073
    %v6075 = vsel %vm2618, %v6069, %v6074
    %6076 = vrot.lane.b32.xlu0 %v5923, 64
    %v6077 = vpop.permute.xlu0 %6076
    %6078 = vrot.lane.b32.xlu0 %v5928, 64
    %v6079 = vpop.permute.xlu0 %6078
    %6080 = vrot.lane.b32.xlu0 %v5935, 64
    %v6081 = vpop.permute.xlu0 %6080
    %6082 = vrot.lane.b32.xlu0 %v5943, 64
    %v6083 = vpop.permute.xlu0 %6082
    %6084 = vrot.lane.b32.xlu0 %v5948, 64
    %v6085 = vpop.permute.xlu0 %6084
    %6086 = vrot.lane.b32.xlu0 %v5955, 64
    %v6087 = vpop.permute.xlu0 %6086
    %6088 = vrot.lane.b32.xlu0 %v5963, 64
    %v6089 = vpop.permute.xlu0 %6088
    %6090 = vrot.lane.b32.xlu0 %v5968, 64
    %v6091 = vpop.permute.xlu0 %6090
    %6092 = vrot.lane.b32.xlu0 %v5975, 64
    %v6093 = vpop.permute.xlu0 %6092
    %6094 = vrot.lane.b32.xlu0 %v5983, 64
    %v6095 = vpop.permute.xlu0 %6094
    %6096 = vrot.lane.b32.xlu0 %v5988, 64
    %v6097 = vpop.permute.xlu0 %6096
    %6098 = vrot.lane.b32.xlu0 %v5995, 64
    %v6099 = vpop.permute.xlu0 %6098
    %6100 = vrot.lane.b32.xlu0 %v6003, 64
    %v6101 = vpop.permute.xlu0 %6100
    %6102 = vrot.lane.b32.xlu0 %v6008, 64
    %v6103 = vpop.permute.xlu0 %6102
    %6104 = vrot.lane.b32.xlu0 %v6015, 64
    %v6105 = vpop.permute.xlu0 %6104
    %6106 = vrot.lane.b32.xlu0 %v6023, 64
    %v6107 = vpop.permute.xlu0 %6106
    %6108 = vrot.lane.b32.xlu0 %v6028, 64
    %v6109 = vpop.permute.xlu0 %6108
    %6110 = vrot.lane.b32.xlu0 %v6035, 64
    %v6111 = vpop.permute.xlu0 %6110
    %6112 = vrot.lane.b32.xlu0 %v6043, 64
    %v6113 = vpop.permute.xlu0 %6112
    %6114 = vrot.lane.b32.xlu0 %v6048, 64
    %v6115 = vpop.permute.xlu0 %6114
    %6116 = vrot.lane.b32.xlu0 %v6055, 64
    %v6117 = vpop.permute.xlu0 %6116
    %6118 = vrot.lane.b32.xlu0 %v6063, 64
    %v6119 = vpop.permute.xlu0 %6118
    %6120 = vrot.lane.b32.xlu0 %v6068, 64
    %v6121 = vpop.permute.xlu0 %6120
    %6122 = vrot.lane.b32.xlu0 %v6075, 64
    %v6123 = vpop.permute.xlu0 %6122
    %6148 = vst.msk [vmem:[#allocation3 + $0x4] sm:$0xf] %vm5763, %v6077
    %6149 = vst.msk [vmem:[#allocation3 + $0x14] sm:$0xf] %vm5763, %v6079
    %6150 = vst.msk [vmem:[#allocation3 + $0x24] sm:$0xf] %vm5763, %v6081
    %6151 = vst.msk [vmem:[#allocation3 + $0x34] sm:$0xf] %vm5763, %v6083
    %6152 = vst.msk [vmem:[#allocation3 + $0x44] sm:$0xf] %vm5763, %v6085
    %6153 = vst.msk [vmem:[#allocation3 + $0x54] sm:$0xf] %vm5763, %v6087
    %6154 = vst.msk [vmem:[#allocation3 + $0x64] sm:$0xf] %vm5763, %v6089
    %6155 = vst.msk [vmem:[#allocation3 + $0x74] sm:$0xf] %vm5763, %v6091
    %6156 = vst.msk [vmem:[#allocation3 + $0x84] sm:$0xf] %vm5763, %v6093
    %6157 = vst.msk [vmem:[#allocation3 + $0x94] sm:$0xf] %vm5763, %v6095
    %6158 = vst.msk [vmem:[#allocation3 + $0xa4] sm:$0xf] %vm5763, %v6097
    %6159 = vst.msk [vmem:[#allocation3 + $0xb4] sm:$0xf] %vm5763, %v6099
    %6160 = vst.msk [vmem:[#allocation3 + $0xc4] sm:$0xf] %vm5763, %v6101
    %6161 = vst.msk [vmem:[#allocation3 + $0xd4] sm:$0xf] %vm5763, %v6103
    %6162 = vst.msk [vmem:[#allocation3 + $0xe4] sm:$0xf] %vm5763, %v6105
    %6163 = vst.msk [vmem:[#allocation3 + $0xf4] sm:$0xf] %vm5763, %v6107
    %6164 = vst.msk [vmem:[#allocation3 + $0x104] sm:$0xf] %vm5763, %v6109
    %6165 = vst.msk [vmem:[#allocation3 + $0x114] sm:$0xf] %vm5763, %v6111
    %6166 = vst.msk [vmem:[#allocation3 + $0x124] sm:$0xf] %vm5763, %v6113
    %6167 = vst.msk [vmem:[#allocation3 + $0x134] sm:$0xf] %vm5763, %v6115
    %6168 = vst.msk [vmem:[#allocation3 + $0x144] sm:$0xf] %vm5763, %v6117
    %6169 = vst.msk [vmem:[#allocation3 + $0x154] sm:$0xf] %vm5763, %v6119
    %6170 = vst.msk [vmem:[#allocation3 + $0x164] sm:$0xf] %vm5763, %v6121
    %6171 = vst.msk [vmem:[#allocation3 + $0x174] sm:$0xf] %vm5763, %v6123
    %v6172 = vrot.slane %v5330, 6
    %v6173 = vrot.slane %v6172, 4
    %v6174 = vrot.slane %v5331, 6
    %v6175 = vsel %vm3022, %v6173, %v6174
    %v6176 = vrot.slane %v6174, 4
    %v6177 = vrot.slane %v5332, 6
    %v6178 = vsel %vm3022, %v6176, %v6177
    %v6179 = vrot.slane %v6177, 4
    %v6180 = vrot.slane %v5411, 6
    %v6181 = vsel %vm3022, %v6179, %v6180
    %v6182 = vrot.slane %v5333, 6
    %v6183 = vrot.slane %v6182, 4
    %v6184 = vrot.slane %v5334, 6
    %v6185 = vsel %vm3022, %v6183, %v6184
    %v6186 = vrot.slane %v6184, 4
    %v6187 = vrot.slane %v5335, 6
    %v6188 = vsel %vm3022, %v6186, %v6187
    %v6189 = vrot.slane %v6187, 4
    %v6190 = vrot.slane %v5412, 6
    %v6191 = vsel %vm3022, %v6189, %v6190
    %v6192 = vrot.slane %v5336, 6
    %v6193 = vrot.slane %v6192, 4
    %v6194 = vrot.slane %v5337, 6
    %v6195 = vsel %vm3022, %v6193, %v6194
    %v6196 = vrot.slane %v6194, 4
    %v6197 = vrot.slane %v5338, 6
    %v6198 = vsel %vm3022, %v6196, %v6197
    %v6199 = vrot.slane %v6197, 4
    %v6200 = vrot.slane %v5413, 6
    %v6201 = vsel %vm3022, %v6199, %v6200
    %v6202 = vrot.slane %v5339, 6
    %v6203 = vrot.slane %v6202, 4
    %v6204 = vrot.slane %v5340, 6
    %v6205 = vsel %vm3022, %v6203, %v6204
    %v6206 = vrot.slane %v6204, 4
    %v6207 = vrot.slane %v5341, 6
    %v6208 = vsel %vm3022, %v6206, %v6207
    %v6209 = vrot.slane %v6207, 4
    %v6210 = vrot.slane %v5414, 6
    %v6211 = vsel %vm3022, %v6209, %v6210
    %v6212 = vrot.slane %v5342, 6
    %v6213 = vrot.slane %v6212, 4
    %v6214 = vrot.slane %v5343, 6
    %v6215 = vsel %vm3022, %v6213, %v6214
    %v6216 = vrot.slane %v6214, 4
    %v6217 = vrot.slane %v5344, 6
    %v6218 = vsel %vm3022, %v6216, %v6217
    %v6219 = vrot.slane %v6217, 4
    %v6220 = vrot.slane %v5415, 6
    %v6221 = vsel %vm3022, %v6219, %v6220
    %v6222 = vrot.slane %v5345, 6
    %v6223 = vrot.slane %v6222, 4
    %v6224 = vrot.slane %v5346, 6
    %v6225 = vsel %vm3022, %v6223, %v6224
    %v6226 = vrot.slane %v6224, 4
    %v6227 = vrot.slane %v5347, 6
    %v6228 = vsel %vm3022, %v6226, %v6227
    %v6229 = vrot.slane %v6227, 4
    %v6230 = vrot.slane %v5416, 6
    %v6231 = vsel %vm3022, %v6229, %v6230
    %v6232 = vrot.slane %v5348, 6
    %v6233 = vrot.slane %v6232, 4
    %v6234 = vrot.slane %v5349, 6
    %v6235 = vsel %vm3022, %v6233, %v6234
    %v6236 = vrot.slane %v6234, 4
    %v6237 = vrot.slane %v5350, 6
    %v6238 = vsel %vm3022, %v6236, %v6237
    %v6239 = vrot.slane %v6237, 4
    %v6240 = vrot.slane %v5417, 6
    %v6241 = vsel %vm3022, %v6239, %v6240
    %v6242 = vrot.slane %v5351, 6
    %v6243 = vrot.slane %v6242, 4
    %v6244 = vrot.slane %v5352, 6
    %v6245 = vsel %vm3022, %v6243, %v6244
    %v6246 = vrot.slane %v6244, 4
    %v6247 = vrot.slane %v5353, 6
    %v6248 = vsel %vm3022, %v6246, %v6247
    %v6249 = vrot.slane %v6247, 4
    %v6250 = vrot.slane %v5418, 6
    %v6251 = vsel %vm3022, %v6249, %v6250
    %6276 = vst.msk [vmem:[#allocation3 + $0x8] sm:$0xf] %vm5378, %v6175
    %6277 = vst.msk [vmem:[#allocation3 + $0x18] sm:$0xf] %vm5378, %v6178
    %6278 = vst.msk [vmem:[#allocation3 + $0x28] sm:$0xf] %vm5378, %v6181
    %6279 = vst.msk [vmem:[#allocation3 + $0x38] sm:$0xf] %vm5378, %v6185
    %6280 = vst.msk [vmem:[#allocation3 + $0x48] sm:$0xf] %vm5378, %v6188
    %6281 = vst.msk [vmem:[#allocation3 + $0x58] sm:$0xf] %vm5378, %v6191
    %6282 = vst.msk [vmem:[#allocation3 + $0x68] sm:$0xf] %vm5378, %v6195
    %6283 = vst.msk [vmem:[#allocation3 + $0x78] sm:$0xf] %vm5378, %v6198
    %6284 = vst.msk [vmem:[#allocation3 + $0x88] sm:$0xf] %vm5378, %v6201
    %6285 = vst.msk [vmem:[#allocation3 + $0x98] sm:$0xf] %vm5378, %v6205
    %6286 = vst.msk [vmem:[#allocation3 + $0xa8] sm:$0xf] %vm5378, %v6208
    %6287 = vst.msk [vmem:[#allocation3 + $0xb8] sm:$0xf] %vm5378, %v6211
    %6288 = vst.msk [vmem:[#allocation3 + $0xc8] sm:$0xf] %vm5378, %v6215
    %6289 = vst.msk [vmem:[#allocation3 + $0xd8] sm:$0xf] %vm5378, %v6218
    %6290 = vst.msk [vmem:[#allocation3 + $0xe8] sm:$0xf] %vm5378, %v6221
    %6291 = vst.msk [vmem:[#allocation3 + $0xf8] sm:$0xf] %vm5378, %v6225
    %6292 = vst.msk [vmem:[#allocation3 + $0x108] sm:$0xf] %vm5378, %v6228
    %6293 = vst.msk [vmem:[#allocation3 + $0x118] sm:$0xf] %vm5378, %v6231
    %6294 = vst.msk [vmem:[#allocation3 + $0x128] sm:$0xf] %vm5378, %v6235
    %6295 = vst.msk [vmem:[#allocation3 + $0x138] sm:$0xf] %vm5378, %v6238
    %6296 = vst.msk [vmem:[#allocation3 + $0x148] sm:$0xf] %vm5378, %v6241
    %6297 = vst.msk [vmem:[#allocation3 + $0x158] sm:$0xf] %vm5378, %v6245
    %6298 = vst.msk [vmem:[#allocation3 + $0x168] sm:$0xf] %vm5378, %v6248
    %6299 = vst.msk [vmem:[#allocation3 + $0x178] sm:$0xf] %vm5378, %v6251
    %v6300 = vrot.slane %v5420, 6
    %v6301 = vrot.slane %v5423, 7
    %v6302 = vor.u32 %v6300, %v6301
    %v6303 = vrot.slane %v6302, 4
    %v6304 = vrot.slane %v5433, 6
    %v6305 = vrot.slane %v5429, 7
    %v6306 = vor.u32 %v6304, %v6305
    %v6307 = vsel %vm3233, %v6303, %v6306
    %v6308 = vrot.slane %v6306, 4
    %v6309 = vrot.slane %v5443, 6
    %v6310 = vrot.slane %v5439, 7
    %v6311 = vor.u32 %v6309, %v6310
    %v6312 = vsel %vm3233, %v6308, %v6311
    %v6313 = vrot.slane %v6311, 4
    %v6314 = vrot.slane %v5930, 6
    %v6315 = vrot.slane %v5449, 7
    %v6316 = vor.u32 %v6314, %v6315
    %v6317 = vsel %vm3233, %v6313, %v6316
    %v6318 = vrot.slane %v5454, 6
    %v6319 = vrot.slane %v5457, 7
    %v6320 = vor.u32 %v6318, %v6319
    %v6321 = vrot.slane %v6320, 4
    %v6322 = vrot.slane %v5467, 6
    %v6323 = vrot.slane %v5463, 7
    %v6324 = vor.u32 %v6322, %v6323
    %v6325 = vsel %vm3233, %v6321, %v6324
    %v6326 = vrot.slane %v6324, 4
    %v6327 = vrot.slane %v5477, 6
    %v6328 = vrot.slane %v5473, 7
    %v6329 = vor.u32 %v6327, %v6328
    %v6330 = vsel %vm3233, %v6326, %v6329
    %v6331 = vrot.slane %v6329, 4
    %v6332 = vrot.slane %v5950, 6
    %v6333 = vrot.slane %v5483, 7
    %v6334 = vor.u32 %v6332, %v6333
    %v6335 = vsel %vm3233, %v6331, %v6334
    %v6336 = vrot.slane %v5488, 6
    %v6337 = vrot.slane %v5491, 7
    %v6338 = vor.u32 %v6336, %v6337
    %v6339 = vrot.slane %v6338, 4
    %v6340 = vrot.slane %v5501, 6
    %v6341 = vrot.slane %v5497, 7
    %v6342 = vor.u32 %v6340, %v6341
    %v6343 = vsel %vm3233, %v6339, %v6342
    %v6344 = vrot.slane %v6342, 4
    %v6345 = vrot.slane %v5511, 6
    %v6346 = vrot.slane %v5507, 7
    %v6347 = vor.u32 %v6345, %v6346
    %v6348 = vsel %vm3233, %v6344, %v6347
    %v6349 = vrot.slane %v6347, 4
    %v6350 = vrot.slane %v5970, 6
    %v6351 = vrot.slane %v5517, 7
    %v6352 = vor.u32 %v6350, %v6351
    %v6353 = vsel %vm3233, %v6349, %v6352
    %v6354 = vrot.slane %v5522, 6
    %v6355 = vrot.slane %v5525, 7
    %v6356 = vor.u32 %v6354, %v6355
    %v6357 = vrot.slane %v6356, 4
    %v6358 = vrot.slane %v5535, 6
    %v6359 = vrot.slane %v5531, 7
    %v6360 = vor.u32 %v6358, %v6359
    %v6361 = vsel %vm3233, %v6357, %v6360
    %v6362 = vrot.slane %v6360, 4
    %v6363 = vrot.slane %v5545, 6
    %v6364 = vrot.slane %v5541, 7
    %v6365 = vor.u32 %v6363, %v6364
    %v6366 = vsel %vm3233, %v6362, %v6365
    %v6367 = vrot.slane %v6365, 4
    %v6368 = vrot.slane %v5990, 6
    %v6369 = vrot.slane %v5551, 7
    %v6370 = vor.u32 %v6368, %v6369
    %v6371 = vsel %vm3233, %v6367, %v6370
    %v6372 = vrot.slane %v5556, 6
    %v6373 = vrot.slane %v5559, 7
    %v6374 = vor.u32 %v6372, %v6373
    %v6375 = vrot.slane %v6374, 4
    %v6376 = vrot.slane %v5569, 6
    %v6377 = vrot.slane %v5565, 7
    %v6378 = vor.u32 %v6376, %v6377
    %v6379 = vsel %vm3233, %v6375, %v6378
    %v6380 = vrot.slane %v6378, 4
    %v6381 = vrot.slane %v5579, 6
    %v6382 = vrot.slane %v5575, 7
    %v6383 = vor.u32 %v6381, %v6382
    %v6384 = vsel %vm3233, %v6380, %v6383
    %v6385 = vrot.slane %v6383, 4
    %v6386 = vrot.slane %v6010, 6
    %v6387 = vrot.slane %v5585, 7
    %v6388 = vor.u32 %v6386, %v6387
    %v6389 = vsel %vm3233, %v6385, %v6388
    %v6390 = vrot.slane %v5590, 6
    %v6391 = vrot.slane %v5593, 7
    %v6392 = vor.u32 %v6390, %v6391
    %v6393 = vrot.slane %v6392, 4
    %v6394 = vrot.slane %v5603, 6
    %v6395 = vrot.slane %v5599, 7
    %v6396 = vor.u32 %v6394, %v6395
    %v6397 = vsel %vm3233, %v6393, %v6396
    %v6398 = vrot.slane %v6396, 4
    %v6399 = vrot.slane %v5613, 6
    %v6400 = vrot.slane %v5609, 7
    %v6401 = vor.u32 %v6399, %v6400
    %v6402 = vsel %vm3233, %v6398, %v6401
    %v6403 = vrot.slane %v6401, 4
    %v6404 = vrot.slane %v6030, 6
    %v6405 = vrot.slane %v5619, 7
    %v6406 = vor.u32 %v6404, %v6405
    %v6407 = vsel %vm3233, %v6403, %v6406
    %v6408 = vrot.slane %v5624, 6
    %v6409 = vrot.slane %v5627, 7
    %v6410 = vor.u32 %v6408, %v6409
    %v6411 = vrot.slane %v6410, 4
    %v6412 = vrot.slane %v5637, 6
    %v6413 = vrot.slane %v5633, 7
    %v6414 = vor.u32 %v6412, %v6413
    %v6415 = vsel %vm3233, %v6411, %v6414
    %v6416 = vrot.slane %v6414, 4
    %v6417 = vrot.slane %v5647, 6
    %v6418 = vrot.slane %v5643, 7
    %v6419 = vor.u32 %v6417, %v6418
    %v6420 = vsel %vm3233, %v6416, %v6419
    %v6421 = vrot.slane %v6419, 4
    %v6422 = vrot.slane %v6050, 6
    %v6423 = vrot.slane %v5653, 7
    %v6424 = vor.u32 %v6422, %v6423
    %v6425 = vsel %vm3233, %v6421, %v6424
    %v6426 = vrot.slane %v5658, 6
    %v6427 = vrot.slane %v5661, 7
    %v6428 = vor.u32 %v6426, %v6427
    %v6429 = vrot.slane %v6428, 4
    %v6430 = vrot.slane %v5671, 6
    %v6431 = vrot.slane %v5667, 7
    %v6432 = vor.u32 %v6430, %v6431
    %v6433 = vsel %vm3233, %v6429, %v6432
    %v6434 = vrot.slane %v6432, 4
    %v6435 = vrot.slane %v5681, 6
    %v6436 = vrot.slane %v5677, 7
    %v6437 = vor.u32 %v6435, %v6436
    %v6438 = vsel %vm3233, %v6434, %v6437
    %v6439 = vrot.slane %v6437, 4
    %v6440 = vrot.slane %v6070, 6
    %v6441 = vrot.slane %v5687, 7
    %v6442 = vor.u32 %v6440, %v6441
    %v6443 = vsel %vm3233, %v6439, %v6442
    %6444 = vrot.lane.b32.xlu0 %v6307, 64
    %v6445 = vpop.permute.xlu0 %6444
    %6446 = vrot.lane.b32.xlu0 %v6312, 64
    %v6447 = vpop.permute.xlu0 %6446
    %6448 = vrot.lane.b32.xlu0 %v6317, 64
    %v6449 = vpop.permute.xlu0 %6448
    %6450 = vrot.lane.b32.xlu0 %v6325, 64
    %v6451 = vpop.permute.xlu0 %6450
    %6452 = vrot.lane.b32.xlu0 %v6330, 64
    %v6453 = vpop.permute.xlu0 %6452
    %6454 = vrot.lane.b32.xlu0 %v6335, 64
    %v6455 = vpop.permute.xlu0 %6454
    %6456 = vrot.lane.b32.xlu0 %v6343, 64
    %v6457 = vpop.permute.xlu0 %6456
    %6458 = vrot.lane.b32.xlu0 %v6348, 64
    %v6459 = vpop.permute.xlu0 %6458
    %6460 = vrot.lane.b32.xlu0 %v6353, 64
    %v6461 = vpop.permute.xlu0 %6460
    %6462 = vrot.lane.b32.xlu0 %v6361, 64
    %v6463 = vpop.permute.xlu0 %6462
    %6464 = vrot.lane.b32.xlu0 %v6366, 64
    %v6465 = vpop.permute.xlu0 %6464
    %6466 = vrot.lane.b32.xlu0 %v6371, 64
    %v6467 = vpop.permute.xlu0 %6466
    %6468 = vrot.lane.b32.xlu0 %v6379, 64
    %v6469 = vpop.permute.xlu0 %6468
    %6470 = vrot.lane.b32.xlu0 %v6384, 64
    %v6471 = vpop.permute.xlu0 %6470
    %6472 = vrot.lane.b32.xlu0 %v6389, 64
    %v6473 = vpop.permute.xlu0 %6472
    %6474 = vrot.lane.b32.xlu0 %v6397, 64
    %v6475 = vpop.permute.xlu0 %6474
    %6476 = vrot.lane.b32.xlu0 %v6402, 64
    %v6477 = vpop.permute.xlu0 %6476
    %6478 = vrot.lane.b32.xlu0 %v6407, 64
    %v6479 = vpop.permute.xlu0 %6478
    %6480 = vrot.lane.b32.xlu0 %v6415, 64
    %v6481 = vpop.permute.xlu0 %6480
    %6482 = vrot.lane.b32.xlu0 %v6420, 64
    %v6483 = vpop.permute.xlu0 %6482
    %6484 = vrot.lane.b32.xlu0 %v6425, 64
    %v6485 = vpop.permute.xlu0 %6484
    %6486 = vrot.lane.b32.xlu0 %v6433, 64
    %v6487 = vpop.permute.xlu0 %6486
    %6488 = vrot.lane.b32.xlu0 %v6438, 64
    %v6489 = vpop.permute.xlu0 %6488
    %6490 = vrot.lane.b32.xlu0 %v6443, 64
    %v6491 = vpop.permute.xlu0 %6490
    %6516 = vst.msk [vmem:[#allocation3 + $0x8] sm:$0xf] %vm5763, %v6445
    %6517 = vst.msk [vmem:[#allocation3 + $0x18] sm:$0xf] %vm5763, %v6447
    %6518 = vst.msk [vmem:[#allocation3 + $0x28] sm:$0xf] %vm5763, %v6449
    %6519 = vst.msk [vmem:[#allocation3 + $0x38] sm:$0xf] %vm5763, %v6451
    %6520 = vst.msk [vmem:[#allocation3 + $0x48] sm:$0xf] %vm5763, %v6453
    %6521 = vst.msk [vmem:[#allocation3 + $0x58] sm:$0xf] %vm5763, %v6455
    %6522 = vst.msk [vmem:[#allocation3 + $0x68] sm:$0xf] %vm5763, %v6457
    %6523 = vst.msk [vmem:[#allocation3 + $0x78] sm:$0xf] %vm5763, %v6459
    %6524 = vst.msk [vmem:[#allocation3 + $0x88] sm:$0xf] %vm5763, %v6461
    %6525 = vst.msk [vmem:[#allocation3 + $0x98] sm:$0xf] %vm5763, %v6463
    %6526 = vst.msk [vmem:[#allocation3 + $0xa8] sm:$0xf] %vm5763, %v6465
    %6527 = vst.msk [vmem:[#allocation3 + $0xb8] sm:$0xf] %vm5763, %v6467
    %6528 = vst.msk [vmem:[#allocation3 + $0xc8] sm:$0xf] %vm5763, %v6469
    %6529 = vst.msk [vmem:[#allocation3 + $0xd8] sm:$0xf] %vm5763, %v6471
    %6530 = vst.msk [vmem:[#allocation3 + $0xe8] sm:$0xf] %vm5763, %v6473
    %6531 = vst.msk [vmem:[#allocation3 + $0xf8] sm:$0xf] %vm5763, %v6475
    %6532 = vst.msk [vmem:[#allocation3 + $0x108] sm:$0xf] %vm5763, %v6477
    %6533 = vst.msk [vmem:[#allocation3 + $0x118] sm:$0xf] %vm5763, %v6479
    %6534 = vst.msk [vmem:[#allocation3 + $0x128] sm:$0xf] %vm5763, %v6481
    %6535 = vst.msk [vmem:[#allocation3 + $0x138] sm:$0xf] %vm5763, %v6483
    %6536 = vst.msk [vmem:[#allocation3 + $0x148] sm:$0xf] %vm5763, %v6485
    %6537 = vst.msk [vmem:[#allocation3 + $0x158] sm:$0xf] %vm5763, %v6487
    %6538 = vst.msk [vmem:[#allocation3 + $0x168] sm:$0xf] %vm5763, %v6489
    %6539 = vst.msk [vmem:[#allocation3 + $0x178] sm:$0xf] %vm5763, %v6491
    %v6540 = vrot.slane %v5330, 7
    %v6541 = vrot.slane %v6540, 4
    %v6542 = vrot.slane %v5331, 7
    %v6543 = vsel %vm3620, %v6541, %v6542
    %v6544 = vrot.slane %v6542, 4
    %v6545 = vrot.slane %v5332, 7
    %v6546 = vsel %vm3620, %v6544, %v6545
    %v6547 = vrot.slane %v6545, 4
    %v6548 = vrot.slane %v5411, 7
    %v6549 = vsel %vm3620, %v6547, %v6548
    %v6550 = vrot.slane %v5333, 7
    %v6551 = vrot.slane %v6550, 4
    %v6552 = vrot.slane %v5334, 7
    %v6553 = vsel %vm3620, %v6551, %v6552
    %v6554 = vrot.slane %v6552, 4
    %v6555 = vrot.slane %v5335, 7
    %v6556 = vsel %vm3620, %v6554, %v6555
    %v6557 = vrot.slane %v6555, 4
    %v6558 = vrot.slane %v5412, 7
    %v6559 = vsel %vm3620, %v6557, %v6558
    %v6560 = vrot.slane %v5336, 7
    %v6561 = vrot.slane %v6560, 4
    %v6562 = vrot.slane %v5337, 7
    %v6563 = vsel %vm3620, %v6561, %v6562
    %v6564 = vrot.slane %v6562, 4
    %v6565 = vrot.slane %v5338, 7
    %v6566 = vsel %vm3620, %v6564, %v6565
    %v6567 = vrot.slane %v6565, 4
    %v6568 = vrot.slane %v5413, 7
    %v6569 = vsel %vm3620, %v6567, %v6568
    %v6570 = vrot.slane %v5339, 7
    %v6571 = vrot.slane %v6570, 4
    %v6572 = vrot.slane %v5340, 7
    %v6573 = vsel %vm3620, %v6571, %v6572
    %v6574 = vrot.slane %v6572, 4
    %v6575 = vrot.slane %v5341, 7
    %v6576 = vsel %vm3620, %v6574, %v6575
    %v6577 = vrot.slane %v6575, 4
    %v6578 = vrot.slane %v5414, 7
    %v6579 = vsel %vm3620, %v6577, %v6578
    %v6580 = vrot.slane %v5342, 7
    %v6581 = vrot.slane %v6580, 4
    %v6582 = vrot.slane %v5343, 7
    %v6583 = vsel %vm3620, %v6581, %v6582
    %v6584 = vrot.slane %v6582, 4
    %v6585 = vrot.slane %v5344, 7
    %v6586 = vsel %vm3620, %v6584, %v6585
    %v6587 = vrot.slane %v6585, 4
    %v6588 = vrot.slane %v5415, 7
    %v6589 = vsel %vm3620, %v6587, %v6588
    %v6590 = vrot.slane %v5345, 7
    %v6591 = vrot.slane %v6590, 4
    %v6592 = vrot.slane %v5346, 7
    %v6593 = vsel %vm3620, %v6591, %v6592
    %v6594 = vrot.slane %v6592, 4
    %v6595 = vrot.slane %v5347, 7
    %v6596 = vsel %vm3620, %v6594, %v6595
    %v6597 = vrot.slane %v6595, 4
    %v6598 = vrot.slane %v5416, 7
    %v6599 = vsel %vm3620, %v6597, %v6598
    %v6600 = vrot.slane %v5348, 7
    %v6601 = vrot.slane %v6600, 4
    %v6602 = vrot.slane %v5349, 7
    %v6603 = vsel %vm3620, %v6601, %v6602
    %v6604 = vrot.slane %v6602, 4
    %v6605 = vrot.slane %v5350, 7
    %v6606 = vsel %vm3620, %v6604, %v6605
    %v6607 = vrot.slane %v6605, 4
    %v6608 = vrot.slane %v5417, 7
    %v6609 = vsel %vm3620, %v6607, %v6608
    %v6610 = vrot.slane %v5351, 7
    %v6611 = vrot.slane %v6610, 4
    %v6612 = vrot.slane %v5352, 7
    %v6613 = vsel %vm3620, %v6611, %v6612
    %v6614 = vrot.slane %v6612, 4
    %v6615 = vrot.slane %v5353, 7
    %v6616 = vsel %vm3620, %v6614, %v6615
    %v6617 = vrot.slane %v6615, 4
    %v6618 = vrot.slane %v5418, 7
    %v6619 = vsel %vm3620, %v6617, %v6618
    %6644 = vst.msk [vmem:[#allocation3 + $0xc] sm:$0xf] %vm5378, %v6543
    %6645 = vst.msk [vmem:[#allocation3 + $0x1c] sm:$0xf] %vm5378, %v6546
    %6646 = vst.msk [vmem:[#allocation3 + $0x2c] sm:$0xf] %vm5378, %v6549
    %6647 = vst.msk [vmem:[#allocation3 + $0x3c] sm:$0xf] %vm5378, %v6553
    %6648 = vst.msk [vmem:[#allocation3 + $0x4c] sm:$0xf] %vm5378, %v6556
    %6649 = vst.msk [vmem:[#allocation3 + $0x5c] sm:$0xf] %vm5378, %v6559
    %6650 = vst.msk [vmem:[#allocation3 + $0x6c] sm:$0xf] %vm5378, %v6563
    %6651 = vst.msk [vmem:[#allocation3 + $0x7c] sm:$0xf] %vm5378, %v6566
    %6652 = vst.msk [vmem:[#allocation3 + $0x8c] sm:$0xf] %vm5378, %v6569
    %6653 = vst.msk [vmem:[#allocation3 + $0x9c] sm:$0xf] %vm5378, %v6573
    %6654 = vst.msk [vmem:[#allocation3 + $0xac] sm:$0xf] %vm5378, %v6576
    %6655 = vst.msk [vmem:[#allocation3 + $0xbc] sm:$0xf] %vm5378, %v6579
    %6656 = vst.msk [vmem:[#allocation3 + $0xcc] sm:$0xf] %vm5378, %v6583
    %6657 = vst.msk [vmem:[#allocation3 + $0xdc] sm:$0xf] %vm5378, %v6586
    %6658 = vst.msk [vmem:[#allocation3 + $0xec] sm:$0xf] %vm5378, %v6589
    %6659 = vst.msk [vmem:[#allocation3 + $0xfc] sm:$0xf] %vm5378, %v6593
    %6660 = vst.msk [vmem:[#allocation3 + $0x10c] sm:$0xf] %vm5378, %v6596
    %6661 = vst.msk [vmem:[#allocation3 + $0x11c] sm:$0xf] %vm5378, %v6599
    %6662 = vst.msk [vmem:[#allocation3 + $0x12c] sm:$0xf] %vm5378, %v6603
    %6663 = vst.msk [vmem:[#allocation3 + $0x13c] sm:$0xf] %vm5378, %v6606
    %6664 = vst.msk [vmem:[#allocation3 + $0x14c] sm:$0xf] %vm5378, %v6609
    %6665 = vst.msk [vmem:[#allocation3 + $0x15c] sm:$0xf] %vm5378, %v6613
    %6666 = vst.msk [vmem:[#allocation3 + $0x16c] sm:$0xf] %vm5378, %v6616
    %6667 = vst.msk [vmem:[#allocation3 + $0x17c] sm:$0xf] %vm5378, %v6619
    %v6668 = vrot.slane %v5420, 7
    %v6669 = vrot.slane %v6668, 4
    %v6670 = vrot.slane %v5433, 7
    %v6671 = vor.u32 %v6670, %v5429
    %v6672 = vsel %vm3911, %v6669, %v6671
    %v6673 = vrot.slane %v6670, 4
    %v6674 = vrot.slane %v5443, 7
    %v6675 = vor.u32 %v6674, %v5439
    %v6676 = vsel %vm3911, %v6673, %v6675
    %v6677 = vrot.slane %v6674, 4
    %v6678 = vrot.slane %v5930, 7
    %v6679 = vor.u32 %v6678, %v5449
    %v6680 = vsel %vm3911, %v6677, %v6679
    %v6681 = vrot.slane %v5454, 7
    %v6682 = vrot.slane %v6681, 4
    %v6683 = vrot.slane %v5467, 7
    %v6684 = vor.u32 %v6683, %v5463
    %v6685 = vsel %vm3911, %v6682, %v6684
    %v6686 = vrot.slane %v6683, 4
    %v6687 = vrot.slane %v5477, 7
    %v6688 = vor.u32 %v6687, %v5473
    %v6689 = vsel %vm3911, %v6686, %v6688
    %v6690 = vrot.slane %v6687, 4
    %v6691 = vrot.slane %v5950, 7
    %v6692 = vor.u32 %v6691, %v5483
    %v6693 = vsel %vm3911, %v6690, %v6692
    %v6694 = vrot.slane %v5488, 7
    %v6695 = vrot.slane %v6694, 4
    %v6696 = vrot.slane %v5501, 7
    %v6697 = vor.u32 %v6696, %v5497
    %v6698 = vsel %vm3911, %v6695, %v6697
    %v6699 = vrot.slane %v6696, 4
    %v6700 = vrot.slane %v5511, 7
    %v6701 = vor.u32 %v6700, %v5507
    %v6702 = vsel %vm3911, %v6699, %v6701
    %v6703 = vrot.slane %v6700, 4
    %v6704 = vrot.slane %v5970, 7
    %v6705 = vor.u32 %v6704, %v5517
    %v6706 = vsel %vm3911, %v6703, %v6705
    %v6707 = vrot.slane %v5522, 7
    %v6708 = vrot.slane %v6707, 4
    %v6709 = vrot.slane %v5535, 7
    %v6710 = vor.u32 %v6709, %v5531
    %v6711 = vsel %vm3911, %v6708, %v6710
    %v6712 = vrot.slane %v6709, 4
    %v6713 = vrot.slane %v5545, 7
    %v6714 = vor.u32 %v6713, %v5541
    %v6715 = vsel %vm3911, %v6712, %v6714
    %v6716 = vrot.slane %v6713, 4
    %v6717 = vrot.slane %v5990, 7
    %v6718 = vor.u32 %v6717, %v5551
    %v6719 = vsel %vm3911, %v6716, %v6718
    %v6720 = vrot.slane %v5556, 7
    %v6721 = vrot.slane %v6720, 4
    %v6722 = vrot.slane %v5569, 7
    %v6723 = vor.u32 %v6722, %v5565
    %v6724 = vsel %vm3911, %v6721, %v6723
    %v6725 = vrot.slane %v6722, 4
    %v6726 = vrot.slane %v5579, 7
    %v6727 = vor.u32 %v6726, %v5575
    %v6728 = vsel %vm3911, %v6725, %v6727
    %v6729 = vrot.slane %v6726, 4
    %v6730 = vrot.slane %v6010, 7
    %v6731 = vor.u32 %v6730, %v5585
    %v6732 = vsel %vm3911, %v6729, %v6731
    %v6733 = vrot.slane %v5590, 7
    %v6734 = vrot.slane %v6733, 4
    %v6735 = vrot.slane %v5603, 7
    %v6736 = vor.u32 %v6735, %v5599
    %v6737 = vsel %vm3911, %v6734, %v6736
    %v6738 = vrot.slane %v6735, 4
    %v6739 = vrot.slane %v5613, 7
    %v6740 = vor.u32 %v6739, %v5609
    %v6741 = vsel %vm3911, %v6738, %v6740
    %v6742 = vrot.slane %v6739, 4
    %v6743 = vrot.slane %v6030, 7
    %v6744 = vor.u32 %v6743, %v5619
    %v6745 = vsel %vm3911, %v6742, %v6744
    %v6746 = vrot.slane %v5624, 7
    %v6747 = vrot.slane %v6746, 4
    %v6748 = vrot.slane %v5637, 7
    %v6749 = vor.u32 %v6748, %v5633
    %v6750 = vsel %vm3911, %v6747, %v6749
    %v6751 = vrot.slane %v6748, 4
    %v6752 = vrot.slane %v5647, 7
    %v6753 = vor.u32 %v6752, %v5643
    %v6754 = vsel %vm3911, %v6751, %v6753
    %v6755 = vrot.slane %v6752, 4
    %v6756 = vrot.slane %v6050, 7
    %v6757 = vor.u32 %v6756, %v5653
    %v6758 = vsel %vm3911, %v6755, %v6757
    %v6759 = vrot.slane %v5658, 7
    %v6760 = vrot.slane %v6759, 4
    %v6761 = vrot.slane %v5671, 7
    %v6762 = vor.u32 %v6761, %v5667
    %v6763 = vsel %vm3911, %v6760, %v6762
    %v6764 = vrot.slane %v6761, 4
    %v6765 = vrot.slane %v5681, 7
    %v6766 = vor.u32 %v6765, %v5677
    %v6767 = vsel %vm3911, %v6764, %v6766
    %v6768 = vrot.slane %v6765, 4
    %v6769 = vrot.slane %v6070, 7
    %v6770 = vor.u32 %v6769, %v5687
    %v6771 = vsel %vm3911, %v6768, %v6770
    %6772 = vrot.lane.b32.xlu0 %v6672, 64
    %v6773 = vpop.permute.xlu0 %6772
    %6774 = vrot.lane.b32.xlu0 %v6676, 64
    %v6775 = vpop.permute.xlu0 %6774
    %6776 = vrot.lane.b32.xlu0 %v6680, 64
    %v6777 = vpop.permute.xlu0 %6776
    %6778 = vrot.lane.b32.xlu0 %v6685, 64
    %v6779 = vpop.permute.xlu0 %6778
    %6780 = vrot.lane.b32.xlu0 %v6689, 64
    %v6781 = vpop.permute.xlu0 %6780
    %6782 = vrot.lane.b32.xlu0 %v6693, 64
    %v6783 = vpop.permute.xlu0 %6782
    %6784 = vrot.lane.b32.xlu0 %v6698, 64
    %v6785 = vpop.permute.xlu0 %6784
    %6786 = vrot.lane.b32.xlu0 %v6702, 64
    %v6787 = vpop.permute.xlu0 %6786
    %6788 = vrot.lane.b32.xlu0 %v6706, 64
    %v6789 = vpop.permute.xlu0 %6788
    %6790 = vrot.lane.b32.xlu0 %v6711, 64
    %v6791 = vpop.permute.xlu0 %6790
    %6792 = vrot.lane.b32.xlu0 %v6715, 64
    %v6793 = vpop.permute.xlu0 %6792
    %6794 = vrot.lane.b32.xlu0 %v6719, 64
    %v6795 = vpop.permute.xlu0 %6794
    %6796 = vrot.lane.b32.xlu0 %v6724, 64
    %v6797 = vpop.permute.xlu0 %6796
    %6798 = vrot.lane.b32.xlu0 %v6728, 64
    %v6799 = vpop.permute.xlu0 %6798
    %6800 = vrot.lane.b32.xlu0 %v6732, 64
    %v6801 = vpop.permute.xlu0 %6800
    %6802 = vrot.lane.b32.xlu0 %v6737, 64
    %v6803 = vpop.permute.xlu0 %6802
    %6804 = vrot.lane.b32.xlu0 %v6741, 64
    %v6805 = vpop.permute.xlu0 %6804
    %6806 = vrot.lane.b32.xlu0 %v6745, 64
    %v6807 = vpop.permute.xlu0 %6806
    %6808 = vrot.lane.b32.xlu0 %v6750, 64
    %v6809 = vpop.permute.xlu0 %6808
    %6810 = vrot.lane.b32.xlu0 %v6754, 64
    %v6811 = vpop.permute.xlu0 %6810
    %6812 = vrot.lane.b32.xlu0 %v6758, 64
    %v6813 = vpop.permute.xlu0 %6812
    %6814 = vrot.lane.b32.xlu0 %v6763, 64
    %v6815 = vpop.permute.xlu0 %6814
    %6816 = vrot.lane.b32.xlu0 %v6767, 64
    %v6817 = vpop.permute.xlu0 %6816
    %6818 = vrot.lane.b32.xlu0 %v6771, 64
    %v6819 = vpop.permute.xlu0 %6818
    %6844 = vst.msk [vmem:[#allocation3 + $0xc] sm:$0xf] %vm5763, %v6773
    %6845 = vst.msk [vmem:[#allocation3 + $0x1c] sm:$0xf] %vm5763, %v6775
    %6846 = vst.msk [vmem:[#allocation3 + $0x2c] sm:$0xf] %vm5763, %v6777
    %6847 = vst.msk [vmem:[#allocation3 + $0x3c] sm:$0xf] %vm5763, %v6779
    %6848 = vst.msk [vmem:[#allocation3 + $0x4c] sm:$0xf] %vm5763, %v6781
    %6849 = vst.msk [vmem:[#allocation3 + $0x5c] sm:$0xf] %vm5763, %v6783
    %6850 = vst.msk [vmem:[#allocation3 + $0x6c] sm:$0xf] %vm5763, %v6785
    %6851 = vst.msk [vmem:[#allocation3 + $0x7c] sm:$0xf] %vm5763, %v6787
    %6852 = vst.msk [vmem:[#allocation3 + $0x8c] sm:$0xf] %vm5763, %v6789
    %6853 = vst.msk [vmem:[#allocation3 + $0x9c] sm:$0xf] %vm5763, %v6791
    %6854 = vst.msk [vmem:[#allocation3 + $0xac] sm:$0xf] %vm5763, %v6793
    %6855 = vst.msk [vmem:[#allocation3 + $0xbc] sm:$0xf] %vm5763, %v6795
    %6856 = vst.msk [vmem:[#allocation3 + $0xcc] sm:$0xf] %vm5763, %v6797
    %6857 = vst.msk [vmem:[#allocation3 + $0xdc] sm:$0xf] %vm5763, %v6799
    %6858 = vst.msk [vmem:[#allocation3 + $0xec] sm:$0xf] %vm5763, %v6801
    %6859 = vst.msk [vmem:[#allocation3 + $0xfc] sm:$0xf] %vm5763, %v6803
    %6860 = vst.msk [vmem:[#allocation3 + $0x10c] sm:$0xf] %vm5763, %v6805
    %6861 = vst.msk [vmem:[#allocation3 + $0x11c] sm:$0xf] %vm5763, %v6807
    %6862 = vst.msk [vmem:[#allocation3 + $0x12c] sm:$0xf] %vm5763, %v6809
    %6863 = vst.msk [vmem:[#allocation3 + $0x13c] sm:$0xf] %vm5763, %v6811
    %6864 = vst.msk [vmem:[#allocation3 + $0x14c] sm:$0xf] %vm5763, %v6813
    %6865 = vst.msk [vmem:[#allocation3 + $0x15c] sm:$0xf] %vm5763, %v6815
    %6866 = vst.msk [vmem:[#allocation3 + $0x16c] sm:$0xf] %vm5763, %v6817
    %6867 = vst.msk [vmem:[#allocation3 + $0x17c] sm:$0xf] %vm5763, %v6819
    %v6868 = vld [vmem:[#allocation3] sm:$0xff]
    %v6869 = vld [vmem:[#allocation3 + $0x8] sm:$0xff]
    %v6870 = vld [vmem:[#allocation3 + $0x10] sm:$0xff]
    %v6871 = vld [vmem:[#allocation3 + $0x18] sm:$0xff]
    %v6872 = vld [vmem:[#allocation3 + $0x20] sm:$0xff]
    %v6873 = vld [vmem:[#allocation3 + $0x28] sm:$0xff]
    %v6874 = vld [vmem:[#allocation3 + $0x30] sm:$0xff]
    %v6875 = vld [vmem:[#allocation3 + $0x38] sm:$0xff]
    %v6876 = vld [vmem:[#allocation3 + $0x40] sm:$0xff]
    %v6877 = vld [vmem:[#allocation3 + $0x48] sm:$0xff]
    %v6878 = vld [vmem:[#allocation3 + $0x50] sm:$0xff]
    %v6879 = vld [vmem:[#allocation3 + $0x58] sm:$0xff]
    %v6880 = vld [vmem:[#allocation3 + $0x60] sm:$0xff]
    %v6881 = vld [vmem:[#allocation3 + $0x68] sm:$0xff]
    %v6882 = vld [vmem:[#allocation3 + $0x70] sm:$0xff]
    %v6883 = vld [vmem:[#allocation3 + $0x78] sm:$0xff]
    %v6884 = vld [vmem:[#allocation3 + $0x80] sm:$0xff]
    %v6885 = vld [vmem:[#allocation3 + $0x88] sm:$0xff]
    %v6886 = vld [vmem:[#allocation3 + $0x90] sm:$0xff]
    %v6887 = vld [vmem:[#allocation3 + $0x98] sm:$0xff]
    %v6888 = vld [vmem:[#allocation3 + $0xa0] sm:$0xff]
    %v6889 = vld [vmem:[#allocation3 + $0xa8] sm:$0xff]
    %v6890 = vld [vmem:[#allocation3 + $0xb0] sm:$0xff]
    %v6891 = vld [vmem:[#allocation3 + $0xb8] sm:$0xff]
    %v6892 = vld [vmem:[#allocation3 + $0xc0] sm:$0xff]
    %v6893 = vld [vmem:[#allocation3 + $0xc8] sm:$0xff]
    %v6894 = vld [vmem:[#allocation3 + $0xd0] sm:$0xff]
    %v6895 = vld [vmem:[#allocation3 + $0xd8] sm:$0xff]
    %v6896 = vld [vmem:[#allocation3 + $0xe0] sm:$0xff]
    %v6897 = vld [vmem:[#allocation3 + $0xe8] sm:$0xff]
    %v6898 = vld [vmem:[#allocation3 + $0xf0] sm:$0xff]
    %v6899 = vld [vmem:[#allocation3 + $0xf8] sm:$0xff]
    %v6900 = vld [vmem:[#allocation3 + $0x100] sm:$0xff]
    %v6901 = vld [vmem:[#allocation3 + $0x108] sm:$0xff]
    %v6902 = vld [vmem:[#allocation3 + $0x110] sm:$0xff]
    %v6903 = vld [vmem:[#allocation3 + $0x118] sm:$0xff]
    %v6904 = vld [vmem:[#allocation3 + $0x120] sm:$0xff]
    %v6905 = vld [vmem:[#allocation3 + $0x128] sm:$0xff]
    %v6906 = vld [vmem:[#allocation3 + $0x130] sm:$0xff]
    %v6907 = vld [vmem:[#allocation3 + $0x138] sm:$0xff]
    %v6908 = vld [vmem:[#allocation3 + $0x140] sm:$0xff]
    %v6909 = vld [vmem:[#allocation3 + $0x148] sm:$0xff]
    %v6910 = vld [vmem:[#allocation3 + $0x150] sm:$0xff]
    %v6911 = vld [vmem:[#allocation3 + $0x158] sm:$0xff]
    %v6912 = vld [vmem:[#allocation3 + $0x160] sm:$0xff]
    %v6913 = vld [vmem:[#allocation3 + $0x168] sm:$0xff]
    %v6914 = vld [vmem:[#allocation3 + $0x170] sm:$0xff]
    %v6915 = vld [vmem:[#allocation3 + $0x178] sm:$0xff]
    %v6916 = vld [vmem:[%s5] sm:$0xf]
    %v6917 = vld [vmem:[%s5 + $0x4] sm:$0xf]
    %v6918 = vld [vmem:[%s5 + $0x8] sm:$0xf]
    %v6919 = vld [vmem:[%s5 + $0xc] sm:$0xf]
    %v6920 = vld [vmem:[%s5 + $0x10] sm:$0xf]
    %v6921 = vld [vmem:[%s5 + $0x14] sm:$0xf]
    %v6922 = vld [vmem:[%s5 + $0x18] sm:$0xf]
    %v6923 = vld [vmem:[%s5 + $0x1c] sm:$0xf]
    %v6924 = vld [vmem:[%s5 + $0x20] sm:$0xf]
    %v6925 = vld [vmem:[%s5 + $0x24] sm:$0xf]
    %v6926 = vld [vmem:[%s5 + $0x28] sm:$0xf]
    %v6927 = vld [vmem:[%s5 + $0x2c] sm:$0xf]
    %v6928 = vld [vmem:[%s5 + $0x30] sm:$0xf]
    %v6929 = vld [vmem:[%s5 + $0x34] sm:$0xf]
    %v6930 = vld [vmem:[%s5 + $0x38] sm:$0xf]
    %v6931 = vld [vmem:[%s5 + $0x3c] sm:$0xf]
    %v6932 = vld [vmem:[%s5 + $0x40] sm:$0xf]
    %v6933 = vld [vmem:[%s5 + $0x44] sm:$0xf]
    %v6934 = vld [vmem:[%s5 + $0x48] sm:$0xf]
    %v6935 = vld [vmem:[%s5 + $0x4c] sm:$0xf]
    %v6936 = vld [vmem:[%s5 + $0x50] sm:$0xf]
    %v6937 = vld [vmem:[%s5 + $0x54] sm:$0xf]
    %v6938 = vld [vmem:[%s5 + $0x58] sm:$0xf]
    %v6939 = vld [vmem:[%s5 + $0x5c] sm:$0xf]
    %v6940 = vld [vmem:[%s5 + $0x60] sm:$0xf]
    %v6941 = vld [vmem:[%s5 + $0x64] sm:$0xf]
    %v6942 = vld [vmem:[%s5 + $0x68] sm:$0xf]
    %v6943 = vld [vmem:[%s5 + $0x6c] sm:$0xf]
    %v6944 = vld [vmem:[%s5 + $0x70] sm:$0xf]
    %v6945 = vld [vmem:[%s5 + $0x74] sm:$0xf]
    %v6946 = vld [vmem:[%s5 + $0x78] sm:$0xf]
    %v6947 = vld [vmem:[%s5 + $0x7c] sm:$0xf]
    %v6948 = vld [vmem:[%s5 + $0x80] sm:$0xf]
    %v6949 = vld [vmem:[%s5 + $0x84] sm:$0xf]
    %v6950 = vld [vmem:[%s5 + $0x88] sm:$0xf]
    %v6951 = vld [vmem:[%s5 + $0x8c] sm:$0xf]
    %v6952 = vld [vmem:[%s5 + $0x90] sm:$0xf]
    %v6953 = vld [vmem:[%s5 + $0x94] sm:$0xf]
    %v6954 = vld [vmem:[%s5 + $0x98] sm:$0xf]
    %v6955 = vld [vmem:[%s5 + $0x9c] sm:$0xf]
    %v6956 = vld [vmem:[%s5 + $0xa0] sm:$0xf]
    %v6957 = vld [vmem:[%s5 + $0xa4] sm:$0xf]
    %v6958 = vld [vmem:[%s5 + $0xa8] sm:$0xf]
    %v6959 = vld [vmem:[%s5 + $0xac] sm:$0xf]
    %v6960 = vld [vmem:[%s5 + $0xb0] sm:$0xf]
    %v6961 = vld [vmem:[%s5 + $0xb4] sm:$0xf]
    %v6962 = vld [vmem:[%s5 + $0xb8] sm:$0xf]
    %v6963 = vld [vmem:[%s5 + $0xbc] sm:$0xf]
    %v6964 = vld [vmem:[%s5 + $0xc0] sm:$0xf]
    %v6965 = vld [vmem:[%s5 + $0xc4] sm:$0xf]
    %v6966 = vld [vmem:[%s5 + $0xc8] sm:$0xf]
    %v6967 = vld [vmem:[%s5 + $0xcc] sm:$0xf]
    %v6968 = vld [vmem:[%s5 + $0xd0] sm:$0xf]
    %v6969 = vld [vmem:[%s5 + $0xd4] sm:$0xf]
    %v6970 = vld [vmem:[%s5 + $0xd8] sm:$0xf]
    %v6971 = vld [vmem:[%s5 + $0xdc] sm:$0xf]
    %v6972 = vld [vmem:[%s5 + $0xe0] sm:$0xf]
    %v6973 = vld [vmem:[%s5 + $0xe4] sm:$0xf]
    %v6974 = vld [vmem:[%s5 + $0xe8] sm:$0xf]
    %v6975 = vld [vmem:[%s5 + $0xec] sm:$0xf]
    %v6976 = vld [vmem:[%s5 + $0xf0] sm:$0xf]
    %v6977 = vld [vmem:[%s5 + $0xf4] sm:$0xf]
    %v6978 = vld [vmem:[%s5 + $0xf8] sm:$0xf]
    %v6979 = vld [vmem:[%s5 + $0xfc] sm:$0xf]
    %v6980 = vld [vmem:[%s6] sm:$0x1]
    %v6982 = vlaneseq
    %v6983 = vshrl.u32 %v6982, 7
    %v6984 = vsub.s32 0, %v6983
    %v6985 = vrot.slane %v6980, %v6984
    %v7035 = vunpack.c.l.b16 %v6868
    %v7036 = vunpack.c.h.b16 %v6868
    %v7037 = vunpack.c.l.b16 %v6869
    %v7038 = vunpack.c.h.b16 %v6869
    %v7039 = vunpack.c.l.b16 %v6870
    %v7040 = vunpack.c.h.b16 %v6870
    %v7041 = vunpack.c.l.b16 %v6871
    %v7042 = vunpack.c.h.b16 %v6871
    %v7043 = vunpack.c.l.b16 %v6872
    %v7044 = vunpack.c.h.b16 %v6872
    %v7045 = vunpack.c.l.b16 %v6873
    %v7046 = vunpack.c.h.b16 %v6873
    %v7047 = vunpack.c.l.b16 %v6874
    %v7048 = vunpack.c.h.b16 %v6874
    %v7049 = vunpack.c.l.b16 %v6875
    %v7050 = vunpack.c.h.b16 %v6875
    %v7051 = vunpack.c.l.b16 %v6876
    %v7052 = vunpack.c.h.b16 %v6876
    %v7053 = vunpack.c.l.b16 %v6877
    %v7054 = vunpack.c.h.b16 %v6877
    %v7055 = vunpack.c.l.b16 %v6878
    %v7056 = vunpack.c.h.b16 %v6878
    %v7057 = vunpack.c.l.b16 %v6879
    %v7058 = vunpack.c.h.b16 %v6879
    %v7059 = vunpack.c.l.b16 %v6880
    %v7060 = vunpack.c.h.b16 %v6880
    %v7061 = vunpack.c.l.b16 %v6881
    %v7062 = vunpack.c.h.b16 %v6881
    %v7063 = vunpack.c.l.b16 %v6882
    %v7064 = vunpack.c.h.b16 %v6882
    %v7065 = vunpack.c.l.b16 %v6883
    %v7066 = vunpack.c.h.b16 %v6883
    %v7067 = vunpack.c.l.b16 %v6884
    %v7068 = vunpack.c.h.b16 %v6884
    %v7069 = vunpack.c.l.b16 %v6885
    %v7070 = vunpack.c.h.b16 %v6885
    %v7071 = vunpack.c.l.b16 %v6886
    %v7072 = vunpack.c.h.b16 %v6886
    %v7073 = vunpack.c.l.b16 %v6887
    %v7074 = vunpack.c.h.b16 %v6887
    %v7075 = vunpack.c.l.b16 %v6888
    %v7076 = vunpack.c.h.b16 %v6888
    %v7077 = vunpack.c.l.b16 %v6889
    %v7078 = vunpack.c.h.b16 %v6889
    %v7079 = vunpack.c.l.b16 %v6890
    %v7080 = vunpack.c.h.b16 %v6890
    %v7081 = vunpack.c.l.b16 %v6891
    %v7082 = vunpack.c.h.b16 %v6891
    %v7083 = vunpack.c.l.b16 %v6892
    %v7084 = vunpack.c.h.b16 %v6892
    %v7085 = vunpack.c.l.b16 %v6893
    %v7086 = vunpack.c.h.b16 %v6893
    %v7087 = vunpack.c.l.b16 %v6894
    %v7088 = vunpack.c.h.b16 %v6894
    %v7089 = vunpack.c.l.b16 %v6895
    %v7090 = vunpack.c.h.b16 %v6895
    %v7091 = vunpack.c.l.b16 %v6896
    %v7092 = vunpack.c.h.b16 %v6896
    %v7093 = vunpack.c.l.b16 %v6897
    %v7094 = vunpack.c.h.b16 %v6897
    %v7095 = vunpack.c.l.b16 %v6898
    %v7096 = vunpack.c.h.b16 %v6898
    %v7097 = vunpack.c.l.b16 %v6899
    %v7098 = vunpack.c.h.b16 %v6899
    %v7099 = vunpack.c.l.b16 %v6900
    %v7100 = vunpack.c.h.b16 %v6900
    %v7101 = vunpack.c.l.b16 %v6901
    %v7102 = vunpack.c.h.b16 %v6901
    %v7103 = vunpack.c.l.b16 %v6902
    %v7104 = vunpack.c.h.b16 %v6902
    %v7105 = vunpack.c.l.b16 %v6903
    %v7106 = vunpack.c.h.b16 %v6903
    %v7107 = vunpack.c.l.b16 %v6904
    %v7108 = vunpack.c.h.b16 %v6904
    %v7109 = vunpack.c.l.b16 %v6905
    %v7110 = vunpack.c.h.b16 %v6905
    %v7111 = vunpack.c.l.b16 %v6906
    %v7112 = vunpack.c.h.b16 %v6906
    %v7113 = vunpack.c.l.b16 %v6907
    %v7114 = vunpack.c.h.b16 %v6907
    %v7115 = vunpack.c.l.b16 %v6908
    %v7116 = vunpack.c.h.b16 %v6908
    %v7117 = vunpack.c.l.b16 %v6909
    %v7118 = vunpack.c.h.b16 %v6909
    %v7119 = vunpack.c.l.b16 %v6910
    %v7120 = vunpack.c.h.b16 %v6910
    %v7121 = vunpack.c.l.b16 %v6911
    %v7122 = vunpack.c.h.b16 %v6911
    %v7123 = vunpack.c.l.b16 %v6912
    %v7124 = vunpack.c.h.b16 %v6912
    %v7125 = vunpack.c.l.b16 %v6913
    %v7126 = vunpack.c.h.b16 %v6913
    %v7127 = vunpack.c.l.b16 %v6914
    %v7128 = vunpack.c.h.b16 %v6914
    %v7129 = vunpack.c.l.b16 %v6915
    %v7130 = vunpack.c.h.b16 %v6915
    %v7131 = vpack.c.b16 %v7039, %v7035
    %v7132 = vpack.c.b16 %v7040, %v7036
    %v7133 = vpack.c.b16 %v7041, %v7037
    %v7134 = vpack.c.b16 %v7042, %v7038
    %v7135 = vpack.c.b16 %v7047, %v7043
    %v7136 = vpack.c.b16 %v7048, %v7044
    %v7137 = vpack.c.b16 %v7049, %v7045
    %v7138 = vpack.c.b16 %v7050, %v7046
    %v7139 = vpack.c.b16 %v7055, %v7051
    %v7140 = vpack.c.b16 %v7056, %v7052
    %v7141 = vpack.c.b16 %v7057, %v7053
    %v7142 = vpack.c.b16 %v7058, %v7054
    %v7143 = vpack.c.b16 %v7063, %v7059
    %v7144 = vpack.c.b16 %v7064, %v7060
    %v7145 = vpack.c.b16 %v7065, %v7061
    %v7146 = vpack.c.b16 %v7066, %v7062
    %v7147 = vpack.c.b16 %v7071, %v7067
    %v7148 = vpack.c.b16 %v7072, %v7068
    %v7149 = vpack.c.b16 %v7073, %v7069
    %v7150 = vpack.c.b16 %v7074, %v7070
    %v7151 = vpack.c.b16 %v7079, %v7075
    %v7152 = vpack.c.b16 %v7080, %v7076
    %v7153 = vpack.c.b16 %v7081, %v7077
    %v7154 = vpack.c.b16 %v7082, %v7078
    %v7155 = vpack.c.b16 %v7087, %v7083
    %v7156 = vpack.c.b16 %v7088, %v7084
    %v7157 = vpack.c.b16 %v7089, %v7085
    %v7158 = vpack.c.b16 %v7090, %v7086
    %v7159 = vpack.c.b16 %v7095, %v7091
    %v7160 = vpack.c.b16 %v7096, %v7092
    %v7161 = vpack.c.b16 %v7097, %v7093
    %v7162 = vpack.c.b16 %v7098, %v7094
    %v7163 = vpack.c.b16 %v7103, %v7099
    %v7164 = vpack.c.b16 %v7104, %v7100
    %v7165 = vpack.c.b16 %v7105, %v7101
    %v7166 = vpack.c.b16 %v7106, %v7102
    %v7167 = vpack.c.b16 %v7111, %v7107
    %v7168 = vpack.c.b16 %v7112, %v7108
    %v7169 = vpack.c.b16 %v7113, %v7109
    %v7170 = vpack.c.b16 %v7114, %v7110
    %v7171 = vpack.c.b16 %v7119, %v7115
    %v7172 = vpack.c.b16 %v7120, %v7116
    %v7173 = vpack.c.b16 %v7121, %v7117
    %v7174 = vpack.c.b16 %v7122, %v7118
    %v7175 = vpack.c.b16 %v7127, %v7123
    %v7176 = vpack.c.b16 %v7128, %v7124
    %v7177 = vpack.c.b16 %v7129, %v7125
    %v7178 = vpack.c.b16 %v7130, %v7126
    %v7291 = vunpack.c.l.b16 %v6916
    %v7292 = vunpack.c.l.b16 %v6917
    %v7293 = vunpack.c.l.b16 %v6918
    %v7294 = vunpack.c.l.b16 %v6919
    %v7295 = vunpack.c.l.b16 %v6920
    %v7296 = vunpack.c.l.b16 %v6921
    %v7297 = vunpack.c.l.b16 %v6922
    %v7298 = vunpack.c.l.b16 %v6923
    %v7299 = vunpack.c.l.b16 %v6924
    %v7300 = vunpack.c.l.b16 %v6925
    %v7301 = vunpack.c.l.b16 %v6926
    %v7302 = vunpack.c.l.b16 %v6927
    %v7303 = vunpack.c.l.b16 %v6928
    %v7304 = vunpack.c.l.b16 %v6929
    %v7305 = vunpack.c.l.b16 %v6930
    %v7306 = vunpack.c.l.b16 %v6931
    %v7307 = vunpack.c.l.b16 %v6932
    %v7308 = vunpack.c.l.b16 %v6933
    %v7309 = vunpack.c.l.b16 %v6934
    %v7310 = vunpack.c.l.b16 %v6935
    %v7311 = vunpack.c.l.b16 %v6936
    %v7312 = vunpack.c.l.b16 %v6937
    %v7313 = vunpack.c.l.b16 %v6938
    %v7314 = vunpack.c.l.b16 %v6939
    %v7315 = vunpack.c.l.b16 %v6940
    %v7316 = vunpack.c.l.b16 %v6941
    %v7317 = vunpack.c.l.b16 %v6942
    %v7318 = vunpack.c.l.b16 %v6943
    %v7319 = vunpack.c.l.b16 %v6944
    %v7320 = vunpack.c.l.b16 %v6945
    %v7321 = vunpack.c.l.b16 %v6946
    %v7322 = vunpack.c.l.b16 %v6947
    %v7323 = vunpack.c.l.b16 %v6948
    %v7324 = vunpack.c.l.b16 %v6949
    %v7325 = vunpack.c.l.b16 %v6950
    %v7326 = vunpack.c.l.b16 %v6951
    %v7327 = vunpack.c.l.b16 %v6952
    %v7328 = vunpack.c.l.b16 %v6953
    %v7329 = vunpack.c.l.b16 %v6954
    %v7330 = vunpack.c.l.b16 %v6955
    %v7331 = vunpack.c.l.b16 %v6956
    %v7332 = vunpack.c.l.b16 %v6957
    %v7333 = vunpack.c.l.b16 %v6958
    %v7334 = vunpack.c.l.b16 %v6959
    %v7335 = vunpack.c.l.b16 %v6960
    %v7336 = vunpack.c.l.b16 %v6961
    %v7337 = vunpack.c.l.b16 %v6962
    %v7338 = vunpack.c.l.b16 %v6963
    %v7339 = vunpack.c.l.b16 %v6964
    %v7340 = vunpack.c.l.b16 %v6965
    %v7341 = vunpack.c.l.b16 %v6966
    %v7342 = vunpack.c.l.b16 %v6967
    %v7343 = vunpack.c.l.b16 %v6968
    %v7344 = vunpack.c.l.b16 %v6969
    %v7345 = vunpack.c.l.b16 %v6970
    %v7346 = vunpack.c.l.b16 %v6971
    %v7347 = vunpack.c.l.b16 %v6972
    %v7348 = vunpack.c.l.b16 %v6973
    %v7349 = vunpack.c.l.b16 %v6974
    %v7350 = vunpack.c.l.b16 %v6975
    %v7351 = vunpack.c.l.b16 %v6976
    %v7352 = vunpack.c.l.b16 %v6977
    %v7353 = vunpack.c.l.b16 %v6978
    %v7354 = vunpack.c.l.b16 %v6979
    %v7355 = vpack.c.b16 %v7292, %v7291
    %v7356 = vpack.c.b16 %v7294, %v7293
    %v7357 = vpack.c.b16 %v7296, %v7295
    %v7358 = vpack.c.b16 %v7298, %v7297
    %v7359 = vpack.c.b16 %v7300, %v7299
    %v7360 = vpack.c.b16 %v7302, %v7301
    %v7361 = vpack.c.b16 %v7304, %v7303
    %v7362 = vpack.c.b16 %v7306, %v7305
    %v7363 = vpack.c.b16 %v7308, %v7307
    %v7364 = vpack.c.b16 %v7310, %v7309
    %v7365 = vpack.c.b16 %v7312, %v7311
    %v7366 = vpack.c.b16 %v7314, %v7313
    %v7367 = vpack.c.b16 %v7316, %v7315
    %v7368 = vpack.c.b16 %v7318, %v7317
    %v7369 = vpack.c.b16 %v7320, %v7319
    %v7370 = vpack.c.b16 %v7322, %v7321
    %v7371 = vpack.c.b16 %v7324, %v7323
    %v7372 = vpack.c.b16 %v7326, %v7325
    %v7373 = vpack.c.b16 %v7328, %v7327
    %v7374 = vpack.c.b16 %v7330, %v7329
    %v7375 = vpack.c.b16 %v7332, %v7331
    %v7376 = vpack.c.b16 %v7334, %v7333
    %v7377 = vpack.c.b16 %v7336, %v7335
    %v7378 = vpack.c.b16 %v7338, %v7337
    %v7379 = vpack.c.b16 %v7340, %v7339
    %v7380 = vpack.c.b16 %v7342, %v7341
    %v7381 = vpack.c.b16 %v7344, %v7343
    %v7382 = vpack.c.b16 %v7346, %v7345
    %v7383 = vpack.c.b16 %v7348, %v7347
    %v7384 = vpack.c.b16 %v7350, %v7349
    %v7385 = vpack.c.b16 %v7352, %v7351
    %v7386 = vpack.c.b16 %v7354, %v7353
    %7419 = vmatprep.subr.bf16.mxu0 0
    %7420 = vmatpush1.bf16.msra.mxu0 %v7355
    %7421 = vmatprep.subr.bf16.mxu0 0
    %7422 = vmatpush1.bf16.msra.mxu0 %v7356
    %7423 = vmatprep.subr.bf16.mxu0 0
    %7424 = vmatpush1.bf16.msra.mxu0 %v7357
    %7425 = vmatprep.subr.bf16.mxu0 0
    %7426 = vmatpush1.bf16.msra.mxu0 %v7358
    %7427 = vmatprep.subr.bf16.mxu0 0
    %7428 = vmatpush1.bf16.msra.mxu0 %v7359
    %7429 = vmatprep.subr.bf16.mxu0 0
    %7430 = vmatpush1.bf16.msra.mxu0 %v7360
    %7431 = vmatprep.subr.bf16.mxu0 0
    %7432 = vmatpush1.bf16.msra.mxu0 %v7361
    %7433 = vmatprep.subr.bf16.mxu0 0
    %7434 = vmatpush1.bf16.msra.mxu0 %v7362
    %7435 = vmatprep.subr.bf16.mxu0 0
    %7436 = vmatpush1.bf16.msra.mxu0 %v7363
    %7437 = vmatprep.subr.bf16.mxu0 0
    %7438 = vmatpush1.bf16.msra.mxu0 %v7364
    %7439 = vmatprep.subr.bf16.mxu0 0
    %7440 = vmatpush1.bf16.msra.mxu0 %v7365
    %7441 = vmatprep.subr.bf16.mxu0 0
    %7442 = vmatpush1.bf16.msra.mxu0 %v7366
    %7443 = vmatprep.subr.bf16.mxu0 0
    %7444 = vmatpush1.bf16.msra.mxu0 %v7367
    %7445 = vmatprep.subr.bf16.mxu0 0
    %7446 = vmatpush1.bf16.msra.mxu0 %v7368
    %7447 = vmatprep.subr.bf16.mxu0 0
    %7448 = vmatpush1.bf16.msra.mxu0 %v7369
    %7449 = vmatprep.subr.bf16.mxu0 0
    %7450 = vmatpush1.bf16.msra.mxu0 %v7370
    %7451 = vmatprep.mubr.bf16.mxu0 %v7132
    %7452 = vmatmul.mubr.bf16.gmra.mrb[0].mxu0 %v7131
    %v7453 = vpop.f32.mrb[0].mxu0
    %v7454 = vadd.f32 %v6985, %v7453
    %v7455 = vpop.f32.mrb[0].mxu0
    %v7456 = vpop.f32.mrb[0].mxu0
    %v7457 = vadd.f32 %v6985, %v7456
    %v7458 = vpop.f32.mrb[0].mxu0
    %7459 = vmatprep.mubr.bf16.mxu0 %v7136
    %7460 = vmatmul.mubr.bf16.gmra.mrb[0].mxu0 %v7135
    %v7461 = vpop.f32.mrb[0].mxu0
    %v7462 = vadd.f32 %v6985, %v7461
    %v7463 = vpop.f32.mrb[0].mxu0
    %v7464 = vpop.f32.mrb[0].mxu0
    %v7465 = vadd.f32 %v6985, %v7464
    %v7466 = vpop.f32.mrb[0].mxu0
    %7467 = vmatprep.mubr.bf16.mxu0 %v7140
    %7468 = vmatmul.mubr.bf16.gmra.mrb[0].mxu0 %v7139
    %v7469 = vpop.f32.mrb[0].mxu0
    %v7470 = vadd.f32 %v6985, %v7469
    %v7471 = vpop.f32.mrb[0].mxu0
    %v7472 = vpop.f32.mrb[0].mxu0
    %v7473 = vadd.f32 %v6985, %v7472
    %v7474 = vpop.f32.mrb[0].mxu0
    %7475 = vmatprep.mubr.bf16.mxu0 %v7144
    %7476 = vmatmul.mubr.bf16.gmra.mrb[0].mxu0 %v7143
    %v7477 = vpop.f32.mrb[0].mxu0
    %v7478 = vadd.f32 %v6985, %v7477
    %v7479 = vpop.f32.mrb[0].mxu0
    %v7480 = vpop.f32.mrb[0].mxu0
    %v7481 = vadd.f32 %v6985, %v7480
    %v7482 = vpop.f32.mrb[0].mxu0
    %7483 = vmatprep.mubr.bf16.mxu0 %v7148
    %7484 = vmatmul.mubr.bf16.gmra.mrb[0].mxu0 %v7147
    %v7485 = vpop.f32.mrb[0].mxu0
    %v7486 = vadd.f32 %v6985, %v7485
    %v7487 = vpop.f32.mrb[0].mxu0
    %v7488 = vpop.f32.mrb[0].mxu0
    %v7489 = vadd.f32 %v6985, %v7488
    %v7490 = vpop.f32.mrb[0].mxu0
    %7491 = vmatprep.mubr.bf16.mxu0 %v7152
    %7492 = vmatmul.mubr.bf16.gmra.mrb[0].mxu0 %v7151
    %v7493 = vpop.f32.mrb[0].mxu0
    %v7494 = vadd.f32 %v6985, %v7493
    %v7495 = vpop.f32.mrb[0].mxu0
    %v7496 = vpop.f32.mrb[0].mxu0
    %v7497 = vadd.f32 %v6985, %v7496
    %v7498 = vpop.f32.mrb[0].mxu0
    %7499 = vmatprep.mubr.bf16.mxu0 %v7156
    %7500 = vmatmul.mubr.bf16.gmra.mrb[0].mxu0 %v7155
    %v7501 = vpop.f32.mrb[0].mxu0
    %v7502 = vadd.f32 %v6985, %v7501
    %v7503 = vpop.f32.mrb[0].mxu0
    %v7504 = vpop.f32.mrb[0].mxu0
    %v7505 = vadd.f32 %v6985, %v7504
    %v7506 = vpop.f32.mrb[0].mxu0
    %7507 = vmatprep.mubr.bf16.mxu0 %v7160
    %7508 = vmatmul.mubr.bf16.gmra.mrb[0].mxu0 %v7159
    %v7509 = vpop.f32.mrb[0].mxu0
    %v7510 = vadd.f32 %v6985, %v7509
    %v7511 = vpop.f32.mrb[0].mxu0
    %v7512 = vpop.f32.mrb[0].mxu0
    %v7513 = vadd.f32 %v6985, %v7512
    %v7514 = vpop.f32.mrb[0].mxu0
    %7515 = vmatprep.mubr.bf16.mxu0 %v7164
    %7516 = vmatmul.mubr.bf16.gmra.mrb[0].mxu0 %v7163
    %v7517 = vpop.f32.mrb[0].mxu0
    %v7518 = vadd.f32 %v6985, %v7517
    %v7519 = vpop.f32.mrb[0].mxu0
    %v7520 = vpop.f32.mrb[0].mxu0
    %v7521 = vadd.f32 %v6985, %v7520
    %v7522 = vpop.f32.mrb[0].mxu0
    %7523 = vmatprep.mubr.bf16.mxu0 %v7168
    %7524 = vmatmul.mubr.bf16.gmra.mrb[0].mxu0 %v7167
    %v7525 = vpop.f32.mrb[0].mxu0
    %v7526 = vadd.f32 %v6985, %v7525
    %v7527 = vpop.f32.mrb[0].mxu0
    %v7528 = vpop.f32.mrb[0].mxu0
    %v7529 = vadd.f32 %v6985, %v7528
    %v7530 = vpop.f32.mrb[0].mxu0
    %7531 = vmatprep.mubr.bf16.mxu0 %v7172
    %7532 = vmatmul.mubr.bf16.gmra.mrb[0].mxu0 %v7171
    %v7533 = vpop.f32.mrb[0].mxu0
    %v7534 = vadd.f32 %v6985, %v7533
    %v7535 = vpop.f32.mrb[0].mxu0
    %v7536 = vpop.f32.mrb[0].mxu0
    %v7537 = vadd.f32 %v6985, %v7536
    %v7538 = vpop.f32.mrb[0].mxu0
    %7539 = vmatprep.mubr.bf16.mxu0 %v7176
    %7540 = vmatmul.mubr.bf16.gmra.mrb[0].mxu0 %v7175
    %v7541 = vpop.f32.mrb[0].mxu0
    %v7542 = vadd.f32 %v6985, %v7541
    %v7543 = vpop.f32.mrb[0].mxu0
    %v7544 = vpop.f32.mrb[0].mxu0
    %v7545 = vadd.f32 %v6985, %v7544
    %v7546 = vpop.f32.mrb[0].mxu0
    %7547 = vdwg.mxu0
    %7548 = vmatprep.subr.bf16.mxu0 0
    %7549 = vmatpush1.bf16.msra.mxu0 %v7371
    %7550 = vmatprep.subr.bf16.mxu0 0
    %7551 = vmatpush1.bf16.msra.mxu0 %v7372
    %7552 = vmatprep.subr.bf16.mxu0 0
    %7553 = vmatpush1.bf16.msra.mxu0 %v7373
    %7554 = vmatprep.subr.bf16.mxu0 0
    %7555 = vmatpush1.bf16.msra.mxu0 %v7374
    %7556 = vmatprep.subr.bf16.mxu0 0
    %7557 = vmatpush1.bf16.msra.mxu0 %v7375
    %7558 = vmatprep.subr.bf16.mxu0 0
    %7559 = vmatpush1.bf16.msra.mxu0 %v7376
    %7560 = vmatprep.subr.bf16.mxu0 0
    %7561 = vmatpush1.bf16.msra.mxu0 %v7377
    %7562 = vmatprep.subr.bf16.mxu0 0
    %7563 = vmatpush1.bf16.msra.mxu0 %v7378
    %7564 = vmatprep.subr.bf16.mxu0 0
    %7565 = vmatpush1.bf16.msra.mxu0 %v7379
    %7566 = vmatprep.subr.bf16.mxu0 0
    %7567 = vmatpush1.bf16.msra.mxu0 %v7380
    %7568 = vmatprep.subr.bf16.mxu0 0
    %7569 = vmatpush1.bf16.msra.mxu0 %v7381
    %7570 = vmatprep.subr.bf16.mxu0 0
    %7571 = vmatpush1.bf16.msra.mxu0 %v7382
    %7572 = vmatprep.subr.bf16.mxu0 0
    %7573 = vmatpush1.bf16.msra.mxu0 %v7383
    %7574 = vmatprep.subr.bf16.mxu0 0
    %7575 = vmatpush1.bf16.msra.mxu0 %v7384
    %7576 = vmatprep.subr.bf16.mxu0 0
    %7577 = vmatpush1.bf16.msra.mxu0 %v7385
    %7578 = vmatprep.subr.bf16.mxu0 0
    %7579 = vmatpush1.bf16.msra.mxu0 %v7386
    %7580 = vmatprep.mubr.bf16.mxu0 %v7134
    %7581 = vmatmul.mubr.bf16.gmra.mrb[0].mxu0 %v7133
    %v7582 = vpop.f32.mrb[0].mxu0
    %v7583 = vadd.f32 %v7454, %v7582
    %v7584 = vpop.f32.mrb[0].mxu0
    %v7585 = vpop.f32.mrb[0].mxu0
    %v7586 = vadd.f32 %v7457, %v7585
    %v7587 = vpop.f32.mrb[0].mxu0
    %7588 = vmatprep.mubr.bf16.mxu0 %v7138
    %7589 = vmatmul.mubr.bf16.gmra.mrb[0].mxu0 %v7137
    %v7590 = vpop.f32.mrb[0].mxu0
    %v7591 = vadd.f32 %v7462, %v7590
    %v7592 = vpop.f32.mrb[0].mxu0
    %v7593 = vpop.f32.mrb[0].mxu0
    %v7594 = vadd.f32 %v7465, %v7593
    %v7595 = vpop.f32.mrb[0].mxu0
    %7596 = vmatprep.mubr.bf16.mxu0 %v7142
    %7597 = vmatmul.mubr.bf16.gmra.mrb[0].mxu0 %v7141
    %v7598 = vpop.f32.mrb[0].mxu0
    %v7599 = vadd.f32 %v7470, %v7598
    %v7600 = vpop.f32.mrb[0].mxu0
    %v7601 = vpop.f32.mrb[0].mxu0
    %v7602 = vadd.f32 %v7473, %v7601
    %v7603 = vpop.f32.mrb[0].mxu0
    %7604 = vmatprep.mubr.bf16.mxu0 %v7146
    %7605 = vmatmul.mubr.bf16.gmra.mrb[0].mxu0 %v7145
    %v7606 = vpop.f32.mrb[0].mxu0
    %v7607 = vadd.f32 %v7478, %v7606
    %v7608 = vpop.f32.mrb[0].mxu0
    %v7609 = vpop.f32.mrb[0].mxu0
    %v7610 = vadd.f32 %v7481, %v7609
    %v7611 = vpop.f32.mrb[0].mxu0
    %7612 = vmatprep.mubr.bf16.mxu0 %v7150
    %7613 = vmatmul.mubr.bf16.gmra.mrb[0].mxu0 %v7149
    %v7614 = vpop.f32.mrb[0].mxu0
    %v7615 = vadd.f32 %v7486, %v7614
    %v7616 = vpop.f32.mrb[0].mxu0
    %v7617 = vpop.f32.mrb[0].mxu0
    %v7618 = vadd.f32 %v7489, %v7617
    %v7619 = vpop.f32.mrb[0].mxu0
    %7620 = vmatprep.mubr.bf16.mxu0 %v7154
    %7621 = vmatmul.mubr.bf16.gmra.mrb[0].mxu0 %v7153
    %v7622 = vpop.f32.mrb[0].mxu0
    %v7623 = vadd.f32 %v7494, %v7622
    %v7624 = vpop.f32.mrb[0].mxu0
    %v7625 = vpop.f32.mrb[0].mxu0
    %v7626 = vadd.f32 %v7497, %v7625
    %v7627 = vpop.f32.mrb[0].mxu0
    %7628 = vmatprep.mubr.bf16.mxu0 %v7158
    %7629 = vmatmul.mubr.bf16.gmra.mrb[0].mxu0 %v7157
    %v7630 = vpop.f32.mrb[0].mxu0
    %v7631 = vadd.f32 %v7502, %v7630
    %v7632 = vpop.f32.mrb[0].mxu0
    %v7633 = vpop.f32.mrb[0].mxu0
    %v7634 = vadd.f32 %v7505, %v7633
    %v7635 = vpop.f32.mrb[0].mxu0
    %7636 = vmatprep.mubr.bf16.mxu0 %v7162
    %7637 = vmatmul.mubr.bf16.gmra.mrb[0].mxu0 %v7161
    %v7638 = vpop.f32.mrb[0].mxu0
    %v7639 = vadd.f32 %v7510, %v7638
    %v7640 = vpop.f32.mrb[0].mxu0
    %v7641 = vpop.f32.mrb[0].mxu0
    %v7642 = vadd.f32 %v7513, %v7641
    %v7643 = vpop.f32.mrb[0].mxu0
    %7644 = vmatprep.mubr.bf16.mxu0 %v7166
    %7645 = vmatmul.mubr.bf16.gmra.mrb[0].mxu0 %v7165
    %v7646 = vpop.f32.mrb[0].mxu0
    %v7647 = vadd.f32 %v7518, %v7646
    %v7648 = vpop.f32.mrb[0].mxu0
    %v7649 = vpop.f32.mrb[0].mxu0
    %v7650 = vadd.f32 %v7521, %v7649
    %v7651 = vpop.f32.mrb[0].mxu0
    %7652 = vmatprep.mubr.bf16.mxu0 %v7170
    %7653 = vmatmul.mubr.bf16.gmra.mrb[0].mxu0 %v7169
    %v7654 = vpop.f32.mrb[0].mxu0
    %v7655 = vadd.f32 %v7526, %v7654
    %v7656 = vpop.f32.mrb[0].mxu0
    %v7657 = vpop.f32.mrb[0].mxu0
    %v7658 = vadd.f32 %v7529, %v7657
    %v7659 = vpop.f32.mrb[0].mxu0
    %7660 = vmatprep.mubr.bf16.mxu0 %v7174
    %7661 = vmatmul.mubr.bf16.gmra.mrb[0].mxu0 %v7173
    %v7662 = vpop.f32.mrb[0].mxu0
    %v7663 = vadd.f32 %v7534, %v7662
    %v7664 = vpop.f32.mrb[0].mxu0
    %v7665 = vpop.f32.mrb[0].mxu0
    %v7666 = vadd.f32 %v7537, %v7665
    %v7667 = vpop.f32.mrb[0].mxu0
    %7668 = vmatprep.mubr.bf16.mxu0 %v7178
    %7669 = vmatmul.mubr.bf16.gmra.mrb[0].mxu0 %v7177
    %v7670 = vpop.f32.mrb[0].mxu0
    %v7671 = vadd.f32 %v7542, %v7670
    %v7672 = vpop.f32.mrb[0].mxu0
    %v7673 = vpop.f32.mrb[0].mxu0
    %v7674 = vadd.f32 %v7545, %v7673
    %v7675 = vpop.f32.mrb[0].mxu0
    %7676 = vdwg.mxu0
    %v7677 = vmax.f32 %v7583, 0.0
    %v7678 = vmax.f32 %v7586, 0.0
    %v7679 = vmax.f32 %v7591, 0.0
    %v7680 = vmax.f32 %v7594, 0.0
    %v7681 = vmax.f32 %v7599, 0.0
    %v7682 = vmax.f32 %v7602, 0.0
    %v7683 = vmax.f32 %v7607, 0.0
    %v7684 = vmax.f32 %v7610, 0.0
    %v7685 = vmax.f32 %v7615, 0.0
    %v7686 = vmax.f32 %v7618, 0.0
    %v7687 = vmax.f32 %v7623, 0.0
    %v7688 = vmax.f32 %v7626, 0.0
    %v7689 = vmax.f32 %v7631, 0.0
    %v7690 = vmax.f32 %v7634, 0.0
    %v7691 = vmax.f32 %v7639, 0.0
    %v7692 = vmax.f32 %v7642, 0.0
    %v7693 = vmax.f32 %v7647, 0.0
    %v7694 = vmax.f32 %v7650, 0.0
    %v7695 = vmax.f32 %v7655, 0.0
    %v7696 = vmax.f32 %v7658, 0.0
    %v7697 = vmax.f32 %v7663, 0.0
    %v7698 = vmax.f32 %v7666, 0.0
    %v7699 = vmax.f32 %v7671, 0.0
    %v7700 = vmax.f32 %v7674, 0.0
    %v7701 = vlaneseq
    %v7702 = vshrl.u32 %v7701, 7
    %v7703 = vadd.s32 %v7702, 8
    %v7704 = vadd.s32 %v7702, 16
    %vm7705 = vcmp.lt.s32.totalorder %v7702, 19
    %vm7706 = vcmp.lt.s32.totalorder %v7703, 19
    %vm7707 = vcmp.lt.s32.totalorder %v7704, 19
    %v7708 = vsel %vm7705, 1, 0
    %v7709 = vsel %vm7706, 1, 0
    %v7710 = vsel %vm7707, 1, 0
    %vm7711 = vcmp.eq.s32.totalorder %v7708, 1
    %vm7712 = vcmp.eq.s32.totalorder %v7709, 1
    %vm7713 = vcmp.eq.s32.totalorder %v7710, 1
    %v7714 = vsel %vm7711, %v7677, 0.0
    %v7715 = vsel %vm7712, %v7678, 0.0
    %v7716 = vsel %vm7713, %v7679, 0.0
    %v7717 = vsel %vm7711, %v7680, 0.0
    %v7718 = vsel %vm7712, %v7681, 0.0
    %v7719 = vsel %vm7713, %v7682, 0.0
    %v7720 = vsel %vm7711, %v7683, 0.0
    %v7721 = vsel %vm7712, %v7684, 0.0
    %v7722 = vsel %vm7713, %v7685, 0.0
    %v7723 = vsel %vm7711, %v7686, 0.0
    %v7724 = vsel %vm7712, %v7687, 0.0
    %v7725 = vsel %vm7713, %v7688, 0.0
    %v7726 = vsel %vm7711, %v7689, 0.0
    %v7727 = vsel %vm7712, %v7690, 0.0
    %v7728 = vsel %vm7713, %v7691, 0.0
    %v7729 = vsel %vm7711, %v7692, 0.0
    %v7730 = vsel %vm7712, %v7693, 0.0
    %v7731 = vsel %vm7713, %v7694, 0.0
    %v7732 = vsel %vm7711, %v7695, 0.0
    %v7733 = vsel %vm7712, %v7696, 0.0
    %v7734 = vsel %vm7713, %v7697, 0.0
    %v7735 = vsel %vm7711, %v7698, 0.0
    %v7736 = vsel %vm7712, %v7699, 0.0
    %v7737 = vsel %vm7713, %v7700, 0.0
    %v7738 = vmax.f32 %v7714, %v7715
    %v7739 = vmax.f32 %v7738, %v7716
    %v7740 = vrot.slane %v7739, 4
    %v7741 = vmax.f32 %v7739, %v7740
    %v7742 = vrot.slane %v7741, 2
    %v7743 = vmax.f32 %v7741, %v7742
    %v7744 = vrot.slane %v7743, 1
    %v7745 = vmax.f32 %v7743, %v7744
    %v7746 = vmax.f32 %v7717, %v7718
    %v7747 = vmax.f32 %v7746, %v7719
    %v7748 = vrot.slane %v7747, 4
    %v7749 = vmax.f32 %v7747, %v7748
    %v7750 = vrot.slane %v7749, 2
    %v7751 = vmax.f32 %v7749, %v7750
    %v7752 = vrot.slane %v7751, 1
    %v7753 = vmax.f32 %v7751, %v7752
    %v7754 = vmax.f32 %v7720, %v7721
    %v7755 = vmax.f32 %v7754, %v7722
    %v7756 = vrot.slane %v7755, 4
    %v7757 = vmax.f32 %v7755, %v7756
    %v7758 = vrot.slane %v7757, 2
    %v7759 = vmax.f32 %v7757, %v7758
    %v7760 = vrot.slane %v7759, 1
    %v7761 = vmax.f32 %v7759, %v7760
    %v7762 = vmax.f32 %v7723, %v7724
    %v7763 = vmax.f32 %v7762, %v7725
    %v7764 = vrot.slane %v7763, 4
    %v7765 = vmax.f32 %v7763, %v7764
    %v7766 = vrot.slane %v7765, 2
    %v7767 = vmax.f32 %v7765, %v7766
    %v7768 = vrot.slane %v7767, 1
    %v7769 = vmax.f32 %v7767, %v7768
    %v7770 = vmax.f32 %v7726, %v7727
    %v7771 = vmax.f32 %v7770, %v7728
    %v7772 = vrot.slane %v7771, 4
    %v7773 = vmax.f32 %v7771, %v7772
    %v7774 = vrot.slane %v7773, 2
    %v7775 = vmax.f32 %v7773, %v7774
    %v7776 = vrot.slane %v7775, 1
    %v7777 = vmax.f32 %v7775, %v7776
    %v7778 = vmax.f32 %v7729, %v7730
    %v7779 = vmax.f32 %v7778, %v7731
    %v7780 = vrot.slane %v7779, 4
    %v7781 = vmax.f32 %v7779, %v7780
    %v7782 = vrot.slane %v7781, 2
    %v7783 = vmax.f32 %v7781, %v7782
    %v7784 = vrot.slane %v7783, 1
    %v7785 = vmax.f32 %v7783, %v7784
    %v7786 = vmax.f32 %v7732, %v7733
    %v7787 = vmax.f32 %v7786, %v7734
    %v7788 = vrot.slane %v7787, 4
    %v7789 = vmax.f32 %v7787, %v7788
    %v7790 = vrot.slane %v7789, 2
    %v7791 = vmax.f32 %v7789, %v7790
    %v7792 = vrot.slane %v7791, 1
    %v7793 = vmax.f32 %v7791, %v7792
    %v7794 = vmax.f32 %v7735, %v7736
    %v7795 = vmax.f32 %v7794, %v7737
    %v7796 = vrot.slane %v7795, 4
    %v7797 = vmax.f32 %v7795, %v7796
    %v7798 = vrot.slane %v7797, 2
    %v7799 = vmax.f32 %v7797, %v7798
    %v7800 = vrot.slane %v7799, 1
    %v7801 = vmax.f32 %v7799, %v7800
    %vm7810 = vcmask 1041409
    %v7811 = vsel %vm7810, %v7753, %v7745
    %vm7812 = vcmask 1042434
    %v7813 = vsel %vm7812, %v7761, %v7811
    %vm7814 = vcmask 1043459
    %v7815 = vsel %vm7814, %v7769, %v7813
    %vm7816 = vcmask 1044484
    %v7817 = vsel %vm7816, %v7777, %v7815
    %vm7818 = vcmask 1045509
    %v7819 = vsel %vm7818, %v7785, %v7817
    %vm7820 = vcmask 1046534
    %v7821 = vsel %vm7820, %v7793, %v7819
    %vm7822 = vcmask 1047559
    %v7823 = vsel %vm7822, %v7801, %v7821
    %7825 = vst [vmem:[#allocation4] sm:$0xff] %v7823
    // Predicated region
    $region30: #{tpu_custom_call.1} parent=1 // pred_check
      _
    $region31: #{tpu_custom_call.1} parent=1 // pred_check_branch
      %7827 = sbr.rel (0) target = $region33
    $region32: #{tpu_custom_call.1} parent=1 // pred_region
      %s7829 = ssub.s32 128, 128
      %7830 = vsyncadd [#allocation5], %s7829
      %s7832 = sshll.u32 [#allocation4], 4
      %s7833 = int_to_ptr.vmem [resolvable:$true] %s7832
      %7835 = dma.vmem_to_hbm [thread:$0]  %s7833, 128, %s7, [#allocation5]
    $region33: #{tpu_custom_call.1} parent=1 // pred_fallthru
      _
    // Predicated region
    $region34: #{tpu_custom_call.1} parent=1 // pred_check
      _
    $region35: #{tpu_custom_call.1} parent=1 // pred_check_branch
      %7837 = sbr.rel (0) target = $region37
    $region36: #{tpu_custom_call.1} parent=1 // pred_region
      %7838 = dma.done [#allocation5], 128
    $region37: #{tpu_custom_call.1} parent=1 // pred_fallthru
      _
    %7839 = vsyncpa [#allocation5], 1

</llo_original>
